<compile_context>
chip_gen: v7x
topology: tpu7x:2x2x1
jax: 0.10.0
libtpu: 0.0.40
codegen_flags: <defaults>
</compile_context>

<pallas_src>
import functools

import jax
import jax.numpy as jnp
from jax.experimental import pallas as pl
from jax.experimental.pallas import tpu as pltpu


# ---------------------------------------------------------------------------
# Pallas kernel 1: tiled matmul + bias (+ReLU) with f32 accumulator
# ---------------------------------------------------------------------------
def _mm_kernel(a_ref, w_ref, b_ref, o_ref, acc_ref, *, relu):
    @pl.when(pl.program_id(2) == 0)
    def _init():
        acc_ref[...] = jnp.zeros_like(acc_ref)

    acc_ref[...] += jnp.dot(a_ref[...], w_ref[...],
                            preferred_element_type=jnp.float32)

    @pl.when(pl.program_id(2) == pl.num_programs(2) - 1)
    def _finalize():
        r = acc_ref[...] + b_ref[...]            # (1, TN) broadcasts over rows
        if relu:
            r = jnp.maximum(r, 0.0)
        o_ref[...] = r.astype(o_ref.dtype)


def matmul_bias_act(a, w, b, *, relu, out_dtype, tm=256):
    """a: (M, K) bf16, w: (K, N) bf16, b: (1, N) f32 -> (M, N) out_dtype."""
    M, K = a.shape
    Kw, N = w.shape
    assert K == Kw and b.shape == (1, N)

    TM = M if M <= tm else tm                    # full dim (<=tm) or 256 (mult of 8)
    TN = N                                       # all N here are <= 256: one tile
    TK = K                                       # full-K unless large & 128-divisible
    if K > 1024:
        for cand in (512, 384, 256):
            if K % cand == 0:
                TK = cand
                break
    grid = (pl.cdiv(M, TM), pl.cdiv(N, TN), pl.cdiv(K, TK))

    return pl.pallas_call(
        functools.partial(_mm_kernel, relu=relu),
        out_shape=jax.ShapeDtypeStruct((M, N), out_dtype),
        grid_spec=pltpu.PrefetchScalarGridSpec(
            num_scalar_prefetch=0,
            grid=grid,
            in_specs=[
                pl.BlockSpec((TM, TK), lambda i, j, k: (i, k)),
                pl.BlockSpec((TK, TN), lambda i, j, k: (k, j)),
                pl.BlockSpec((1, TN), lambda i, j, k: (0, j)),
            ],
            out_specs=pl.BlockSpec((TM, TN), lambda i, j, k: (i, j)),
            scratch_shapes=[pltpu.VMEM((TM, TN), jnp.float32)],
        ),
        compiler_params=pltpu.CompilerParams(
            dimension_semantics=("parallel", "parallel", "arbitrary")),
    )(a, w, b)


# ---------------------------------------------------------------------------
# Pallas kernel 2: single-input 2x2 max-pool (stride 2, floor mode)
# ---------------------------------------------------------------------------
def _maxpool2x2_kernel(x_ref, o_ref):
    tb, ho, wo, c = x_ref.shape
    hp, wp = ho // 2, wo // 2
    # W-direction: strided ref loads along the sublane dim (even / odd cols).
    even = x_ref[:, :, pl.ds(0, wp, 2), :]       # (tb, ho, wp, c)
    odd = x_ref[:, :, pl.ds(1, wp, 2), :]
    m = jnp.maximum(even, odd)
    # H-direction: crop odd tail + split a leading dim (no relayout).
    m = m[:, :2 * hp, :, :].reshape(tb, hp, 2, wp, c)
    o_ref[...] = jnp.maximum(m[:, :, 0], m[:, :, 1]).astype(o_ref.dtype)


def maxpool2x2(x, out_dtype):
    """x: (B, H, W, C) f32 -> (B, H//2, W//2, C) out_dtype."""
    B, Ho, Wo, C = x.shape
    Hp, Wp = Ho // 2, Wo // 2
    tb = next(t for t in (8, 4, 2, 1) if B % t == 0)
    return pl.pallas_call(
        _maxpool2x2_kernel,
        out_shape=jax.ShapeDtypeStruct((B, Hp, Wp, C), out_dtype),
        grid_spec=pltpu.PrefetchScalarGridSpec(
            num_scalar_prefetch=0,
            grid=(B // tb,),
            in_specs=[pl.BlockSpec((tb, Ho, Wo, C), lambda i: (i, 0, 0, 0))],
            out_specs=pl.BlockSpec((tb, Hp, Wp, C), lambda i: (i, 0, 0, 0)),
        ),
        compiler_params=pltpu.CompilerParams(dimension_semantics=("parallel",)),
    )(x)


# ---------------------------------------------------------------------------
# Pallas kernel 3: fused tail  out = y3 @ W_img + vec @ W_vec + b
# (conv4 + AvgPool2d + Conv1d + concat + Linear, pre-composed into 2 matmuls)
# ---------------------------------------------------------------------------
def _tail_kernel(a1_ref, w1_ref, a2_ref, w2_ref, b_ref, o_ref):
    acc = jnp.dot(a1_ref[...], w1_ref[...], preferred_element_type=jnp.float32)
    acc += jnp.dot(a2_ref[...].astype(jnp.bfloat16), w2_ref[...],
                   preferred_element_type=jnp.float32)
    o_ref[...] = (acc + b_ref[...]).astype(o_ref.dtype)


def tail_matmul(a1, w1, a2, w2, b, *, tm=256):
    B, K1 = a1.shape
    K2 = a2.shape[1]
    N = w1.shape[1]
    TM = B if B <= tm else tm
    return pl.pallas_call(
        _tail_kernel,
        out_shape=jax.ShapeDtypeStruct((B, N), jnp.float32),
        grid_spec=pltpu.PrefetchScalarGridSpec(
            num_scalar_prefetch=0,
            grid=(pl.cdiv(B, TM),),
            in_specs=[
                pl.BlockSpec((TM, K1), lambda i: (i, 0)),
                pl.BlockSpec((K1, N), lambda i: (0, 0)),
                pl.BlockSpec((TM, K2), lambda i: (i, 0)),
                pl.BlockSpec((K2, N), lambda i: (0, 0)),
                pl.BlockSpec((1, N), lambda i: (0, 0)),
            ],
            out_specs=pl.BlockSpec((TM, N), lambda i: (i, 0)),
        ),
        compiler_params=pltpu.CompilerParams(dimension_semantics=("parallel",)),
    )(a1, w1, a2, w2, b)


# ---------------------------------------------------------------------------
# Wrapper-side glue (weight prep is one-time / weight-only; reshapes are free)
# ---------------------------------------------------------------------------
def _im2col(x, kh, kw, out_dtype):
    """x: (B,H,W,C) -> (B*Ho*Wo, kh*kw*C) in patch order (kh, kw, C)."""
    B, H, W, C = x.shape
    Ho, Wo = H - kh + 1, W - kw + 1
    patches = [x[:, i:i + Ho, j:j + Wo, :] for i in range(kh) for j in range(kw)]
    p = jnp.stack(patches, axis=3)                       # (B, Ho, Wo, kh*kw, C)
    return p.reshape(B * Ho * Wo, kh * kw * C).astype(out_dtype), (B, Ho, Wo)


def _conv_w(w):
    # PyTorch (O, Cin, kh, kw) -> (kh*kw*Cin, O) bf16, matching im2col order.
    O, Cin, kh, kw = w.shape
    return jnp.transpose(w, (2, 3, 1, 0)).reshape(kh * kw * Cin, O).astype(jnp.bfloat16)


def _precompose_tail(params):
    """Fold conv4 + AvgPool2d(2) + Conv1d + concat + Linear into two matrices."""
    f32 = jnp.float32
    w4 = params["c4_w"].astype(f32)          # (256, 256, 3, 3)
    b4 = params["c4_b"].astype(f32)          # (256,)
    fcw = params["fc_w"].astype(f32)         # (5, 554)
    fcb = params["fc_b"].astype(f32)         # (5,)
    w1d = params["conv1d_w"].astype(f32)     # (1, 5, 3)
    b1d = params["conv1d_b"].astype(f32)     # (1,)
    fcw_img, fcw_vec = fcw[:, :256], fcw[:, 256:]

    # Image branch: fc_img o (avgpool o conv4) applied to y3 (B, 4, 4, 256).
    g = jnp.einsum("ro,ocij->rcij", fcw_img, w4)          # (5, 256, 3, 3)
    A = jnp.zeros((5, 4, 4, 256), f32)
    gt = jnp.transpose(g, (0, 2, 3, 1))                    # (5, 3, 3, 256)
    for p in range(2):
        for q in range(2):
            A = A.at[:, p:p + 3, q:q + 3, :].add(0.25 * gt)
    w_img = A.reshape(5, 4 * 4 * 256).T                    # (4096, 5)

    # Vec branch: fc_vec o conv1d applied to vec (B, 5, 300).
    Bm = jnp.zeros((5, 5, 300), f32)
    for k in range(3):
        Bm = Bm.at[:, :, k:k + 298].add(
            fcw_vec[:, None, :] * w1d[0, :, k][None, :, None])
    w_vec = Bm.reshape(5, 5 * 300).T                       # (1500, 5)

    b_tail = fcb + fcw_img @ b4 + fcw_vec.sum(axis=1) * b1d[0]
    return (w_img.astype(jnp.bfloat16), w_vec.astype(jnp.bfloat16),
            b_tail.reshape(1, 5))


# ---------------------------------------------------------------------------
# Semantic_Net forward
# ---------------------------------------------------------------------------
def semantic_net_forward(params, img, vec):
    assert img.shape[1:] == (3, 32, 32) and vec.shape[1:] == (5, 300)
    f32, bf16 = jnp.float32, jnp.bfloat16
    B = img.shape[0]

    w1 = _conv_w(params["c1_w"])
    w2 = _conv_w(params["c2_w"])
    w3 = _conv_w(params["c3_w"])
    b1 = params["c1_b"].astype(f32).reshape(1, -1)
    b2 = params["c2_b"].astype(f32).reshape(1, -1)
    b3 = params["c3_b"].astype(f32).reshape(1, -1)
    w_img, w_vec, b_tail = _precompose_tail(params)

    x = jnp.transpose(img, (0, 2, 3, 1)).astype(f32)            # NCHW -> NHWC

    a, (_, H1, W1) = _im2col(x, 3, 3, bf16)                     # (B*900, 27)
    y = matmul_bias_act(a, w1, b1, relu=True, out_dtype=f32)    # (B*900, 64)
    y = maxpool2x2(y.reshape(B, H1, W1, 64), bf16)              # (B,15,15,64)

    a, (_, H2, W2) = _im2col(y, 3, 3, bf16)                     # (B*169, 576)
    y = matmul_bias_act(a, w2, b2, relu=True, out_dtype=f32)    # (B*169, 128)
    y = maxpool2x2(y.reshape(B, H2, W2, 128), bf16)             # (B,6,6,128)

    a, (_, H3, W3) = _im2col(y, 3, 3, bf16)                     # (B*16, 1152)
    y3 = matmul_bias_act(a, w3, b3, relu=True, out_dtype=bf16)  # (B*16, 256)

    out = tail_matmul(y3.reshape(B, H3 * W3 * 256), w_img,
                      vec.reshape(B, 5 * 300), w_vec, b_tail)   # (B, 5) f32
    return out


# ---------------------------------------------------------------------------
# Deterministic parameter init (PyTorch-default-style uniform bounds)
# ---------------------------------------------------------------------------
def init_params(key):
    keys = jax.random.split(key, 12)

    def u(k, shape, fan_in):
        bound = 1.0 / float(fan_in) ** 0.5
        return jax.random.uniform(k, shape, jnp.float32, -bound, bound)

    return {
        "c1_w": u(keys[0], (64, 3, 3, 3), 3 * 9),
        "c1_b": u(keys[1], (64,), 3 * 9),
        "c2_w": u(keys[2], (128, 64, 3, 3), 64 * 9),
        "c2_b": u(keys[3], (128,), 64 * 9),
        "c3_w": u(keys[4], (256, 128, 3, 3), 128 * 9),
        "c3_b": u(keys[5], (256,), 128 * 9),
        "c4_w": u(keys[6], (256, 256, 3, 3), 256 * 9),
        "c4_b": u(keys[7], (256,), 256 * 9),
        "fc_w": u(keys[8], (5, 554), 554),
        "fc_b": u(keys[9], (5,), 554),
        "conv1d_w": u(keys[10], (1, 5, 3), 5 * 3),
        "conv1d_b": u(keys[11], (1,), 5 * 3),
    }


if __name__ == "__main__":
    key = jax.random.PRNGKey(0)
    k_img, k_vec, k_params = jax.random.split(key, 3)
    B = 2
    # Shapes are dictated by the module: img 32x32 so features flatten to 256,
    # vec length 300 so Conv1d output length is 298 (256 + 298 = 554 = Linear in).
    img = jax.random.normal(k_img, (B, 3, 32, 32), jnp.float32)
    vec = jax.random.normal(k_vec, (B, 5, 300), jnp.float32)
    params = init_params(k_params)

    fwd = jax.jit(semantic_net_forward)
    out = fwd(params, img, vec)
    jax.block_until_ready(out)
    assert out.shape == (B, 5) and out.dtype == jnp.float32
    print("KERNEL_OK")
</pallas_src>

<mosaic_0001>
module attributes {stable_mosaic.version = 11 : i64} {
  func.func @_mm_kernel(%arg0: i32, %arg1: i32, %arg2: i32, %arg3: memref<256x27xbf16, #tpu.memory_space<vmem>>, %arg4: memref<27x64xbf16, #tpu.memory_space<vmem>>, %arg5: memref<1x64xf32, #tpu.memory_space<vmem>>, %arg6: memref<256x64xf32, #tpu.memory_space<vmem>>, %arg7: memref<256x64xf32, #tpu.memory_space<vmem>>) attributes {dimension_semantics = [#tpu.dimension_semantics<parallel>, #tpu.dimension_semantics<parallel>, #tpu.dimension_semantics<arbitrary>], iteration_bounds = array<i64: 8, 1, 1>, scalar_prefetch = 0 : i64, scratch_operands = 1 : i64, tpu.core_type = #tpu.core_type<tc>, window_params = [{transform_indices = @transform_0, window_bounds = array<i64: 256, 27>}, {transform_indices = @transform_1, window_bounds = array<i64: 27, 64>}, {transform_indices = @transform_2, window_bounds = array<i64: 1, 64>}, {transform_indices = @transform_3, window_bounds = array<i64: 256, 64>}]} {
    %c0_i32 = arith.constant 0 : i32
    %0 = arith.cmpi eq, %arg2, %c0_i32 : i32
    %1 = arith.extui %0 : i1 to i32
    %c0_i32_0 = arith.constant 0 : i32
    %2 = arith.cmpi ne, %1, %c0_i32_0 : i32
    scf.if %2 {
      %cst_10 = arith.constant 0.000000e+00 : f32
      %12 = vector.broadcast %cst_10 : f32 to vector<256x64xf32>
      %c0_11 = arith.constant 0 : index
      %c0_12 = arith.constant 0 : index
      %13 = vector.load %arg7[%c0_11, %c0_12] : memref<256x64xf32, #tpu.memory_space<vmem>>, vector<256x64xf32>
      tpu.vector_store %arg7[%c0_11, %c0_12], %12 {strides = array<i32>} : memref<256x64xf32, #tpu.memory_space<vmem>>, vector<256x64xf32>,
    } else {
    }
    %c0 = arith.constant 0 : index
    %c0_1 = arith.constant 0 : index
    %3 = vector.load %arg7[%c0, %c0_1] : memref<256x64xf32, #tpu.memory_space<vmem>>, vector<256x64xf32>
    %c0_2 = arith.constant 0 : index
    %c0_3 = arith.constant 0 : index
    %4 = vector.load %arg3[%c0_2, %c0_3] : memref<256x27xbf16, #tpu.memory_space<vmem>>, vector<256x27xbf16>
    %c0_4 = arith.constant 0 : index
    %c0_5 = arith.constant 0 : index
    %5 = vector.load %arg4[%c0_4, %c0_5] : memref<27x64xbf16, #tpu.memory_space<vmem>>, vector<27x64xbf16>
    %cst = arith.constant dense<0.000000e+00> : vector<256x64xf32>
    %6 = tpu.matmul %4, %5, %cst {dimension_numbers = #tpu.dot_dimension_numbers<[1], [0], [0], [1], [0, 0, 1, 1], [], []>} : vector<256x27xbf16>, vector<27x64xbf16>, vector<256x64xf32> -> vector<256x64xf32>
    %7 = arith.addf %3, %6 : vector<256x64xf32>
    %c0_6 = arith.constant 0 : index
    %c0_7 = arith.constant 0 : index
    %8 = vector.load %arg7[%c0_6, %c0_7] : memref<256x64xf32, #tpu.memory_space<vmem>>, vector<256x64xf32>
    tpu.vector_store %arg7[%c0_6, %c0_7], %7 {strides = array<i32>} : memref<256x64xf32, #tpu.memory_space<vmem>>, vector<256x64xf32>,
    %c0_i32_8 = arith.constant 0 : i32
    %9 = arith.cmpi eq, %arg2, %c0_i32_8 : i32
    %10 = arith.extui %9 : i1 to i32
    %c0_i32_9 = arith.constant 0 : i32
    %11 = arith.cmpi ne, %10, %c0_i32_9 : i32
    scf.if %11 {
      %c0_10 = arith.constant 0 : index
      %c0_11 = arith.constant 0 : index
      %12 = vector.load %arg7[%c0_10, %c0_11] : memref<256x64xf32, #tpu.memory_space<vmem>>, vector<256x64xf32>
      %c0_12 = arith.constant 0 : index
      %c0_13 = arith.constant 0 : index
      %13 = vector.load %arg5[%c0_12, %c0_13] : memref<1x64xf32, #tpu.memory_space<vmem>>, vector<1x64xf32>
      %14 = vector.broadcast %13 : vector<1x64xf32> to vector<256x64xf32>
      %15 = arith.addf %12, %14 : vector<256x64xf32>
      %cst_14 = arith.constant 0.000000e+00 : f32
      %16 = vector.broadcast %cst_14 : f32 to vector<256x64xf32>
      %17 = arith.maximumf %15, %16 : vector<256x64xf32>
      %c0_15 = arith.constant 0 : index
      %c0_16 = arith.constant 0 : index
      %18 = vector.load %arg6[%c0_15, %c0_16] : memref<256x64xf32, #tpu.memory_space<vmem>>, vector<256x64xf32>
      tpu.vector_store %arg6[%c0_15, %c0_16], %17 {strides = array<i32>} : memref<256x64xf32, #tpu.memory_space<vmem>>, vector<256x64xf32>,
    } else {
    }
    return
  }
  func.func @transform_0(%arg0: i32, %arg1: i32, %arg2: i32) -> (i32, i32) {
    %c0_i32 = arith.constant 0 : i32
    return %arg0, %arg2 : i32, i32
  }
  func.func @transform_1(%arg0: i32, %arg1: i32, %arg2: i32) -> (i32, i32) {
    %c0_i32 = arith.constant 0 : i32
    return %arg2, %arg1 : i32, i32
  }
  func.func @transform_2(%arg0: i32, %arg1: i32, %arg2: i32) -> (i32, i32) {
    %c0_i32 = arith.constant 0 : i32
    %c0_i32_0 = arith.constant 0 : i32
    return %c0_i32, %arg1 : i32, i32
  }
  func.func @transform_3(%arg0: i32, %arg1: i32, %arg2: i32) -> (i32, i32) {
    %c0_i32 = arith.constant 0 : i32
    return %arg0, %arg1 : i32, i32
  }
}

module attributes {stable_mosaic.version = 11 : i64} {
  func.func @_maxpool2x2_kernel(%arg0: i32, %arg1: memref<2x30x30x64xf32, #tpu.memory_space<vmem>>, %arg2: memref<2x15x15x64xbf16, #tpu.memory_space<vmem>>) attributes {dimension_semantics = [#tpu.dimension_semantics<parallel>], iteration_bounds = array<i64: 1>, scalar_prefetch = 0 : i64, scratch_operands = 0 : i64, tpu.core_type = #tpu.core_type<tc>, window_params = [{transform_indices = @transform_0, window_bounds = array<i64: 2, 30, 30, 64>}, {transform_indices = @transform_1, window_bounds = array<i64: 2, 15, 15, 64>}]} {
    %c0 = arith.constant 0 : index
    %c0_0 = arith.constant 0 : index
    %c0_1 = arith.constant 0 : index
    %c0_2 = arith.constant 0 : index
    %0 = tpu.strided_load %arg1[%c0, %c0_0, %c0_1, %c0_2] {strides = array<i32: 1, 1, 2, 1>} : memref<2x30x30x64xf32, #tpu.memory_space<vmem>>, vector<2x30x15x64xf32>
    %c0_3 = arith.constant 0 : index
    %c0_4 = arith.constant 0 : index
    %c1 = arith.constant 1 : index
    %c0_5 = arith.constant 0 : index
    %1 = tpu.strided_load %arg1[%c0_3, %c0_4, %c1, %c0_5] {strides = array<i32: 1, 1, 2, 1>} : memref<2x30x30x64xf32, #tpu.memory_space<vmem>>, vector<2x30x15x64xf32>
    %2 = arith.maximumf %0, %1 : vector<2x30x15x64xf32>
    %3 = vector.shape_cast %2 : vector<2x30x15x64xf32> to vector<2x15x2x15x64xf32>
    %4 = vector.extract_strided_slice %3 {offsets = [0, 0, 0, 0, 0], sizes = [2, 15, 1, 15, 64], strides = [1, 1, 1, 1, 1]} : vector<2x15x2x15x64xf32> to vector<2x15x1x15x64xf32>
    %5 = vector.shape_cast %4 : vector<2x15x1x15x64xf32> to vector<2x15x15x64xf32>
    %6 = vector.extract_strided_slice %3 {offsets = [0, 0, 1, 0, 0], sizes = [2, 15, 1, 15, 64], strides = [1, 1, 1, 1, 1]} : vector<2x15x2x15x64xf32> to vector<2x15x1x15x64xf32>
    %7 = vector.shape_cast %6 : vector<2x15x1x15x64xf32> to vector<2x15x15x64xf32>
    %8 = arith.maximumf %5, %7 : vector<2x15x15x64xf32>
    %9 = arith.truncf %8 : vector<2x15x15x64xf32> to vector<2x15x15x64xbf16>
    %c0_6 = arith.constant 0 : index
    %c0_7 = arith.constant 0 : index
    %c0_8 = arith.constant 0 : index
    %c0_9 = arith.constant 0 : index
    %10 = vector.load %arg2[%c0_6, %c0_7, %c0_8, %c0_9] : memref<2x15x15x64xbf16, #tpu.memory_space<vmem>>, vector<2x15x15x64xbf16>
    tpu.vector_store %arg2[%c0_6, %c0_7, %c0_8, %c0_9], %9 {strides = array<i32>} : memref<2x15x15x64xbf16, #tpu.memory_space<vmem>>, vector<2x15x15x64xbf16>,
    return
  }
  func.func @transform_0(%arg0: i32) -> (i32, i32, i32, i32) {
    %c0_i32 = arith.constant 0 : i32
    %c0_i32_0 = arith.constant 0 : i32
    %c0_i32_1 = arith.constant 0 : i32
    %c0_i32_2 = arith.constant 0 : i32
    return %arg0, %c0_i32, %c0_i32_0, %c0_i32_1 : i32, i32, i32, i32
  }
  func.func @transform_1(%arg0: i32) -> (i32, i32, i32, i32) {
    %c0_i32 = arith.constant 0 : i32
    %c0_i32_0 = arith.constant 0 : i32
    %c0_i32_1 = arith.constant 0 : i32
    %c0_i32_2 = arith.constant 0 : i32
    return %arg0, %c0_i32, %c0_i32_0, %c0_i32_1 : i32, i32, i32, i32
  }
}

module attributes {stable_mosaic.version = 11 : i64} {
  func.func @_mm_kernel(%arg0: i32, %arg1: i32, %arg2: i32, %arg3: memref<256x576xbf16, #tpu.memory_space<vmem>>, %arg4: memref<576x128xbf16, #tpu.memory_space<vmem>>, %arg5: memref<1x128xf32, #tpu.memory_space<vmem>>, %arg6: memref<256x128xf32, #tpu.memory_space<vmem>>, %arg7: memref<256x128xf32, #tpu.memory_space<vmem>>) attributes {dimension_semantics = [#tpu.dimension_semantics<parallel>, #tpu.dimension_semantics<parallel>, #tpu.dimension_semantics<arbitrary>], iteration_bounds = array<i64: 2, 1, 1>, scalar_prefetch = 0 : i64, scratch_operands = 1 : i64, tpu.core_type = #tpu.core_type<tc>, window_params = [{transform_indices = @transform_0, window_bounds = array<i64: 256, 576>}, {transform_indices = @transform_1, window_bounds = array<i64: 576, 128>}, {transform_indices = @transform_2, window_bounds = array<i64: 1, 128>}, {transform_indices = @transform_3, window_bounds = array<i64: 256, 128>}]} {
    %c0_i32 = arith.constant 0 : i32
    %0 = arith.cmpi eq, %arg2, %c0_i32 : i32
    %1 = arith.extui %0 : i1 to i32
    %c0_i32_0 = arith.constant 0 : i32
    %2 = arith.cmpi ne, %1, %c0_i32_0 : i32
    scf.if %2 {
      %cst_10 = arith.constant 0.000000e+00 : f32
      %12 = vector.broadcast %cst_10 : f32 to vector<256x128xf32>
      %c0_11 = arith.constant 0 : index
      %c0_12 = arith.constant 0 : index
      %13 = vector.load %arg7[%c0_11, %c0_12] : memref<256x128xf32, #tpu.memory_space<vmem>>, vector<256x128xf32>
      tpu.vector_store %arg7[%c0_11, %c0_12], %12 {strides = array<i32>} : memref<256x128xf32, #tpu.memory_space<vmem>>, vector<256x128xf32>,
    } else {
    }
    %c0 = arith.constant 0 : index
    %c0_1 = arith.constant 0 : index
    %3 = vector.load %arg7[%c0, %c0_1] : memref<256x128xf32, #tpu.memory_space<vmem>>, vector<256x128xf32>
    %c0_2 = arith.constant 0 : index
    %c0_3 = arith.constant 0 : index
    %4 = vector.load %arg3[%c0_2, %c0_3] : memref<256x576xbf16, #tpu.memory_space<vmem>>, vector<256x576xbf16>
    %c0_4 = arith.constant 0 : index
    %c0_5 = arith.constant 0 : index
    %5 = vector.load %arg4[%c0_4, %c0_5] : memref<576x128xbf16, #tpu.memory_space<vmem>>, vector<576x128xbf16>
    %cst = arith.constant dense<0.000000e+00> : vector<256x128xf32>
    %6 = tpu.matmul %4, %5, %cst {dimension_numbers = #tpu.dot_dimension_numbers<[1], [0], [0], [1], [0, 0, 1, 1], [], []>} : vector<256x576xbf16>, vector<576x128xbf16>, vector<256x128xf32> -> vector<256x128xf32>
    %7 = arith.addf %3, %6 : vector<256x128xf32>
    %c0_6 = arith.constant 0 : index
    %c0_7 = arith.constant 0 : index
    %8 = vector.load %arg7[%c0_6, %c0_7] : memref<256x128xf32, #tpu.memory_space<vmem>>, vector<256x128xf32>
    tpu.vector_store %arg7[%c0_6, %c0_7], %7 {strides = array<i32>} : memref<256x128xf32, #tpu.memory_space<vmem>>, vector<256x128xf32>,
    %c0_i32_8 = arith.constant 0 : i32
    %9 = arith.cmpi eq, %arg2, %c0_i32_8 : i32
    %10 = arith.extui %9 : i1 to i32
    %c0_i32_9 = arith.constant 0 : i32
    %11 = arith.cmpi ne, %10, %c0_i32_9 : i32
    scf.if %11 {
      %c0_10 = arith.constant 0 : index
      %c0_11 = arith.constant 0 : index
      %12 = vector.load %arg7[%c0_10, %c0_11] : memref<256x128xf32, #tpu.memory_space<vmem>>, vector<256x128xf32>
      %c0_12 = arith.constant 0 : index
      %c0_13 = arith.constant 0 : index
      %13 = vector.load %arg5[%c0_12, %c0_13] : memref<1x128xf32, #tpu.memory_space<vmem>>, vector<1x128xf32>
      %14 = vector.broadcast %13 : vector<1x128xf32> to vector<256x128xf32>
      %15 = arith.addf %12, %14 : vector<256x128xf32>
      %cst_14 = arith.constant 0.000000e+00 : f32
      %16 = vector.broadcast %cst_14 : f32 to vector<256x128xf32>
      %17 = arith.maximumf %15, %16 : vector<256x128xf32>
      %c0_15 = arith.constant 0 : index
      %c0_16 = arith.constant 0 : index
      %18 = vector.load %arg6[%c0_15, %c0_16] : memref<256x128xf32, #tpu.memory_space<vmem>>, vector<256x128xf32>
      tpu.vector_store %arg6[%c0_15, %c0_16], %17 {strides = array<i32>} : memref<256x128xf32, #tpu.memory_space<vmem>>, vector<256x128xf32>,
    } else {
    }
    return
  }
  func.func @transform_0(%arg0: i32, %arg1: i32, %arg2: i32) -> (i32, i32) {
    %c0_i32 = arith.constant 0 : i32
    return %arg0, %arg2 : i32, i32
  }
  func.func @transform_1(%arg0: i32, %arg1: i32, %arg2: i32) -> (i32, i32) {
    %c0_i32 = arith.constant 0 : i32
    return %arg2, %arg1 : i32, i32
  }
  func.func @transform_2(%arg0: i32, %arg1: i32, %arg2: i32) -> (i32, i32) {
    %c0_i32 = arith.constant 0 : i32
    %c0_i32_0 = arith.constant 0 : i32
    return %c0_i32, %arg1 : i32, i32
  }
  func.func @transform_3(%arg0: i32, %arg1: i32, %arg2: i32) -> (i32, i32) {
    %c0_i32 = arith.constant 0 : i32
    return %arg0, %arg1 : i32, i32
  }
}

module attributes {stable_mosaic.version = 11 : i64} {
  func.func @_maxpool2x2_kernel(%arg0: i32, %arg1: memref<2x13x13x128xf32, #tpu.memory_space<vmem>>, %arg2: memref<2x6x6x128xbf16, #tpu.memory_space<vmem>>) attributes {dimension_semantics = [#tpu.dimension_semantics<parallel>], iteration_bounds = array<i64: 1>, scalar_prefetch = 0 : i64, scratch_operands = 0 : i64, tpu.core_type = #tpu.core_type<tc>, window_params = [{transform_indices = @transform_0, window_bounds = array<i64: 2, 13, 13, 128>}, {transform_indices = @transform_1, window_bounds = array<i64: 2, 6, 6, 128>}]} {
    %c0 = arith.constant 0 : index
    %c0_0 = arith.constant 0 : index
    %c0_1 = arith.constant 0 : index
    %c0_2 = arith.constant 0 : index
    %0 = tpu.strided_load %arg1[%c0, %c0_0, %c0_1, %c0_2] {strides = array<i32: 1, 1, 2, 1>} : memref<2x13x13x128xf32, #tpu.memory_space<vmem>>, vector<2x13x6x128xf32>
    %c0_3 = arith.constant 0 : index
    %c0_4 = arith.constant 0 : index
    %c1 = arith.constant 1 : index
    %c0_5 = arith.constant 0 : index
    %1 = tpu.strided_load %arg1[%c0_3, %c0_4, %c1, %c0_5] {strides = array<i32: 1, 1, 2, 1>} : memref<2x13x13x128xf32, #tpu.memory_space<vmem>>, vector<2x13x6x128xf32>
    %2 = arith.maximumf %0, %1 : vector<2x13x6x128xf32>
    %3 = vector.extract_strided_slice %2 {offsets = [0, 0, 0, 0], sizes = [2, 12, 6, 128], strides = [1, 1, 1, 1]} : vector<2x13x6x128xf32> to vector<2x12x6x128xf32>
    %4 = vector.shape_cast %3 : vector<2x12x6x128xf32> to vector<2x6x2x6x128xf32>
    %5 = vector.extract_strided_slice %4 {offsets = [0, 0, 0, 0, 0], sizes = [2, 6, 1, 6, 128], strides = [1, 1, 1, 1, 1]} : vector<2x6x2x6x128xf32> to vector<2x6x1x6x128xf32>
    %6 = vector.shape_cast %5 : vector<2x6x1x6x128xf32> to vector<2x6x6x128xf32>
    %7 = vector.extract_strided_slice %4 {offsets = [0, 0, 1, 0, 0], sizes = [2, 6, 1, 6, 128], strides = [1, 1, 1, 1, 1]} : vector<2x6x2x6x128xf32> to vector<2x6x1x6x128xf32>
    %8 = vector.shape_cast %7 : vector<2x6x1x6x128xf32> to vector<2x6x6x128xf32>
    %9 = arith.maximumf %6, %8 : vector<2x6x6x128xf32>
    %10 = arith.truncf %9 : vector<2x6x6x128xf32> to vector<2x6x6x128xbf16>
    %c0_6 = arith.constant 0 : index
    %c0_7 = arith.constant 0 : index
    %c0_8 = arith.constant 0 : index
    %c0_9 = arith.constant 0 : index
    %11 = vector.load %arg2[%c0_6, %c0_7, %c0_8, %c0_9] : memref<2x6x6x128xbf16, #tpu.memory_space<vmem>>, vector<2x6x6x128xbf16>
    tpu.vector_store %arg2[%c0_6, %c0_7, %c0_8, %c0_9], %10 {strides = array<i32>} : memref<2x6x6x128xbf16, #tpu.memory_space<vmem>>, vector<2x6x6x128xbf16>,
    return
  }
  func.func @transform_0(%arg0: i32) -> (i32, i32, i32, i32) {
    %c0_i32 = arith.constant 0 : i32
    %c0_i32_0 = arith.constant 0 : i32
    %c0_i32_1 = arith.constant 0 : i32
    %c0_i32_2 = arith.constant 0 : i32
    return %arg0, %c0_i32, %c0_i32_0, %c0_i32_1 : i32, i32, i32, i32
  }
  func.func @transform_1(%arg0: i32) -> (i32, i32, i32, i32) {
    %c0_i32 = arith.constant 0 : i32
    %c0_i32_0 = arith.constant 0 : i32
    %c0_i32_1 = arith.constant 0 : i32
    %c0_i32_2 = arith.constant 0 : i32
    return %arg0, %c0_i32, %c0_i32_0, %c0_i32_1 : i32, i32, i32, i32
  }
}

module attributes {stable_mosaic.version = 11 : i64} {
  func.func @_mm_kernel(%arg0: i32, %arg1: i32, %arg2: i32, %arg3: memref<32x384xbf16, #tpu.memory_space<vmem>>, %arg4: memref<384x256xbf16, #tpu.memory_space<vmem>>, %arg5: memref<1x256xf32, #tpu.memory_space<vmem>>, %arg6: memref<32x256xbf16, #tpu.memory_space<vmem>>, %arg7: memref<32x256xf32, #tpu.memory_space<vmem>>) attributes {dimension_semantics = [#tpu.dimension_semantics<parallel>, #tpu.dimension_semantics<parallel>, #tpu.dimension_semantics<arbitrary>], iteration_bounds = array<i64: 1, 1, 3>, scalar_prefetch = 0 : i64, scratch_operands = 1 : i64, tpu.core_type = #tpu.core_type<tc>, window_params = [{transform_indices = @transform_0, window_bounds = array<i64: 32, 384>}, {transform_indices = @transform_1, window_bounds = array<i64: 384, 256>}, {transform_indices = @transform_2, window_bounds = array<i64: 1, 256>}, {transform_indices = @transform_3, window_bounds = array<i64: 32, 256>}]} {
    %c0_i32 = arith.constant 0 : i32
    %0 = arith.cmpi eq, %arg2, %c0_i32 : i32
    %1 = arith.extui %0 : i1 to i32
    %c0_i32_0 = arith.constant 0 : i32
    %2 = arith.cmpi ne, %1, %c0_i32_0 : i32
    scf.if %2 {
      %cst_9 = arith.constant 0.000000e+00 : f32
      %12 = vector.broadcast %cst_9 : f32 to vector<32x256xf32>
      %c0_10 = arith.constant 0 : index
      %c0_11 = arith.constant 0 : index
      %13 = vector.load %arg7[%c0_10, %c0_11] : memref<32x256xf32, #tpu.memory_space<vmem>>, vector<32x256xf32>
      tpu.vector_store %arg7[%c0_10, %c0_11], %12 {strides = array<i32>} : memref<32x256xf32, #tpu.memory_space<vmem>>, vector<32x256xf32>,
    } else {
    }
    %c0 = arith.constant 0 : index
    %c0_1 = arith.constant 0 : index
    %3 = vector.load %arg7[%c0, %c0_1] : memref<32x256xf32, #tpu.memory_space<vmem>>, vector<32x256xf32>
    %c0_2 = arith.constant 0 : index
    %c0_3 = arith.constant 0 : index
    %4 = vector.load %arg3[%c0_2, %c0_3] : memref<32x384xbf16, #tpu.memory_space<vmem>>, vector<32x384xbf16>
    %c0_4 = arith.constant 0 : index
    %c0_5 = arith.constant 0 : index
    %5 = vector.load %arg4[%c0_4, %c0_5] : memref<384x256xbf16, #tpu.memory_space<vmem>>, vector<384x256xbf16>
    %cst = arith.constant dense<0.000000e+00> : vector<32x256xf32>
    %6 = tpu.matmul %4, %5, %cst {dimension_numbers = #tpu.dot_dimension_numbers<[1], [0], [0], [1], [0, 0, 1, 1], [], []>} : vector<32x384xbf16>, vector<384x256xbf16>, vector<32x256xf32> -> vector<32x256xf32>
    %7 = arith.addf %3, %6 : vector<32x256xf32>
    %c0_6 = arith.constant 0 : index
    %c0_7 = arith.constant 0 : index
    %8 = vector.load %arg7[%c0_6, %c0_7] : memref<32x256xf32, #tpu.memory_space<vmem>>, vector<32x256xf32>
    tpu.vector_store %arg7[%c0_6, %c0_7], %7 {strides = array<i32>} : memref<32x256xf32, #tpu.memory_space<vmem>>, vector<32x256xf32>,
    %c2_i32 = arith.constant 2 : i32
    %9 = arith.cmpi eq, %arg2, %c2_i32 : i32
    %10 = arith.extui %9 : i1 to i32
    %c0_i32_8 = arith.constant 0 : i32
    %11 = arith.cmpi ne, %10, %c0_i32_8 : i32
    scf.if %11 {
      %c0_9 = arith.constant 0 : index
      %c0_10 = arith.constant 0 : index
      %12 = vector.load %arg7[%c0_9, %c0_10] : memref<32x256xf32, #tpu.memory_space<vmem>>, vector<32x256xf32>
      %c0_11 = arith.constant 0 : index
      %c0_12 = arith.constant 0 : index
      %13 = vector.load %arg5[%c0_11, %c0_12] : memref<1x256xf32, #tpu.memory_space<vmem>>, vector<1x256xf32>
      %14 = vector.broadcast %13 : vector<1x256xf32> to vector<32x256xf32>
      %15 = arith.addf %12, %14 : vector<32x256xf32>
      %cst_13 = arith.constant 0.000000e+00 : f32
      %16 = vector.broadcast %cst_13 : f32 to vector<32x256xf32>
      %17 = arith.maximumf %15, %16 : vector<32x256xf32>
      %18 = arith.truncf %17 : vector<32x256xf32> to vector<32x256xbf16>
      %c0_14 = arith.constant 0 : index
      %c0_15 = arith.constant 0 : index
      %19 = vector.load %arg6[%c0_14, %c0_15] : memref<32x256xbf16, #tpu.memory_space<vmem>>, vector<32x256xbf16>
      tpu.vector_store %arg6[%c0_14, %c0_15], %18 {strides = array<i32>} : memref<32x256xbf16, #tpu.memory_space<vmem>>, vector<32x256xbf16>,
    } else {
    }
    return
  }
  func.func @transform_0(%arg0: i32, %arg1: i32, %arg2: i32) -> (i32, i32) {
    %c0_i32 = arith.constant 0 : i32
    return %arg0, %arg2 : i32, i32
  }
  func.func @transform_1(%arg0: i32, %arg1: i32, %arg2: i32) -> (i32, i32) {
    %c0_i32 = arith.constant 0 : i32
    return %arg2, %arg1 : i32, i32
  }
  func.func @transform_2(%arg0: i32, %arg1: i32, %arg2: i32) -> (i32, i32) {
    %c0_i32 = arith.constant 0 : i32
    %c0_i32_0 = arith.constant 0 : i32
    return %c0_i32, %arg1 : i32, i32
  }
  func.func @transform_3(%arg0: i32, %arg1: i32, %arg2: i32) -> (i32, i32) {
    %c0_i32 = arith.constant 0 : i32
    return %arg0, %arg1 : i32, i32
  }
}

module attributes {stable_mosaic.version = 11 : i64} {
  func.func @_tail_kernel(%arg0: i32, %arg1: memref<2x4096xbf16, #tpu.memory_space<vmem>>, %arg2: memref<4096x5xbf16, #tpu.memory_space<vmem>>, %arg3: memref<2x1500xf32, #tpu.memory_space<vmem>>, %arg4: memref<1500x5xbf16, #tpu.memory_space<vmem>>, %arg5: memref<1x5xf32, #tpu.memory_space<vmem>>, %arg6: memref<2x5xf32, #tpu.memory_space<vmem>>) attributes {dimension_semantics = [#tpu.dimension_semantics<parallel>], iteration_bounds = array<i64: 1>, scalar_prefetch = 0 : i64, scratch_operands = 0 : i64, tpu.core_type = #tpu.core_type<tc>, window_params = [{transform_indices = @transform_0, window_bounds = array<i64: 2, 4096>}, {pipeline_mode = #tpu.pipeline_mode<synchronous>, transform_indices = @transform_1, window_bounds = array<i64: 4096, 5>}, {transform_indices = @transform_2, window_bounds = array<i64: 2, 1500>}, {pipeline_mode = #tpu.pipeline_mode<synchronous>, transform_indices = @transform_3, window_bounds = array<i64: 1500, 5>}, {pipeline_mode = #tpu.pipeline_mode<synchronous>, transform_indices = @transform_4, window_bounds = array<i64: 1, 5>}, {transform_indices = @transform_5, window_bounds = array<i64: 2, 5>}]} {
    %c0 = arith.constant 0 : index
    %c0_0 = arith.constant 0 : index
    %0 = vector.load %arg1[%c0, %c0_0] : memref<2x4096xbf16, #tpu.memory_space<vmem>>, vector<2x4096xbf16>
    %c0_1 = arith.constant 0 : index
    %c0_2 = arith.constant 0 : index
    %1 = vector.load %arg2[%c0_1, %c0_2] : memref<4096x5xbf16, #tpu.memory_space<vmem>>, vector<4096x5xbf16>
    %cst = arith.constant dense<0.000000e+00> : vector<2x5xf32>
    %2 = tpu.matmul %0, %1, %cst {dimension_numbers = #tpu.dot_dimension_numbers<[1], [0], [0], [1], [0, 0, 1, 1], [], []>} : vector<2x4096xbf16>, vector<4096x5xbf16>, vector<2x5xf32> -> vector<2x5xf32>
    %c0_3 = arith.constant 0 : index
    %c0_4 = arith.constant 0 : index
    %3 = vector.load %arg3[%c0_3, %c0_4] : memref<2x1500xf32, #tpu.memory_space<vmem>>, vector<2x1500xf32>
    %4 = arith.truncf %3 : vector<2x1500xf32> to vector<2x1500xbf16>
    %c0_5 = arith.constant 0 : index
    %c0_6 = arith.constant 0 : index
    %5 = vector.load %arg4[%c0_5, %c0_6] : memref<1500x5xbf16, #tpu.memory_space<vmem>>, vector<1500x5xbf16>
    %cst_7 = arith.constant dense<0.000000e+00> : vector<2x5xf32>
    %6 = tpu.matmul %4, %5, %cst_7 {dimension_numbers = #tpu.dot_dimension_numbers<[1], [0], [0], [1], [0, 0, 1, 1], [], []>} : vector<2x1500xbf16>, vector<1500x5xbf16>, vector<2x5xf32> -> vector<2x5xf32>
    %7 = arith.addf %2, %6 : vector<2x5xf32>
    %c0_8 = arith.constant 0 : index
    %c0_9 = arith.constant 0 : index
    %8 = vector.load %arg5[%c0_8, %c0_9] : memref<1x5xf32, #tpu.memory_space<vmem>>, vector<1x5xf32>
    %9 = vector.broadcast %8 : vector<1x5xf32> to vector<2x5xf32>
    %10 = arith.addf %7, %9 : vector<2x5xf32>
    %c0_10 = arith.constant 0 : index
    %c0_11 = arith.constant 0 : index
    %11 = vector.load %arg6[%c0_10, %c0_11] : memref<2x5xf32, #tpu.memory_space<vmem>>, vector<2x5xf32>
    tpu.vector_store %arg6[%c0_10, %c0_11], %10 {strides = array<i32>} : memref<2x5xf32, #tpu.memory_space<vmem>>, vector<2x5xf32>,
    return
  }
  func.func @transform_0(%arg0: i32) -> (i32, i32) {
    %c0_i32 = arith.constant 0 : i32
    %c0_i32_0 = arith.constant 0 : i32
    return %arg0, %c0_i32 : i32, i32
  }
  func.func @transform_1(%arg0: i32) -> (i32, i32) {
    %c0_i32 = arith.constant 0 : i32
    %c0_i32_0 = arith.constant 0 : i32
    %c0_i32_1 = arith.constant 0 : i32
    return %c0_i32, %c0_i32_0 : i32, i32
  }
  func.func @transform_2(%arg0: i32) -> (i32, i32) {
    %c0_i32 = arith.constant 0 : i32
    %c0_i32_0 = arith.constant 0 : i32
    return %arg0, %c0_i32 : i32, i32
  }
  func.func @transform_3(%arg0: i32) -> (i32, i32) {
    %c0_i32 = arith.constant 0 : i32
    %c0_i32_0 = arith.constant 0 : i32
    %c0_i32_1 = arith.constant 0 : i32
    return %c0_i32, %c0_i32_0 : i32, i32
  }
  func.func @transform_4(%arg0: i32) -> (i32, i32) {
    %c0_i32 = arith.constant 0 : i32
    %c0_i32_0 = arith.constant 0 : i32
    %c0_i32_1 = arith.constant 0 : i32
    return %c0_i32, %c0_i32_0 : i32, i32
  }
  func.func @transform_5(%arg0: i32) -> (i32, i32) {
    %c0_i32 = arith.constant 0 : i32
    %c0_i32_0 = arith.constant 0 : i32
    return %arg0, %c0_i32 : i32, i32
  }
}

</mosaic_0001>

<llo_original>
// kernel: semantic_net_forward.6
$region0: #{semantic_net_forward.6}
  #allocation0 [shape = 'u32[]', space=smem, size = 0x4, offset = 0x4, fixed_abs, tag = 'smem constant byte address 0x4 - core index']
  #allocation1 [shape = 'u32[144,128]{1,0:T(1,128)}', space=vmem, size = 0x12000, scoped, tag = 'internal scratch']
  #allocation2 [shape = 'f32[256,64]{1,0:T(8,128)}', space=vmem, size = 0x20000, scoped, tag = 'scratch operand']
  %s0 = inlined_call_operand.vmem [shape: bf16[1800,27], index: 0, kind: input, shape index: {}]
  %s1 = inlined_call_operand.vmem [shape: bf16[27,64], index: 1, kind: input, shape index: {}]
  %s2 = inlined_call_operand.vmem [shape: f32[1,64], index: 2, kind: input, shape index: {}]
  %s3 = inlined_call_operand.vmem [shape: f32[1800,64], index: 3, kind: output, shape index: {}]
  %s4 = sld [smem:[#allocation0]]
  $region101: #{semantic_net_forward.6} parent=0
    _
  %s6 = ssub.s32 1, %s4
  %s7 = scalar_select 0, %s6, %s4
  $region1: #{semantic_net_forward.6} parent=0
    #allocation3 [shape = 'u8[262144]{0}', space=vmem, size = 0x40000, scoped, tag = 'output window, operand 0']
    loop: start=0, step=1, limit=10
    $region2: #{semantic_net_forward.6} parent=1 // loop_pre_header
      _
    $region3: #{semantic_net_forward.6} parent=1 // loop_header
      %s9 = sphi 0, %s13
      %p10 = scmp.ge.s32.totalorder %s9, 10
      %s16 = sphi 0, %s35
      %s17 = sphi 0, %s31
      %s18 = sphi 0, %s27
      %s19 = sphi 0, %s16
      %s20 = sphi 0, %s17
      %s21 = sphi 0, %s18
      %s22 = sphi 0, %s19
      %s23 = sphi 0, %s20
      %s24 = sphi 0, %s21
      %s40 = sphi 0, %s42
      %s43 = sphi 0, %s40
      %s44 = sphi 0, %s43
      %s60 = sphi 0, %s44
      %s68 = sphi 0, %s70
      %s71 = sphi 0, %s68
      %s72 = sphi 0, %s71
      %s88 = sphi 0, %s72
      %s94 = sphi 0, %s96
      %s97 = sphi 0, %s94
      %s98 = sphi 0, %s97
      %s114 = sphi 0, %s98
      %s122 = sphi 0, %s124
      %s125 = sphi 0, %s122
      %s126 = sphi 0, %s125
      %s142 = sphi 0, %s126
    $region4: #{semantic_net_forward.6} parent=1 // loop_header_branch
      %12 = sbr.rel (%p10) target = $region8
    $region5: #{semantic_net_forward.6} parent=1 // loop_body
      %s14 = ssub.s32 %s9, 1
      %s15 = ssub.s32 %s9, 2
      %s25 = sadd.s32 1, %s18
      %p26 = scmp.ge.s32.totalorder %s25, 1
      %s27 = scalar_select %p26, 0, %s25
      %s28 = sadd.s32 1, %s17
      %s29 = scalar_select %p26, %s28, %s17
      %p30 = scmp.ge.s32.totalorder %s29, 1
      %s31 = scalar_select %p30, 0, %s29
      %s32 = sadd.s32 1, %s16
      %s33 = scalar_select %p30, %s32, %s16
      %p34 = scmp.ge.s32.totalorder %s33, 8
      %s35 = scalar_select %p34, 0, %s33
      %s36 = ssub.s32 %s16, %s35
      %s37 = ssub.s32 %s18, %s27
      %s38 = sor.u32 %s36, %s37
      %p39 = scmp.eq.s32.totalorder %s38, 0
      %s41 = sadd.s32 %s40, 1
      %s42 = scalar_select %p39, %s40, %s41
      %p45 = pneg %p39
      %p46 = scmp.eq.s32.totalorder %s9, 7
      %p47 = por %p45, %p46
      %p48 = scmp.ne.s32.totalorder %s40, %s43
      %p49 = scmp.eq.s32.totalorder %s9, 0
      %p50 = por %p48, %p49
      %p51 = scmp.ne.s32.totalorder %s40, %s43
      %p52 = scmp.eq.s32.totalorder %s14, 7
      %p53 = por %p51, %p52
      %p54 = scmp.ne.s32.totalorder %s43, %s44
      %p55 = scmp.eq.s32.totalorder %s14, 0
      %p56 = por %p54, %p55
      %p57 = scmp.ne.s32.totalorder %s43, %s44
      %p58 = scmp.eq.s32.totalorder %s15, 7
      %p59 = por %p57, %p58
      %p61 = scmp.ne.s32.totalorder %s44, %s60
      %p62 = scmp.eq.s32.totalorder %s15, 0
      %p63 = por %p61, %p62
      %s64 = ssub.s32 %s18, %s27
      %s65 = ssub.s32 %s17, %s31
      %s66 = sor.u32 %s64, %s65
      %p67 = scmp.eq.s32.totalorder %s66, 0
      %s69 = sadd.s32 %s68, 1
      %s70 = scalar_select %p67, %s68, %s69
      %p73 = pneg %p67
      %p74 = scmp.eq.s32.totalorder %s9, 7
      %p75 = por %p73, %p74
      %p76 = scmp.ne.s32.totalorder %s68, %s71
      %p77 = scmp.eq.s32.totalorder %s9, 0
      %p78 = por %p76, %p77
      %p79 = scmp.ne.s32.totalorder %s68, %s71
      %p80 = scmp.eq.s32.totalorder %s14, 7
      %p81 = por %p79, %p80
      %p82 = scmp.ne.s32.totalorder %s71, %s72
      %p83 = scmp.eq.s32.totalorder %s14, 0
      %p84 = por %p82, %p83
      %p85 = scmp.ne.s32.totalorder %s71, %s72
      %p86 = scmp.eq.s32.totalorder %s15, 7
      %p87 = por %p85, %p86
      %p89 = scmp.ne.s32.totalorder %s72, %s88
      %p90 = scmp.eq.s32.totalorder %s15, 0
      %p91 = por %p89, %p90
      %s92 = ssub.s32 %s17, %s31
      %p93 = scmp.eq.s32.totalorder %s92, 0
      %s95 = sadd.s32 %s94, 1
      %s96 = scalar_select %p93, %s94, %s95
      %p99 = pneg %p93
      %p100 = scmp.eq.s32.totalorder %s9, 7
      %p101 = por %p99, %p100
      %p102 = scmp.ne.s32.totalorder %s94, %s97
      %p103 = scmp.eq.s32.totalorder %s9, 0
      %p104 = por %p102, %p103
      %p105 = scmp.ne.s32.totalorder %s94, %s97
      %p106 = scmp.eq.s32.totalorder %s14, 7
      %p107 = por %p105, %p106
      %p108 = scmp.ne.s32.totalorder %s97, %s98
      %p109 = scmp.eq.s32.totalorder %s14, 0
      %p110 = por %p108, %p109
      %p111 = scmp.ne.s32.totalorder %s97, %s98
      %p112 = scmp.eq.s32.totalorder %s15, 7
      %p113 = por %p111, %p112
      %p115 = scmp.ne.s32.totalorder %s98, %s114
      %p116 = scmp.eq.s32.totalorder %s15, 0
      %p117 = por %p115, %p116
      %s118 = ssub.s32 %s16, %s35
      %s119 = ssub.s32 %s17, %s31
      %s120 = sor.u32 %s118, %s119
      %p121 = scmp.eq.s32.totalorder %s120, 0
      %s123 = sadd.s32 %s122, 1
      %s124 = scalar_select %p121, %s122, %s123
      %p127 = pneg %p121
      %p128 = scmp.eq.s32.totalorder %s9, 7
      %p129 = por %p127, %p128
      %p130 = scmp.ne.s32.totalorder %s122, %s125
      %p131 = scmp.eq.s32.totalorder %s9, 0
      %p132 = por %p130, %p131
      %p133 = scmp.ne.s32.totalorder %s122, %s125
      %p134 = scmp.eq.s32.totalorder %s14, 7
      %p135 = por %p133, %p134
      %p136 = scmp.ne.s32.totalorder %s125, %s126
      %p137 = scmp.eq.s32.totalorder %s14, 0
      %p138 = por %p136, %p137
      %p139 = scmp.ne.s32.totalorder %s125, %s126
      %p140 = scmp.eq.s32.totalorder %s15, 7
      %p141 = por %p139, %p140
      %p143 = scmp.ne.s32.totalorder %s126, %s142
      %p144 = scmp.eq.s32.totalorder %s15, 0
      %p145 = por %p143, %p144
      %p146 = scmp.le.s32.totalorder 1, %s9
      %p147 = scmp.lt.s32.totalorder %s9, 9
      %p148 = pnand %p146, %p147
      %p149 = pneg %p148
      // Predicated region
      $region9: #{semantic_net_forward.6} parent=5 // pred_check
        _
      $region10: #{semantic_net_forward.6} parent=5 // pred_check_branch
        %151 = sbr.rel (%p148) target = $region12
      $region11: #{semantic_net_forward.6} parent=5 // pred_region
        %s152 = ssub.s32 %s9, 1
        // Predicated region
        $region13: #{semantic_net_forward.6} parent=11 // pred_check
          %p153 = pneg %p84
        $region14: #{semantic_net_forward.6} parent=11 // pred_check_branch
          %155 = sbr.rel (%p153) target = $region16
        $region15: #{semantic_net_forward.6} parent=11 // pred_region
          %s156 = smul.u32 4, %s21
          %p157 = scmp.lt.s32.totalorder %s156, 3
          %s158 = scalar_select %p157, %s156, 3
          %p159 = scmp.lt.s32.totalorder %s20, 0
          %s160 = scalar_select %p159, %s20, 0
          %s161 = sadd.s32 %s160, %s158
          %s162 = smul.addr %s161, 4
          %s163 = scalar_lea.vmem %s1, %s162
          %s164 = smul.u32 4, %s21
        $region16: #{semantic_net_forward.6} parent=11 // pred_fallthru
          _
        // Predicated region
        $region17: #{semantic_net_forward.6} parent=11 // pred_check
          %p165 = pneg %p110
        $region18: #{semantic_net_forward.6} parent=11 // pred_check_branch
          %167 = sbr.rel (%p165) target = $region20
        $region19: #{semantic_net_forward.6} parent=11 // pred_region
          %p168 = scmp.lt.s32.totalorder %s20, 0
          %s169 = scalar_select %p168, %s20, 0
          %s170 = scalar_lea.vmem %s2, %s169
        $region20: #{semantic_net_forward.6} parent=11 // pred_fallthru
          _
      $region12: #{semantic_net_forward.6} parent=5 // pred_fallthru
        _
      %p171 = scmp.lt.s32.totalorder %s9, 8
      // Predicated region
      $region21: #{semantic_net_forward.6} parent=5 // pred_check
        %p172 = pneg %p171
      $region22: #{semantic_net_forward.6} parent=5 // pred_check_branch
        %174 = sbr.rel (%p172) target = $region24
      $region23: #{semantic_net_forward.6} parent=5 // pred_region
        // Predicated region
        $region25: #{semantic_net_forward.6} parent=23 // pred_check
          %p175 = pneg %p50
        $region26: #{semantic_net_forward.6} parent=23 // pred_check_branch
          %177 = sbr.rel (%p175) target = $region28
        $region27: #{semantic_net_forward.6} parent=23 // pred_region
          %s178 = smul.u32 32, %s16
          %s179 = ssub.s32 225, %s178
          %p180 = scmp.lt.s32.totalorder %s179, 32
          %s181 = scalar_select %p180, %s179, 32
          %s182 = smul.u32 64, %s181
          %p183 = scmp.lt.s32.totalorder %s178, 224
          %s184 = scalar_select %p183, %s178, 224
          %p185 = scmp.lt.s32.totalorder %s18, 0
          %s186 = scalar_select %p185, %s18, 0
          %s187 = sadd.s32 %s186, %s184
          %s188 = smul.addr %s187, 4
          %s189 = scalar_lea.vmem %s0, %s188
          %s190 = smul.u32 32, %s16
          %s191 = ssub.s32 225, %s190
          %p192 = scmp.lt.s32.totalorder %s191, 32
          %s193 = scalar_select %p192, %s191, 32
          %s194 = smul.u32 64, %s193
        $region28: #{semantic_net_forward.6} parent=23 // pred_fallthru
          _
      $region24: #{semantic_net_forward.6} parent=5 // pred_fallthru
        _
      %p195 = scmp.le.s32.totalorder 1, %s9
      %p196 = scmp.lt.s32.totalorder %s9, 9
      %p197 = pnand %p195, %p196
      %p198 = pneg %p197
      // Predicated region
      $region29: #{semantic_net_forward.6} parent=5 // pred_check
        _
      $region30: #{semantic_net_forward.6} parent=5 // pred_check_branch
        %200 = sbr.rel (%p197) target = $region32
      $region31: #{semantic_net_forward.6} parent=5 // pred_region
        %s201 = ssub.s32 %s9, 1
        %s202 = smul.u32 32, %s19
        %s203 = ssub.s32 225, %s202
        %p204 = scmp.lt.s32.totalorder %s203, 32
        %s205 = scalar_select %p204, %s203, 32
        %s206 = smul.u32 64, %s205
        %p207 = scmp.lt.s32.totalorder %s202, 224
        %s208 = scalar_select %p207, %s202, 224
        %p209 = scmp.lt.s32.totalorder %s21, 0
        %s210 = scalar_select %p209, %s21, 0
        %s211 = sadd.s32 %s210, %s208
        %s212 = smul.addr %s211, 4
        %s213 = scalar_lea.vmem %s0, %s212
        %p214 = pneg %p56
        %p215 = pneg %p53
        %s216 = smul.u32 4, %s21
        %p217 = scmp.lt.s32.totalorder %s216, 3
        %s218 = scalar_select %p217, %s216, 3
        %p219 = scmp.lt.s32.totalorder %s20, 0
        %s220 = scalar_select %p219, %s20, 0
        %s221 = sadd.s32 %s220, %s218
        %s222 = smul.addr %s221, 4
        %s223 = scalar_lea.vmem %s1, %s222
        %p224 = pneg %p84
        %p225 = pneg %p81
        %p226 = scmp.lt.s32.totalorder %s20, 0
        %s227 = scalar_select %p226, %s20, 0
        %s228 = scalar_lea.vmem %s2, %s227
        %p229 = pneg %p110
        %p230 = pneg %p107
        %p231 = pneg %p138
        %p232 = pneg %p135
        %s233 = sand.u32 %s125, 1
        %s234 = sand.u32 %s125, 1
        %s235 = smul.addr %s234, 256
        %s236 = scalar_lea.vmem [#allocation3], %s235
        %s237 = smul.u32 32, %s19
        %s238 = ssub.s32 225, %s237
        %p239 = scmp.lt.s32.totalorder %s238, 32
        %s240 = scalar_select %p239, %s238, 32
        %s241 = smul.u32 64, %s240
        %p242 = scmp.lt.s32.totalorder %s237, 224
        %s243 = scalar_select %p242, %s237, 224
        %p244 = scmp.lt.s32.totalorder %s21, 0
        %s245 = scalar_select %p244, %s21, 0
        %s246 = sadd.s32 %s245, %s243
        %s247 = smul.addr %s246, 4
        %s248 = scalar_lea.vmem %s0, %s247
        %s249 = smul.u32 32, %s19
        %s250 = ssub.s32 225, %s249
        %p251 = scmp.lt.s32.totalorder %s250, 32
        %s252 = scalar_select %p251, %s250, 32
        %s253 = smul.u32 64, %s252
        %s254 = smul.u32 4, %s21
        %p255 = scmp.lt.s32.totalorder %s254, 3
        %s256 = scalar_select %p255, %s254, 3
        %p257 = scmp.lt.s32.totalorder %s20, 0
        %s258 = scalar_select %p257, %s20, 0
        %s259 = sadd.s32 %s258, %s256
        %s260 = smul.addr %s259, 4
        %s261 = scalar_lea.vmem %s1, %s260
        %s262 = smul.u32 4, %s21
        %p263 = scmp.lt.s32.totalorder %s20, 0
        %s264 = scalar_select %p263, %s20, 0
        %s265 = scalar_lea.vmem %s2, %s264
        %s266 = smul.u32 32, %s19
        %s267 = ssub.s32 225, %s266
        %p268 = scmp.lt.s32.totalorder %s267, 32
        %s269 = scalar_select %p268, %s267, 32
        %s270 = smul.u32 128, %s269
        %p272 = scmp.eq.s32.totalorder %s21, 0
        // Predicated region
        $region33: #{semantic_net_forward.6} parent=31 // pred_check
          %p273 = pneg %p272
        $region34: #{semantic_net_forward.6} parent=31 // pred_check_branch
          %275 = sbr.rel (%p273) target = $region36
        $region35: #{semantic_net_forward.6} parent=31 // pred_region
          %vm276 = vcmask 523264
          %277 = vst.msk [vmem:[#allocation2] sm:$0xff] %vm276, 0.0
          %278 = vst.msk [vmem:[#allocation2 + $0x8] sm:$0xff] %vm276, 0.0
          %279 = vst.msk [vmem:[#allocation2 + $0x10] sm:$0xff] %vm276, 0.0
          %280 = vst.msk [vmem:[#allocation2 + $0x18] sm:$0xff] %vm276, 0.0
          %281 = vst.msk [vmem:[#allocation2 + $0x20] sm:$0xff] %vm276, 0.0
          %282 = vst.msk [vmem:[#allocation2 + $0x28] sm:$0xff] %vm276, 0.0
          %283 = vst.msk [vmem:[#allocation2 + $0x30] sm:$0xff] %vm276, 0.0
          %284 = vst.msk [vmem:[#allocation2 + $0x38] sm:$0xff] %vm276, 0.0
          %285 = vst.msk [vmem:[#allocation2 + $0x40] sm:$0xff] %vm276, 0.0
          %286 = vst.msk [vmem:[#allocation2 + $0x48] sm:$0xff] %vm276, 0.0
          %287 = vst.msk [vmem:[#allocation2 + $0x50] sm:$0xff] %vm276, 0.0
          %288 = vst.msk [vmem:[#allocation2 + $0x58] sm:$0xff] %vm276, 0.0
          %289 = vst.msk [vmem:[#allocation2 + $0x60] sm:$0xff] %vm276, 0.0
          %290 = vst.msk [vmem:[#allocation2 + $0x68] sm:$0xff] %vm276, 0.0
          %291 = vst.msk [vmem:[#allocation2 + $0x70] sm:$0xff] %vm276, 0.0
          %292 = vst.msk [vmem:[#allocation2 + $0x78] sm:$0xff] %vm276, 0.0
          %293 = vst.msk [vmem:[#allocation2 + $0x80] sm:$0xff] %vm276, 0.0
          %294 = vst.msk [vmem:[#allocation2 + $0x88] sm:$0xff] %vm276, 0.0
          %295 = vst.msk [vmem:[#allocation2 + $0x90] sm:$0xff] %vm276, 0.0
          %296 = vst.msk [vmem:[#allocation2 + $0x98] sm:$0xff] %vm276, 0.0
          %297 = vst.msk [vmem:[#allocation2 + $0xa0] sm:$0xff] %vm276, 0.0
          %298 = vst.msk [vmem:[#allocation2 + $0xa8] sm:$0xff] %vm276, 0.0
          %299 = vst.msk [vmem:[#allocation2 + $0xb0] sm:$0xff] %vm276, 0.0
          %300 = vst.msk [vmem:[#allocation2 + $0xb8] sm:$0xff] %vm276, 0.0
          %301 = vst.msk [vmem:[#allocation2 + $0xc0] sm:$0xff] %vm276, 0.0
          %302 = vst.msk [vmem:[#allocation2 + $0xc8] sm:$0xff] %vm276, 0.0
          %303 = vst.msk [vmem:[#allocation2 + $0xd0] sm:$0xff] %vm276, 0.0
          %304 = vst.msk [vmem:[#allocation2 + $0xd8] sm:$0xff] %vm276, 0.0
          %305 = vst.msk [vmem:[#allocation2 + $0xe0] sm:$0xff] %vm276, 0.0
          %306 = vst.msk [vmem:[#allocation2 + $0xe8] sm:$0xff] %vm276, 0.0
          %307 = vst.msk [vmem:[#allocation2 + $0xf0] sm:$0xff] %vm276, 0.0
          %308 = vst.msk [vmem:[#allocation2 + $0xf8] sm:$0xff] %vm276, 0.0
        $region36: #{semantic_net_forward.6} parent=31 // pred_fallthru
          _
        %v309 = vld [vmem:[#allocation2] sm:$0xff]
        %v310 = vld [vmem:[#allocation2 + $0x8] sm:$0xff]
        %v311 = vld [vmem:[#allocation2 + $0x10] sm:$0xff]
        %v312 = vld [vmem:[#allocation2 + $0x18] sm:$0xff]
        %v313 = vld [vmem:[#allocation2 + $0x20] sm:$0xff]
        %v314 = vld [vmem:[#allocation2 + $0x28] sm:$0xff]
        %v315 = vld [vmem:[#allocation2 + $0x30] sm:$0xff]
        %v316 = vld [vmem:[#allocation2 + $0x38] sm:$0xff]
        %v317 = vld [vmem:[#allocation2 + $0x40] sm:$0xff]
        %v318 = vld [vmem:[#allocation2 + $0x48] sm:$0xff]
        %v319 = vld [vmem:[#allocation2 + $0x50] sm:$0xff]
        %v320 = vld [vmem:[#allocation2 + $0x58] sm:$0xff]
        %v321 = vld [vmem:[#allocation2 + $0x60] sm:$0xff]
        %v322 = vld [vmem:[#allocation2 + $0x68] sm:$0xff]
        %v323 = vld [vmem:[#allocation2 + $0x70] sm:$0xff]
        %v324 = vld [vmem:[#allocation2 + $0x78] sm:$0xff]
        %v325 = vld [vmem:[#allocation2 + $0x80] sm:$0xff]
        %v326 = vld [vmem:[#allocation2 + $0x88] sm:$0xff]
        %v327 = vld [vmem:[#allocation2 + $0x90] sm:$0xff]
        %v328 = vld [vmem:[#allocation2 + $0x98] sm:$0xff]
        %v329 = vld [vmem:[#allocation2 + $0xa0] sm:$0xff]
        %v330 = vld [vmem:[#allocation2 + $0xa8] sm:$0xff]
        %v331 = vld [vmem:[#allocation2 + $0xb0] sm:$0xff]
        %v332 = vld [vmem:[#allocation2 + $0xb8] sm:$0xff]
        %v333 = vld [vmem:[#allocation2 + $0xc0] sm:$0xff]
        %v334 = vld [vmem:[#allocation2 + $0xc8] sm:$0xff]
        %v335 = vld [vmem:[#allocation2 + $0xd0] sm:$0xff]
        %v336 = vld [vmem:[#allocation2 + $0xd8] sm:$0xff]
        %v337 = vld [vmem:[#allocation2 + $0xe0] sm:$0xff]
        %v338 = vld [vmem:[#allocation2 + $0xe8] sm:$0xff]
        %v339 = vld [vmem:[#allocation2 + $0xf0] sm:$0xff]
        %v340 = vld [vmem:[#allocation2 + $0xf8] sm:$0xff]
        %v341 = vld [vmem:[%s248] sm:$0xf]
        %v342 = vld [vmem:[%s248 + $0x4] sm:$0xf]
        %v343 = vld [vmem:[%s248 + $0x8] sm:$0xf]
        %v344 = vld [vmem:[%s248 + $0xc] sm:$0xf]
        %v345 = vld [vmem:[%s248 + $0x10] sm:$0xf]
        %v346 = vld [vmem:[%s248 + $0x14] sm:$0xf]
        %v347 = vld [vmem:[%s248 + $0x18] sm:$0xf]
        %v348 = vld [vmem:[%s248 + $0x1c] sm:$0xf]
        %v349 = vld [vmem:[%s248 + $0x20] sm:$0xf]
        %v350 = vld [vmem:[%s248 + $0x24] sm:$0xf]
        %v351 = vld [vmem:[%s248 + $0x28] sm:$0xf]
        %v352 = vld [vmem:[%s248 + $0x2c] sm:$0xf]
        %v353 = vld [vmem:[%s248 + $0x30] sm:$0xf]
        %v354 = vld [vmem:[%s248 + $0x34] sm:$0xf]
        %v355 = vld [vmem:[%s248 + $0x38] sm:$0xf]
        %v356 = vld [vmem:[%s248 + $0x3c] sm:$0xf]
        %v357 = vld [vmem:[%s248 + $0x40] sm:$0xf]
        %v358 = vld [vmem:[%s248 + $0x44] sm:$0xf]
        %v359 = vld [vmem:[%s248 + $0x48] sm:$0xf]
        %v360 = vld [vmem:[%s248 + $0x4c] sm:$0xf]
        %v361 = vld [vmem:[%s248 + $0x50] sm:$0xf]
        %v362 = vld [vmem:[%s248 + $0x54] sm:$0xf]
        %v363 = vld [vmem:[%s248 + $0x58] sm:$0xf]
        %v364 = vld [vmem:[%s248 + $0x5c] sm:$0xf]
        %v365 = vld [vmem:[%s248 + $0x60] sm:$0xf]
        %v366 = vld [vmem:[%s248 + $0x64] sm:$0xf]
        %v367 = vld [vmem:[%s248 + $0x68] sm:$0xf]
        %v368 = vld [vmem:[%s248 + $0x6c] sm:$0xf]
        %v369 = vld [vmem:[%s248 + $0x70] sm:$0xf]
        %v370 = vld [vmem:[%s248 + $0x74] sm:$0xf]
        %v371 = vld [vmem:[%s248 + $0x78] sm:$0xf]
        %v372 = vld [vmem:[%s248 + $0x7c] sm:$0xf]
        %v373 = vld [vmem:[%s261] sm:$0xf]
        %v374 = vld [vmem:[%s261 + $0x4] sm:$0xf]
        %v375 = vld [vmem:[%s261 + $0x8] sm:$0xf]
        %v376 = vld [vmem:[%s261 + $0xc] sm:$0x3]
        %v409 = vunpack.c.l.b16 %v341
        %v410 = vunpack.c.l.b16 %v342
        %v411 = vunpack.c.l.b16 %v343
        %v412 = vunpack.c.l.b16 %v344
        %v413 = vunpack.c.l.b16 %v345
        %v414 = vunpack.c.l.b16 %v346
        %v415 = vunpack.c.l.b16 %v347
        %v416 = vunpack.c.l.b16 %v348
        %v417 = vunpack.c.l.b16 %v349
        %v418 = vunpack.c.l.b16 %v350
        %v419 = vunpack.c.l.b16 %v351
        %v420 = vunpack.c.l.b16 %v352
        %v421 = vunpack.c.l.b16 %v353
        %v422 = vunpack.c.l.b16 %v354
        %v423 = vunpack.c.l.b16 %v355
        %v424 = vunpack.c.l.b16 %v356
        %v425 = vunpack.c.l.b16 %v357
        %v426 = vunpack.c.l.b16 %v358
        %v427 = vunpack.c.l.b16 %v359
        %v428 = vunpack.c.l.b16 %v360
        %v429 = vunpack.c.l.b16 %v361
        %v430 = vunpack.c.l.b16 %v362
        %v431 = vunpack.c.l.b16 %v363
        %v432 = vunpack.c.l.b16 %v364
        %v433 = vunpack.c.l.b16 %v365
        %v434 = vunpack.c.l.b16 %v366
        %v435 = vunpack.c.l.b16 %v367
        %v436 = vunpack.c.l.b16 %v368
        %v437 = vunpack.c.l.b16 %v369
        %v438 = vunpack.c.l.b16 %v370
        %v439 = vunpack.c.l.b16 %v371
        %v440 = vunpack.c.l.b16 %v372
        %v441 = vpack.c.b16 %v410, %v409
        %v442 = vpack.c.b16 %v412, %v411
        %v443 = vpack.c.b16 %v414, %v413
        %v444 = vpack.c.b16 %v416, %v415
        %v445 = vpack.c.b16 %v418, %v417
        %v446 = vpack.c.b16 %v420, %v419
        %v447 = vpack.c.b16 %v422, %v421
        %v448 = vpack.c.b16 %v424, %v423
        %v449 = vpack.c.b16 %v426, %v425
        %v450 = vpack.c.b16 %v428, %v427
        %v451 = vpack.c.b16 %v430, %v429
        %v452 = vpack.c.b16 %v432, %v431
        %v453 = vpack.c.b16 %v434, %v433
        %v454 = vpack.c.b16 %v436, %v435
        %v455 = vpack.c.b16 %v438, %v437
        %v456 = vpack.c.b16 %v440, %v439
        %v461 = vunpack.c.l.b16 %v373
        %v462 = vunpack.c.l.b16 %v374
        %v463 = vunpack.c.l.b16 %v375
        %v464 = vunpack.c.l.b16 %v376
        %v465 = vpack.c.b16 %v462, %v461
        %v466 = vpack.c.b16 %v464, %v463
        %vm468 = vcmask 220160
        %v470 = vsel %vm468, %v441, 0
        %v473 = vsel %vm468, %v442, 0
        %v476 = vsel %vm468, %v443, 0
        %v479 = vsel %vm468, %v444, 0
        %v482 = vsel %vm468, %v445, 0
        %v485 = vsel %vm468, %v446, 0
        %v488 = vsel %vm468, %v447, 0
        %v491 = vsel %vm468, %v448, 0
        %v494 = vsel %vm468, %v449, 0
        %v497 = vsel %vm468, %v450, 0
        %v500 = vsel %vm468, %v451, 0
        %v503 = vsel %vm468, %v452, 0
        %v506 = vsel %vm468, %v453, 0
        %v509 = vsel %vm468, %v454, 0
        %v512 = vsel %vm468, %v455, 0
        %v515 = vsel %vm468, %v456, 0
        %vm517 = vcmask 1044480
        %vm518 = vcmask 1045504
        %v519 = vsel %vm517, 4294967295, 65535
        %v520 = vsel %vm518, %v519, 0
        %v522 = vand.u32 %v466, %v520
        %524 = vmatprep.subr.bf16.mxu0 0
        %525 = vmatpush1.bf16.msra.mxu0 %v465
        %526 = vmatprep.subr.bf16.mxu0 0
        %527 = vmatpush1.bf16.msra.mxu0 %v522
        %528 = vmatprep.subr.bf16.mxu0 0
        %529 = vmatpush1.bf16.msra.mxu0 0
        %530 = vmatprep.subr.bf16.mxu0 0
        %531 = vmatpush1.bf16.msra.mxu0 0
        %532 = vmatprep.subr.bf16.mxu0 0
        %533 = vmatpush1.bf16.msra.mxu0 0
        %534 = vmatprep.subr.bf16.mxu0 0
        %535 = vmatpush1.bf16.msra.mxu0 0
        %536 = vmatprep.subr.bf16.mxu0 0
        %537 = vmatpush1.bf16.msra.mxu0 0
        %538 = vmatprep.subr.bf16.mxu0 0
        %539 = vmatpush1.bf16.msra.mxu0 0
        %540 = vmatprep.subr.bf16.mxu0 0
        %541 = vmatpush1.bf16.msra.mxu0 0
        %542 = vmatprep.subr.bf16.mxu0 0
        %543 = vmatpush1.bf16.msra.mxu0 0
        %544 = vmatprep.subr.bf16.mxu0 0
        %545 = vmatpush1.bf16.msra.mxu0 0
        %546 = vmatprep.subr.bf16.mxu0 0
        %547 = vmatpush1.bf16.msra.mxu0 0
        %548 = vmatprep.subr.bf16.mxu0 0
        %549 = vmatpush1.bf16.msra.mxu0 0
        %550 = vmatprep.subr.bf16.mxu0 0
        %551 = vmatpush1.bf16.msra.mxu0 0
        %552 = vmatprep.subr.bf16.mxu0 0
        %553 = vmatpush1.bf16.msra.mxu0 0
        %554 = vmatprep.subr.bf16.mxu0 0
        %555 = vmatpush1.bf16.msra.mxu0 0
        %556 = vmatprep.mubr.bf16.mxu0 0
        %557 = vmatmul.mubr.bf16.gmra.mrb[0].mxu0 %v470
        %v558 = vpop.f32.mrb[0].mxu0
        %v559 = vadd.f32 0.0, %v558
        %v560 = vpop.f32.mrb[0].mxu0
        %v561 = vpop.f32.mrb[0].mxu0
        %v562 = vadd.f32 0.0, %v561
        %v563 = vpop.f32.mrb[0].mxu0
        %564 = vmatprep.mubr.bf16.mxu0 0
        %565 = vmatmul.mubr.bf16.gmra.mrb[0].mxu0 %v473
        %v566 = vpop.f32.mrb[0].mxu0
        %v567 = vadd.f32 0.0, %v566
        %v568 = vpop.f32.mrb[0].mxu0
        %v569 = vpop.f32.mrb[0].mxu0
        %v570 = vadd.f32 0.0, %v569
        %v571 = vpop.f32.mrb[0].mxu0
        %572 = vmatprep.mubr.bf16.mxu0 0
        %573 = vmatmul.mubr.bf16.gmra.mrb[0].mxu0 %v476
        %v574 = vpop.f32.mrb[0].mxu0
        %v575 = vadd.f32 0.0, %v574
        %v576 = vpop.f32.mrb[0].mxu0
        %v577 = vpop.f32.mrb[0].mxu0
        %v578 = vadd.f32 0.0, %v577
        %v579 = vpop.f32.mrb[0].mxu0
        %580 = vmatprep.mubr.bf16.mxu0 0
        %581 = vmatmul.mubr.bf16.gmra.mrb[0].mxu0 %v479
        %v582 = vpop.f32.mrb[0].mxu0
        %v583 = vadd.f32 0.0, %v582
        %v584 = vpop.f32.mrb[0].mxu0
        %v585 = vpop.f32.mrb[0].mxu0
        %v586 = vadd.f32 0.0, %v585
        %v587 = vpop.f32.mrb[0].mxu0
        %588 = vmatprep.mubr.bf16.mxu0 0
        %589 = vmatmul.mubr.bf16.gmra.mrb[0].mxu0 %v482
        %v590 = vpop.f32.mrb[0].mxu0
        %v591 = vadd.f32 0.0, %v590
        %v592 = vpop.f32.mrb[0].mxu0
        %v593 = vpop.f32.mrb[0].mxu0
        %v594 = vadd.f32 0.0, %v593
        %v595 = vpop.f32.mrb[0].mxu0
        %596 = vmatprep.mubr.bf16.mxu0 0
        %597 = vmatmul.mubr.bf16.gmra.mrb[0].mxu0 %v485
        %v598 = vpop.f32.mrb[0].mxu0
        %v599 = vadd.f32 0.0, %v598
        %v600 = vpop.f32.mrb[0].mxu0
        %v601 = vpop.f32.mrb[0].mxu0
        %v602 = vadd.f32 0.0, %v601
        %v603 = vpop.f32.mrb[0].mxu0
        %604 = vmatprep.mubr.bf16.mxu0 0
        %605 = vmatmul.mubr.bf16.gmra.mrb[0].mxu0 %v488
        %v606 = vpop.f32.mrb[0].mxu0
        %v607 = vadd.f32 0.0, %v606
        %v608 = vpop.f32.mrb[0].mxu0
        %v609 = vpop.f32.mrb[0].mxu0
        %v610 = vadd.f32 0.0, %v609
        %v611 = vpop.f32.mrb[0].mxu0
        %612 = vmatprep.mubr.bf16.mxu0 0
        %613 = vmatmul.mubr.bf16.gmra.mrb[0].mxu0 %v491
        %v614 = vpop.f32.mrb[0].mxu0
        %v615 = vadd.f32 0.0, %v614
        %v616 = vpop.f32.mrb[0].mxu0
        %v617 = vpop.f32.mrb[0].mxu0
        %v618 = vadd.f32 0.0, %v617
        %v619 = vpop.f32.mrb[0].mxu0
        %620 = vmatprep.mubr.bf16.mxu0 0
        %621 = vmatmul.mubr.bf16.gmra.mrb[0].mxu0 %v494
        %v622 = vpop.f32.mrb[0].mxu0
        %v623 = vadd.f32 0.0, %v622
        %v624 = vpop.f32.mrb[0].mxu0
        %v625 = vpop.f32.mrb[0].mxu0
        %v626 = vadd.f32 0.0, %v625
        %v627 = vpop.f32.mrb[0].mxu0
        %628 = vmatprep.mubr.bf16.mxu0 0
        %629 = vmatmul.mubr.bf16.gmra.mrb[0].mxu0 %v497
        %v630 = vpop.f32.mrb[0].mxu0
        %v631 = vadd.f32 0.0, %v630
        %v632 = vpop.f32.mrb[0].mxu0
        %v633 = vpop.f32.mrb[0].mxu0
        %v634 = vadd.f32 0.0, %v633
        %v635 = vpop.f32.mrb[0].mxu0
        %636 = vmatprep.mubr.bf16.mxu0 0
        %637 = vmatmul.mubr.bf16.gmra.mrb[0].mxu0 %v500
        %v638 = vpop.f32.mrb[0].mxu0
        %v639 = vadd.f32 0.0, %v638
        %v640 = vpop.f32.mrb[0].mxu0
        %v641 = vpop.f32.mrb[0].mxu0
        %v642 = vadd.f32 0.0, %v641
        %v643 = vpop.f32.mrb[0].mxu0
        %644 = vmatprep.mubr.bf16.mxu0 0
        %645 = vmatmul.mubr.bf16.gmra.mrb[0].mxu0 %v503
        %v646 = vpop.f32.mrb[0].mxu0
        %v647 = vadd.f32 0.0, %v646
        %v648 = vpop.f32.mrb[0].mxu0
        %v649 = vpop.f32.mrb[0].mxu0
        %v650 = vadd.f32 0.0, %v649
        %v651 = vpop.f32.mrb[0].mxu0
        %652 = vmatprep.mubr.bf16.mxu0 0
        %653 = vmatmul.mubr.bf16.gmra.mrb[0].mxu0 %v506
        %v654 = vpop.f32.mrb[0].mxu0
        %v655 = vadd.f32 0.0, %v654
        %v656 = vpop.f32.mrb[0].mxu0
        %v657 = vpop.f32.mrb[0].mxu0
        %v658 = vadd.f32 0.0, %v657
        %v659 = vpop.f32.mrb[0].mxu0
        %660 = vmatprep.mubr.bf16.mxu0 0
        %661 = vmatmul.mubr.bf16.gmra.mrb[0].mxu0 %v509
        %v662 = vpop.f32.mrb[0].mxu0
        %v663 = vadd.f32 0.0, %v662
        %v664 = vpop.f32.mrb[0].mxu0
        %v665 = vpop.f32.mrb[0].mxu0
        %v666 = vadd.f32 0.0, %v665
        %v667 = vpop.f32.mrb[0].mxu0
        %668 = vmatprep.mubr.bf16.mxu0 0
        %669 = vmatmul.mubr.bf16.gmra.mrb[0].mxu0 %v512
        %v670 = vpop.f32.mrb[0].mxu0
        %v671 = vadd.f32 0.0, %v670
        %v672 = vpop.f32.mrb[0].mxu0
        %v673 = vpop.f32.mrb[0].mxu0
        %v674 = vadd.f32 0.0, %v673
        %v675 = vpop.f32.mrb[0].mxu0
        %676 = vmatprep.mubr.bf16.mxu0 0
        %677 = vmatmul.mubr.bf16.gmra.mrb[0].mxu0 %v515
        %v678 = vpop.f32.mrb[0].mxu0
        %v679 = vadd.f32 0.0, %v678
        %v680 = vpop.f32.mrb[0].mxu0
        %v681 = vpop.f32.mrb[0].mxu0
        %v682 = vadd.f32 0.0, %v681
        %v683 = vpop.f32.mrb[0].mxu0
        %684 = vdwg.mxu0
        %v685 = vadd.f32 %v309, %v559
        %v686 = vadd.f32 %v310, %v562
        %v687 = vadd.f32 %v311, %v567
        %v688 = vadd.f32 %v312, %v570
        %v689 = vadd.f32 %v313, %v575
        %v690 = vadd.f32 %v314, %v578
        %v691 = vadd.f32 %v315, %v583
        %v692 = vadd.f32 %v316, %v586
        %v693 = vadd.f32 %v317, %v591
        %v694 = vadd.f32 %v318, %v594
        %v695 = vadd.f32 %v319, %v599
        %v696 = vadd.f32 %v320, %v602
        %v697 = vadd.f32 %v321, %v607
        %v698 = vadd.f32 %v322, %v610
        %v699 = vadd.f32 %v323, %v615
        %v700 = vadd.f32 %v324, %v618
        %v701 = vadd.f32 %v325, %v623
        %v702 = vadd.f32 %v326, %v626
        %v703 = vadd.f32 %v327, %v631
        %v704 = vadd.f32 %v328, %v634
        %v705 = vadd.f32 %v329, %v639
        %v706 = vadd.f32 %v330, %v642
        %v707 = vadd.f32 %v331, %v647
        %v708 = vadd.f32 %v332, %v650
        %v709 = vadd.f32 %v333, %v655
        %v710 = vadd.f32 %v334, %v658
        %v711 = vadd.f32 %v335, %v663
        %v712 = vadd.f32 %v336, %v666
        %v713 = vadd.f32 %v337, %v671
        %v714 = vadd.f32 %v338, %v674
        %v715 = vadd.f32 %v339, %v679
        %v716 = vadd.f32 %v340, %v682
        %vm717 = vcmask 523264
        %718 = vst.msk [vmem:[#allocation2] sm:$0xff] %vm717, %v685
        %719 = vst.msk [vmem:[#allocation2 + $0x8] sm:$0xff] %vm717, %v686
        %720 = vst.msk [vmem:[#allocation2 + $0x10] sm:$0xff] %vm717, %v687
        %721 = vst.msk [vmem:[#allocation2 + $0x18] sm:$0xff] %vm717, %v688
        %722 = vst.msk [vmem:[#allocation2 + $0x20] sm:$0xff] %vm717, %v689
        %723 = vst.msk [vmem:[#allocation2 + $0x28] sm:$0xff] %vm717, %v690
        %724 = vst.msk [vmem:[#allocation2 + $0x30] sm:$0xff] %vm717, %v691
        %725 = vst.msk [vmem:[#allocation2 + $0x38] sm:$0xff] %vm717, %v692
        %726 = vst.msk [vmem:[#allocation2 + $0x40] sm:$0xff] %vm717, %v693
        %727 = vst.msk [vmem:[#allocation2 + $0x48] sm:$0xff] %vm717, %v694
        %728 = vst.msk [vmem:[#allocation2 + $0x50] sm:$0xff] %vm717, %v695
        %729 = vst.msk [vmem:[#allocation2 + $0x58] sm:$0xff] %vm717, %v696
        %730 = vst.msk [vmem:[#allocation2 + $0x60] sm:$0xff] %vm717, %v697
        %731 = vst.msk [vmem:[#allocation2 + $0x68] sm:$0xff] %vm717, %v698
        %732 = vst.msk [vmem:[#allocation2 + $0x70] sm:$0xff] %vm717, %v699
        %733 = vst.msk [vmem:[#allocation2 + $0x78] sm:$0xff] %vm717, %v700
        %734 = vst.msk [vmem:[#allocation2 + $0x80] sm:$0xff] %vm717, %v701
        %735 = vst.msk [vmem:[#allocation2 + $0x88] sm:$0xff] %vm717, %v702
        %736 = vst.msk [vmem:[#allocation2 + $0x90] sm:$0xff] %vm717, %v703
        %737 = vst.msk [vmem:[#allocation2 + $0x98] sm:$0xff] %vm717, %v704
        %738 = vst.msk [vmem:[#allocation2 + $0xa0] sm:$0xff] %vm717, %v705
        %739 = vst.msk [vmem:[#allocation2 + $0xa8] sm:$0xff] %vm717, %v706
        %740 = vst.msk [vmem:[#allocation2 + $0xb0] sm:$0xff] %vm717, %v707
        %741 = vst.msk [vmem:[#allocation2 + $0xb8] sm:$0xff] %vm717, %v708
        %742 = vst.msk [vmem:[#allocation2 + $0xc0] sm:$0xff] %vm717, %v709
        %743 = vst.msk [vmem:[#allocation2 + $0xc8] sm:$0xff] %vm717, %v710
        %744 = vst.msk [vmem:[#allocation2 + $0xd0] sm:$0xff] %vm717, %v711
        %745 = vst.msk [vmem:[#allocation2 + $0xd8] sm:$0xff] %vm717, %v712
        %746 = vst.msk [vmem:[#allocation2 + $0xe0] sm:$0xff] %vm717, %v713
        %747 = vst.msk [vmem:[#allocation2 + $0xe8] sm:$0xff] %vm717, %v714
        %748 = vst.msk [vmem:[#allocation2 + $0xf0] sm:$0xff] %vm717, %v715
        %749 = vst.msk [vmem:[#allocation2 + $0xf8] sm:$0xff] %vm717, %v716
        // Predicated region
        $region37: #{semantic_net_forward.6} parent=31 // pred_check
          %p750 = pneg %p272
        $region38: #{semantic_net_forward.6} parent=31 // pred_check_branch
          %752 = sbr.rel (%p750) target = $region40
        $region39: #{semantic_net_forward.6} parent=31 // pred_region
          %v753 = vld [vmem:[#allocation2] sm:$0xff]
          %v754 = vld [vmem:[#allocation2 + $0x8] sm:$0xff]
          %v755 = vld [vmem:[#allocation2 + $0x10] sm:$0xff]
          %v756 = vld [vmem:[#allocation2 + $0x18] sm:$0xff]
          %v757 = vld [vmem:[#allocation2 + $0x20] sm:$0xff]
          %v758 = vld [vmem:[#allocation2 + $0x28] sm:$0xff]
          %v759 = vld [vmem:[#allocation2 + $0x30] sm:$0xff]
          %v760 = vld [vmem:[#allocation2 + $0x38] sm:$0xff]
          %v761 = vld [vmem:[#allocation2 + $0x40] sm:$0xff]
          %v762 = vld [vmem:[#allocation2 + $0x48] sm:$0xff]
          %v763 = vld [vmem:[#allocation2 + $0x50] sm:$0xff]
          %v764 = vld [vmem:[#allocation2 + $0x58] sm:$0xff]
          %v765 = vld [vmem:[#allocation2 + $0x60] sm:$0xff]
          %v766 = vld [vmem:[#allocation2 + $0x68] sm:$0xff]
          %v767 = vld [vmem:[#allocation2 + $0x70] sm:$0xff]
          %v768 = vld [vmem:[#allocation2 + $0x78] sm:$0xff]
          %v769 = vld [vmem:[#allocation2 + $0x80] sm:$0xff]
          %v770 = vld [vmem:[#allocation2 + $0x88] sm:$0xff]
          %v771 = vld [vmem:[#allocation2 + $0x90] sm:$0xff]
          %v772 = vld [vmem:[#allocation2 + $0x98] sm:$0xff]
          %v773 = vld [vmem:[#allocation2 + $0xa0] sm:$0xff]
          %v774 = vld [vmem:[#allocation2 + $0xa8] sm:$0xff]
          %v775 = vld [vmem:[#allocation2 + $0xb0] sm:$0xff]
          %v776 = vld [vmem:[#allocation2 + $0xb8] sm:$0xff]
          %v777 = vld [vmem:[#allocation2 + $0xc0] sm:$0xff]
          %v778 = vld [vmem:[#allocation2 + $0xc8] sm:$0xff]
          %v779 = vld [vmem:[#allocation2 + $0xd0] sm:$0xff]
          %v780 = vld [vmem:[#allocation2 + $0xd8] sm:$0xff]
          %v781 = vld [vmem:[#allocation2 + $0xe0] sm:$0xff]
          %v782 = vld [vmem:[#allocation2 + $0xe8] sm:$0xff]
          %v783 = vld [vmem:[#allocation2 + $0xf0] sm:$0xff]
          %v784 = vld [vmem:[#allocation2 + $0xf8] sm:$0xff]
          %v785 = vld [vmem:[%s265] sm:$0x1]
          %v787 = vlaneseq
          %v788 = vshrl.u32 %v787, 7
          %v789 = vsub.s32 0, %v788
          %v790 = vrot.slane %v785, %v789
          %v792 = vadd.f32 %v753, %v790
          %v793 = vadd.f32 %v754, %v790
          %v794 = vadd.f32 %v755, %v790
          %v795 = vadd.f32 %v756, %v790
          %v796 = vadd.f32 %v757, %v790
          %v797 = vadd.f32 %v758, %v790
          %v798 = vadd.f32 %v759, %v790
          %v799 = vadd.f32 %v760, %v790
          %v800 = vadd.f32 %v761, %v790
          %v801 = vadd.f32 %v762, %v790
          %v802 = vadd.f32 %v763, %v790
          %v803 = vadd.f32 %v764, %v790
          %v804 = vadd.f32 %v765, %v790
          %v805 = vadd.f32 %v766, %v790
          %v806 = vadd.f32 %v767, %v790
          %v807 = vadd.f32 %v768, %v790
          %v808 = vadd.f32 %v769, %v790
          %v809 = vadd.f32 %v770, %v790
          %v810 = vadd.f32 %v771, %v790
          %v811 = vadd.f32 %v772, %v790
          %v812 = vadd.f32 %v773, %v790
          %v813 = vadd.f32 %v774, %v790
          %v814 = vadd.f32 %v775, %v790
          %v815 = vadd.f32 %v776, %v790
          %v816 = vadd.f32 %v777, %v790
          %v817 = vadd.f32 %v778, %v790
          %v818 = vadd.f32 %v779, %v790
          %v819 = vadd.f32 %v780, %v790
          %v820 = vadd.f32 %v781, %v790
          %v821 = vadd.f32 %v782, %v790
          %v822 = vadd.f32 %v783, %v790
          %v823 = vadd.f32 %v784, %v790
          %v824 = vmax.f32 %v792, 0.0
          %v825 = vmax.f32 %v793, 0.0
          %v826 = vmax.f32 %v794, 0.0
          %v827 = vmax.f32 %v795, 0.0
          %v828 = vmax.f32 %v796, 0.0
          %v829 = vmax.f32 %v797, 0.0
          %v830 = vmax.f32 %v798, 0.0
          %v831 = vmax.f32 %v799, 0.0
          %v832 = vmax.f32 %v800, 0.0
          %v833 = vmax.f32 %v801, 0.0
          %v834 = vmax.f32 %v802, 0.0
          %v835 = vmax.f32 %v803, 0.0
          %v836 = vmax.f32 %v804, 0.0
          %v837 = vmax.f32 %v805, 0.0
          %v838 = vmax.f32 %v806, 0.0
          %v839 = vmax.f32 %v807, 0.0
          %v840 = vmax.f32 %v808, 0.0
          %v841 = vmax.f32 %v809, 0.0
          %v842 = vmax.f32 %v810, 0.0
          %v843 = vmax.f32 %v811, 0.0
          %v844 = vmax.f32 %v812, 0.0
          %v845 = vmax.f32 %v813, 0.0
          %v846 = vmax.f32 %v814, 0.0
          %v847 = vmax.f32 %v815, 0.0
          %v848 = vmax.f32 %v816, 0.0
          %v849 = vmax.f32 %v817, 0.0
          %v850 = vmax.f32 %v818, 0.0
          %v851 = vmax.f32 %v819, 0.0
          %v852 = vmax.f32 %v820, 0.0
          %v853 = vmax.f32 %v821, 0.0
          %v854 = vmax.f32 %v822, 0.0
          %v855 = vmax.f32 %v823, 0.0
          %856 = vst.msk [vmem:[%s236] sm:$0xff] %vm717, %v824
          %857 = vst.msk [vmem:[%s236 + $0x8] sm:$0xff] %vm717, %v825
          %858 = vst.msk [vmem:[%s236 + $0x10] sm:$0xff] %vm717, %v826
          %859 = vst.msk [vmem:[%s236 + $0x18] sm:$0xff] %vm717, %v827
          %860 = vst.msk [vmem:[%s236 + $0x20] sm:$0xff] %vm717, %v828
          %861 = vst.msk [vmem:[%s236 + $0x28] sm:$0xff] %vm717, %v829
          %862 = vst.msk [vmem:[%s236 + $0x30] sm:$0xff] %vm717, %v830
          %863 = vst.msk [vmem:[%s236 + $0x38] sm:$0xff] %vm717, %v831
          %864 = vst.msk [vmem:[%s236 + $0x40] sm:$0xff] %vm717, %v832
          %865 = vst.msk [vmem:[%s236 + $0x48] sm:$0xff] %vm717, %v833
          %866 = vst.msk [vmem:[%s236 + $0x50] sm:$0xff] %vm717, %v834
          %867 = vst.msk [vmem:[%s236 + $0x58] sm:$0xff] %vm717, %v835
          %868 = vst.msk [vmem:[%s236 + $0x60] sm:$0xff] %vm717, %v836
          %869 = vst.msk [vmem:[%s236 + $0x68] sm:$0xff] %vm717, %v837
          %870 = vst.msk [vmem:[%s236 + $0x70] sm:$0xff] %vm717, %v838
          %871 = vst.msk [vmem:[%s236 + $0x78] sm:$0xff] %vm717, %v839
          %872 = vst.msk [vmem:[%s236 + $0x80] sm:$0xff] %vm717, %v840
          %873 = vst.msk [vmem:[%s236 + $0x88] sm:$0xff] %vm717, %v841
          %874 = vst.msk [vmem:[%s236 + $0x90] sm:$0xff] %vm717, %v842
          %875 = vst.msk [vmem:[%s236 + $0x98] sm:$0xff] %vm717, %v843
          %876 = vst.msk [vmem:[%s236 + $0xa0] sm:$0xff] %vm717, %v844
          %877 = vst.msk [vmem:[%s236 + $0xa8] sm:$0xff] %vm717, %v845
          %878 = vst.msk [vmem:[%s236 + $0xb0] sm:$0xff] %vm717, %v846
          %879 = vst.msk [vmem:[%s236 + $0xb8] sm:$0xff] %vm717, %v847
          %880 = vst.msk [vmem:[%s236 + $0xc0] sm:$0xff] %vm717, %v848
          %881 = vst.msk [vmem:[%s236 + $0xc8] sm:$0xff] %vm717, %v849
          %882 = vst.msk [vmem:[%s236 + $0xd0] sm:$0xff] %vm717, %v850
          %883 = vst.msk [vmem:[%s236 + $0xd8] sm:$0xff] %vm717, %v851
          %884 = vst.msk [vmem:[%s236 + $0xe0] sm:$0xff] %vm717, %v852
          %885 = vst.msk [vmem:[%s236 + $0xe8] sm:$0xff] %vm717, %v853
          %886 = vst.msk [vmem:[%s236 + $0xf0] sm:$0xff] %vm717, %v854
          %887 = vst.msk [vmem:[%s236 + $0xf8] sm:$0xff] %vm717, %v855
        $region40: #{semantic_net_forward.6} parent=31 // pred_fallthru
          _
        %s888 = sand.u32 %s125, 1
        %s889 = sand.u32 %s125, 1
        %s890 = smul.addr %s889, 256
        %s891 = scalar_lea.vmem [#allocation3], %s890
        // Predicated region
        $region41: #{semantic_net_forward.6} parent=31 // pred_check
          %p892 = pneg %p135
        $region42: #{semantic_net_forward.6} parent=31 // pred_check_branch
          %894 = sbr.rel (%p892) target = $region44
        $region43: #{semantic_net_forward.6} parent=31 // pred_region
          %s895 = smul.u32 32, %s19
          %s896 = ssub.s32 225, %s895
          %p897 = scmp.lt.s32.totalorder %s896, 32
          %s898 = scalar_select %p897, %s896, 32
          %s899 = smul.u32 128, %s898
          %p900 = scmp.ne.s32.totalorder 0, %s899
          %s901 = sadd.s32 %s20, %s895
          %s902 = smul.addr %s901, 8
          %s903 = scalar_lea.vmem %s3, %s902
          // Predicated region
          $region45: #{semantic_net_forward.6} parent=43 // pred_check
            %p904 = pneg %p900
          $region46: #{semantic_net_forward.6} parent=43 // pred_check_branch
            %906 = sbr.rel (%p904) target = $region48
          $region47: #{semantic_net_forward.6} parent=43 // pred_region
            // Predicated region
            $region49: #{semantic_net_forward.6} parent=47 // pred_check
              _
            $region50: #{semantic_net_forward.6} parent=47 // pred_check_branch
              %908 = sbr.rel (0) target = $region52
            $region51: #{semantic_net_forward.6} parent=47 // pred_region
              // Predicated region
              $region71: #{semantic_net_forward.6} parent=51 // pred_check
                _
              $region72: #{semantic_net_forward.6} parent=51 // pred_check_branch
                %1019 = sbr.rel (0) target = $region74
              $region73: #{semantic_net_forward.6} parent=51 // pred_region
                %s1020 = sshrl.u32 %s898, 5
                // While loop
                $region75: #{semantic_net_forward.6} parent=73 // loop_pre_header
                  _
                $region76: #{semantic_net_forward.6} parent=73 // loop_header
                  %s1022 = sphi 0, %s1024
                  %p1023 = scmp.ge.s32.totalorder %s1022, %s1020
                  %s1027 = sphi 0, %s1096
                  %s1028 = sphi %s891, %s1099
                  %s1029 = sphi %s903, %s1100
                $region77: #{semantic_net_forward.6} parent=73 // loop_header_branch
                  %1026 = sbr.rel (%p1023) target = $region81
                $region78: #{semantic_net_forward.6} parent=73 // loop_body
                  %v1030 = vld [vmem:[%s1028] sm:$0xff]
                  %1031 = vst [vmem:[%s1029] sm:$0xff] %v1030
                  %v1032 = vld [vmem:[%s1028 + $0x8] sm:$0xff]
                  %1033 = vst [vmem:[%s1029 + $0x8] sm:$0xff] %v1032
                  %v1034 = vld [vmem:[%s1028 + $0x10] sm:$0xff]
                  %1035 = vst [vmem:[%s1029 + $0x10] sm:$0xff] %v1034
                  %v1036 = vld [vmem:[%s1028 + $0x18] sm:$0xff]
                  %1037 = vst [vmem:[%s1029 + $0x18] sm:$0xff] %v1036
                  %v1038 = vld [vmem:[%s1028 + $0x20] sm:$0xff]
                  %1039 = vst [vmem:[%s1029 + $0x20] sm:$0xff] %v1038
                  %v1040 = vld [vmem:[%s1028 + $0x28] sm:$0xff]
                  %1041 = vst [vmem:[%s1029 + $0x28] sm:$0xff] %v1040
                  %v1042 = vld [vmem:[%s1028 + $0x30] sm:$0xff]
                  %1043 = vst [vmem:[%s1029 + $0x30] sm:$0xff] %v1042
                  %v1044 = vld [vmem:[%s1028 + $0x38] sm:$0xff]
                  %1045 = vst [vmem:[%s1029 + $0x38] sm:$0xff] %v1044
                  %v1046 = vld [vmem:[%s1028 + $0x40] sm:$0xff]
                  %1047 = vst [vmem:[%s1029 + $0x40] sm:$0xff] %v1046
                  %v1048 = vld [vmem:[%s1028 + $0x48] sm:$0xff]
                  %1049 = vst [vmem:[%s1029 + $0x48] sm:$0xff] %v1048
                  %v1050 = vld [vmem:[%s1028 + $0x50] sm:$0xff]
                  %1051 = vst [vmem:[%s1029 + $0x50] sm:$0xff] %v1050
                  %v1052 = vld [vmem:[%s1028 + $0x58] sm:$0xff]
                  %1053 = vst [vmem:[%s1029 + $0x58] sm:$0xff] %v1052
                  %v1054 = vld [vmem:[%s1028 + $0x60] sm:$0xff]
                  %1055 = vst [vmem:[%s1029 + $0x60] sm:$0xff] %v1054
                  %v1056 = vld [vmem:[%s1028 + $0x68] sm:$0xff]
                  %1057 = vst [vmem:[%s1029 + $0x68] sm:$0xff] %v1056
                  %v1058 = vld [vmem:[%s1028 + $0x70] sm:$0xff]
                  %1059 = vst [vmem:[%s1029 + $0x70] sm:$0xff] %v1058
                  %v1060 = vld [vmem:[%s1028 + $0x78] sm:$0xff]
                  %1061 = vst [vmem:[%s1029 + $0x78] sm:$0xff] %v1060
                  %v1062 = vld [vmem:[%s1028 + $0x80] sm:$0xff]
                  %1063 = vst [vmem:[%s1029 + $0x80] sm:$0xff] %v1062
                  %v1064 = vld [vmem:[%s1028 + $0x88] sm:$0xff]
                  %1065 = vst [vmem:[%s1029 + $0x88] sm:$0xff] %v1064
                  %v1066 = vld [vmem:[%s1028 + $0x90] sm:$0xff]
                  %1067 = vst [vmem:[%s1029 + $0x90] sm:$0xff] %v1066
                  %v1068 = vld [vmem:[%s1028 + $0x98] sm:$0xff]
                  %1069 = vst [vmem:[%s1029 + $0x98] sm:$0xff] %v1068
                  %v1070 = vld [vmem:[%s1028 + $0xa0] sm:$0xff]
                  %1071 = vst [vmem:[%s1029 + $0xa0] sm:$0xff] %v1070
                  %v1072 = vld [vmem:[%s1028 + $0xa8] sm:$0xff]
                  %1073 = vst [vmem:[%s1029 + $0xa8] sm:$0xff] %v1072
                  %v1074 = vld [vmem:[%s1028 + $0xb0] sm:$0xff]
                  %1075 = vst [vmem:[%s1029 + $0xb0] sm:$0xff] %v1074
                  %v1076 = vld [vmem:[%s1028 + $0xb8] sm:$0xff]
                  %1077 = vst [vmem:[%s1029 + $0xb8] sm:$0xff] %v1076
                  %v1078 = vld [vmem:[%s1028 + $0xc0] sm:$0xff]
                  %1079 = vst [vmem:[%s1029 + $0xc0] sm:$0xff] %v1078
                  %v1080 = vld [vmem:[%s1028 + $0xc8] sm:$0xff]
                  %1081 = vst [vmem:[%s1029 + $0xc8] sm:$0xff] %v1080
                  %v1082 = vld [vmem:[%s1028 + $0xd0] sm:$0xff]
                  %1083 = vst [vmem:[%s1029 + $0xd0] sm:$0xff] %v1082
                  %v1084 = vld [vmem:[%s1028 + $0xd8] sm:$0xff]
                  %1085 = vst [vmem:[%s1029 + $0xd8] sm:$0xff] %v1084
                  %v1086 = vld [vmem:[%s1028 + $0xe0] sm:$0xff]
                  %1087 = vst [vmem:[%s1029 + $0xe0] sm:$0xff] %v1086
                  %v1088 = vld [vmem:[%s1028 + $0xe8] sm:$0xff]
                  %1089 = vst [vmem:[%s1029 + $0xe8] sm:$0xff] %v1088
                  %v1090 = vld [vmem:[%s1028 + $0xf0] sm:$0xff]
                  %1091 = vst [vmem:[%s1029 + $0xf0] sm:$0xff] %v1090
                  %v1092 = vld [vmem:[%s1028 + $0xf8] sm:$0xff]
                  %1093 = vst [vmem:[%s1029 + $0xf8] sm:$0xff] %v1092
                  %s1094 = sadd.s32 1, %s1027
                  %p1095 = scmp.ge.s32.totalorder %s1094, %s1020
                  %s1096 = scalar_select %p1095, 0, %s1094
                  %s1097 = smul.u32 %s1096, 256
                  %s1098 = smul.u32 %s1096, 256
                  %s1099 = scalar_lea.vmem %s891, %s1097 [#allocation3]
                  %s1100 = scalar_lea.vmem %s903, %s1098
                $region79: #{semantic_net_forward.6} parent=73 // loop_footer
                  %s1024 = sadd.s32 %s1022, 1
                $region80: #{semantic_net_forward.6} parent=73 // loop_footer_branch
                  %1021 = sbr.rel target = $region76
                $region81: #{semantic_net_forward.6} parent=73 // loop_exit
                  _
                %s1101 = sshrl.u32 %s898, 5
                %s1102 = sand.u32 %s898, 31
                %s1103 = smul.u32 %s1101, 32
                %s1104 = smul.u32 8, %s1103
                %s1105 = scalar_lea.vmem %s891, %s1104 [#allocation3]
                %s1106 = smul.u32 8, %s1103
                %s1107 = scalar_lea.vmem %s903, %s1106
                // While loop
                $region82: #{semantic_net_forward.6} parent=73 // loop_pre_header
                  _
                $region83: #{semantic_net_forward.6} parent=73 // loop_header
                  %s1109 = sphi 0, %s1111
                  %p1110 = scmp.ge.s32.totalorder %s1109, %s1102
                  %s1114 = sphi 0, %s1121
                  %s1115 = sphi %s1105, %s1124
                  %s1116 = sphi %s1107, %s1125
                $region84: #{semantic_net_forward.6} parent=73 // loop_header_branch
                  %1113 = sbr.rel (%p1110) target = $region88
                $region85: #{semantic_net_forward.6} parent=73 // loop_body
                  %v1117 = vld [vmem:[%s1115] sm:$0xff]
                  %1118 = vst [vmem:[%s1116] sm:$0xff] %v1117
                  %s1119 = sadd.s32 1, %s1114
                  %p1120 = scmp.ge.s32.totalorder %s1119, %s1102
                  %s1121 = scalar_select %p1120, 0, %s1119
                  %s1122 = smul.u32 %s1121, 8
                  %s1123 = smul.u32 %s1121, 8
                  %s1124 = scalar_lea.vmem %s1105, %s1122 [#allocation3]
                  %s1125 = scalar_lea.vmem %s1107, %s1123
                $region86: #{semantic_net_forward.6} parent=73 // loop_footer
                  %s1111 = sadd.s32 %s1109, 1
                $region87: #{semantic_net_forward.6} parent=73 // loop_footer_branch
                  %1108 = sbr.rel target = $region83
                $region88: #{semantic_net_forward.6} parent=73 // loop_exit
                  _
              $region74: #{semantic_net_forward.6} parent=51 // pred_fallthru
                _
              // Predicated region
              $region89: #{semantic_net_forward.6} parent=51 // pred_check
                _
              $region90: #{semantic_net_forward.6} parent=51 // pred_check_branch
                %1127 = sbr.rel target = $region92
              $region91: #{semantic_net_forward.6} parent=51 // pred_region
                _
              $region92: #{semantic_net_forward.6} parent=51 // pred_fallthru
                _
            $region52: #{semantic_net_forward.6} parent=47 // pred_fallthru
              _
            // Predicated region
            $region53: #{semantic_net_forward.6} parent=47 // pred_check
              _
            $region54: #{semantic_net_forward.6} parent=47 // pred_check_branch
              %910 = sbr.rel target = $region56
            $region55: #{semantic_net_forward.6} parent=47 // pred_region
              %s912 = sshrl.u32 %s898, 5
              // While loop
              $region57: #{semantic_net_forward.6} parent=55 // loop_pre_header
                _
              $region58: #{semantic_net_forward.6} parent=55 // loop_header
                %s914 = sphi 0, %s916
                %p915 = scmp.ge.s32.totalorder %s914, %s912
                %s919 = sphi 0, %s988
                %s920 = sphi %s891, %s991
                %s921 = sphi %s903, %s992
              $region59: #{semantic_net_forward.6} parent=55 // loop_header_branch
                %918 = sbr.rel (%p915) target = $region63
              $region60: #{semantic_net_forward.6} parent=55 // loop_body
                %v922 = vld [vmem:[%s920] sm:$0xff]
                %923 = vst [vmem:[%s921] sm:$0xff] %v922
                %v924 = vld [vmem:[%s920 + $0x8] sm:$0xff]
                %925 = vst [vmem:[%s921 + $0x8] sm:$0xff] %v924
                %v926 = vld [vmem:[%s920 + $0x10] sm:$0xff]
                %927 = vst [vmem:[%s921 + $0x10] sm:$0xff] %v926
                %v928 = vld [vmem:[%s920 + $0x18] sm:$0xff]
                %929 = vst [vmem:[%s921 + $0x18] sm:$0xff] %v928
                %v930 = vld [vmem:[%s920 + $0x20] sm:$0xff]
                %931 = vst [vmem:[%s921 + $0x20] sm:$0xff] %v930
                %v932 = vld [vmem:[%s920 + $0x28] sm:$0xff]
                %933 = vst [vmem:[%s921 + $0x28] sm:$0xff] %v932
                %v934 = vld [vmem:[%s920 + $0x30] sm:$0xff]
                %935 = vst [vmem:[%s921 + $0x30] sm:$0xff] %v934
                %v936 = vld [vmem:[%s920 + $0x38] sm:$0xff]
                %937 = vst [vmem:[%s921 + $0x38] sm:$0xff] %v936
                %v938 = vld [vmem:[%s920 + $0x40] sm:$0xff]
                %939 = vst [vmem:[%s921 + $0x40] sm:$0xff] %v938
                %v940 = vld [vmem:[%s920 + $0x48] sm:$0xff]
                %941 = vst [vmem:[%s921 + $0x48] sm:$0xff] %v940
                %v942 = vld [vmem:[%s920 + $0x50] sm:$0xff]
                %943 = vst [vmem:[%s921 + $0x50] sm:$0xff] %v942
                %v944 = vld [vmem:[%s920 + $0x58] sm:$0xff]
                %945 = vst [vmem:[%s921 + $0x58] sm:$0xff] %v944
                %v946 = vld [vmem:[%s920 + $0x60] sm:$0xff]
                %947 = vst [vmem:[%s921 + $0x60] sm:$0xff] %v946
                %v948 = vld [vmem:[%s920 + $0x68] sm:$0xff]
                %949 = vst [vmem:[%s921 + $0x68] sm:$0xff] %v948
                %v950 = vld [vmem:[%s920 + $0x70] sm:$0xff]
                %951 = vst [vmem:[%s921 + $0x70] sm:$0xff] %v950
                %v952 = vld [vmem:[%s920 + $0x78] sm:$0xff]
                %953 = vst [vmem:[%s921 + $0x78] sm:$0xff] %v952
                %v954 = vld [vmem:[%s920 + $0x80] sm:$0xff]
                %955 = vst [vmem:[%s921 + $0x80] sm:$0xff] %v954
                %v956 = vld [vmem:[%s920 + $0x88] sm:$0xff]
                %957 = vst [vmem:[%s921 + $0x88] sm:$0xff] %v956
                %v958 = vld [vmem:[%s920 + $0x90] sm:$0xff]
                %959 = vst [vmem:[%s921 + $0x90] sm:$0xff] %v958
                %v960 = vld [vmem:[%s920 + $0x98] sm:$0xff]
                %961 = vst [vmem:[%s921 + $0x98] sm:$0xff] %v960
                %v962 = vld [vmem:[%s920 + $0xa0] sm:$0xff]
                %963 = vst [vmem:[%s921 + $0xa0] sm:$0xff] %v962
                %v964 = vld [vmem:[%s920 + $0xa8] sm:$0xff]
                %965 = vst [vmem:[%s921 + $0xa8] sm:$0xff] %v964
                %v966 = vld [vmem:[%s920 + $0xb0] sm:$0xff]
                %967 = vst [vmem:[%s921 + $0xb0] sm:$0xff] %v966
                %v968 = vld [vmem:[%s920 + $0xb8] sm:$0xff]
                %969 = vst [vmem:[%s921 + $0xb8] sm:$0xff] %v968
                %v970 = vld [vmem:[%s920 + $0xc0] sm:$0xff]
                %971 = vst [vmem:[%s921 + $0xc0] sm:$0xff] %v970
                %v972 = vld [vmem:[%s920 + $0xc8] sm:$0xff]
                %973 = vst [vmem:[%s921 + $0xc8] sm:$0xff] %v972
                %v974 = vld [vmem:[%s920 + $0xd0] sm:$0xff]
                %975 = vst [vmem:[%s921 + $0xd0] sm:$0xff] %v974
                %v976 = vld [vmem:[%s920 + $0xd8] sm:$0xff]
                %977 = vst [vmem:[%s921 + $0xd8] sm:$0xff] %v976
                %v978 = vld [vmem:[%s920 + $0xe0] sm:$0xff]
                %979 = vst [vmem:[%s921 + $0xe0] sm:$0xff] %v978
                %v980 = vld [vmem:[%s920 + $0xe8] sm:$0xff]
                %981 = vst [vmem:[%s921 + $0xe8] sm:$0xff] %v980
                %v982 = vld [vmem:[%s920 + $0xf0] sm:$0xff]
                %983 = vst [vmem:[%s921 + $0xf0] sm:$0xff] %v982
                %v984 = vld [vmem:[%s920 + $0xf8] sm:$0xff]
                %985 = vst [vmem:[%s921 + $0xf8] sm:$0xff] %v984
                %s986 = sadd.s32 1, %s919
                %p987 = scmp.ge.s32.totalorder %s986, %s912
                %s988 = scalar_select %p987, 0, %s986
                %s989 = smul.u32 %s988, 256
                %s990 = smul.u32 %s988, 256
                %s991 = scalar_lea.vmem %s891, %s989 [#allocation3]
                %s992 = scalar_lea.vmem %s903, %s990
              $region61: #{semantic_net_forward.6} parent=55 // loop_footer
                %s916 = sadd.s32 %s914, 1
              $region62: #{semantic_net_forward.6} parent=55 // loop_footer_branch
                %913 = sbr.rel target = $region58
              $region63: #{semantic_net_forward.6} parent=55 // loop_exit
                _
              %s993 = sshrl.u32 %s898, 5
              %s994 = sand.u32 %s898, 31
              %s995 = smul.u32 %s993, 32
              %s996 = smul.u32 8, %s995
              %s997 = scalar_lea.vmem %s891, %s996 [#allocation3]
              %s998 = smul.u32 8, %s995
              %s999 = scalar_lea.vmem %s903, %s998
              // While loop
              $region64: #{semantic_net_forward.6} parent=55 // loop_pre_header
                _
              $region65: #{semantic_net_forward.6} parent=55 // loop_header
                %s1001 = sphi 0, %s1003
                %p1002 = scmp.ge.s32.totalorder %s1001, %s994
                %s1006 = sphi 0, %s1013
                %s1007 = sphi %s997, %s1016
                %s1008 = sphi %s999, %s1017
              $region66: #{semantic_net_forward.6} parent=55 // loop_header_branch
                %1005 = sbr.rel (%p1002) target = $region70
              $region67: #{semantic_net_forward.6} parent=55 // loop_body
                %v1009 = vld [vmem:[%s1007] sm:$0xff]
                %1010 = vst [vmem:[%s1008] sm:$0xff] %v1009
                %s1011 = sadd.s32 1, %s1006
                %p1012 = scmp.ge.s32.totalorder %s1011, %s994
                %s1013 = scalar_select %p1012, 0, %s1011
                %s1014 = smul.u32 %s1013, 8
                %s1015 = smul.u32 %s1013, 8
                %s1016 = scalar_lea.vmem %s997, %s1014 [#allocation3]
                %s1017 = scalar_lea.vmem %s999, %s1015
              $region68: #{semantic_net_forward.6} parent=55 // loop_footer
                %s1003 = sadd.s32 %s1001, 1
              $region69: #{semantic_net_forward.6} parent=55 // loop_footer_branch
                %1000 = sbr.rel target = $region65
              $region70: #{semantic_net_forward.6} parent=55 // loop_exit
                _
            $region56: #{semantic_net_forward.6} parent=47 // pred_fallthru
              _
          $region48: #{semantic_net_forward.6} parent=43 // pred_fallthru
            _
          %1128 = vnop
        $region44: #{semantic_net_forward.6} parent=31 // pred_fallthru
          _
      $region32: #{semantic_net_forward.6} parent=5 // pred_fallthru
        _
      %p1129 = scmp.le.s32.totalorder 2, %s9
      // Predicated region
      $region93: #{semantic_net_forward.6} parent=5 // pred_check
        %p1130 = pneg %p1129
      $region94: #{semantic_net_forward.6} parent=5 // pred_check_branch
        %1132 = sbr.rel (%p1130) target = $region96
      $region95: #{semantic_net_forward.6} parent=5 // pred_region
        %s1133 = ssub.s32 %s9, 2
        // Predicated region
        $region97: #{semantic_net_forward.6} parent=95 // pred_check
          %p1134 = pneg %p141
        $region98: #{semantic_net_forward.6} parent=95 // pred_check_branch
          %1136 = sbr.rel (%p1134) target = $region100
        $region99: #{semantic_net_forward.6} parent=95 // pred_region
          %s1137 = sand.u32 %s126, 1
          %s1138 = sand.u32 %s126, 1
          %s1139 = smul.addr %s1138, 256
          %s1140 = scalar_lea.vmem [#allocation3], %s1139
        $region100: #{semantic_net_forward.6} parent=95 // pred_fallthru
          _
      $region96: #{semantic_net_forward.6} parent=5 // pred_fallthru
        _
    $region6: #{semantic_net_forward.6} parent=1 // loop_footer
      %s13 = sadd.s32 1, %s9
    $region7: #{semantic_net_forward.6} parent=1 // loop_footer_branch
      %8 = sbr.rel target = $region3
    $region8: #{semantic_net_forward.6} parent=1 // loop_exit
      _

// kernel: semantic_net_forward.7
$region0: #{semantic_net_forward.7}
  #allocation0 [shape = 'u32[]', space=smem, size = 0x4, offset = 0x4, fixed_abs, tag = 'smem constant byte address 0x4 - core index']
  #allocation1 [shape = 'u32[144,128]{1,0:T(1,128)}', space=vmem, size = 0x12000, scoped, tag = 'internal scratch']
  %s0 = inlined_call_operand.vmem [shape: f32[2,30,30,64], index: 0, kind: input, shape index: {}]
  %s1 = inlined_call_operand.vmem [shape: bf16[2,15,15,64], index: 1, kind: output, shape index: {}]
  %s2 = sld [smem:[#allocation0]]
  $region14: #{semantic_net_forward.7} parent=0
    _
  %s4 = ssub.s32 1, %s2
  %s5 = scalar_select 0, %s4, %s2
  // Predicated region
  $region2: #{semantic_net_forward.7} parent=0 // pred_check
    _
  $region3: #{semantic_net_forward.7} parent=0 // pred_check_branch
    %7 = sbr.rel (0) target = $region5
  $region4: #{semantic_net_forward.7} parent=0 // pred_region
    _
  $region5: #{semantic_net_forward.7} parent=0 // pred_fallthru
    _
  %v8 = vld [vmem:[%s0] ss:$2 sm:$0xff]
  %s9 = scalar_lea.vmem %s0, 16
  %v10 = vld [vmem:[%s9] ss:$2 sm:$0x7f]
  %s11 = scalar_lea.vmem %s0, 32
  %v12 = vld [vmem:[%s11] ss:$2 sm:$0xff]
  %s13 = scalar_lea.vmem %s0, 48
  %v14 = vld [vmem:[%s13] ss:$2 sm:$0x7f]
  %s15 = scalar_lea.vmem %s0, 64
  %v16 = vld [vmem:[%s15] ss:$2 sm:$0xff]
  %s17 = scalar_lea.vmem %s0, 80
  %v18 = vld [vmem:[%s17] ss:$2 sm:$0x7f]
  %s19 = scalar_lea.vmem %s0, 96
  %v20 = vld [vmem:[%s19] ss:$2 sm:$0xff]
  %s21 = scalar_lea.vmem %s0, 112
  %v22 = vld [vmem:[%s21] ss:$2 sm:$0x7f]
  %s23 = scalar_lea.vmem %s0, 128
  %v24 = vld [vmem:[%s23] ss:$2 sm:$0xff]
  %s25 = scalar_lea.vmem %s0, 144
  %v26 = vld [vmem:[%s25] ss:$2 sm:$0x7f]
  %s27 = scalar_lea.vmem %s0, 160
  %v28 = vld [vmem:[%s27] ss:$2 sm:$0xff]
  %s29 = scalar_lea.vmem %s0, 176
  %v30 = vld [vmem:[%s29] ss:$2 sm:$0x7f]
  %s31 = scalar_lea.vmem %s0, 192
  %v32 = vld [vmem:[%s31] ss:$2 sm:$0xff]
  %s33 = scalar_lea.vmem %s0, 208
  %v34 = vld [vmem:[%s33] ss:$2 sm:$0x7f]
  %s35 = scalar_lea.vmem %s0, 224
  %v36 = vld [vmem:[%s35] ss:$2 sm:$0xff]
  %s37 = scalar_lea.vmem %s0, 240
  %v38 = vld [vmem:[%s37] ss:$2 sm:$0x7f]
  %s39 = scalar_lea.vmem %s0, 256
  %v40 = vld [vmem:[%s39] ss:$2 sm:$0xff]
  %s41 = scalar_lea.vmem %s0, 272
  %v42 = vld [vmem:[%s41] ss:$2 sm:$0x7f]
  %s43 = scalar_lea.vmem %s0, 288
  %v44 = vld [vmem:[%s43] ss:$2 sm:$0xff]
  %s45 = scalar_lea.vmem %s0, 304
  %v46 = vld [vmem:[%s45] ss:$2 sm:$0x7f]
  %s47 = scalar_lea.vmem %s0, 320
  %v48 = vld [vmem:[%s47] ss:$2 sm:$0xff]
  %s49 = scalar_lea.vmem %s0, 336
  %v50 = vld [vmem:[%s49] ss:$2 sm:$0x7f]
  %s51 = scalar_lea.vmem %s0, 352
  %v52 = vld [vmem:[%s51] ss:$2 sm:$0xff]
  %s53 = scalar_lea.vmem %s0, 368
  %v54 = vld [vmem:[%s53] ss:$2 sm:$0x7f]
  %s55 = scalar_lea.vmem %s0, 384
  %v56 = vld [vmem:[%s55] ss:$2 sm:$0xff]
  %s57 = scalar_lea.vmem %s0, 400
  %v58 = vld [vmem:[%s57] ss:$2 sm:$0x7f]
  %s59 = scalar_lea.vmem %s0, 416
  %v60 = vld [vmem:[%s59] ss:$2 sm:$0xff]
  %s61 = scalar_lea.vmem %s0, 432
  %v62 = vld [vmem:[%s61] ss:$2 sm:$0x7f]
  %s63 = scalar_lea.vmem %s0, 448
  %v64 = vld [vmem:[%s63] ss:$2 sm:$0xff]
  %s65 = scalar_lea.vmem %s0, 464
  %v66 = vld [vmem:[%s65] ss:$2 sm:$0x7f]
  %s67 = scalar_lea.vmem %s0, 480
  %v68 = vld [vmem:[%s67] ss:$2 sm:$0xff]
  %s69 = scalar_lea.vmem %s0, 496
  %v70 = vld [vmem:[%s69] ss:$2 sm:$0x7f]
  %s71 = scalar_lea.vmem %s0, 512
  %v72 = vld [vmem:[%s71] ss:$2 sm:$0xff]
  %s73 = scalar_lea.vmem %s0, 528
  %v74 = vld [vmem:[%s73] ss:$2 sm:$0x7f]
  %s75 = scalar_lea.vmem %s0, 544
  %v76 = vld [vmem:[%s75] ss:$2 sm:$0xff]
  %s77 = scalar_lea.vmem %s0, 560
  %v78 = vld [vmem:[%s77] ss:$2 sm:$0x7f]
  %s79 = scalar_lea.vmem %s0, 576
  %v80 = vld [vmem:[%s79] ss:$2 sm:$0xff]
  %s81 = scalar_lea.vmem %s0, 592
  %v82 = vld [vmem:[%s81] ss:$2 sm:$0x7f]
  %s83 = scalar_lea.vmem %s0, 608
  %v84 = vld [vmem:[%s83] ss:$2 sm:$0xff]
  %s85 = scalar_lea.vmem %s0, 624
  %v86 = vld [vmem:[%s85] ss:$2 sm:$0x7f]
  %s87 = scalar_lea.vmem %s0, 640
  %v88 = vld [vmem:[%s87] ss:$2 sm:$0xff]
  %s89 = scalar_lea.vmem %s0, 656
  %v90 = vld [vmem:[%s89] ss:$2 sm:$0x7f]
  %s91 = scalar_lea.vmem %s0, 672
  %v92 = vld [vmem:[%s91] ss:$2 sm:$0xff]
  %s93 = scalar_lea.vmem %s0, 688
  %v94 = vld [vmem:[%s93] ss:$2 sm:$0x7f]
  %s95 = scalar_lea.vmem %s0, 704
  %v96 = vld [vmem:[%s95] ss:$2 sm:$0xff]
  %s97 = scalar_lea.vmem %s0, 720
  %v98 = vld [vmem:[%s97] ss:$2 sm:$0x7f]
  %s99 = scalar_lea.vmem %s0, 736
  %v100 = vld [vmem:[%s99] ss:$2 sm:$0xff]
  %s101 = scalar_lea.vmem %s0, 752
  %v102 = vld [vmem:[%s101] ss:$2 sm:$0x7f]
  %s103 = scalar_lea.vmem %s0, 768
  %v104 = vld [vmem:[%s103] ss:$2 sm:$0xff]
  %s105 = scalar_lea.vmem %s0, 784
  %v106 = vld [vmem:[%s105] ss:$2 sm:$0x7f]
  %s107 = scalar_lea.vmem %s0, 800
  %v108 = vld [vmem:[%s107] ss:$2 sm:$0xff]
  %s109 = scalar_lea.vmem %s0, 816
  %v110 = vld [vmem:[%s109] ss:$2 sm:$0x7f]
  %s111 = scalar_lea.vmem %s0, 832
  %v112 = vld [vmem:[%s111] ss:$2 sm:$0xff]
  %s113 = scalar_lea.vmem %s0, 848
  %v114 = vld [vmem:[%s113] ss:$2 sm:$0x7f]
  %s115 = scalar_lea.vmem %s0, 864
  %v116 = vld [vmem:[%s115] ss:$2 sm:$0xff]
  %s117 = scalar_lea.vmem %s0, 880
  %v118 = vld [vmem:[%s117] ss:$2 sm:$0x7f]
  %s119 = scalar_lea.vmem %s0, 896
  %v120 = vld [vmem:[%s119] ss:$2 sm:$0xff]
  %s121 = scalar_lea.vmem %s0, 912
  %v122 = vld [vmem:[%s121] ss:$2 sm:$0x7f]
  %s123 = scalar_lea.vmem %s0, 928
  %v124 = vld [vmem:[%s123] ss:$2 sm:$0xff]
  %s125 = scalar_lea.vmem %s0, 944
  %v126 = vld [vmem:[%s125] ss:$2 sm:$0x7f]
  %s127 = scalar_lea.vmem %s0, 960
  %v128 = vld [vmem:[%s127] ss:$2 sm:$0xff]
  %s129 = scalar_lea.vmem %s0, 976
  %v130 = vld [vmem:[%s129] ss:$2 sm:$0x7f]
  %s131 = scalar_lea.vmem %s0, 992
  %v132 = vld [vmem:[%s131] ss:$2 sm:$0xff]
  %s133 = scalar_lea.vmem %s0, 1008
  %v134 = vld [vmem:[%s133] ss:$2 sm:$0x7f]
  %s135 = scalar_lea.vmem %s0, 1024
  %v136 = vld [vmem:[%s135] ss:$2 sm:$0xff]
  %s137 = scalar_lea.vmem %s0, 1040
  %v138 = vld [vmem:[%s137] ss:$2 sm:$0x7f]
  %s139 = scalar_lea.vmem %s0, 1056
  %v140 = vld [vmem:[%s139] ss:$2 sm:$0xff]
  %s141 = scalar_lea.vmem %s0, 1072
  %v142 = vld [vmem:[%s141] ss:$2 sm:$0x7f]
  %s143 = scalar_lea.vmem %s0, 1088
  %v144 = vld [vmem:[%s143] ss:$2 sm:$0xff]
  %s145 = scalar_lea.vmem %s0, 1104
  %v146 = vld [vmem:[%s145] ss:$2 sm:$0x7f]
  %s147 = scalar_lea.vmem %s0, 1120
  %v148 = vld [vmem:[%s147] ss:$2 sm:$0xff]
  %s149 = scalar_lea.vmem %s0, 1136
  %v150 = vld [vmem:[%s149] ss:$2 sm:$0x7f]
  %s151 = scalar_lea.vmem %s0, 1152
  %v152 = vld [vmem:[%s151] ss:$2 sm:$0xff]
  %s153 = scalar_lea.vmem %s0, 1168
  %v154 = vld [vmem:[%s153] ss:$2 sm:$0x7f]
  %s155 = scalar_lea.vmem %s0, 1184
  %v156 = vld [vmem:[%s155] ss:$2 sm:$0xff]
  %s157 = scalar_lea.vmem %s0, 1200
  %v158 = vld [vmem:[%s157] ss:$2 sm:$0x7f]
  %s159 = scalar_lea.vmem %s0, 1216
  %v160 = vld [vmem:[%s159] ss:$2 sm:$0xff]
  %s161 = scalar_lea.vmem %s0, 1232
  %v162 = vld [vmem:[%s161] ss:$2 sm:$0x7f]
  %s163 = scalar_lea.vmem %s0, 1248
  %v164 = vld [vmem:[%s163] ss:$2 sm:$0xff]
  %s165 = scalar_lea.vmem %s0, 1264
  %v166 = vld [vmem:[%s165] ss:$2 sm:$0x7f]
  %s167 = scalar_lea.vmem %s0, 1280
  %v168 = vld [vmem:[%s167] ss:$2 sm:$0xff]
  %s169 = scalar_lea.vmem %s0, 1296
  %v170 = vld [vmem:[%s169] ss:$2 sm:$0x7f]
  %s171 = scalar_lea.vmem %s0, 1312
  %v172 = vld [vmem:[%s171] ss:$2 sm:$0xff]
  %s173 = scalar_lea.vmem %s0, 1328
  %v174 = vld [vmem:[%s173] ss:$2 sm:$0x7f]
  %s175 = scalar_lea.vmem %s0, 1344
  %v176 = vld [vmem:[%s175] ss:$2 sm:$0xff]
  %s177 = scalar_lea.vmem %s0, 1360
  %v178 = vld [vmem:[%s177] ss:$2 sm:$0x7f]
  %s179 = scalar_lea.vmem %s0, 1376
  %v180 = vld [vmem:[%s179] ss:$2 sm:$0xff]
  %s181 = scalar_lea.vmem %s0, 1392
  %v182 = vld [vmem:[%s181] ss:$2 sm:$0x7f]
  %s183 = scalar_lea.vmem %s0, 1408
  %v184 = vld [vmem:[%s183] ss:$2 sm:$0xff]
  %s185 = scalar_lea.vmem %s0, 1424
  %v186 = vld [vmem:[%s185] ss:$2 sm:$0x7f]
  %s187 = scalar_lea.vmem %s0, 1440
  %v188 = vld [vmem:[%s187] ss:$2 sm:$0xff]
  %s189 = scalar_lea.vmem %s0, 1456
  %v190 = vld [vmem:[%s189] ss:$2 sm:$0x7f]
  %s191 = scalar_lea.vmem %s0, 1472
  %v192 = vld [vmem:[%s191] ss:$2 sm:$0xff]
  %s193 = scalar_lea.vmem %s0, 1488
  %v194 = vld [vmem:[%s193] ss:$2 sm:$0x7f]
  %s195 = scalar_lea.vmem %s0, 1504
  %v196 = vld [vmem:[%s195] ss:$2 sm:$0xff]
  %s197 = scalar_lea.vmem %s0, 1520
  %v198 = vld [vmem:[%s197] ss:$2 sm:$0x7f]
  %s199 = scalar_lea.vmem %s0, 1536
  %v200 = vld [vmem:[%s199] ss:$2 sm:$0xff]
  %s201 = scalar_lea.vmem %s0, 1552
  %v202 = vld [vmem:[%s201] ss:$2 sm:$0x7f]
  %s203 = scalar_lea.vmem %s0, 1568
  %v204 = vld [vmem:[%s203] ss:$2 sm:$0xff]
  %s205 = scalar_lea.vmem %s0, 1584
  %v206 = vld [vmem:[%s205] ss:$2 sm:$0x7f]
  %s207 = scalar_lea.vmem %s0, 1600
  %v208 = vld [vmem:[%s207] ss:$2 sm:$0xff]
  %s209 = scalar_lea.vmem %s0, 1616
  %v210 = vld [vmem:[%s209] ss:$2 sm:$0x7f]
  %s211 = scalar_lea.vmem %s0, 1632
  %v212 = vld [vmem:[%s211] ss:$2 sm:$0xff]
  %s213 = scalar_lea.vmem %s0, 1648
  %v214 = vld [vmem:[%s213] ss:$2 sm:$0x7f]
  %s215 = scalar_lea.vmem %s0, 1664
  %v216 = vld [vmem:[%s215] ss:$2 sm:$0xff]
  %s217 = scalar_lea.vmem %s0, 1680
  %v218 = vld [vmem:[%s217] ss:$2 sm:$0x7f]
  %s219 = scalar_lea.vmem %s0, 1696
  %v220 = vld [vmem:[%s219] ss:$2 sm:$0xff]
  %s221 = scalar_lea.vmem %s0, 1712
  %v222 = vld [vmem:[%s221] ss:$2 sm:$0x7f]
  %s223 = scalar_lea.vmem %s0, 1728
  %v224 = vld [vmem:[%s223] ss:$2 sm:$0xff]
  %s225 = scalar_lea.vmem %s0, 1744
  %v226 = vld [vmem:[%s225] ss:$2 sm:$0x7f]
  %s227 = scalar_lea.vmem %s0, 1760
  %v228 = vld [vmem:[%s227] ss:$2 sm:$0xff]
  %s229 = scalar_lea.vmem %s0, 1776
  %v230 = vld [vmem:[%s229] ss:$2 sm:$0x7f]
  %s231 = scalar_lea.vmem %s0, 1792
  %v232 = vld [vmem:[%s231] ss:$2 sm:$0xff]
  %s233 = scalar_lea.vmem %s0, 1808
  %v234 = vld [vmem:[%s233] ss:$2 sm:$0x7f]
  %s235 = scalar_lea.vmem %s0, 1824
  %v236 = vld [vmem:[%s235] ss:$2 sm:$0xff]
  %s237 = scalar_lea.vmem %s0, 1840
  %v238 = vld [vmem:[%s237] ss:$2 sm:$0x7f]
  %s239 = scalar_lea.vmem %s0, 1856
  %v240 = vld [vmem:[%s239] ss:$2 sm:$0xff]
  %s241 = scalar_lea.vmem %s0, 1872
  %v242 = vld [vmem:[%s241] ss:$2 sm:$0x7f]
  %s243 = scalar_lea.vmem %s0, 1888
  %v244 = vld [vmem:[%s243] ss:$2 sm:$0xff]
  %s245 = scalar_lea.vmem %s0, 1904
  %v246 = vld [vmem:[%s245] ss:$2 sm:$0x7f]
  %s247 = scalar_lea.vmem %s0, 1
  %v248 = vld [vmem:[%s247] ss:$2 sm:$0xff]
  %s249 = scalar_lea.vmem %s0, 17
  %v250 = vld [vmem:[%s249] ss:$2 sm:$0x7f]
  %s251 = scalar_lea.vmem %s0, 33
  %v252 = vld [vmem:[%s251] ss:$2 sm:$0xff]
  %s253 = scalar_lea.vmem %s0, 49
  %v254 = vld [vmem:[%s253] ss:$2 sm:$0x7f]
  %s255 = scalar_lea.vmem %s0, 65
  %v256 = vld [vmem:[%s255] ss:$2 sm:$0xff]
  %s257 = scalar_lea.vmem %s0, 81
  %v258 = vld [vmem:[%s257] ss:$2 sm:$0x7f]
  %s259 = scalar_lea.vmem %s0, 97
  %v260 = vld [vmem:[%s259] ss:$2 sm:$0xff]
  %s261 = scalar_lea.vmem %s0, 113
  %v262 = vld [vmem:[%s261] ss:$2 sm:$0x7f]
  %s263 = scalar_lea.vmem %s0, 129
  %v264 = vld [vmem:[%s263] ss:$2 sm:$0xff]
  %s265 = scalar_lea.vmem %s0, 145
  %v266 = vld [vmem:[%s265] ss:$2 sm:$0x7f]
  %s267 = scalar_lea.vmem %s0, 161
  %v268 = vld [vmem:[%s267] ss:$2 sm:$0xff]
  %s269 = scalar_lea.vmem %s0, 177
  %v270 = vld [vmem:[%s269] ss:$2 sm:$0x7f]
  %s271 = scalar_lea.vmem %s0, 193
  %v272 = vld [vmem:[%s271] ss:$2 sm:$0xff]
  %s273 = scalar_lea.vmem %s0, 209
  %v274 = vld [vmem:[%s273] ss:$2 sm:$0x7f]
  %s275 = scalar_lea.vmem %s0, 225
  %v276 = vld [vmem:[%s275] ss:$2 sm:$0xff]
  %s277 = scalar_lea.vmem %s0, 241
  %v278 = vld [vmem:[%s277] ss:$2 sm:$0x7f]
  %s279 = scalar_lea.vmem %s0, 257
  %v280 = vld [vmem:[%s279] ss:$2 sm:$0xff]
  %s281 = scalar_lea.vmem %s0, 273
  %v282 = vld [vmem:[%s281] ss:$2 sm:$0x7f]
  %s283 = scalar_lea.vmem %s0, 289
  %v284 = vld [vmem:[%s283] ss:$2 sm:$0xff]
  %s285 = scalar_lea.vmem %s0, 305
  %v286 = vld [vmem:[%s285] ss:$2 sm:$0x7f]
  %s287 = scalar_lea.vmem %s0, 321
  %v288 = vld [vmem:[%s287] ss:$2 sm:$0xff]
  %s289 = scalar_lea.vmem %s0, 337
  %v290 = vld [vmem:[%s289] ss:$2 sm:$0x7f]
  %s291 = scalar_lea.vmem %s0, 353
  %v292 = vld [vmem:[%s291] ss:$2 sm:$0xff]
  %s293 = scalar_lea.vmem %s0, 369
  %v294 = vld [vmem:[%s293] ss:$2 sm:$0x7f]
  %s295 = scalar_lea.vmem %s0, 385
  %v296 = vld [vmem:[%s295] ss:$2 sm:$0xff]
  %s297 = scalar_lea.vmem %s0, 401
  %v298 = vld [vmem:[%s297] ss:$2 sm:$0x7f]
  %s299 = scalar_lea.vmem %s0, 417
  %v300 = vld [vmem:[%s299] ss:$2 sm:$0xff]
  %s301 = scalar_lea.vmem %s0, 433
  %v302 = vld [vmem:[%s301] ss:$2 sm:$0x7f]
  %s303 = scalar_lea.vmem %s0, 449
  %v304 = vld [vmem:[%s303] ss:$2 sm:$0xff]
  %s305 = scalar_lea.vmem %s0, 465
  %v306 = vld [vmem:[%s305] ss:$2 sm:$0x7f]
  %s307 = scalar_lea.vmem %s0, 481
  %v308 = vld [vmem:[%s307] ss:$2 sm:$0xff]
  %s309 = scalar_lea.vmem %s0, 497
  %v310 = vld [vmem:[%s309] ss:$2 sm:$0x7f]
  %s311 = scalar_lea.vmem %s0, 513
  %v312 = vld [vmem:[%s311] ss:$2 sm:$0xff]
  %s313 = scalar_lea.vmem %s0, 529
  %v314 = vld [vmem:[%s313] ss:$2 sm:$0x7f]
  %s315 = scalar_lea.vmem %s0, 545
  %v316 = vld [vmem:[%s315] ss:$2 sm:$0xff]
  %s317 = scalar_lea.vmem %s0, 561
  %v318 = vld [vmem:[%s317] ss:$2 sm:$0x7f]
  %s319 = scalar_lea.vmem %s0, 577
  %v320 = vld [vmem:[%s319] ss:$2 sm:$0xff]
  %s321 = scalar_lea.vmem %s0, 593
  %v322 = vld [vmem:[%s321] ss:$2 sm:$0x7f]
  %s323 = scalar_lea.vmem %s0, 609
  %v324 = vld [vmem:[%s323] ss:$2 sm:$0xff]
  %s325 = scalar_lea.vmem %s0, 625
  %v326 = vld [vmem:[%s325] ss:$2 sm:$0x7f]
  %s327 = scalar_lea.vmem %s0, 641
  %v328 = vld [vmem:[%s327] ss:$2 sm:$0xff]
  %s329 = scalar_lea.vmem %s0, 657
  %v330 = vld [vmem:[%s329] ss:$2 sm:$0x7f]
  %s331 = scalar_lea.vmem %s0, 673
  %v332 = vld [vmem:[%s331] ss:$2 sm:$0xff]
  %s333 = scalar_lea.vmem %s0, 689
  %v334 = vld [vmem:[%s333] ss:$2 sm:$0x7f]
  %s335 = scalar_lea.vmem %s0, 705
  %v336 = vld [vmem:[%s335] ss:$2 sm:$0xff]
  %s337 = scalar_lea.vmem %s0, 721
  %v338 = vld [vmem:[%s337] ss:$2 sm:$0x7f]
  %s339 = scalar_lea.vmem %s0, 737
  %v340 = vld [vmem:[%s339] ss:$2 sm:$0xff]
  %s341 = scalar_lea.vmem %s0, 753
  %v342 = vld [vmem:[%s341] ss:$2 sm:$0x7f]
  %s343 = scalar_lea.vmem %s0, 769
  %v344 = vld [vmem:[%s343] ss:$2 sm:$0xff]
  %s345 = scalar_lea.vmem %s0, 785
  %v346 = vld [vmem:[%s345] ss:$2 sm:$0x7f]
  %s347 = scalar_lea.vmem %s0, 801
  %v348 = vld [vmem:[%s347] ss:$2 sm:$0xff]
  %s349 = scalar_lea.vmem %s0, 817
  %v350 = vld [vmem:[%s349] ss:$2 sm:$0x7f]
  %s351 = scalar_lea.vmem %s0, 833
  %v352 = vld [vmem:[%s351] ss:$2 sm:$0xff]
  %s353 = scalar_lea.vmem %s0, 849
  %v354 = vld [vmem:[%s353] ss:$2 sm:$0x7f]
  %s355 = scalar_lea.vmem %s0, 865
  %v356 = vld [vmem:[%s355] ss:$2 sm:$0xff]
  %s357 = scalar_lea.vmem %s0, 881
  %v358 = vld [vmem:[%s357] ss:$2 sm:$0x7f]
  %s359 = scalar_lea.vmem %s0, 897
  %v360 = vld [vmem:[%s359] ss:$2 sm:$0xff]
  %s361 = scalar_lea.vmem %s0, 913
  %v362 = vld [vmem:[%s361] ss:$2 sm:$0x7f]
  %s363 = scalar_lea.vmem %s0, 929
  %v364 = vld [vmem:[%s363] ss:$2 sm:$0xff]
  %s365 = scalar_lea.vmem %s0, 945
  %v366 = vld [vmem:[%s365] ss:$2 sm:$0x7f]
  %s367 = scalar_lea.vmem %s0, 961
  %v368 = vld [vmem:[%s367] ss:$2 sm:$0xff]
  %s369 = scalar_lea.vmem %s0, 977
  %v370 = vld [vmem:[%s369] ss:$2 sm:$0x7f]
  %s371 = scalar_lea.vmem %s0, 993
  %v372 = vld [vmem:[%s371] ss:$2 sm:$0xff]
  %s373 = scalar_lea.vmem %s0, 1009
  %v374 = vld [vmem:[%s373] ss:$2 sm:$0x7f]
  %s375 = scalar_lea.vmem %s0, 1025
  %v376 = vld [vmem:[%s375] ss:$2 sm:$0xff]
  %s377 = scalar_lea.vmem %s0, 1041
  %v378 = vld [vmem:[%s377] ss:$2 sm:$0x7f]
  %s379 = scalar_lea.vmem %s0, 1057
  %v380 = vld [vmem:[%s379] ss:$2 sm:$0xff]
  %s381 = scalar_lea.vmem %s0, 1073
  %v382 = vld [vmem:[%s381] ss:$2 sm:$0x7f]
  %s383 = scalar_lea.vmem %s0, 1089
  %v384 = vld [vmem:[%s383] ss:$2 sm:$0xff]
  %s385 = scalar_lea.vmem %s0, 1105
  %v386 = vld [vmem:[%s385] ss:$2 sm:$0x7f]
  %s387 = scalar_lea.vmem %s0, 1121
  %v388 = vld [vmem:[%s387] ss:$2 sm:$0xff]
  %s389 = scalar_lea.vmem %s0, 1137
  %v390 = vld [vmem:[%s389] ss:$2 sm:$0x7f]
  %s391 = scalar_lea.vmem %s0, 1153
  %v392 = vld [vmem:[%s391] ss:$2 sm:$0xff]
  %s393 = scalar_lea.vmem %s0, 1169
  %v394 = vld [vmem:[%s393] ss:$2 sm:$0x7f]
  %s395 = scalar_lea.vmem %s0, 1185
  %v396 = vld [vmem:[%s395] ss:$2 sm:$0xff]
  %s397 = scalar_lea.vmem %s0, 1201
  %v398 = vld [vmem:[%s397] ss:$2 sm:$0x7f]
  %s399 = scalar_lea.vmem %s0, 1217
  %v400 = vld [vmem:[%s399] ss:$2 sm:$0xff]
  %s401 = scalar_lea.vmem %s0, 1233
  %v402 = vld [vmem:[%s401] ss:$2 sm:$0x7f]
  %s403 = scalar_lea.vmem %s0, 1249
  %v404 = vld [vmem:[%s403] ss:$2 sm:$0xff]
  %s405 = scalar_lea.vmem %s0, 1265
  %v406 = vld [vmem:[%s405] ss:$2 sm:$0x7f]
  %s407 = scalar_lea.vmem %s0, 1281
  %v408 = vld [vmem:[%s407] ss:$2 sm:$0xff]
  %s409 = scalar_lea.vmem %s0, 1297
  %v410 = vld [vmem:[%s409] ss:$2 sm:$0x7f]
  %s411 = scalar_lea.vmem %s0, 1313
  %v412 = vld [vmem:[%s411] ss:$2 sm:$0xff]
  %s413 = scalar_lea.vmem %s0, 1329
  %v414 = vld [vmem:[%s413] ss:$2 sm:$0x7f]
  %s415 = scalar_lea.vmem %s0, 1345
  %v416 = vld [vmem:[%s415] ss:$2 sm:$0xff]
  %s417 = scalar_lea.vmem %s0, 1361
  %v418 = vld [vmem:[%s417] ss:$2 sm:$0x7f]
  %s419 = scalar_lea.vmem %s0, 1377
  %v420 = vld [vmem:[%s419] ss:$2 sm:$0xff]
  %s421 = scalar_lea.vmem %s0, 1393
  %v422 = vld [vmem:[%s421] ss:$2 sm:$0x7f]
  %s423 = scalar_lea.vmem %s0, 1409
  %v424 = vld [vmem:[%s423] ss:$2 sm:$0xff]
  %s425 = scalar_lea.vmem %s0, 1425
  %v426 = vld [vmem:[%s425] ss:$2 sm:$0x7f]
  %s427 = scalar_lea.vmem %s0, 1441
  %v428 = vld [vmem:[%s427] ss:$2 sm:$0xff]
  %s429 = scalar_lea.vmem %s0, 1457
  %v430 = vld [vmem:[%s429] ss:$2 sm:$0x7f]
  %s431 = scalar_lea.vmem %s0, 1473
  %v432 = vld [vmem:[%s431] ss:$2 sm:$0xff]
  %s433 = scalar_lea.vmem %s0, 1489
  %v434 = vld [vmem:[%s433] ss:$2 sm:$0x7f]
  %s435 = scalar_lea.vmem %s0, 1505
  %v436 = vld [vmem:[%s435] ss:$2 sm:$0xff]
  %s437 = scalar_lea.vmem %s0, 1521
  %v438 = vld [vmem:[%s437] ss:$2 sm:$0x7f]
  %s439 = scalar_lea.vmem %s0, 1537
  %v440 = vld [vmem:[%s439] ss:$2 sm:$0xff]
  %s441 = scalar_lea.vmem %s0, 1553
  %v442 = vld [vmem:[%s441] ss:$2 sm:$0x7f]
  %s443 = scalar_lea.vmem %s0, 1569
  %v444 = vld [vmem:[%s443] ss:$2 sm:$0xff]
  %s445 = scalar_lea.vmem %s0, 1585
  %v446 = vld [vmem:[%s445] ss:$2 sm:$0x7f]
  %s447 = scalar_lea.vmem %s0, 1601
  %v448 = vld [vmem:[%s447] ss:$2 sm:$0xff]
  %s449 = scalar_lea.vmem %s0, 1617
  %v450 = vld [vmem:[%s449] ss:$2 sm:$0x7f]
  %s451 = scalar_lea.vmem %s0, 1633
  %v452 = vld [vmem:[%s451] ss:$2 sm:$0xff]
  %s453 = scalar_lea.vmem %s0, 1649
  %v454 = vld [vmem:[%s453] ss:$2 sm:$0x7f]
  %s455 = scalar_lea.vmem %s0, 1665
  %v456 = vld [vmem:[%s455] ss:$2 sm:$0xff]
  %s457 = scalar_lea.vmem %s0, 1681
  %v458 = vld [vmem:[%s457] ss:$2 sm:$0x7f]
  %s459 = scalar_lea.vmem %s0, 1697
  %v460 = vld [vmem:[%s459] ss:$2 sm:$0xff]
  %s461 = scalar_lea.vmem %s0, 1713
  %v462 = vld [vmem:[%s461] ss:$2 sm:$0x7f]
  %s463 = scalar_lea.vmem %s0, 1729
  %v464 = vld [vmem:[%s463] ss:$2 sm:$0xff]
  %s465 = scalar_lea.vmem %s0, 1745
  %v466 = vld [vmem:[%s465] ss:$2 sm:$0x7f]
  %s467 = scalar_lea.vmem %s0, 1761
  %v468 = vld [vmem:[%s467] ss:$2 sm:$0xff]
  %s469 = scalar_lea.vmem %s0, 1777
  %v470 = vld [vmem:[%s469] ss:$2 sm:$0x7f]
  %s471 = scalar_lea.vmem %s0, 1793
  %v472 = vld [vmem:[%s471] ss:$2 sm:$0xff]
  %s473 = scalar_lea.vmem %s0, 1809
  %v474 = vld [vmem:[%s473] ss:$2 sm:$0x7f]
  %s475 = scalar_lea.vmem %s0, 1825
  %v476 = vld [vmem:[%s475] ss:$2 sm:$0xff]
  %s477 = scalar_lea.vmem %s0, 1841
  %v478 = vld [vmem:[%s477] ss:$2 sm:$0x7f]
  %s479 = scalar_lea.vmem %s0, 1857
  %v480 = vld [vmem:[%s479] ss:$2 sm:$0xff]
  %s481 = scalar_lea.vmem %s0, 1873
  %v482 = vld [vmem:[%s481] ss:$2 sm:$0x7f]
  %s483 = scalar_lea.vmem %s0, 1889
  %v484 = vld [vmem:[%s483] ss:$2 sm:$0xff]
  %s485 = scalar_lea.vmem %s0, 1905
  %v486 = vld [vmem:[%s485] ss:$2 sm:$0x7f]
  %v487 = vmax.f32 %v8, %v248
  %v488 = vmax.f32 %v10, %v250
  %v489 = vmax.f32 %v12, %v252
  %v490 = vmax.f32 %v14, %v254
  %v491 = vmax.f32 %v16, %v256
  %v492 = vmax.f32 %v18, %v258
  %v493 = vmax.f32 %v20, %v260
  %v494 = vmax.f32 %v22, %v262
  %v495 = vmax.f32 %v24, %v264
  %v496 = vmax.f32 %v26, %v266
  %v497 = vmax.f32 %v28, %v268
  %v498 = vmax.f32 %v30, %v270
  %v499 = vmax.f32 %v32, %v272
  %v500 = vmax.f32 %v34, %v274
  %v501 = vmax.f32 %v36, %v276
  %v502 = vmax.f32 %v38, %v278
  %v503 = vmax.f32 %v40, %v280
  %v504 = vmax.f32 %v42, %v282
  %v505 = vmax.f32 %v44, %v284
  %v506 = vmax.f32 %v46, %v286
  %v507 = vmax.f32 %v48, %v288
  %v508 = vmax.f32 %v50, %v290
  %v509 = vmax.f32 %v52, %v292
  %v510 = vmax.f32 %v54, %v294
  %v511 = vmax.f32 %v56, %v296
  %v512 = vmax.f32 %v58, %v298
  %v513 = vmax.f32 %v60, %v300
  %v514 = vmax.f32 %v62, %v302
  %v515 = vmax.f32 %v64, %v304
  %v516 = vmax.f32 %v66, %v306
  %v517 = vmax.f32 %v68, %v308
  %v518 = vmax.f32 %v70, %v310
  %v519 = vmax.f32 %v72, %v312
  %v520 = vmax.f32 %v74, %v314
  %v521 = vmax.f32 %v76, %v316
  %v522 = vmax.f32 %v78, %v318
  %v523 = vmax.f32 %v80, %v320
  %v524 = vmax.f32 %v82, %v322
  %v525 = vmax.f32 %v84, %v324
  %v526 = vmax.f32 %v86, %v326
  %v527 = vmax.f32 %v88, %v328
  %v528 = vmax.f32 %v90, %v330
  %v529 = vmax.f32 %v92, %v332
  %v530 = vmax.f32 %v94, %v334
  %v531 = vmax.f32 %v96, %v336
  %v532 = vmax.f32 %v98, %v338
  %v533 = vmax.f32 %v100, %v340
  %v534 = vmax.f32 %v102, %v342
  %v535 = vmax.f32 %v104, %v344
  %v536 = vmax.f32 %v106, %v346
  %v537 = vmax.f32 %v108, %v348
  %v538 = vmax.f32 %v110, %v350
  %v539 = vmax.f32 %v112, %v352
  %v540 = vmax.f32 %v114, %v354
  %v541 = vmax.f32 %v116, %v356
  %v542 = vmax.f32 %v118, %v358
  %v543 = vmax.f32 %v120, %v360
  %v544 = vmax.f32 %v122, %v362
  %v545 = vmax.f32 %v124, %v364
  %v546 = vmax.f32 %v126, %v366
  %v547 = vmax.f32 %v128, %v368
  %v548 = vmax.f32 %v130, %v370
  %v549 = vmax.f32 %v132, %v372
  %v550 = vmax.f32 %v134, %v374
  %v551 = vmax.f32 %v136, %v376
  %v552 = vmax.f32 %v138, %v378
  %v553 = vmax.f32 %v140, %v380
  %v554 = vmax.f32 %v142, %v382
  %v555 = vmax.f32 %v144, %v384
  %v556 = vmax.f32 %v146, %v386
  %v557 = vmax.f32 %v148, %v388
  %v558 = vmax.f32 %v150, %v390
  %v559 = vmax.f32 %v152, %v392
  %v560 = vmax.f32 %v154, %v394
  %v561 = vmax.f32 %v156, %v396
  %v562 = vmax.f32 %v158, %v398
  %v563 = vmax.f32 %v160, %v400
  %v564 = vmax.f32 %v162, %v402
  %v565 = vmax.f32 %v164, %v404
  %v566 = vmax.f32 %v166, %v406
  %v567 = vmax.f32 %v168, %v408
  %v568 = vmax.f32 %v170, %v410
  %v569 = vmax.f32 %v172, %v412
  %v570 = vmax.f32 %v174, %v414
  %v571 = vmax.f32 %v176, %v416
  %v572 = vmax.f32 %v178, %v418
  %v573 = vmax.f32 %v180, %v420
  %v574 = vmax.f32 %v182, %v422
  %v575 = vmax.f32 %v184, %v424
  %v576 = vmax.f32 %v186, %v426
  %v577 = vmax.f32 %v188, %v428
  %v578 = vmax.f32 %v190, %v430
  %v579 = vmax.f32 %v192, %v432
  %v580 = vmax.f32 %v194, %v434
  %v581 = vmax.f32 %v196, %v436
  %v582 = vmax.f32 %v198, %v438
  %v583 = vmax.f32 %v200, %v440
  %v584 = vmax.f32 %v202, %v442
  %v585 = vmax.f32 %v204, %v444
  %v586 = vmax.f32 %v206, %v446
  %v587 = vmax.f32 %v208, %v448
  %v588 = vmax.f32 %v210, %v450
  %v589 = vmax.f32 %v212, %v452
  %v590 = vmax.f32 %v214, %v454
  %v591 = vmax.f32 %v216, %v456
  %v592 = vmax.f32 %v218, %v458
  %v593 = vmax.f32 %v220, %v460
  %v594 = vmax.f32 %v222, %v462
  %v595 = vmax.f32 %v224, %v464
  %v596 = vmax.f32 %v226, %v466
  %v597 = vmax.f32 %v228, %v468
  %v598 = vmax.f32 %v230, %v470
  %v599 = vmax.f32 %v232, %v472
  %v600 = vmax.f32 %v234, %v474
  %v601 = vmax.f32 %v236, %v476
  %v602 = vmax.f32 %v238, %v478
  %v603 = vmax.f32 %v240, %v480
  %v604 = vmax.f32 %v242, %v482
  %v605 = vmax.f32 %v244, %v484
  %v606 = vmax.f32 %v246, %v486
  %v607 = vmax.f32 %v487, %v489
  %v608 = vmax.f32 %v488, %v490
  %v609 = vmax.f32 %v491, %v493
  %v610 = vmax.f32 %v492, %v494
  %v611 = vmax.f32 %v495, %v497
  %v612 = vmax.f32 %v496, %v498
  %v613 = vmax.f32 %v499, %v501
  %v614 = vmax.f32 %v500, %v502
  %v615 = vmax.f32 %v503, %v505
  %v616 = vmax.f32 %v504, %v506
  %v617 = vmax.f32 %v507, %v509
  %v618 = vmax.f32 %v508, %v510
  %v619 = vmax.f32 %v511, %v513
  %v620 = vmax.f32 %v512, %v514
  %v621 = vmax.f32 %v515, %v517
  %v622 = vmax.f32 %v516, %v518
  %v623 = vmax.f32 %v519, %v521
  %v624 = vmax.f32 %v520, %v522
  %v625 = vmax.f32 %v523, %v525
  %v626 = vmax.f32 %v524, %v526
  %v627 = vmax.f32 %v527, %v529
  %v628 = vmax.f32 %v528, %v530
  %v629 = vmax.f32 %v531, %v533
  %v630 = vmax.f32 %v532, %v534
  %v631 = vmax.f32 %v535, %v537
  %v632 = vmax.f32 %v536, %v538
  %v633 = vmax.f32 %v539, %v541
  %v634 = vmax.f32 %v540, %v542
  %v635 = vmax.f32 %v543, %v545
  %v636 = vmax.f32 %v544, %v546
  %v637 = vmax.f32 %v547, %v549
  %v638 = vmax.f32 %v548, %v550
  %v639 = vmax.f32 %v551, %v553
  %v640 = vmax.f32 %v552, %v554
  %v641 = vmax.f32 %v555, %v557
  %v642 = vmax.f32 %v556, %v558
  %v643 = vmax.f32 %v559, %v561
  %v644 = vmax.f32 %v560, %v562
  %v645 = vmax.f32 %v563, %v565
  %v646 = vmax.f32 %v564, %v566
  %v647 = vmax.f32 %v567, %v569
  %v648 = vmax.f32 %v568, %v570
  %v649 = vmax.f32 %v571, %v573
  %v650 = vmax.f32 %v572, %v574
  %v651 = vmax.f32 %v575, %v577
  %v652 = vmax.f32 %v576, %v578
  %v653 = vmax.f32 %v579, %v581
  %v654 = vmax.f32 %v580, %v582
  %v655 = vmax.f32 %v583, %v585
  %v656 = vmax.f32 %v584, %v586
  %v657 = vmax.f32 %v587, %v589
  %v658 = vmax.f32 %v588, %v590
  %v659 = vmax.f32 %v591, %v593
  %v660 = vmax.f32 %v592, %v594
  %v661 = vmax.f32 %v595, %v597
  %v662 = vmax.f32 %v596, %v598
  %v663 = vmax.f32 %v599, %v601
  %v664 = vmax.f32 %v600, %v602
  %v665 = vmax.f32 %v603, %v605
  %v666 = vmax.f32 %v604, %v606
  %v667 = vpack.c.bf16 %v608, %v607
  %v668 = vpack.c.bf16 %v610, %v609
  %v669 = vpack.c.bf16 %v612, %v611
  %v670 = vpack.c.bf16 %v614, %v613
  %v671 = vpack.c.bf16 %v616, %v615
  %v672 = vpack.c.bf16 %v618, %v617
  %v673 = vpack.c.bf16 %v620, %v619
  %v674 = vpack.c.bf16 %v622, %v621
  %v675 = vpack.c.bf16 %v624, %v623
  %v676 = vpack.c.bf16 %v626, %v625
  %v677 = vpack.c.bf16 %v628, %v627
  %v678 = vpack.c.bf16 %v630, %v629
  %v679 = vpack.c.bf16 %v632, %v631
  %v680 = vpack.c.bf16 %v634, %v633
  %v681 = vpack.c.bf16 %v636, %v635
  %v682 = vpack.c.bf16 %v638, %v637
  %v683 = vpack.c.bf16 %v640, %v639
  %v684 = vpack.c.bf16 %v642, %v641
  %v685 = vpack.c.bf16 %v644, %v643
  %v686 = vpack.c.bf16 %v646, %v645
  %v687 = vpack.c.bf16 %v648, %v647
  %v688 = vpack.c.bf16 %v650, %v649
  %v689 = vpack.c.bf16 %v652, %v651
  %v690 = vpack.c.bf16 %v654, %v653
  %v691 = vpack.c.bf16 %v656, %v655
  %v692 = vpack.c.bf16 %v658, %v657
  %v693 = vpack.c.bf16 %v660, %v659
  %v694 = vpack.c.bf16 %v662, %v661
  %v695 = vpack.c.bf16 %v664, %v663
  %v696 = vpack.c.bf16 %v666, %v665
  %v727 = vunpack.c.l.b16 %v667
  %v728 = vunpack.c.h.b16 %v667
  %v729 = vunpack.c.l.b16 %v668
  %v730 = vunpack.c.h.b16 %v668
  %v731 = vunpack.c.l.b16 %v669
  %v732 = vunpack.c.h.b16 %v669
  %v733 = vunpack.c.l.b16 %v670
  %v734 = vunpack.c.h.b16 %v670
  %v735 = vunpack.c.l.b16 %v671
  %v736 = vunpack.c.h.b16 %v671
  %v737 = vunpack.c.l.b16 %v672
  %v738 = vunpack.c.h.b16 %v672
  %v739 = vunpack.c.l.b16 %v673
  %v740 = vunpack.c.h.b16 %v673
  %v741 = vunpack.c.l.b16 %v674
  %v742 = vunpack.c.h.b16 %v674
  %v743 = vunpack.c.l.b16 %v675
  %v744 = vunpack.c.h.b16 %v675
  %v745 = vunpack.c.l.b16 %v676
  %v746 = vunpack.c.h.b16 %v676
  %v747 = vunpack.c.l.b16 %v677
  %v748 = vunpack.c.h.b16 %v677
  %v749 = vunpack.c.l.b16 %v678
  %v750 = vunpack.c.h.b16 %v678
  %v751 = vunpack.c.l.b16 %v679
  %v752 = vunpack.c.h.b16 %v679
  %v753 = vunpack.c.l.b16 %v680
  %v754 = vunpack.c.h.b16 %v680
  %v755 = vunpack.c.l.b16 %v681
  %v756 = vunpack.c.h.b16 %v681
  %v757 = vunpack.c.l.b16 %v682
  %v758 = vunpack.c.h.b16 %v682
  %v759 = vunpack.c.l.b16 %v683
  %v760 = vunpack.c.h.b16 %v683
  %v761 = vunpack.c.l.b16 %v684
  %v762 = vunpack.c.h.b16 %v684
  %v763 = vunpack.c.l.b16 %v685
  %v764 = vunpack.c.h.b16 %v685
  %v765 = vunpack.c.l.b16 %v686
  %v766 = vunpack.c.h.b16 %v686
  %v767 = vunpack.c.l.b16 %v687
  %v768 = vunpack.c.h.b16 %v687
  %v769 = vunpack.c.l.b16 %v688
  %v770 = vunpack.c.h.b16 %v688
  %v771 = vunpack.c.l.b16 %v689
  %v772 = vunpack.c.h.b16 %v689
  %v773 = vunpack.c.l.b16 %v690
  %v774 = vunpack.c.h.b16 %v690
  %v775 = vunpack.c.l.b16 %v691
  %v776 = vunpack.c.h.b16 %v691
  %v777 = vunpack.c.l.b16 %v692
  %v778 = vunpack.c.h.b16 %v692
  %v779 = vunpack.c.l.b16 %v693
  %v780 = vunpack.c.h.b16 %v693
  %v781 = vunpack.c.l.b16 %v694
  %v782 = vunpack.c.h.b16 %v694
  %v783 = vunpack.c.l.b16 %v695
  %v784 = vunpack.c.h.b16 %v695
  %v785 = vunpack.c.l.b16 %v696
  %v786 = vunpack.c.h.b16 %v696
  %v787 = vpack.c.b16 %v727, %v727
  %v788 = vpack.c.b16 %v728, %v728
  %v789 = vpack.c.b16 %v729, %v729
  %v790 = vpack.c.b16 %v730, %v730
  %v791 = vpack.c.b16 %v731, %v731
  %v792 = vpack.c.b16 %v732, %v732
  %v793 = vpack.c.b16 %v733, %v733
  %v794 = vpack.c.b16 %v734, %v734
  %v795 = vpack.c.b16 %v735, %v735
  %v796 = vpack.c.b16 %v736, %v736
  %v797 = vpack.c.b16 %v737, %v737
  %v798 = vpack.c.b16 %v738, %v738
  %v799 = vpack.c.b16 %v739, %v739
  %v800 = vpack.c.b16 %v740, %v740
  %v801 = vpack.c.b16 %v741, %v741
  %v802 = vpack.c.b16 %v742, %v742
  %v803 = vpack.c.b16 %v743, %v743
  %v804 = vpack.c.b16 %v744, %v744
  %v805 = vpack.c.b16 %v745, %v745
  %v806 = vpack.c.b16 %v746, %v746
  %v807 = vpack.c.b16 %v747, %v747
  %v808 = vpack.c.b16 %v748, %v748
  %v809 = vpack.c.b16 %v749, %v749
  %v810 = vpack.c.b16 %v750, %v750
  %v811 = vpack.c.b16 %v751, %v751
  %v812 = vpack.c.b16 %v752, %v752
  %v813 = vpack.c.b16 %v753, %v753
  %v814 = vpack.c.b16 %v754, %v754
  %v815 = vpack.c.b16 %v755, %v755
  %v816 = vpack.c.b16 %v756, %v756
  %v817 = vpack.c.b16 %v757, %v757
  %v818 = vpack.c.b16 %v758, %v758
  %v819 = vpack.c.b16 %v759, %v759
  %v820 = vpack.c.b16 %v760, %v760
  %v821 = vpack.c.b16 %v761, %v761
  %v822 = vpack.c.b16 %v762, %v762
  %v823 = vpack.c.b16 %v763, %v763
  %v824 = vpack.c.b16 %v764, %v764
  %v825 = vpack.c.b16 %v765, %v765
  %v826 = vpack.c.b16 %v766, %v766
  %v827 = vpack.c.b16 %v767, %v767
  %v828 = vpack.c.b16 %v768, %v768
  %v829 = vpack.c.b16 %v769, %v769
  %v830 = vpack.c.b16 %v770, %v770
  %v831 = vpack.c.b16 %v771, %v771
  %v832 = vpack.c.b16 %v772, %v772
  %v833 = vpack.c.b16 %v773, %v773
  %v834 = vpack.c.b16 %v774, %v774
  %v835 = vpack.c.b16 %v775, %v775
  %v836 = vpack.c.b16 %v776, %v776
  %v837 = vpack.c.b16 %v777, %v777
  %v838 = vpack.c.b16 %v778, %v778
  %v839 = vpack.c.b16 %v779, %v779
  %v840 = vpack.c.b16 %v780, %v780
  %v841 = vpack.c.b16 %v781, %v781
  %v842 = vpack.c.b16 %v782, %v782
  %v843 = vpack.c.b16 %v783, %v783
  %v844 = vpack.c.b16 %v784, %v784
  %v845 = vpack.c.b16 %v785, %v785
  %v846 = vpack.c.b16 %v786, %v786
  %vm907 = vcmask 519168
  %908 = vst.msk [vmem:[%s1] sm:$0xf] %vm907, %v787
  %vm909 = vcmask 519168
  %vm910 = vsmask.f32 3328
  %vm911 = vmand %vm909, %vm910
  %v912 = vld [vmem:[%s1 + $0x4] sm:$0xf]
  %v913 = vsel %vm911, %v788, %v912
  %914 = vst [vmem:[%s1 + $0x4] sm:$0xf] %v913
  %915 = vst.msk [vmem:[%s1 + $0x8] sm:$0xf] %vm907, %v789
  %v916 = vld [vmem:[%s1 + $0xc] sm:$0xf]
  %v917 = vsel %vm911, %v790, %v916
  %918 = vst [vmem:[%s1 + $0xc] sm:$0xf] %v917
  %919 = vst.msk [vmem:[%s1 + $0x10] sm:$0xf] %vm907, %v791
  %v920 = vld [vmem:[%s1 + $0x14] sm:$0xf]
  %v921 = vsel %vm911, %v792, %v920
  %922 = vst [vmem:[%s1 + $0x14] sm:$0xf] %v921
  %923 = vst.msk [vmem:[%s1 + $0x18] sm:$0xf] %vm907, %v793
  %v924 = vld [vmem:[%s1 + $0x1c] sm:$0xf]
  %v925 = vsel %vm911, %v794, %v924
  %926 = vst [vmem:[%s1 + $0x1c] sm:$0xf] %v925
  %927 = vst.msk [vmem:[%s1 + $0x20] sm:$0xf] %vm907, %v795
  %v928 = vld [vmem:[%s1 + $0x24] sm:$0xf]
  %v929 = vsel %vm911, %v796, %v928
  %930 = vst [vmem:[%s1 + $0x24] sm:$0xf] %v929
  %931 = vst.msk [vmem:[%s1 + $0x28] sm:$0xf] %vm907, %v797
  %v932 = vld [vmem:[%s1 + $0x2c] sm:$0xf]
  %v933 = vsel %vm911, %v798, %v932
  %934 = vst [vmem:[%s1 + $0x2c] sm:$0xf] %v933
  %935 = vst.msk [vmem:[%s1 + $0x30] sm:$0xf] %vm907, %v799
  %v936 = vld [vmem:[%s1 + $0x34] sm:$0xf]
  %v937 = vsel %vm911, %v800, %v936
  %938 = vst [vmem:[%s1 + $0x34] sm:$0xf] %v937
  %939 = vst.msk [vmem:[%s1 + $0x38] sm:$0xf] %vm907, %v801
  %v940 = vld [vmem:[%s1 + $0x3c] sm:$0xf]
  %v941 = vsel %vm911, %v802, %v940
  %942 = vst [vmem:[%s1 + $0x3c] sm:$0xf] %v941
  %943 = vst.msk [vmem:[%s1 + $0x40] sm:$0xf] %vm907, %v803
  %v944 = vld [vmem:[%s1 + $0x44] sm:$0xf]
  %v945 = vsel %vm911, %v804, %v944
  %946 = vst [vmem:[%s1 + $0x44] sm:$0xf] %v945
  %947 = vst.msk [vmem:[%s1 + $0x48] sm:$0xf] %vm907, %v805
  %v948 = vld [vmem:[%s1 + $0x4c] sm:$0xf]
  %v949 = vsel %vm911, %v806, %v948
  %950 = vst [vmem:[%s1 + $0x4c] sm:$0xf] %v949
  %951 = vst.msk [vmem:[%s1 + $0x50] sm:$0xf] %vm907, %v807
  %v952 = vld [vmem:[%s1 + $0x54] sm:$0xf]
  %v953 = vsel %vm911, %v808, %v952
  %954 = vst [vmem:[%s1 + $0x54] sm:$0xf] %v953
  %955 = vst.msk [vmem:[%s1 + $0x58] sm:$0xf] %vm907, %v809
  %v956 = vld [vmem:[%s1 + $0x5c] sm:$0xf]
  %v957 = vsel %vm911, %v810, %v956
  %958 = vst [vmem:[%s1 + $0x5c] sm:$0xf] %v957
  %959 = vst.msk [vmem:[%s1 + $0x60] sm:$0xf] %vm907, %v811
  %v960 = vld [vmem:[%s1 + $0x64] sm:$0xf]
  %v961 = vsel %vm911, %v812, %v960
  %962 = vst [vmem:[%s1 + $0x64] sm:$0xf] %v961
  %963 = vst.msk [vmem:[%s1 + $0x68] sm:$0xf] %vm907, %v813
  %v964 = vld [vmem:[%s1 + $0x6c] sm:$0xf]
  %v965 = vsel %vm911, %v814, %v964
  %966 = vst [vmem:[%s1 + $0x6c] sm:$0xf] %v965
  %967 = vst.msk [vmem:[%s1 + $0x70] sm:$0xf] %vm907, %v815
  %v968 = vld [vmem:[%s1 + $0x74] sm:$0xf]
  %v969 = vsel %vm911, %v816, %v968
  %970 = vst [vmem:[%s1 + $0x74] sm:$0xf] %v969
  %971 = vst.msk [vmem:[%s1 + $0x78] sm:$0xf] %vm907, %v817
  %v972 = vld [vmem:[%s1 + $0x7c] sm:$0xf]
  %v973 = vsel %vm911, %v818, %v972
  %974 = vst [vmem:[%s1 + $0x7c] sm:$0xf] %v973
  %975 = vst.msk [vmem:[%s1 + $0x80] sm:$0xf] %vm907, %v819
  %v976 = vld [vmem:[%s1 + $0x84] sm:$0xf]
  %v977 = vsel %vm911, %v820, %v976
  %978 = vst [vmem:[%s1 + $0x84] sm:$0xf] %v977
  %979 = vst.msk [vmem:[%s1 + $0x88] sm:$0xf] %vm907, %v821
  %v980 = vld [vmem:[%s1 + $0x8c] sm:$0xf]
  %v981 = vsel %vm911, %v822, %v980
  %982 = vst [vmem:[%s1 + $0x8c] sm:$0xf] %v981
  %983 = vst.msk [vmem:[%s1 + $0x90] sm:$0xf] %vm907, %v823
  %v984 = vld [vmem:[%s1 + $0x94] sm:$0xf]
  %v985 = vsel %vm911, %v824, %v984
  %986 = vst [vmem:[%s1 + $0x94] sm:$0xf] %v985
  %987 = vst.msk [vmem:[%s1 + $0x98] sm:$0xf] %vm907, %v825
  %v988 = vld [vmem:[%s1 + $0x9c] sm:$0xf]
  %v989 = vsel %vm911, %v826, %v988
  %990 = vst [vmem:[%s1 + $0x9c] sm:$0xf] %v989
  %991 = vst.msk [vmem:[%s1 + $0xa0] sm:$0xf] %vm907, %v827
  %v992 = vld [vmem:[%s1 + $0xa4] sm:$0xf]
  %v993 = vsel %vm911, %v828, %v992
  %994 = vst [vmem:[%s1 + $0xa4] sm:$0xf] %v993
  %995 = vst.msk [vmem:[%s1 + $0xa8] sm:$0xf] %vm907, %v829
  %v996 = vld [vmem:[%s1 + $0xac] sm:$0xf]
  %v997 = vsel %vm911, %v830, %v996
  %998 = vst [vmem:[%s1 + $0xac] sm:$0xf] %v997
  %999 = vst.msk [vmem:[%s1 + $0xb0] sm:$0xf] %vm907, %v831
  %v1000 = vld [vmem:[%s1 + $0xb4] sm:$0xf]
  %v1001 = vsel %vm911, %v832, %v1000
  %1002 = vst [vmem:[%s1 + $0xb4] sm:$0xf] %v1001
  %1003 = vst.msk [vmem:[%s1 + $0xb8] sm:$0xf] %vm907, %v833
  %v1004 = vld [vmem:[%s1 + $0xbc] sm:$0xf]
  %v1005 = vsel %vm911, %v834, %v1004
  %1006 = vst [vmem:[%s1 + $0xbc] sm:$0xf] %v1005
  %1007 = vst.msk [vmem:[%s1 + $0xc0] sm:$0xf] %vm907, %v835
  %v1008 = vld [vmem:[%s1 + $0xc4] sm:$0xf]
  %v1009 = vsel %vm911, %v836, %v1008
  %1010 = vst [vmem:[%s1 + $0xc4] sm:$0xf] %v1009
  %1011 = vst.msk [vmem:[%s1 + $0xc8] sm:$0xf] %vm907, %v837
  %v1012 = vld [vmem:[%s1 + $0xcc] sm:$0xf]
  %v1013 = vsel %vm911, %v838, %v1012
  %1014 = vst [vmem:[%s1 + $0xcc] sm:$0xf] %v1013
  %1015 = vst.msk [vmem:[%s1 + $0xd0] sm:$0xf] %vm907, %v839
  %v1016 = vld [vmem:[%s1 + $0xd4] sm:$0xf]
  %v1017 = vsel %vm911, %v840, %v1016
  %1018 = vst [vmem:[%s1 + $0xd4] sm:$0xf] %v1017
  %1019 = vst.msk [vmem:[%s1 + $0xd8] sm:$0xf] %vm907, %v841
  %v1020 = vld [vmem:[%s1 + $0xdc] sm:$0xf]
  %v1021 = vsel %vm911, %v842, %v1020
  %1022 = vst [vmem:[%s1 + $0xdc] sm:$0xf] %v1021
  %1023 = vst.msk [vmem:[%s1 + $0xe0] sm:$0xf] %vm907, %v843
  %v1024 = vld [vmem:[%s1 + $0xe4] sm:$0xf]
  %v1025 = vsel %vm911, %v844, %v1024
  %1026 = vst [vmem:[%s1 + $0xe4] sm:$0xf] %v1025
  %1027 = vst.msk [vmem:[%s1 + $0xe8] sm:$0xf] %vm907, %v845
  %v1028 = vld [vmem:[%s1 + $0xec] sm:$0xf]
  %v1029 = vsel %vm911, %v846, %v1028
  %1030 = vst [vmem:[%s1 + $0xec] sm:$0xf] %v1029
  // Predicated region
  $region6: #{semantic_net_forward.7} parent=0 // pred_check
    _
  $region7: #{semantic_net_forward.7} parent=0 // pred_check_branch
    %1032 = sbr.rel (0) target = $region9
  $region8: #{semantic_net_forward.7} parent=0 // pred_region
    _
  $region9: #{semantic_net_forward.7} parent=0 // pred_fallthru
    _
  // Predicated region
  $region10: #{semantic_net_forward.7} parent=0 // pred_check
    _
  $region11: #{semantic_net_forward.7} parent=0 // pred_check_branch
    %1034 = sbr.rel (0) target = $region13
  $region12: #{semantic_net_forward.7} parent=0 // pred_region
    _
  $region13: #{semantic_net_forward.7} parent=0 // pred_fallthru
    _

// kernel: semantic_net_forward.8
$region0: #{semantic_net_forward.8}
  #allocation0 [shape = 'u32[]', space=smem, size = 0x4, offset = 0x4, fixed_abs, tag = 'smem constant byte address 0x4 - core index']
  #allocation1 [shape = 'u32[144,128]{1,0:T(1,128)}', space=vmem, size = 0x12000, scoped, tag = 'internal scratch']
  #allocation2 [shape = 'f32[256,128]{1,0:T(8,128)}', space=vmem, size = 0x20000, scoped, tag = 'scratch operand']
  %s0 = inlined_call_operand.vmem [shape: bf16[338,576], index: 0, kind: input, shape index: {}]
  %s1 = inlined_call_operand.vmem [shape: bf16[576,128], index: 1, kind: input, shape index: {}]
  %s2 = inlined_call_operand.vmem [shape: f32[1,128], index: 2, kind: input, shape index: {}]
  %s3 = inlined_call_operand.vmem [shape: f32[338,128], index: 3, kind: output, shape index: {}]
  %s4 = sld [smem:[#allocation0]]
  $region101: #{semantic_net_forward.8} parent=0
    _
  %s6 = ssub.s32 1, %s4
  %s7 = scalar_select 0, %s6, %s4
  $region1: #{semantic_net_forward.8} parent=0
    #allocation3 [shape = 'u8[262144]{0}', space=vmem, size = 0x40000, scoped, tag = 'output window, operand 0']
    loop: start=0, step=1, limit=4
    $region2: #{semantic_net_forward.8} parent=1 // loop_pre_header
      _
    $region3: #{semantic_net_forward.8} parent=1 // loop_header
      %s9 = sphi 0, %s13
      %p10 = scmp.ge.s32.totalorder %s9, 4
      %s16 = sphi 0, %s35
      %s17 = sphi 0, %s31
      %s18 = sphi 0, %s27
      %s19 = sphi 0, %s16
      %s20 = sphi 0, %s17
      %s21 = sphi 0, %s18
      %s22 = sphi 0, %s19
      %s23 = sphi 0, %s20
      %s24 = sphi 0, %s21
      %s40 = sphi 0, %s42
      %s43 = sphi 0, %s40
      %s44 = sphi 0, %s43
      %s60 = sphi 0, %s44
      %s68 = sphi 0, %s70
      %s71 = sphi 0, %s68
      %s72 = sphi 0, %s71
      %s88 = sphi 0, %s72
      %s94 = sphi 0, %s96
      %s97 = sphi 0, %s94
      %s98 = sphi 0, %s97
      %s114 = sphi 0, %s98
      %s122 = sphi 0, %s124
      %s125 = sphi 0, %s122
      %s126 = sphi 0, %s125
      %s142 = sphi 0, %s126
    $region4: #{semantic_net_forward.8} parent=1 // loop_header_branch
      %12 = sbr.rel (%p10) target = $region8
    $region5: #{semantic_net_forward.8} parent=1 // loop_body
      %s14 = ssub.s32 %s9, 1
      %s15 = ssub.s32 %s9, 2
      %s25 = sadd.s32 1, %s18
      %p26 = scmp.ge.s32.totalorder %s25, 1
      %s27 = scalar_select %p26, 0, %s25
      %s28 = sadd.s32 1, %s17
      %s29 = scalar_select %p26, %s28, %s17
      %p30 = scmp.ge.s32.totalorder %s29, 1
      %s31 = scalar_select %p30, 0, %s29
      %s32 = sadd.s32 1, %s16
      %s33 = scalar_select %p30, %s32, %s16
      %p34 = scmp.ge.s32.totalorder %s33, 2
      %s35 = scalar_select %p34, 0, %s33
      %s36 = ssub.s32 %s16, %s35
      %s37 = ssub.s32 %s18, %s27
      %s38 = sor.u32 %s36, %s37
      %p39 = scmp.eq.s32.totalorder %s38, 0
      %s41 = sadd.s32 %s40, 1
      %s42 = scalar_select %p39, %s40, %s41
      %p45 = pneg %p39
      %p46 = scmp.eq.s32.totalorder %s9, 1
      %p47 = por %p45, %p46
      %p48 = scmp.ne.s32.totalorder %s40, %s43
      %p49 = scmp.eq.s32.totalorder %s9, 0
      %p50 = por %p48, %p49
      %p51 = scmp.ne.s32.totalorder %s40, %s43
      %p52 = scmp.eq.s32.totalorder %s14, 1
      %p53 = por %p51, %p52
      %p54 = scmp.ne.s32.totalorder %s43, %s44
      %p55 = scmp.eq.s32.totalorder %s14, 0
      %p56 = por %p54, %p55
      %p57 = scmp.ne.s32.totalorder %s43, %s44
      %p58 = scmp.eq.s32.totalorder %s15, 1
      %p59 = por %p57, %p58
      %p61 = scmp.ne.s32.totalorder %s44, %s60
      %p62 = scmp.eq.s32.totalorder %s15, 0
      %p63 = por %p61, %p62
      %s64 = ssub.s32 %s18, %s27
      %s65 = ssub.s32 %s17, %s31
      %s66 = sor.u32 %s64, %s65
      %p67 = scmp.eq.s32.totalorder %s66, 0
      %s69 = sadd.s32 %s68, 1
      %s70 = scalar_select %p67, %s68, %s69
      %p73 = pneg %p67
      %p74 = scmp.eq.s32.totalorder %s9, 1
      %p75 = por %p73, %p74
      %p76 = scmp.ne.s32.totalorder %s68, %s71
      %p77 = scmp.eq.s32.totalorder %s9, 0
      %p78 = por %p76, %p77
      %p79 = scmp.ne.s32.totalorder %s68, %s71
      %p80 = scmp.eq.s32.totalorder %s14, 1
      %p81 = por %p79, %p80
      %p82 = scmp.ne.s32.totalorder %s71, %s72
      %p83 = scmp.eq.s32.totalorder %s14, 0
      %p84 = por %p82, %p83
      %p85 = scmp.ne.s32.totalorder %s71, %s72
      %p86 = scmp.eq.s32.totalorder %s15, 1
      %p87 = por %p85, %p86
      %p89 = scmp.ne.s32.totalorder %s72, %s88
      %p90 = scmp.eq.s32.totalorder %s15, 0
      %p91 = por %p89, %p90
      %s92 = ssub.s32 %s17, %s31
      %p93 = scmp.eq.s32.totalorder %s92, 0
      %s95 = sadd.s32 %s94, 1
      %s96 = scalar_select %p93, %s94, %s95
      %p99 = pneg %p93
      %p100 = scmp.eq.s32.totalorder %s9, 1
      %p101 = por %p99, %p100
      %p102 = scmp.ne.s32.totalorder %s94, %s97
      %p103 = scmp.eq.s32.totalorder %s9, 0
      %p104 = por %p102, %p103
      %p105 = scmp.ne.s32.totalorder %s94, %s97
      %p106 = scmp.eq.s32.totalorder %s14, 1
      %p107 = por %p105, %p106
      %p108 = scmp.ne.s32.totalorder %s97, %s98
      %p109 = scmp.eq.s32.totalorder %s14, 0
      %p110 = por %p108, %p109
      %p111 = scmp.ne.s32.totalorder %s97, %s98
      %p112 = scmp.eq.s32.totalorder %s15, 1
      %p113 = por %p111, %p112
      %p115 = scmp.ne.s32.totalorder %s98, %s114
      %p116 = scmp.eq.s32.totalorder %s15, 0
      %p117 = por %p115, %p116
      %s118 = ssub.s32 %s16, %s35
      %s119 = ssub.s32 %s17, %s31
      %s120 = sor.u32 %s118, %s119
      %p121 = scmp.eq.s32.totalorder %s120, 0
      %s123 = sadd.s32 %s122, 1
      %s124 = scalar_select %p121, %s122, %s123
      %p127 = pneg %p121
      %p128 = scmp.eq.s32.totalorder %s9, 1
      %p129 = por %p127, %p128
      %p130 = scmp.ne.s32.totalorder %s122, %s125
      %p131 = scmp.eq.s32.totalorder %s9, 0
      %p132 = por %p130, %p131
      %p133 = scmp.ne.s32.totalorder %s122, %s125
      %p134 = scmp.eq.s32.totalorder %s14, 1
      %p135 = por %p133, %p134
      %p136 = scmp.ne.s32.totalorder %s125, %s126
      %p137 = scmp.eq.s32.totalorder %s14, 0
      %p138 = por %p136, %p137
      %p139 = scmp.ne.s32.totalorder %s125, %s126
      %p140 = scmp.eq.s32.totalorder %s15, 1
      %p141 = por %p139, %p140
      %p143 = scmp.ne.s32.totalorder %s126, %s142
      %p144 = scmp.eq.s32.totalorder %s15, 0
      %p145 = por %p143, %p144
      %p146 = scmp.le.s32.totalorder 1, %s9
      %p147 = scmp.lt.s32.totalorder %s9, 3
      %p148 = pnand %p146, %p147
      %p149 = pneg %p148
      // Predicated region
      $region9: #{semantic_net_forward.8} parent=5 // pred_check
        _
      $region10: #{semantic_net_forward.8} parent=5 // pred_check_branch
        %151 = sbr.rel (%p148) target = $region12
      $region11: #{semantic_net_forward.8} parent=5 // pred_region
        %s152 = ssub.s32 %s9, 1
        // Predicated region
        $region13: #{semantic_net_forward.8} parent=11 // pred_check
          %p153 = pneg %p84
        $region14: #{semantic_net_forward.8} parent=11 // pred_check_branch
          %155 = sbr.rel (%p153) target = $region16
        $region15: #{semantic_net_forward.8} parent=11 // pred_region
          %s156 = smul.u32 72, %s21
          %p157 = scmp.lt.s32.totalorder %s156, 71
          %s158 = scalar_select %p157, %s156, 71
          %p159 = scmp.lt.s32.totalorder %s20, 0
          %s160 = scalar_select %p159, %s20, 0
          %s161 = sadd.s32 %s160, %s158
          %s162 = smul.addr %s161, 4
          %s163 = scalar_lea.vmem %s1, %s162
          %s164 = smul.u32 72, %s21
        $region16: #{semantic_net_forward.8} parent=11 // pred_fallthru
          _
        // Predicated region
        $region17: #{semantic_net_forward.8} parent=11 // pred_check
          %p165 = pneg %p110
        $region18: #{semantic_net_forward.8} parent=11 // pred_check_branch
          %167 = sbr.rel (%p165) target = $region20
        $region19: #{semantic_net_forward.8} parent=11 // pred_region
          %p168 = scmp.lt.s32.totalorder %s20, 0
          %s169 = scalar_select %p168, %s20, 0
          %s170 = scalar_lea.vmem %s2, %s169
        $region20: #{semantic_net_forward.8} parent=11 // pred_fallthru
          _
      $region12: #{semantic_net_forward.8} parent=5 // pred_fallthru
        _
      %p171 = scmp.lt.s32.totalorder %s9, 2
      // Predicated region
      $region21: #{semantic_net_forward.8} parent=5 // pred_check
        %p172 = pneg %p171
      $region22: #{semantic_net_forward.8} parent=5 // pred_check_branch
        %174 = sbr.rel (%p172) target = $region24
      $region23: #{semantic_net_forward.8} parent=5 // pred_region
        // Predicated region
        $region25: #{semantic_net_forward.8} parent=23 // pred_check
          %p175 = pneg %p50
        $region26: #{semantic_net_forward.8} parent=23 // pred_check_branch
          %177 = sbr.rel (%p175) target = $region28
        $region27: #{semantic_net_forward.8} parent=23 // pred_region
          %s178 = smul.u32 32, %s16
          %s179 = smul.u32 5, %s18
          %s180 = ssub.s32 43, %s178
          %p181 = scmp.lt.s32.totalorder %s180, 32
          %s182 = scalar_select %p181, %s180, 32
          %s183 = smul.u32 64, %s182
          %s184 = smul.u32 %s183, 5
          %p185 = scmp.lt.s32.totalorder %s178, 42
          %s186 = scalar_select %p185, %s178, 42
          %p187 = scmp.lt.s32.totalorder %s179, 4
          %s188 = scalar_select %p187, %s179, 4
          %s189 = smul.addr %s186, 5
          %s190 = sadd.s32 %s188, %s189
          %s191 = smul.addr %s190, 4
          %s192 = scalar_lea.vmem %s0, %s191
          %s193 = smul.u32 32, %s16
          %s194 = smul.u32 5, %s18
          %s195 = ssub.s32 43, %s193
          %p196 = scmp.lt.s32.totalorder %s195, 32
          %s197 = scalar_select %p196, %s195, 32
          %s198 = smul.u32 64, %s197
          %s199 = smul.u32 %s198, 5
        $region28: #{semantic_net_forward.8} parent=23 // pred_fallthru
          _
      $region24: #{semantic_net_forward.8} parent=5 // pred_fallthru
        _
      %p200 = scmp.le.s32.totalorder 1, %s9
      %p201 = scmp.lt.s32.totalorder %s9, 3
      %p202 = pnand %p200, %p201
      %p203 = pneg %p202
      // Predicated region
      $region29: #{semantic_net_forward.8} parent=5 // pred_check
        _
      $region30: #{semantic_net_forward.8} parent=5 // pred_check_branch
        %205 = sbr.rel (%p202) target = $region32
      $region31: #{semantic_net_forward.8} parent=5 // pred_region
        %s206 = ssub.s32 %s9, 1
        %s207 = smul.u32 32, %s19
        %s208 = smul.u32 5, %s21
        %s209 = ssub.s32 43, %s207
        %p210 = scmp.lt.s32.totalorder %s209, 32
        %s211 = scalar_select %p210, %s209, 32
        %s212 = smul.u32 64, %s211
        %s213 = smul.u32 %s212, 5
        %p214 = scmp.lt.s32.totalorder %s207, 42
        %s215 = scalar_select %p214, %s207, 42
        %p216 = scmp.lt.s32.totalorder %s208, 4
        %s217 = scalar_select %p216, %s208, 4
        %s218 = smul.addr %s215, 5
        %s219 = sadd.s32 %s217, %s218
        %s220 = smul.addr %s219, 4
        %s221 = scalar_lea.vmem %s0, %s220
        %p222 = pneg %p56
        %p223 = pneg %p53
        %s224 = smul.u32 72, %s21
        %p225 = scmp.lt.s32.totalorder %s224, 71
        %s226 = scalar_select %p225, %s224, 71
        %p227 = scmp.lt.s32.totalorder %s20, 0
        %s228 = scalar_select %p227, %s20, 0
        %s229 = sadd.s32 %s228, %s226
        %s230 = smul.addr %s229, 4
        %s231 = scalar_lea.vmem %s1, %s230
        %p232 = pneg %p84
        %p233 = pneg %p81
        %p234 = scmp.lt.s32.totalorder %s20, 0
        %s235 = scalar_select %p234, %s20, 0
        %s236 = scalar_lea.vmem %s2, %s235
        %p237 = pneg %p110
        %p238 = pneg %p107
        %p239 = pneg %p138
        %p240 = pneg %p135
        %s241 = sand.u32 %s125, 1
        %s242 = sand.u32 %s125, 1
        %s243 = smul.addr %s242, 256
        %s244 = scalar_lea.vmem [#allocation3], %s243
        %s245 = smul.u32 32, %s19
        %s246 = smul.u32 5, %s21
        %s247 = ssub.s32 43, %s245
        %p248 = scmp.lt.s32.totalorder %s247, 32
        %s249 = scalar_select %p248, %s247, 32
        %s250 = smul.u32 64, %s249
        %s251 = smul.u32 %s250, 5
        %p252 = scmp.lt.s32.totalorder %s245, 42
        %s253 = scalar_select %p252, %s245, 42
        %p254 = scmp.lt.s32.totalorder %s246, 4
        %s255 = scalar_select %p254, %s246, 4
        %s256 = smul.addr %s253, 5
        %s257 = sadd.s32 %s255, %s256
        %s258 = smul.addr %s257, 4
        %s259 = scalar_lea.vmem %s0, %s258
        %s260 = smul.u32 32, %s19
        %s261 = smul.u32 5, %s21
        %s262 = ssub.s32 43, %s260
        %p263 = scmp.lt.s32.totalorder %s262, 32
        %s264 = scalar_select %p263, %s262, 32
        %s265 = smul.u32 64, %s264
        %s266 = smul.u32 %s265, 5
        %s267 = smul.u32 72, %s21
        %p268 = scmp.lt.s32.totalorder %s267, 71
        %s269 = scalar_select %p268, %s267, 71
        %p270 = scmp.lt.s32.totalorder %s20, 0
        %s271 = scalar_select %p270, %s20, 0
        %s272 = sadd.s32 %s271, %s269
        %s273 = smul.addr %s272, 4
        %s274 = scalar_lea.vmem %s1, %s273
        %s275 = smul.u32 72, %s21
        %p276 = scmp.lt.s32.totalorder %s20, 0
        %s277 = scalar_select %p276, %s20, 0
        %s278 = scalar_lea.vmem %s2, %s277
        %s279 = smul.u32 32, %s19
        %s280 = ssub.s32 43, %s279
        %p281 = scmp.lt.s32.totalorder %s280, 32
        %s282 = scalar_select %p281, %s280, 32
        %s283 = smul.u32 128, %s282
        %p285 = scmp.eq.s32.totalorder %s21, 0
        // Predicated region
        $region33: #{semantic_net_forward.8} parent=31 // pred_check
          %p286 = pneg %p285
        $region34: #{semantic_net_forward.8} parent=31 // pred_check_branch
          %288 = sbr.rel (%p286) target = $region36
        $region35: #{semantic_net_forward.8} parent=31 // pred_region
          %289 = vst [vmem:[#allocation2] sm:$0xff] 0.0
          %290 = vst [vmem:[#allocation2 + $0x8] sm:$0xff] 0.0
          %291 = vst [vmem:[#allocation2 + $0x10] sm:$0xff] 0.0
          %292 = vst [vmem:[#allocation2 + $0x18] sm:$0xff] 0.0
          %293 = vst [vmem:[#allocation2 + $0x20] sm:$0xff] 0.0
          %294 = vst [vmem:[#allocation2 + $0x28] sm:$0xff] 0.0
          %295 = vst [vmem:[#allocation2 + $0x30] sm:$0xff] 0.0
          %296 = vst [vmem:[#allocation2 + $0x38] sm:$0xff] 0.0
          %297 = vst [vmem:[#allocation2 + $0x40] sm:$0xff] 0.0
          %298 = vst [vmem:[#allocation2 + $0x48] sm:$0xff] 0.0
          %299 = vst [vmem:[#allocation2 + $0x50] sm:$0xff] 0.0
          %300 = vst [vmem:[#allocation2 + $0x58] sm:$0xff] 0.0
          %301 = vst [vmem:[#allocation2 + $0x60] sm:$0xff] 0.0
          %302 = vst [vmem:[#allocation2 + $0x68] sm:$0xff] 0.0
          %303 = vst [vmem:[#allocation2 + $0x70] sm:$0xff] 0.0
          %304 = vst [vmem:[#allocation2 + $0x78] sm:$0xff] 0.0
          %305 = vst [vmem:[#allocation2 + $0x80] sm:$0xff] 0.0
          %306 = vst [vmem:[#allocation2 + $0x88] sm:$0xff] 0.0
          %307 = vst [vmem:[#allocation2 + $0x90] sm:$0xff] 0.0
          %308 = vst [vmem:[#allocation2 + $0x98] sm:$0xff] 0.0
          %309 = vst [vmem:[#allocation2 + $0xa0] sm:$0xff] 0.0
          %310 = vst [vmem:[#allocation2 + $0xa8] sm:$0xff] 0.0
          %311 = vst [vmem:[#allocation2 + $0xb0] sm:$0xff] 0.0
          %312 = vst [vmem:[#allocation2 + $0xb8] sm:$0xff] 0.0
          %313 = vst [vmem:[#allocation2 + $0xc0] sm:$0xff] 0.0
          %314 = vst [vmem:[#allocation2 + $0xc8] sm:$0xff] 0.0
          %315 = vst [vmem:[#allocation2 + $0xd0] sm:$0xff] 0.0
          %316 = vst [vmem:[#allocation2 + $0xd8] sm:$0xff] 0.0
          %317 = vst [vmem:[#allocation2 + $0xe0] sm:$0xff] 0.0
          %318 = vst [vmem:[#allocation2 + $0xe8] sm:$0xff] 0.0
          %319 = vst [vmem:[#allocation2 + $0xf0] sm:$0xff] 0.0
          %320 = vst [vmem:[#allocation2 + $0xf8] sm:$0xff] 0.0
        $region36: #{semantic_net_forward.8} parent=31 // pred_fallthru
          _
        %v321 = vld [vmem:[#allocation2] sm:$0xff]
        %v322 = vld [vmem:[#allocation2 + $0x8] sm:$0xff]
        %v323 = vld [vmem:[#allocation2 + $0x10] sm:$0xff]
        %v324 = vld [vmem:[#allocation2 + $0x18] sm:$0xff]
        %v325 = vld [vmem:[#allocation2 + $0x20] sm:$0xff]
        %v326 = vld [vmem:[#allocation2 + $0x28] sm:$0xff]
        %v327 = vld [vmem:[#allocation2 + $0x30] sm:$0xff]
        %v328 = vld [vmem:[#allocation2 + $0x38] sm:$0xff]
        %v329 = vld [vmem:[#allocation2 + $0x40] sm:$0xff]
        %v330 = vld [vmem:[#allocation2 + $0x48] sm:$0xff]
        %v331 = vld [vmem:[#allocation2 + $0x50] sm:$0xff]
        %v332 = vld [vmem:[#allocation2 + $0x58] sm:$0xff]
        %v333 = vld [vmem:[#allocation2 + $0x60] sm:$0xff]
        %v334 = vld [vmem:[#allocation2 + $0x68] sm:$0xff]
        %v335 = vld [vmem:[#allocation2 + $0x70] sm:$0xff]
        %v336 = vld [vmem:[#allocation2 + $0x78] sm:$0xff]
        %v337 = vld [vmem:[#allocation2 + $0x80] sm:$0xff]
        %v338 = vld [vmem:[#allocation2 + $0x88] sm:$0xff]
        %v339 = vld [vmem:[#allocation2 + $0x90] sm:$0xff]
        %v340 = vld [vmem:[#allocation2 + $0x98] sm:$0xff]
        %v341 = vld [vmem:[#allocation2 + $0xa0] sm:$0xff]
        %v342 = vld [vmem:[#allocation2 + $0xa8] sm:$0xff]
        %v343 = vld [vmem:[#allocation2 + $0xb0] sm:$0xff]
        %v344 = vld [vmem:[#allocation2 + $0xb8] sm:$0xff]
        %v345 = vld [vmem:[#allocation2 + $0xc0] sm:$0xff]
        %v346 = vld [vmem:[#allocation2 + $0xc8] sm:$0xff]
        %v347 = vld [vmem:[#allocation2 + $0xd0] sm:$0xff]
        %v348 = vld [vmem:[#allocation2 + $0xd8] sm:$0xff]
        %v349 = vld [vmem:[#allocation2 + $0xe0] sm:$0xff]
        %v350 = vld [vmem:[#allocation2 + $0xe8] sm:$0xff]
        %v351 = vld [vmem:[#allocation2 + $0xf0] sm:$0xff]
        %v352 = vld [vmem:[#allocation2 + $0xf8] sm:$0xff]
        %v353 = vld [vmem:[%s259] sm:$0xff]
        %v354 = vld [vmem:[%s259 + $0x8] sm:$0xff]
        %v355 = vld [vmem:[%s259 + $0x10] sm:$0xf]
        %v356 = vld [vmem:[%s259 + $0x14] sm:$0xff]
        %v357 = vld [vmem:[%s259 + $0x1c] sm:$0xff]
        %v358 = vld [vmem:[%s259 + $0x24] sm:$0xf]
        %v359 = vld [vmem:[%s259 + $0x28] sm:$0xff]
        %v360 = vld [vmem:[%s259 + $0x30] sm:$0xff]
        %v361 = vld [vmem:[%s259 + $0x38] sm:$0xf]
        %v362 = vld [vmem:[%s259 + $0x3c] sm:$0xff]
        %v363 = vld [vmem:[%s259 + $0x44] sm:$0xff]
        %v364 = vld [vmem:[%s259 + $0x4c] sm:$0xf]
        %v365 = vld [vmem:[%s259 + $0x50] sm:$0xff]
        %v366 = vld [vmem:[%s259 + $0x58] sm:$0xff]
        %v367 = vld [vmem:[%s259 + $0x60] sm:$0xf]
        %v368 = vld [vmem:[%s259 + $0x64] sm:$0xff]
        %v369 = vld [vmem:[%s259 + $0x6c] sm:$0xff]
        %v370 = vld [vmem:[%s259 + $0x74] sm:$0xf]
        %v371 = vld [vmem:[%s259 + $0x78] sm:$0xff]
        %v372 = vld [vmem:[%s259 + $0x80] sm:$0xff]
        %v373 = vld [vmem:[%s259 + $0x88] sm:$0xf]
        %v374 = vld [vmem:[%s259 + $0x8c] sm:$0xff]
        %v375 = vld [vmem:[%s259 + $0x94] sm:$0xff]
        %v376 = vld [vmem:[%s259 + $0x9c] sm:$0xf]
        %v377 = vld [vmem:[%s259 + $0xa0] sm:$0xff]
        %v378 = vld [vmem:[%s259 + $0xa8] sm:$0xff]
        %v379 = vld [vmem:[%s259 + $0xb0] sm:$0xf]
        %v380 = vld [vmem:[%s259 + $0xb4] sm:$0xff]
        %v381 = vld [vmem:[%s259 + $0xbc] sm:$0xff]
        %v382 = vld [vmem:[%s259 + $0xc4] sm:$0xf]
        %v383 = vld [vmem:[%s259 + $0xc8] sm:$0xff]
        %v384 = vld [vmem:[%s259 + $0xd0] sm:$0xff]
        %v385 = vld [vmem:[%s259 + $0xd8] sm:$0xf]
        %v386 = vld [vmem:[%s259 + $0xdc] sm:$0xff]
        %v387 = vld [vmem:[%s259 + $0xe4] sm:$0xff]
        %v388 = vld [vmem:[%s259 + $0xec] sm:$0xf]
        %v389 = vld [vmem:[%s259 + $0xf0] sm:$0xff]
        %v390 = vld [vmem:[%s259 + $0xf8] sm:$0xff]
        %v391 = vld [vmem:[%s259 + $0x100] sm:$0xf]
        %v392 = vld [vmem:[%s259 + $0x104] sm:$0xff]
        %v393 = vld [vmem:[%s259 + $0x10c] sm:$0xff]
        %v394 = vld [vmem:[%s259 + $0x114] sm:$0xf]
        %v395 = vld [vmem:[%s259 + $0x118] sm:$0xff]
        %v396 = vld [vmem:[%s259 + $0x120] sm:$0xff]
        %v397 = vld [vmem:[%s259 + $0x128] sm:$0xf]
        %v398 = vld [vmem:[%s259 + $0x12c] sm:$0xff]
        %v399 = vld [vmem:[%s259 + $0x134] sm:$0xff]
        %v400 = vld [vmem:[%s259 + $0x13c] sm:$0xf]
        %v401 = vld [vmem:[%s259 + $0x140] sm:$0xff]
        %v402 = vld [vmem:[%s259 + $0x148] sm:$0xff]
        %v403 = vld [vmem:[%s259 + $0x150] sm:$0xf]
        %v404 = vld [vmem:[%s259 + $0x154] sm:$0xff]
        %v405 = vld [vmem:[%s259 + $0x15c] sm:$0xff]
        %v406 = vld [vmem:[%s259 + $0x164] sm:$0xf]
        %v407 = vld [vmem:[%s259 + $0x168] sm:$0xff]
        %v408 = vld [vmem:[%s259 + $0x170] sm:$0xff]
        %v409 = vld [vmem:[%s259 + $0x178] sm:$0xf]
        %v410 = vld [vmem:[%s259 + $0x17c] sm:$0xff]
        %v411 = vld [vmem:[%s259 + $0x184] sm:$0xff]
        %v412 = vld [vmem:[%s259 + $0x18c] sm:$0xf]
        %v413 = vld [vmem:[%s259 + $0x190] sm:$0xff]
        %v414 = vld [vmem:[%s259 + $0x198] sm:$0xff]
        %v415 = vld [vmem:[%s259 + $0x1a0] sm:$0xf]
        %v416 = vld [vmem:[%s259 + $0x1a4] sm:$0xff]
        %v417 = vld [vmem:[%s259 + $0x1ac] sm:$0xff]
        %v418 = vld [vmem:[%s259 + $0x1b4] sm:$0xf]
        %v419 = vld [vmem:[%s259 + $0x1b8] sm:$0xff]
        %v420 = vld [vmem:[%s259 + $0x1c0] sm:$0xff]
        %v421 = vld [vmem:[%s259 + $0x1c8] sm:$0xf]
        %v422 = vld [vmem:[%s259 + $0x1cc] sm:$0xff]
        %v423 = vld [vmem:[%s259 + $0x1d4] sm:$0xff]
        %v424 = vld [vmem:[%s259 + $0x1dc] sm:$0xf]
        %v425 = vld [vmem:[%s259 + $0x1e0] sm:$0xff]
        %v426 = vld [vmem:[%s259 + $0x1e8] sm:$0xff]
        %v427 = vld [vmem:[%s259 + $0x1f0] sm:$0xf]
        %v428 = vld [vmem:[%s259 + $0x1f4] sm:$0xff]
        %v429 = vld [vmem:[%s259 + $0x1fc] sm:$0xff]
        %v430 = vld [vmem:[%s259 + $0x204] sm:$0xf]
        %v431 = vld [vmem:[%s259 + $0x208] sm:$0xff]
        %v432 = vld [vmem:[%s259 + $0x210] sm:$0xff]
        %v433 = vld [vmem:[%s259 + $0x218] sm:$0xf]
        %v434 = vld [vmem:[%s259 + $0x21c] sm:$0xff]
        %v435 = vld [vmem:[%s259 + $0x224] sm:$0xff]
        %v436 = vld [vmem:[%s259 + $0x22c] sm:$0xf]
        %v437 = vld [vmem:[%s259 + $0x230] sm:$0xff]
        %v438 = vld [vmem:[%s259 + $0x238] sm:$0xff]
        %v439 = vld [vmem:[%s259 + $0x240] sm:$0xf]
        %v440 = vld [vmem:[%s259 + $0x244] sm:$0xff]
        %v441 = vld [vmem:[%s259 + $0x24c] sm:$0xff]
        %v442 = vld [vmem:[%s259 + $0x254] sm:$0xf]
        %v443 = vld [vmem:[%s259 + $0x258] sm:$0xff]
        %v444 = vld [vmem:[%s259 + $0x260] sm:$0xff]
        %v445 = vld [vmem:[%s259 + $0x268] sm:$0xf]
        %v446 = vld [vmem:[%s259 + $0x26c] sm:$0xff]
        %v447 = vld [vmem:[%s259 + $0x274] sm:$0xff]
        %v448 = vld [vmem:[%s259 + $0x27c] sm:$0xf]
        %v449 = vld [vmem:[%s274] sm:$0xf]
        %v450 = vld [vmem:[%s274 + $0x4] sm:$0xf]
        %v451 = vld [vmem:[%s274 + $0x8] sm:$0xf]
        %v452 = vld [vmem:[%s274 + $0xc] sm:$0xf]
        %v453 = vld [vmem:[%s274 + $0x10] sm:$0xf]
        %v454 = vld [vmem:[%s274 + $0x14] sm:$0xf]
        %v455 = vld [vmem:[%s274 + $0x18] sm:$0xf]
        %v456 = vld [vmem:[%s274 + $0x1c] sm:$0xf]
        %v457 = vld [vmem:[%s274 + $0x20] sm:$0xf]
        %v458 = vld [vmem:[%s274 + $0x24] sm:$0xf]
        %v459 = vld [vmem:[%s274 + $0x28] sm:$0xf]
        %v460 = vld [vmem:[%s274 + $0x2c] sm:$0xf]
        %v461 = vld [vmem:[%s274 + $0x30] sm:$0xf]
        %v462 = vld [vmem:[%s274 + $0x34] sm:$0xf]
        %v463 = vld [vmem:[%s274 + $0x38] sm:$0xf]
        %v464 = vld [vmem:[%s274 + $0x3c] sm:$0xf]
        %v465 = vld [vmem:[%s274 + $0x40] sm:$0xf]
        %v466 = vld [vmem:[%s274 + $0x44] sm:$0xf]
        %v467 = vld [vmem:[%s274 + $0x48] sm:$0xf]
        %v468 = vld [vmem:[%s274 + $0x4c] sm:$0xf]
        %v469 = vld [vmem:[%s274 + $0x50] sm:$0xf]
        %v470 = vld [vmem:[%s274 + $0x54] sm:$0xf]
        %v471 = vld [vmem:[%s274 + $0x58] sm:$0xf]
        %v472 = vld [vmem:[%s274 + $0x5c] sm:$0xf]
        %v473 = vld [vmem:[%s274 + $0x60] sm:$0xf]
        %v474 = vld [vmem:[%s274 + $0x64] sm:$0xf]
        %v475 = vld [vmem:[%s274 + $0x68] sm:$0xf]
        %v476 = vld [vmem:[%s274 + $0x6c] sm:$0xf]
        %v477 = vld [vmem:[%s274 + $0x70] sm:$0xf]
        %v478 = vld [vmem:[%s274 + $0x74] sm:$0xf]
        %v479 = vld [vmem:[%s274 + $0x78] sm:$0xf]
        %v480 = vld [vmem:[%s274 + $0x7c] sm:$0xf]
        %v481 = vld [vmem:[%s274 + $0x80] sm:$0xf]
        %v482 = vld [vmem:[%s274 + $0x84] sm:$0xf]
        %v483 = vld [vmem:[%s274 + $0x88] sm:$0xf]
        %v484 = vld [vmem:[%s274 + $0x8c] sm:$0xf]
        %v485 = vld [vmem:[%s274 + $0x90] sm:$0xf]
        %v486 = vld [vmem:[%s274 + $0x94] sm:$0xf]
        %v487 = vld [vmem:[%s274 + $0x98] sm:$0xf]
        %v488 = vld [vmem:[%s274 + $0x9c] sm:$0xf]
        %v489 = vld [vmem:[%s274 + $0xa0] sm:$0xf]
        %v490 = vld [vmem:[%s274 + $0xa4] sm:$0xf]
        %v491 = vld [vmem:[%s274 + $0xa8] sm:$0xf]
        %v492 = vld [vmem:[%s274 + $0xac] sm:$0xf]
        %v493 = vld [vmem:[%s274 + $0xb0] sm:$0xf]
        %v494 = vld [vmem:[%s274 + $0xb4] sm:$0xf]
        %v495 = vld [vmem:[%s274 + $0xb8] sm:$0xf]
        %v496 = vld [vmem:[%s274 + $0xbc] sm:$0xf]
        %v497 = vld [vmem:[%s274 + $0xc0] sm:$0xf]
        %v498 = vld [vmem:[%s274 + $0xc4] sm:$0xf]
        %v499 = vld [vmem:[%s274 + $0xc8] sm:$0xf]
        %v500 = vld [vmem:[%s274 + $0xcc] sm:$0xf]
        %v501 = vld [vmem:[%s274 + $0xd0] sm:$0xf]
        %v502 = vld [vmem:[%s274 + $0xd4] sm:$0xf]
        %v503 = vld [vmem:[%s274 + $0xd8] sm:$0xf]
        %v504 = vld [vmem:[%s274 + $0xdc] sm:$0xf]
        %v505 = vld [vmem:[%s274 + $0xe0] sm:$0xf]
        %v506 = vld [vmem:[%s274 + $0xe4] sm:$0xf]
        %v507 = vld [vmem:[%s274 + $0xe8] sm:$0xf]
        %v508 = vld [vmem:[%s274 + $0xec] sm:$0xf]
        %v509 = vld [vmem:[%s274 + $0xf0] sm:$0xf]
        %v510 = vld [vmem:[%s274 + $0xf4] sm:$0xf]
        %v511 = vld [vmem:[%s274 + $0xf8] sm:$0xf]
        %v512 = vld [vmem:[%s274 + $0xfc] sm:$0xf]
        %v513 = vld [vmem:[%s274 + $0x100] sm:$0xf]
        %v514 = vld [vmem:[%s274 + $0x104] sm:$0xf]
        %v515 = vld [vmem:[%s274 + $0x108] sm:$0xf]
        %v516 = vld [vmem:[%s274 + $0x10c] sm:$0xf]
        %v517 = vld [vmem:[%s274 + $0x110] sm:$0xf]
        %v518 = vld [vmem:[%s274 + $0x114] sm:$0xf]
        %v519 = vld [vmem:[%s274 + $0x118] sm:$0xf]
        %v520 = vld [vmem:[%s274 + $0x11c] sm:$0xf]
        %v617 = vunpack.c.l.b16 %v353
        %v618 = vunpack.c.h.b16 %v353
        %v619 = vunpack.c.l.b16 %v354
        %v620 = vunpack.c.h.b16 %v354
        %v621 = vunpack.c.l.b16 %v355
        %v622 = vunpack.c.l.b16 %v356
        %v623 = vunpack.c.h.b16 %v356
        %v624 = vunpack.c.l.b16 %v357
        %v625 = vunpack.c.h.b16 %v357
        %v626 = vunpack.c.l.b16 %v358
        %v627 = vunpack.c.l.b16 %v359
        %v628 = vunpack.c.h.b16 %v359
        %v629 = vunpack.c.l.b16 %v360
        %v630 = vunpack.c.h.b16 %v360
        %v631 = vunpack.c.l.b16 %v361
        %v632 = vunpack.c.l.b16 %v362
        %v633 = vunpack.c.h.b16 %v362
        %v634 = vunpack.c.l.b16 %v363
        %v635 = vunpack.c.h.b16 %v363
        %v636 = vunpack.c.l.b16 %v364
        %v637 = vunpack.c.l.b16 %v365
        %v638 = vunpack.c.h.b16 %v365
        %v639 = vunpack.c.l.b16 %v366
        %v640 = vunpack.c.h.b16 %v366
        %v641 = vunpack.c.l.b16 %v367
        %v642 = vunpack.c.l.b16 %v368
        %v643 = vunpack.c.h.b16 %v368
        %v644 = vunpack.c.l.b16 %v369
        %v645 = vunpack.c.h.b16 %v369
        %v646 = vunpack.c.l.b16 %v370
        %v647 = vunpack.c.l.b16 %v371
        %v648 = vunpack.c.h.b16 %v371
        %v649 = vunpack.c.l.b16 %v372
        %v650 = vunpack.c.h.b16 %v372
        %v651 = vunpack.c.l.b16 %v373
        %v652 = vunpack.c.l.b16 %v374
        %v653 = vunpack.c.h.b16 %v374
        %v654 = vunpack.c.l.b16 %v375
        %v655 = vunpack.c.h.b16 %v375
        %v656 = vunpack.c.l.b16 %v376
        %v657 = vunpack.c.l.b16 %v377
        %v658 = vunpack.c.h.b16 %v377
        %v659 = vunpack.c.l.b16 %v378
        %v660 = vunpack.c.h.b16 %v378
        %v661 = vunpack.c.l.b16 %v379
        %v662 = vunpack.c.l.b16 %v380
        %v663 = vunpack.c.h.b16 %v380
        %v664 = vunpack.c.l.b16 %v381
        %v665 = vunpack.c.h.b16 %v381
        %v666 = vunpack.c.l.b16 %v382
        %v667 = vunpack.c.l.b16 %v383
        %v668 = vunpack.c.h.b16 %v383
        %v669 = vunpack.c.l.b16 %v384
        %v670 = vunpack.c.h.b16 %v384
        %v671 = vunpack.c.l.b16 %v385
        %v672 = vunpack.c.l.b16 %v386
        %v673 = vunpack.c.h.b16 %v386
        %v674 = vunpack.c.l.b16 %v387
        %v675 = vunpack.c.h.b16 %v387
        %v676 = vunpack.c.l.b16 %v388
        %v677 = vunpack.c.l.b16 %v389
        %v678 = vunpack.c.h.b16 %v389
        %v679 = vunpack.c.l.b16 %v390
        %v680 = vunpack.c.h.b16 %v390
        %v681 = vunpack.c.l.b16 %v391
        %v682 = vunpack.c.l.b16 %v392
        %v683 = vunpack.c.h.b16 %v392
        %v684 = vunpack.c.l.b16 %v393
        %v685 = vunpack.c.h.b16 %v393
        %v686 = vunpack.c.l.b16 %v394
        %v687 = vunpack.c.l.b16 %v395
        %v688 = vunpack.c.h.b16 %v395
        %v689 = vunpack.c.l.b16 %v396
        %v690 = vunpack.c.h.b16 %v396
        %v691 = vunpack.c.l.b16 %v397
        %v692 = vunpack.c.l.b16 %v398
        %v693 = vunpack.c.h.b16 %v398
        %v694 = vunpack.c.l.b16 %v399
        %v695 = vunpack.c.h.b16 %v399
        %v696 = vunpack.c.l.b16 %v400
        %v697 = vunpack.c.l.b16 %v401
        %v698 = vunpack.c.h.b16 %v401
        %v699 = vunpack.c.l.b16 %v402
        %v700 = vunpack.c.h.b16 %v402
        %v701 = vunpack.c.l.b16 %v403
        %v702 = vunpack.c.l.b16 %v404
        %v703 = vunpack.c.h.b16 %v404
        %v704 = vunpack.c.l.b16 %v405
        %v705 = vunpack.c.h.b16 %v405
        %v706 = vunpack.c.l.b16 %v406
        %v707 = vunpack.c.l.b16 %v407
        %v708 = vunpack.c.h.b16 %v407
        %v709 = vunpack.c.l.b16 %v408
        %v710 = vunpack.c.h.b16 %v408
        %v711 = vunpack.c.l.b16 %v409
        %v712 = vunpack.c.l.b16 %v410
        %v713 = vunpack.c.h.b16 %v410
        %v714 = vunpack.c.l.b16 %v411
        %v715 = vunpack.c.h.b16 %v411
        %v716 = vunpack.c.l.b16 %v412
        %v717 = vunpack.c.l.b16 %v413
        %v718 = vunpack.c.h.b16 %v413
        %v719 = vunpack.c.l.b16 %v414
        %v720 = vunpack.c.h.b16 %v414
        %v721 = vunpack.c.l.b16 %v415
        %v722 = vunpack.c.l.b16 %v416
        %v723 = vunpack.c.h.b16 %v416
        %v724 = vunpack.c.l.b16 %v417
        %v725 = vunpack.c.h.b16 %v417
        %v726 = vunpack.c.l.b16 %v418
        %v727 = vunpack.c.l.b16 %v419
        %v728 = vunpack.c.h.b16 %v419
        %v729 = vunpack.c.l.b16 %v420
        %v730 = vunpack.c.h.b16 %v420
        %v731 = vunpack.c.l.b16 %v421
        %v732 = vunpack.c.l.b16 %v422
        %v733 = vunpack.c.h.b16 %v422
        %v734 = vunpack.c.l.b16 %v423
        %v735 = vunpack.c.h.b16 %v423
        %v736 = vunpack.c.l.b16 %v424
        %v737 = vunpack.c.l.b16 %v425
        %v738 = vunpack.c.h.b16 %v425
        %v739 = vunpack.c.l.b16 %v426
        %v740 = vunpack.c.h.b16 %v426
        %v741 = vunpack.c.l.b16 %v427
        %v742 = vunpack.c.l.b16 %v428
        %v743 = vunpack.c.h.b16 %v428
        %v744 = vunpack.c.l.b16 %v429
        %v745 = vunpack.c.h.b16 %v429
        %v746 = vunpack.c.l.b16 %v430
        %v747 = vunpack.c.l.b16 %v431
        %v748 = vunpack.c.h.b16 %v431
        %v749 = vunpack.c.l.b16 %v432
        %v750 = vunpack.c.h.b16 %v432
        %v751 = vunpack.c.l.b16 %v433
        %v752 = vunpack.c.l.b16 %v434
        %v753 = vunpack.c.h.b16 %v434
        %v754 = vunpack.c.l.b16 %v435
        %v755 = vunpack.c.h.b16 %v435
        %v756 = vunpack.c.l.b16 %v436
        %v757 = vunpack.c.l.b16 %v437
        %v758 = vunpack.c.h.b16 %v437
        %v759 = vunpack.c.l.b16 %v438
        %v760 = vunpack.c.h.b16 %v438
        %v761 = vunpack.c.l.b16 %v439
        %v762 = vunpack.c.l.b16 %v440
        %v763 = vunpack.c.h.b16 %v440
        %v764 = vunpack.c.l.b16 %v441
        %v765 = vunpack.c.h.b16 %v441
        %v766 = vunpack.c.l.b16 %v442
        %v767 = vunpack.c.l.b16 %v443
        %v768 = vunpack.c.h.b16 %v443
        %v769 = vunpack.c.l.b16 %v444
        %v770 = vunpack.c.h.b16 %v444
        %v771 = vunpack.c.l.b16 %v445
        %v772 = vunpack.c.l.b16 %v446
        %v773 = vunpack.c.h.b16 %v446
        %v774 = vunpack.c.l.b16 %v447
        %v775 = vunpack.c.h.b16 %v447
        %v776 = vunpack.c.l.b16 %v448
        %v777 = vpack.c.b16 %v622, %v617
        %v778 = vpack.c.b16 %v623, %v618
        %v779 = vpack.c.b16 %v624, %v619
        %v780 = vpack.c.b16 %v625, %v620
        %v781 = vpack.c.b16 %v626, %v621
        %v782 = vpack.c.b16 %v632, %v627
        %v783 = vpack.c.b16 %v633, %v628
        %v784 = vpack.c.b16 %v634, %v629
        %v785 = vpack.c.b16 %v635, %v630
        %v786 = vpack.c.b16 %v636, %v631
        %v787 = vpack.c.b16 %v642, %v637
        %v788 = vpack.c.b16 %v643, %v638
        %v789 = vpack.c.b16 %v644, %v639
        %v790 = vpack.c.b16 %v645, %v640
        %v791 = vpack.c.b16 %v646, %v641
        %v792 = vpack.c.b16 %v652, %v647
        %v793 = vpack.c.b16 %v653, %v648
        %v794 = vpack.c.b16 %v654, %v649
        %v795 = vpack.c.b16 %v655, %v650
        %v796 = vpack.c.b16 %v656, %v651
        %v797 = vpack.c.b16 %v662, %v657
        %v798 = vpack.c.b16 %v663, %v658
        %v799 = vpack.c.b16 %v664, %v659
        %v800 = vpack.c.b16 %v665, %v660
        %v801 = vpack.c.b16 %v666, %v661
        %v802 = vpack.c.b16 %v672, %v667
        %v803 = vpack.c.b16 %v673, %v668
        %v804 = vpack.c.b16 %v674, %v669
        %v805 = vpack.c.b16 %v675, %v670
        %v806 = vpack.c.b16 %v676, %v671
        %v807 = vpack.c.b16 %v682, %v677
        %v808 = vpack.c.b16 %v683, %v678
        %v809 = vpack.c.b16 %v684, %v679
        %v810 = vpack.c.b16 %v685, %v680
        %v811 = vpack.c.b16 %v686, %v681
        %v812 = vpack.c.b16 %v692, %v687
        %v813 = vpack.c.b16 %v693, %v688
        %v814 = vpack.c.b16 %v694, %v689
        %v815 = vpack.c.b16 %v695, %v690
        %v816 = vpack.c.b16 %v696, %v691
        %v817 = vpack.c.b16 %v702, %v697
        %v818 = vpack.c.b16 %v703, %v698
        %v819 = vpack.c.b16 %v704, %v699
        %v820 = vpack.c.b16 %v705, %v700
        %v821 = vpack.c.b16 %v706, %v701
        %v822 = vpack.c.b16 %v712, %v707
        %v823 = vpack.c.b16 %v713, %v708
        %v824 = vpack.c.b16 %v714, %v709
        %v825 = vpack.c.b16 %v715, %v710
        %v826 = vpack.c.b16 %v716, %v711
        %v827 = vpack.c.b16 %v722, %v717
        %v828 = vpack.c.b16 %v723, %v718
        %v829 = vpack.c.b16 %v724, %v719
        %v830 = vpack.c.b16 %v725, %v720
        %v831 = vpack.c.b16 %v726, %v721
        %v832 = vpack.c.b16 %v732, %v727
        %v833 = vpack.c.b16 %v733, %v728
        %v834 = vpack.c.b16 %v734, %v729
        %v835 = vpack.c.b16 %v735, %v730
        %v836 = vpack.c.b16 %v736, %v731
        %v837 = vpack.c.b16 %v742, %v737
        %v838 = vpack.c.b16 %v743, %v738
        %v839 = vpack.c.b16 %v744, %v739
        %v840 = vpack.c.b16 %v745, %v740
        %v841 = vpack.c.b16 %v746, %v741
        %v842 = vpack.c.b16 %v752, %v747
        %v843 = vpack.c.b16 %v753, %v748
        %v844 = vpack.c.b16 %v754, %v749
        %v845 = vpack.c.b16 %v755, %v750
        %v846 = vpack.c.b16 %v756, %v751
        %v847 = vpack.c.b16 %v762, %v757
        %v848 = vpack.c.b16 %v763, %v758
        %v849 = vpack.c.b16 %v764, %v759
        %v850 = vpack.c.b16 %v765, %v760
        %v851 = vpack.c.b16 %v766, %v761
        %v852 = vpack.c.b16 %v772, %v767
        %v853 = vpack.c.b16 %v773, %v768
        %v854 = vpack.c.b16 %v774, %v769
        %v855 = vpack.c.b16 %v775, %v770
        %v856 = vpack.c.b16 %v776, %v771
        %v993 = vunpack.c.l.b16 %v449
        %v994 = vunpack.c.l.b16 %v450
        %v995 = vunpack.c.l.b16 %v451
        %v996 = vunpack.c.l.b16 %v452
        %v997 = vunpack.c.l.b16 %v453
        %v998 = vunpack.c.l.b16 %v454
        %v999 = vunpack.c.l.b16 %v455
        %v1000 = vunpack.c.l.b16 %v456
        %v1001 = vunpack.c.l.b16 %v457
        %v1002 = vunpack.c.l.b16 %v458
        %v1003 = vunpack.c.l.b16 %v459
        %v1004 = vunpack.c.l.b16 %v460
        %v1005 = vunpack.c.l.b16 %v461
        %v1006 = vunpack.c.l.b16 %v462
        %v1007 = vunpack.c.l.b16 %v463
        %v1008 = vunpack.c.l.b16 %v464
        %v1009 = vunpack.c.l.b16 %v465
        %v1010 = vunpack.c.l.b16 %v466
        %v1011 = vunpack.c.l.b16 %v467
        %v1012 = vunpack.c.l.b16 %v468
        %v1013 = vunpack.c.l.b16 %v469
        %v1014 = vunpack.c.l.b16 %v470
        %v1015 = vunpack.c.l.b16 %v471
        %v1016 = vunpack.c.l.b16 %v472
        %v1017 = vunpack.c.l.b16 %v473
        %v1018 = vunpack.c.l.b16 %v474
        %v1019 = vunpack.c.l.b16 %v475
        %v1020 = vunpack.c.l.b16 %v476
        %v1021 = vunpack.c.l.b16 %v477
        %v1022 = vunpack.c.l.b16 %v478
        %v1023 = vunpack.c.l.b16 %v479
        %v1024 = vunpack.c.l.b16 %v480
        %v1025 = vunpack.c.l.b16 %v481
        %v1026 = vunpack.c.l.b16 %v482
        %v1027 = vunpack.c.l.b16 %v483
        %v1028 = vunpack.c.l.b16 %v484
        %v1029 = vunpack.c.l.b16 %v485
        %v1030 = vunpack.c.l.b16 %v486
        %v1031 = vunpack.c.l.b16 %v487
        %v1032 = vunpack.c.l.b16 %v488
        %v1033 = vunpack.c.l.b16 %v489
        %v1034 = vunpack.c.l.b16 %v490
        %v1035 = vunpack.c.l.b16 %v491
        %v1036 = vunpack.c.l.b16 %v492
        %v1037 = vunpack.c.l.b16 %v493
        %v1038 = vunpack.c.l.b16 %v494
        %v1039 = vunpack.c.l.b16 %v495
        %v1040 = vunpack.c.l.b16 %v496
        %v1041 = vunpack.c.l.b16 %v497
        %v1042 = vunpack.c.l.b16 %v498
        %v1043 = vunpack.c.l.b16 %v499
        %v1044 = vunpack.c.l.b16 %v500
        %v1045 = vunpack.c.l.b16 %v501
        %v1046 = vunpack.c.l.b16 %v502
        %v1047 = vunpack.c.l.b16 %v503
        %v1048 = vunpack.c.l.b16 %v504
        %v1049 = vunpack.c.l.b16 %v505
        %v1050 = vunpack.c.l.b16 %v506
        %v1051 = vunpack.c.l.b16 %v507
        %v1052 = vunpack.c.l.b16 %v508
        %v1053 = vunpack.c.l.b16 %v509
        %v1054 = vunpack.c.l.b16 %v510
        %v1055 = vunpack.c.l.b16 %v511
        %v1056 = vunpack.c.l.b16 %v512
        %v1057 = vunpack.c.l.b16 %v513
        %v1058 = vunpack.c.l.b16 %v514
        %v1059 = vunpack.c.l.b16 %v515
        %v1060 = vunpack.c.l.b16 %v516
        %v1061 = vunpack.c.l.b16 %v517
        %v1062 = vunpack.c.l.b16 %v518
        %v1063 = vunpack.c.l.b16 %v519
        %v1064 = vunpack.c.l.b16 %v520
        %v1065 = vpack.c.b16 %v994, %v993
        %v1066 = vpack.c.b16 %v996, %v995
        %v1067 = vpack.c.b16 %v998, %v997
        %v1068 = vpack.c.b16 %v1000, %v999
        %v1069 = vpack.c.b16 %v1002, %v1001
        %v1070 = vpack.c.b16 %v1004, %v1003
        %v1071 = vpack.c.b16 %v1006, %v1005
        %v1072 = vpack.c.b16 %v1008, %v1007
        %v1073 = vpack.c.b16 %v1010, %v1009
        %v1074 = vpack.c.b16 %v1012, %v1011
        %v1075 = vpack.c.b16 %v1014, %v1013
        %v1076 = vpack.c.b16 %v1016, %v1015
        %v1077 = vpack.c.b16 %v1018, %v1017
        %v1078 = vpack.c.b16 %v1020, %v1019
        %v1079 = vpack.c.b16 %v1022, %v1021
        %v1080 = vpack.c.b16 %v1024, %v1023
        %v1081 = vpack.c.b16 %v1026, %v1025
        %v1082 = vpack.c.b16 %v1028, %v1027
        %v1083 = vpack.c.b16 %v1030, %v1029
        %v1084 = vpack.c.b16 %v1032, %v1031
        %v1085 = vpack.c.b16 %v1034, %v1033
        %v1086 = vpack.c.b16 %v1036, %v1035
        %v1087 = vpack.c.b16 %v1038, %v1037
        %v1088 = vpack.c.b16 %v1040, %v1039
        %v1089 = vpack.c.b16 %v1042, %v1041
        %v1090 = vpack.c.b16 %v1044, %v1043
        %v1091 = vpack.c.b16 %v1046, %v1045
        %v1092 = vpack.c.b16 %v1048, %v1047
        %v1093 = vpack.c.b16 %v1050, %v1049
        %v1094 = vpack.c.b16 %v1052, %v1051
        %v1095 = vpack.c.b16 %v1054, %v1053
        %v1096 = vpack.c.b16 %v1056, %v1055
        %v1097 = vpack.c.b16 %v1058, %v1057
        %v1098 = vpack.c.b16 %v1060, %v1059
        %v1099 = vpack.c.b16 %v1062, %v1061
        %v1100 = vpack.c.b16 %v1064, %v1063
        %vm1137 = vcmask 523264
        %v1139 = vsel %vm1137, %v781, 0
        %v1142 = vsel %vm1137, %v786, 0
        %v1145 = vsel %vm1137, %v791, 0
        %v1148 = vsel %vm1137, %v796, 0
        %v1151 = vsel %vm1137, %v801, 0
        %v1154 = vsel %vm1137, %v806, 0
        %v1157 = vsel %vm1137, %v811, 0
        %v1160 = vsel %vm1137, %v816, 0
        %v1163 = vsel %vm1137, %v821, 0
        %v1166 = vsel %vm1137, %v826, 0
        %v1169 = vsel %vm1137, %v831, 0
        %v1172 = vsel %vm1137, %v836, 0
        %v1175 = vsel %vm1137, %v841, 0
        %v1178 = vsel %vm1137, %v846, 0
        %v1181 = vsel %vm1137, %v851, 0
        %v1184 = vsel %vm1137, %v856, 0
        %1186 = vmatprep.subr.bf16.mxu0 0
        %1187 = vmatpush1.bf16.msra.mxu0 %v1065
        %1188 = vmatprep.subr.bf16.mxu0 0
        %1189 = vmatpush1.bf16.msra.mxu0 %v1066
        %1190 = vmatprep.subr.bf16.mxu0 0
        %1191 = vmatpush1.bf16.msra.mxu0 %v1067
        %1192 = vmatprep.subr.bf16.mxu0 0
        %1193 = vmatpush1.bf16.msra.mxu0 %v1068
        %1194 = vmatprep.subr.bf16.mxu0 0
        %1195 = vmatpush1.bf16.msra.mxu0 %v1069
        %1196 = vmatprep.subr.bf16.mxu0 0
        %1197 = vmatpush1.bf16.msra.mxu0 %v1070
        %1198 = vmatprep.subr.bf16.mxu0 0
        %1199 = vmatpush1.bf16.msra.mxu0 %v1071
        %1200 = vmatprep.subr.bf16.mxu0 0
        %1201 = vmatpush1.bf16.msra.mxu0 %v1072
        %1202 = vmatprep.subr.bf16.mxu0 0
        %1203 = vmatpush1.bf16.msra.mxu0 %v1073
        %1204 = vmatprep.subr.bf16.mxu0 0
        %1205 = vmatpush1.bf16.msra.mxu0 %v1074
        %1206 = vmatprep.subr.bf16.mxu0 0
        %1207 = vmatpush1.bf16.msra.mxu0 %v1075
        %1208 = vmatprep.subr.bf16.mxu0 0
        %1209 = vmatpush1.bf16.msra.mxu0 %v1076
        %1210 = vmatprep.subr.bf16.mxu0 0
        %1211 = vmatpush1.bf16.msra.mxu0 %v1077
        %1212 = vmatprep.subr.bf16.mxu0 0
        %1213 = vmatpush1.bf16.msra.mxu0 %v1078
        %1214 = vmatprep.subr.bf16.mxu0 0
        %1215 = vmatpush1.bf16.msra.mxu0 %v1079
        %1216 = vmatprep.subr.bf16.mxu0 0
        %1217 = vmatpush1.bf16.msra.mxu0 %v1080
        %1218 = vmatprep.mubr.bf16.mxu0 %v778
        %1219 = vmatmul.mubr.bf16.gmra.mrb[0].mxu0 %v777
        %v1220 = vpop.f32.mrb[0].mxu0
        %v1221 = vadd.f32 0.0, %v1220
        %v1222 = vpop.f32.mrb[0].mxu0
        %v1223 = vpop.f32.mrb[0].mxu0
        %v1224 = vadd.f32 0.0, %v1223
        %v1225 = vpop.f32.mrb[0].mxu0
        %1226 = vmatprep.mubr.bf16.mxu0 %v783
        %1227 = vmatmul.mubr.bf16.gmra.mrb[0].mxu0 %v782
        %v1228 = vpop.f32.mrb[0].mxu0
        %v1229 = vadd.f32 0.0, %v1228
        %v1230 = vpop.f32.mrb[0].mxu0
        %v1231 = vpop.f32.mrb[0].mxu0
        %v1232 = vadd.f32 0.0, %v1231
        %v1233 = vpop.f32.mrb[0].mxu0
        %1234 = vmatprep.mubr.bf16.mxu0 %v788
        %1235 = vmatmul.mubr.bf16.gmra.mrb[0].mxu0 %v787
        %v1236 = vpop.f32.mrb[0].mxu0
        %v1237 = vadd.f32 0.0, %v1236
        %v1238 = vpop.f32.mrb[0].mxu0
        %v1239 = vpop.f32.mrb[0].mxu0
        %v1240 = vadd.f32 0.0, %v1239
        %v1241 = vpop.f32.mrb[0].mxu0
        %1242 = vmatprep.mubr.bf16.mxu0 %v793
        %1243 = vmatmul.mubr.bf16.gmra.mrb[0].mxu0 %v792
        %v1244 = vpop.f32.mrb[0].mxu0
        %v1245 = vadd.f32 0.0, %v1244
        %v1246 = vpop.f32.mrb[0].mxu0
        %v1247 = vpop.f32.mrb[0].mxu0
        %v1248 = vadd.f32 0.0, %v1247
        %v1249 = vpop.f32.mrb[0].mxu0
        %1250 = vmatprep.mubr.bf16.mxu0 %v798
        %1251 = vmatmul.mubr.bf16.gmra.mrb[0].mxu0 %v797
        %v1252 = vpop.f32.mrb[0].mxu0
        %v1253 = vadd.f32 0.0, %v1252
        %v1254 = vpop.f32.mrb[0].mxu0
        %v1255 = vpop.f32.mrb[0].mxu0
        %v1256 = vadd.f32 0.0, %v1255
        %v1257 = vpop.f32.mrb[0].mxu0
        %1258 = vmatprep.mubr.bf16.mxu0 %v803
        %1259 = vmatmul.mubr.bf16.gmra.mrb[0].mxu0 %v802
        %v1260 = vpop.f32.mrb[0].mxu0
        %v1261 = vadd.f32 0.0, %v1260
        %v1262 = vpop.f32.mrb[0].mxu0
        %v1263 = vpop.f32.mrb[0].mxu0
        %v1264 = vadd.f32 0.0, %v1263
        %v1265 = vpop.f32.mrb[0].mxu0
        %1266 = vmatprep.mubr.bf16.mxu0 %v808
        %1267 = vmatmul.mubr.bf16.gmra.mrb[0].mxu0 %v807
        %v1268 = vpop.f32.mrb[0].mxu0
        %v1269 = vadd.f32 0.0, %v1268
        %v1270 = vpop.f32.mrb[0].mxu0
        %v1271 = vpop.f32.mrb[0].mxu0
        %v1272 = vadd.f32 0.0, %v1271
        %v1273 = vpop.f32.mrb[0].mxu0
        %1274 = vmatprep.mubr.bf16.mxu0 %v813
        %1275 = vmatmul.mubr.bf16.gmra.mrb[0].mxu0 %v812
        %v1276 = vpop.f32.mrb[0].mxu0
        %v1277 = vadd.f32 0.0, %v1276
        %v1278 = vpop.f32.mrb[0].mxu0
        %v1279 = vpop.f32.mrb[0].mxu0
        %v1280 = vadd.f32 0.0, %v1279
        %v1281 = vpop.f32.mrb[0].mxu0
        %1282 = vmatprep.mubr.bf16.mxu0 %v818
        %1283 = vmatmul.mubr.bf16.gmra.mrb[0].mxu0 %v817
        %v1284 = vpop.f32.mrb[0].mxu0
        %v1285 = vadd.f32 0.0, %v1284
        %v1286 = vpop.f32.mrb[0].mxu0
        %v1287 = vpop.f32.mrb[0].mxu0
        %v1288 = vadd.f32 0.0, %v1287
        %v1289 = vpop.f32.mrb[0].mxu0
        %1290 = vmatprep.mubr.bf16.mxu0 %v823
        %1291 = vmatmul.mubr.bf16.gmra.mrb[0].mxu0 %v822
        %v1292 = vpop.f32.mrb[0].mxu0
        %v1293 = vadd.f32 0.0, %v1292
        %v1294 = vpop.f32.mrb[0].mxu0
        %v1295 = vpop.f32.mrb[0].mxu0
        %v1296 = vadd.f32 0.0, %v1295
        %v1297 = vpop.f32.mrb[0].mxu0
        %1298 = vmatprep.mubr.bf16.mxu0 %v828
        %1299 = vmatmul.mubr.bf16.gmra.mrb[0].mxu0 %v827
        %v1300 = vpop.f32.mrb[0].mxu0
        %v1301 = vadd.f32 0.0, %v1300
        %v1302 = vpop.f32.mrb[0].mxu0
        %v1303 = vpop.f32.mrb[0].mxu0
        %v1304 = vadd.f32 0.0, %v1303
        %v1305 = vpop.f32.mrb[0].mxu0
        %1306 = vmatprep.mubr.bf16.mxu0 %v833
        %1307 = vmatmul.mubr.bf16.gmra.mrb[0].mxu0 %v832
        %v1308 = vpop.f32.mrb[0].mxu0
        %v1309 = vadd.f32 0.0, %v1308
        %v1310 = vpop.f32.mrb[0].mxu0
        %v1311 = vpop.f32.mrb[0].mxu0
        %v1312 = vadd.f32 0.0, %v1311
        %v1313 = vpop.f32.mrb[0].mxu0
        %1314 = vmatprep.mubr.bf16.mxu0 %v838
        %1315 = vmatmul.mubr.bf16.gmra.mrb[0].mxu0 %v837
        %v1316 = vpop.f32.mrb[0].mxu0
        %v1317 = vadd.f32 0.0, %v1316
        %v1318 = vpop.f32.mrb[0].mxu0
        %v1319 = vpop.f32.mrb[0].mxu0
        %v1320 = vadd.f32 0.0, %v1319
        %v1321 = vpop.f32.mrb[0].mxu0
        %1322 = vmatprep.mubr.bf16.mxu0 %v843
        %1323 = vmatmul.mubr.bf16.gmra.mrb[0].mxu0 %v842
        %v1324 = vpop.f32.mrb[0].mxu0
        %v1325 = vadd.f32 0.0, %v1324
        %v1326 = vpop.f32.mrb[0].mxu0
        %v1327 = vpop.f32.mrb[0].mxu0
        %v1328 = vadd.f32 0.0, %v1327
        %v1329 = vpop.f32.mrb[0].mxu0
        %1330 = vmatprep.mubr.bf16.mxu0 %v848
        %1331 = vmatmul.mubr.bf16.gmra.mrb[0].mxu0 %v847
        %v1332 = vpop.f32.mrb[0].mxu0
        %v1333 = vadd.f32 0.0, %v1332
        %v1334 = vpop.f32.mrb[0].mxu0
        %v1335 = vpop.f32.mrb[0].mxu0
        %v1336 = vadd.f32 0.0, %v1335
        %v1337 = vpop.f32.mrb[0].mxu0
        %1338 = vmatprep.mubr.bf16.mxu0 %v853
        %1339 = vmatmul.mubr.bf16.gmra.mrb[0].mxu0 %v852
        %v1340 = vpop.f32.mrb[0].mxu0
        %v1341 = vadd.f32 0.0, %v1340
        %v1342 = vpop.f32.mrb[0].mxu0
        %v1343 = vpop.f32.mrb[0].mxu0
        %v1344 = vadd.f32 0.0, %v1343
        %v1345 = vpop.f32.mrb[0].mxu0
        %1346 = vdwg.mxu0
        %1347 = vmatprep.subr.bf16.mxu0 0
        %1348 = vmatpush1.bf16.msra.mxu0 %v1081
        %1349 = vmatprep.subr.bf16.mxu0 0
        %1350 = vmatpush1.bf16.msra.mxu0 %v1082
        %1351 = vmatprep.subr.bf16.mxu0 0
        %1352 = vmatpush1.bf16.msra.mxu0 %v1083
        %1353 = vmatprep.subr.bf16.mxu0 0
        %1354 = vmatpush1.bf16.msra.mxu0 %v1084
        %1355 = vmatprep.subr.bf16.mxu0 0
        %1356 = vmatpush1.bf16.msra.mxu0 %v1085
        %1357 = vmatprep.subr.bf16.mxu0 0
        %1358 = vmatpush1.bf16.msra.mxu0 %v1086
        %1359 = vmatprep.subr.bf16.mxu0 0
        %1360 = vmatpush1.bf16.msra.mxu0 %v1087
        %1361 = vmatprep.subr.bf16.mxu0 0
        %1362 = vmatpush1.bf16.msra.mxu0 %v1088
        %1363 = vmatprep.subr.bf16.mxu0 0
        %1364 = vmatpush1.bf16.msra.mxu0 %v1089
        %1365 = vmatprep.subr.bf16.mxu0 0
        %1366 = vmatpush1.bf16.msra.mxu0 %v1090
        %1367 = vmatprep.subr.bf16.mxu0 0
        %1368 = vmatpush1.bf16.msra.mxu0 %v1091
        %1369 = vmatprep.subr.bf16.mxu0 0
        %1370 = vmatpush1.bf16.msra.mxu0 %v1092
        %1371 = vmatprep.subr.bf16.mxu0 0
        %1372 = vmatpush1.bf16.msra.mxu0 %v1093
        %1373 = vmatprep.subr.bf16.mxu0 0
        %1374 = vmatpush1.bf16.msra.mxu0 %v1094
        %1375 = vmatprep.subr.bf16.mxu0 0
        %1376 = vmatpush1.bf16.msra.mxu0 %v1095
        %1377 = vmatprep.subr.bf16.mxu0 0
        %1378 = vmatpush1.bf16.msra.mxu0 %v1096
        %1379 = vmatprep.mubr.bf16.mxu0 %v780
        %1380 = vmatmul.mubr.bf16.gmra.mrb[0].mxu0 %v779
        %v1381 = vpop.f32.mrb[0].mxu0
        %v1382 = vadd.f32 %v1221, %v1381
        %v1383 = vpop.f32.mrb[0].mxu0
        %v1384 = vpop.f32.mrb[0].mxu0
        %v1385 = vadd.f32 %v1224, %v1384
        %v1386 = vpop.f32.mrb[0].mxu0
        %1387 = vmatprep.mubr.bf16.mxu0 %v785
        %1388 = vmatmul.mubr.bf16.gmra.mrb[0].mxu0 %v784
        %v1389 = vpop.f32.mrb[0].mxu0
        %v1390 = vadd.f32 %v1229, %v1389
        %v1391 = vpop.f32.mrb[0].mxu0
        %v1392 = vpop.f32.mrb[0].mxu0
        %v1393 = vadd.f32 %v1232, %v1392
        %v1394 = vpop.f32.mrb[0].mxu0
        %1395 = vmatprep.mubr.bf16.mxu0 %v790
        %1396 = vmatmul.mubr.bf16.gmra.mrb[0].mxu0 %v789
        %v1397 = vpop.f32.mrb[0].mxu0
        %v1398 = vadd.f32 %v1237, %v1397
        %v1399 = vpop.f32.mrb[0].mxu0
        %v1400 = vpop.f32.mrb[0].mxu0
        %v1401 = vadd.f32 %v1240, %v1400
        %v1402 = vpop.f32.mrb[0].mxu0
        %1403 = vmatprep.mubr.bf16.mxu0 %v795
        %1404 = vmatmul.mubr.bf16.gmra.mrb[0].mxu0 %v794
        %v1405 = vpop.f32.mrb[0].mxu0
        %v1406 = vadd.f32 %v1245, %v1405
        %v1407 = vpop.f32.mrb[0].mxu0
        %v1408 = vpop.f32.mrb[0].mxu0
        %v1409 = vadd.f32 %v1248, %v1408
        %v1410 = vpop.f32.mrb[0].mxu0
        %1411 = vmatprep.mubr.bf16.mxu0 %v800
        %1412 = vmatmul.mubr.bf16.gmra.mrb[0].mxu0 %v799
        %v1413 = vpop.f32.mrb[0].mxu0
        %v1414 = vadd.f32 %v1253, %v1413
        %v1415 = vpop.f32.mrb[0].mxu0
        %v1416 = vpop.f32.mrb[0].mxu0
        %v1417 = vadd.f32 %v1256, %v1416
        %v1418 = vpop.f32.mrb[0].mxu0
        %1419 = vmatprep.mubr.bf16.mxu0 %v805
        %1420 = vmatmul.mubr.bf16.gmra.mrb[0].mxu0 %v804
        %v1421 = vpop.f32.mrb[0].mxu0
        %v1422 = vadd.f32 %v1261, %v1421
        %v1423 = vpop.f32.mrb[0].mxu0
        %v1424 = vpop.f32.mrb[0].mxu0
        %v1425 = vadd.f32 %v1264, %v1424
        %v1426 = vpop.f32.mrb[0].mxu0
        %1427 = vmatprep.mubr.bf16.mxu0 %v810
        %1428 = vmatmul.mubr.bf16.gmra.mrb[0].mxu0 %v809
        %v1429 = vpop.f32.mrb[0].mxu0
        %v1430 = vadd.f32 %v1269, %v1429
        %v1431 = vpop.f32.mrb[0].mxu0
        %v1432 = vpop.f32.mrb[0].mxu0
        %v1433 = vadd.f32 %v1272, %v1432
        %v1434 = vpop.f32.mrb[0].mxu0
        %1435 = vmatprep.mubr.bf16.mxu0 %v815
        %1436 = vmatmul.mubr.bf16.gmra.mrb[0].mxu0 %v814
        %v1437 = vpop.f32.mrb[0].mxu0
        %v1438 = vadd.f32 %v1277, %v1437
        %v1439 = vpop.f32.mrb[0].mxu0
        %v1440 = vpop.f32.mrb[0].mxu0
        %v1441 = vadd.f32 %v1280, %v1440
        %v1442 = vpop.f32.mrb[0].mxu0
        %1443 = vmatprep.mubr.bf16.mxu0 %v820
        %1444 = vmatmul.mubr.bf16.gmra.mrb[0].mxu0 %v819
        %v1445 = vpop.f32.mrb[0].mxu0
        %v1446 = vadd.f32 %v1285, %v1445
        %v1447 = vpop.f32.mrb[0].mxu0
        %v1448 = vpop.f32.mrb[0].mxu0
        %v1449 = vadd.f32 %v1288, %v1448
        %v1450 = vpop.f32.mrb[0].mxu0
        %1451 = vmatprep.mubr.bf16.mxu0 %v825
        %1452 = vmatmul.mubr.bf16.gmra.mrb[0].mxu0 %v824
        %v1453 = vpop.f32.mrb[0].mxu0
        %v1454 = vadd.f32 %v1293, %v1453
        %v1455 = vpop.f32.mrb[0].mxu0
        %v1456 = vpop.f32.mrb[0].mxu0
        %v1457 = vadd.f32 %v1296, %v1456
        %v1458 = vpop.f32.mrb[0].mxu0
        %1459 = vmatprep.mubr.bf16.mxu0 %v830
        %1460 = vmatmul.mubr.bf16.gmra.mrb[0].mxu0 %v829
        %v1461 = vpop.f32.mrb[0].mxu0
        %v1462 = vadd.f32 %v1301, %v1461
        %v1463 = vpop.f32.mrb[0].mxu0
        %v1464 = vpop.f32.mrb[0].mxu0
        %v1465 = vadd.f32 %v1304, %v1464
        %v1466 = vpop.f32.mrb[0].mxu0
        %1467 = vmatprep.mubr.bf16.mxu0 %v835
        %1468 = vmatmul.mubr.bf16.gmra.mrb[0].mxu0 %v834
        %v1469 = vpop.f32.mrb[0].mxu0
        %v1470 = vadd.f32 %v1309, %v1469
        %v1471 = vpop.f32.mrb[0].mxu0
        %v1472 = vpop.f32.mrb[0].mxu0
        %v1473 = vadd.f32 %v1312, %v1472
        %v1474 = vpop.f32.mrb[0].mxu0
        %1475 = vmatprep.mubr.bf16.mxu0 %v840
        %1476 = vmatmul.mubr.bf16.gmra.mrb[0].mxu0 %v839
        %v1477 = vpop.f32.mrb[0].mxu0
        %v1478 = vadd.f32 %v1317, %v1477
        %v1479 = vpop.f32.mrb[0].mxu0
        %v1480 = vpop.f32.mrb[0].mxu0
        %v1481 = vadd.f32 %v1320, %v1480
        %v1482 = vpop.f32.mrb[0].mxu0
        %1483 = vmatprep.mubr.bf16.mxu0 %v845
        %1484 = vmatmul.mubr.bf16.gmra.mrb[0].mxu0 %v844
        %v1485 = vpop.f32.mrb[0].mxu0
        %v1486 = vadd.f32 %v1325, %v1485
        %v1487 = vpop.f32.mrb[0].mxu0
        %v1488 = vpop.f32.mrb[0].mxu0
        %v1489 = vadd.f32 %v1328, %v1488
        %v1490 = vpop.f32.mrb[0].mxu0
        %1491 = vmatprep.mubr.bf16.mxu0 %v850
        %1492 = vmatmul.mubr.bf16.gmra.mrb[0].mxu0 %v849
        %v1493 = vpop.f32.mrb[0].mxu0
        %v1494 = vadd.f32 %v1333, %v1493
        %v1495 = vpop.f32.mrb[0].mxu0
        %v1496 = vpop.f32.mrb[0].mxu0
        %v1497 = vadd.f32 %v1336, %v1496
        %v1498 = vpop.f32.mrb[0].mxu0
        %1499 = vmatprep.mubr.bf16.mxu0 %v855
        %1500 = vmatmul.mubr.bf16.gmra.mrb[0].mxu0 %v854
        %v1501 = vpop.f32.mrb[0].mxu0
        %v1502 = vadd.f32 %v1341, %v1501
        %v1503 = vpop.f32.mrb[0].mxu0
        %v1504 = vpop.f32.mrb[0].mxu0
        %v1505 = vadd.f32 %v1344, %v1504
        %v1506 = vpop.f32.mrb[0].mxu0
        %1507 = vdwg.mxu0
        %1508 = vmatprep.subr.bf16.mxu0 0
        %1509 = vmatpush1.bf16.msra.mxu0 %v1097
        %1510 = vmatprep.subr.bf16.mxu0 0
        %1511 = vmatpush1.bf16.msra.mxu0 %v1098
        %1512 = vmatprep.subr.bf16.mxu0 0
        %1513 = vmatpush1.bf16.msra.mxu0 %v1099
        %1514 = vmatprep.subr.bf16.mxu0 0
        %1515 = vmatpush1.bf16.msra.mxu0 %v1100
        %1516 = vmatprep.subr.bf16.mxu0 0
        %1517 = vmatpush1.bf16.msra.mxu0 0
        %1518 = vmatprep.subr.bf16.mxu0 0
        %1519 = vmatpush1.bf16.msra.mxu0 0
        %1520 = vmatprep.subr.bf16.mxu0 0
        %1521 = vmatpush1.bf16.msra.mxu0 0
        %1522 = vmatprep.subr.bf16.mxu0 0
        %1523 = vmatpush1.bf16.msra.mxu0 0
        %1524 = vmatprep.subr.bf16.mxu0 0
        %1525 = vmatpush1.bf16.msra.mxu0 0
        %1526 = vmatprep.subr.bf16.mxu0 0
        %1527 = vmatpush1.bf16.msra.mxu0 0
        %1528 = vmatprep.subr.bf16.mxu0 0
        %1529 = vmatpush1.bf16.msra.mxu0 0
        %1530 = vmatprep.subr.bf16.mxu0 0
        %1531 = vmatpush1.bf16.msra.mxu0 0
        %1532 = vmatprep.subr.bf16.mxu0 0
        %1533 = vmatpush1.bf16.msra.mxu0 0
        %1534 = vmatprep.subr.bf16.mxu0 0
        %1535 = vmatpush1.bf16.msra.mxu0 0
        %1536 = vmatprep.subr.bf16.mxu0 0
        %1537 = vmatpush1.bf16.msra.mxu0 0
        %1538 = vmatprep.subr.bf16.mxu0 0
        %1539 = vmatpush1.bf16.msra.mxu0 0
        %1540 = vmatprep.mubr.bf16.mxu0 0
        %1541 = vmatmul.mubr.bf16.gmra.mrb[0].mxu0 %v1139
        %v1542 = vpop.f32.mrb[0].mxu0
        %v1543 = vadd.f32 %v1382, %v1542
        %v1544 = vpop.f32.mrb[0].mxu0
        %v1545 = vpop.f32.mrb[0].mxu0
        %v1546 = vadd.f32 %v1385, %v1545
        %v1547 = vpop.f32.mrb[0].mxu0
        %1548 = vmatprep.mubr.bf16.mxu0 0
        %1549 = vmatmul.mubr.bf16.gmra.mrb[0].mxu0 %v1142
        %v1550 = vpop.f32.mrb[0].mxu0
        %v1551 = vadd.f32 %v1390, %v1550
        %v1552 = vpop.f32.mrb[0].mxu0
        %v1553 = vpop.f32.mrb[0].mxu0
        %v1554 = vadd.f32 %v1393, %v1553
        %v1555 = vpop.f32.mrb[0].mxu0
        %1556 = vmatprep.mubr.bf16.mxu0 0
        %1557 = vmatmul.mubr.bf16.gmra.mrb[0].mxu0 %v1145
        %v1558 = vpop.f32.mrb[0].mxu0
        %v1559 = vadd.f32 %v1398, %v1558
        %v1560 = vpop.f32.mrb[0].mxu0
        %v1561 = vpop.f32.mrb[0].mxu0
        %v1562 = vadd.f32 %v1401, %v1561
        %v1563 = vpop.f32.mrb[0].mxu0
        %1564 = vmatprep.mubr.bf16.mxu0 0
        %1565 = vmatmul.mubr.bf16.gmra.mrb[0].mxu0 %v1148
        %v1566 = vpop.f32.mrb[0].mxu0
        %v1567 = vadd.f32 %v1406, %v1566
        %v1568 = vpop.f32.mrb[0].mxu0
        %v1569 = vpop.f32.mrb[0].mxu0
        %v1570 = vadd.f32 %v1409, %v1569
        %v1571 = vpop.f32.mrb[0].mxu0
        %1572 = vmatprep.mubr.bf16.mxu0 0
        %1573 = vmatmul.mubr.bf16.gmra.mrb[0].mxu0 %v1151
        %v1574 = vpop.f32.mrb[0].mxu0
        %v1575 = vadd.f32 %v1414, %v1574
        %v1576 = vpop.f32.mrb[0].mxu0
        %v1577 = vpop.f32.mrb[0].mxu0
        %v1578 = vadd.f32 %v1417, %v1577
        %v1579 = vpop.f32.mrb[0].mxu0
        %1580 = vmatprep.mubr.bf16.mxu0 0
        %1581 = vmatmul.mubr.bf16.gmra.mrb[0].mxu0 %v1154
        %v1582 = vpop.f32.mrb[0].mxu0
        %v1583 = vadd.f32 %v1422, %v1582
        %v1584 = vpop.f32.mrb[0].mxu0
        %v1585 = vpop.f32.mrb[0].mxu0
        %v1586 = vadd.f32 %v1425, %v1585
        %v1587 = vpop.f32.mrb[0].mxu0
        %1588 = vmatprep.mubr.bf16.mxu0 0
        %1589 = vmatmul.mubr.bf16.gmra.mrb[0].mxu0 %v1157
        %v1590 = vpop.f32.mrb[0].mxu0
        %v1591 = vadd.f32 %v1430, %v1590
        %v1592 = vpop.f32.mrb[0].mxu0
        %v1593 = vpop.f32.mrb[0].mxu0
        %v1594 = vadd.f32 %v1433, %v1593
        %v1595 = vpop.f32.mrb[0].mxu0
        %1596 = vmatprep.mubr.bf16.mxu0 0
        %1597 = vmatmul.mubr.bf16.gmra.mrb[0].mxu0 %v1160
        %v1598 = vpop.f32.mrb[0].mxu0
        %v1599 = vadd.f32 %v1438, %v1598
        %v1600 = vpop.f32.mrb[0].mxu0
        %v1601 = vpop.f32.mrb[0].mxu0
        %v1602 = vadd.f32 %v1441, %v1601
        %v1603 = vpop.f32.mrb[0].mxu0
        %1604 = vmatprep.mubr.bf16.mxu0 0
        %1605 = vmatmul.mubr.bf16.gmra.mrb[0].mxu0 %v1163
        %v1606 = vpop.f32.mrb[0].mxu0
        %v1607 = vadd.f32 %v1446, %v1606
        %v1608 = vpop.f32.mrb[0].mxu0
        %v1609 = vpop.f32.mrb[0].mxu0
        %v1610 = vadd.f32 %v1449, %v1609
        %v1611 = vpop.f32.mrb[0].mxu0
        %1612 = vmatprep.mubr.bf16.mxu0 0
        %1613 = vmatmul.mubr.bf16.gmra.mrb[0].mxu0 %v1166
        %v1614 = vpop.f32.mrb[0].mxu0
        %v1615 = vadd.f32 %v1454, %v1614
        %v1616 = vpop.f32.mrb[0].mxu0
        %v1617 = vpop.f32.mrb[0].mxu0
        %v1618 = vadd.f32 %v1457, %v1617
        %v1619 = vpop.f32.mrb[0].mxu0
        %1620 = vmatprep.mubr.bf16.mxu0 0
        %1621 = vmatmul.mubr.bf16.gmra.mrb[0].mxu0 %v1169
        %v1622 = vpop.f32.mrb[0].mxu0
        %v1623 = vadd.f32 %v1462, %v1622
        %v1624 = vpop.f32.mrb[0].mxu0
        %v1625 = vpop.f32.mrb[0].mxu0
        %v1626 = vadd.f32 %v1465, %v1625
        %v1627 = vpop.f32.mrb[0].mxu0
        %1628 = vmatprep.mubr.bf16.mxu0 0
        %1629 = vmatmul.mubr.bf16.gmra.mrb[0].mxu0 %v1172
        %v1630 = vpop.f32.mrb[0].mxu0
        %v1631 = vadd.f32 %v1470, %v1630
        %v1632 = vpop.f32.mrb[0].mxu0
        %v1633 = vpop.f32.mrb[0].mxu0
        %v1634 = vadd.f32 %v1473, %v1633
        %v1635 = vpop.f32.mrb[0].mxu0
        %1636 = vmatprep.mubr.bf16.mxu0 0
        %1637 = vmatmul.mubr.bf16.gmra.mrb[0].mxu0 %v1175
        %v1638 = vpop.f32.mrb[0].mxu0
        %v1639 = vadd.f32 %v1478, %v1638
        %v1640 = vpop.f32.mrb[0].mxu0
        %v1641 = vpop.f32.mrb[0].mxu0
        %v1642 = vadd.f32 %v1481, %v1641
        %v1643 = vpop.f32.mrb[0].mxu0
        %1644 = vmatprep.mubr.bf16.mxu0 0
        %1645 = vmatmul.mubr.bf16.gmra.mrb[0].mxu0 %v1178
        %v1646 = vpop.f32.mrb[0].mxu0
        %v1647 = vadd.f32 %v1486, %v1646
        %v1648 = vpop.f32.mrb[0].mxu0
        %v1649 = vpop.f32.mrb[0].mxu0
        %v1650 = vadd.f32 %v1489, %v1649
        %v1651 = vpop.f32.mrb[0].mxu0
        %1652 = vmatprep.mubr.bf16.mxu0 0
        %1653 = vmatmul.mubr.bf16.gmra.mrb[0].mxu0 %v1181
        %v1654 = vpop.f32.mrb[0].mxu0
        %v1655 = vadd.f32 %v1494, %v1654
        %v1656 = vpop.f32.mrb[0].mxu0
        %v1657 = vpop.f32.mrb[0].mxu0
        %v1658 = vadd.f32 %v1497, %v1657
        %v1659 = vpop.f32.mrb[0].mxu0
        %1660 = vmatprep.mubr.bf16.mxu0 0
        %1661 = vmatmul.mubr.bf16.gmra.mrb[0].mxu0 %v1184
        %v1662 = vpop.f32.mrb[0].mxu0
        %v1663 = vadd.f32 %v1502, %v1662
        %v1664 = vpop.f32.mrb[0].mxu0
        %v1665 = vpop.f32.mrb[0].mxu0
        %v1666 = vadd.f32 %v1505, %v1665
        %v1667 = vpop.f32.mrb[0].mxu0
        %1668 = vdwg.mxu0
        %v1669 = vadd.f32 %v321, %v1543
        %v1670 = vadd.f32 %v322, %v1546
        %v1671 = vadd.f32 %v323, %v1551
        %v1672 = vadd.f32 %v324, %v1554
        %v1673 = vadd.f32 %v325, %v1559
        %v1674 = vadd.f32 %v326, %v1562
        %v1675 = vadd.f32 %v327, %v1567
        %v1676 = vadd.f32 %v328, %v1570
        %v1677 = vadd.f32 %v329, %v1575
        %v1678 = vadd.f32 %v330, %v1578
        %v1679 = vadd.f32 %v331, %v1583
        %v1680 = vadd.f32 %v332, %v1586
        %v1681 = vadd.f32 %v333, %v1591
        %v1682 = vadd.f32 %v334, %v1594
        %v1683 = vadd.f32 %v335, %v1599
        %v1684 = vadd.f32 %v336, %v1602
        %v1685 = vadd.f32 %v337, %v1607
        %v1686 = vadd.f32 %v338, %v1610
        %v1687 = vadd.f32 %v339, %v1615
        %v1688 = vadd.f32 %v340, %v1618
        %v1689 = vadd.f32 %v341, %v1623
        %v1690 = vadd.f32 %v342, %v1626
        %v1691 = vadd.f32 %v343, %v1631
        %v1692 = vadd.f32 %v344, %v1634
        %v1693 = vadd.f32 %v345, %v1639
        %v1694 = vadd.f32 %v346, %v1642
        %v1695 = vadd.f32 %v347, %v1647
        %v1696 = vadd.f32 %v348, %v1650
        %v1697 = vadd.f32 %v349, %v1655
        %v1698 = vadd.f32 %v350, %v1658
        %v1699 = vadd.f32 %v351, %v1663
        %v1700 = vadd.f32 %v352, %v1666
        %1701 = vst [vmem:[#allocation2] sm:$0xff] %v1669
        %1702 = vst [vmem:[#allocation2 + $0x8] sm:$0xff] %v1670
        %1703 = vst [vmem:[#allocation2 + $0x10] sm:$0xff] %v1671
        %1704 = vst [vmem:[#allocation2 + $0x18] sm:$0xff] %v1672
        %1705 = vst [vmem:[#allocation2 + $0x20] sm:$0xff] %v1673
        %1706 = vst [vmem:[#allocation2 + $0x28] sm:$0xff] %v1674
        %1707 = vst [vmem:[#allocation2 + $0x30] sm:$0xff] %v1675
        %1708 = vst [vmem:[#allocation2 + $0x38] sm:$0xff] %v1676
        %1709 = vst [vmem:[#allocation2 + $0x40] sm:$0xff] %v1677
        %1710 = vst [vmem:[#allocation2 + $0x48] sm:$0xff] %v1678
        %1711 = vst [vmem:[#allocation2 + $0x50] sm:$0xff] %v1679
        %1712 = vst [vmem:[#allocation2 + $0x58] sm:$0xff] %v1680
        %1713 = vst [vmem:[#allocation2 + $0x60] sm:$0xff] %v1681
        %1714 = vst [vmem:[#allocation2 + $0x68] sm:$0xff] %v1682
        %1715 = vst [vmem:[#allocation2 + $0x70] sm:$0xff] %v1683
        %1716 = vst [vmem:[#allocation2 + $0x78] sm:$0xff] %v1684
        %1717 = vst [vmem:[#allocation2 + $0x80] sm:$0xff] %v1685
        %1718 = vst [vmem:[#allocation2 + $0x88] sm:$0xff] %v1686
        %1719 = vst [vmem:[#allocation2 + $0x90] sm:$0xff] %v1687
        %1720 = vst [vmem:[#allocation2 + $0x98] sm:$0xff] %v1688
        %1721 = vst [vmem:[#allocation2 + $0xa0] sm:$0xff] %v1689
        %1722 = vst [vmem:[#allocation2 + $0xa8] sm:$0xff] %v1690
        %1723 = vst [vmem:[#allocation2 + $0xb0] sm:$0xff] %v1691
        %1724 = vst [vmem:[#allocation2 + $0xb8] sm:$0xff] %v1692
        %1725 = vst [vmem:[#allocation2 + $0xc0] sm:$0xff] %v1693
        %1726 = vst [vmem:[#allocation2 + $0xc8] sm:$0xff] %v1694
        %1727 = vst [vmem:[#allocation2 + $0xd0] sm:$0xff] %v1695
        %1728 = vst [vmem:[#allocation2 + $0xd8] sm:$0xff] %v1696
        %1729 = vst [vmem:[#allocation2 + $0xe0] sm:$0xff] %v1697
        %1730 = vst [vmem:[#allocation2 + $0xe8] sm:$0xff] %v1698
        %1731 = vst [vmem:[#allocation2 + $0xf0] sm:$0xff] %v1699
        %1732 = vst [vmem:[#allocation2 + $0xf8] sm:$0xff] %v1700
        // Predicated region
        $region37: #{semantic_net_forward.8} parent=31 // pred_check
          %p1733 = pneg %p285
        $region38: #{semantic_net_forward.8} parent=31 // pred_check_branch
          %1735 = sbr.rel (%p1733) target = $region40
        $region39: #{semantic_net_forward.8} parent=31 // pred_region
          %v1736 = vld [vmem:[#allocation2] sm:$0xff]
          %v1737 = vld [vmem:[#allocation2 + $0x8] sm:$0xff]
          %v1738 = vld [vmem:[#allocation2 + $0x10] sm:$0xff]
          %v1739 = vld [vmem:[#allocation2 + $0x18] sm:$0xff]
          %v1740 = vld [vmem:[#allocation2 + $0x20] sm:$0xff]
          %v1741 = vld [vmem:[#allocation2 + $0x28] sm:$0xff]
          %v1742 = vld [vmem:[#allocation2 + $0x30] sm:$0xff]
          %v1743 = vld [vmem:[#allocation2 + $0x38] sm:$0xff]
          %v1744 = vld [vmem:[#allocation2 + $0x40] sm:$0xff]
          %v1745 = vld [vmem:[#allocation2 + $0x48] sm:$0xff]
          %v1746 = vld [vmem:[#allocation2 + $0x50] sm:$0xff]
          %v1747 = vld [vmem:[#allocation2 + $0x58] sm:$0xff]
          %v1748 = vld [vmem:[#allocation2 + $0x60] sm:$0xff]
          %v1749 = vld [vmem:[#allocation2 + $0x68] sm:$0xff]
          %v1750 = vld [vmem:[#allocation2 + $0x70] sm:$0xff]
          %v1751 = vld [vmem:[#allocation2 + $0x78] sm:$0xff]
          %v1752 = vld [vmem:[#allocation2 + $0x80] sm:$0xff]
          %v1753 = vld [vmem:[#allocation2 + $0x88] sm:$0xff]
          %v1754 = vld [vmem:[#allocation2 + $0x90] sm:$0xff]
          %v1755 = vld [vmem:[#allocation2 + $0x98] sm:$0xff]
          %v1756 = vld [vmem:[#allocation2 + $0xa0] sm:$0xff]
          %v1757 = vld [vmem:[#allocation2 + $0xa8] sm:$0xff]
          %v1758 = vld [vmem:[#allocation2 + $0xb0] sm:$0xff]
          %v1759 = vld [vmem:[#allocation2 + $0xb8] sm:$0xff]
          %v1760 = vld [vmem:[#allocation2 + $0xc0] sm:$0xff]
          %v1761 = vld [vmem:[#allocation2 + $0xc8] sm:$0xff]
          %v1762 = vld [vmem:[#allocation2 + $0xd0] sm:$0xff]
          %v1763 = vld [vmem:[#allocation2 + $0xd8] sm:$0xff]
          %v1764 = vld [vmem:[#allocation2 + $0xe0] sm:$0xff]
          %v1765 = vld [vmem:[#allocation2 + $0xe8] sm:$0xff]
          %v1766 = vld [vmem:[#allocation2 + $0xf0] sm:$0xff]
          %v1767 = vld [vmem:[#allocation2 + $0xf8] sm:$0xff]
          %v1768 = vld [vmem:[%s278] sm:$0x1]
          %v1770 = vlaneseq
          %v1771 = vshrl.u32 %v1770, 7
          %v1772 = vsub.s32 0, %v1771
          %v1773 = vrot.slane %v1768, %v1772
          %v1775 = vadd.f32 %v1736, %v1773
          %v1776 = vadd.f32 %v1737, %v1773
          %v1777 = vadd.f32 %v1738, %v1773
          %v1778 = vadd.f32 %v1739, %v1773
          %v1779 = vadd.f32 %v1740, %v1773
          %v1780 = vadd.f32 %v1741, %v1773
          %v1781 = vadd.f32 %v1742, %v1773
          %v1782 = vadd.f32 %v1743, %v1773
          %v1783 = vadd.f32 %v1744, %v1773
          %v1784 = vadd.f32 %v1745, %v1773
          %v1785 = vadd.f32 %v1746, %v1773
          %v1786 = vadd.f32 %v1747, %v1773
          %v1787 = vadd.f32 %v1748, %v1773
          %v1788 = vadd.f32 %v1749, %v1773
          %v1789 = vadd.f32 %v1750, %v1773
          %v1790 = vadd.f32 %v1751, %v1773
          %v1791 = vadd.f32 %v1752, %v1773
          %v1792 = vadd.f32 %v1753, %v1773
          %v1793 = vadd.f32 %v1754, %v1773
          %v1794 = vadd.f32 %v1755, %v1773
          %v1795 = vadd.f32 %v1756, %v1773
          %v1796 = vadd.f32 %v1757, %v1773
          %v1797 = vadd.f32 %v1758, %v1773
          %v1798 = vadd.f32 %v1759, %v1773
          %v1799 = vadd.f32 %v1760, %v1773
          %v1800 = vadd.f32 %v1761, %v1773
          %v1801 = vadd.f32 %v1762, %v1773
          %v1802 = vadd.f32 %v1763, %v1773
          %v1803 = vadd.f32 %v1764, %v1773
          %v1804 = vadd.f32 %v1765, %v1773
          %v1805 = vadd.f32 %v1766, %v1773
          %v1806 = vadd.f32 %v1767, %v1773
          %v1807 = vmax.f32 %v1775, 0.0
          %v1808 = vmax.f32 %v1776, 0.0
          %v1809 = vmax.f32 %v1777, 0.0
          %v1810 = vmax.f32 %v1778, 0.0
          %v1811 = vmax.f32 %v1779, 0.0
          %v1812 = vmax.f32 %v1780, 0.0
          %v1813 = vmax.f32 %v1781, 0.0
          %v1814 = vmax.f32 %v1782, 0.0
          %v1815 = vmax.f32 %v1783, 0.0
          %v1816 = vmax.f32 %v1784, 0.0
          %v1817 = vmax.f32 %v1785, 0.0
          %v1818 = vmax.f32 %v1786, 0.0
          %v1819 = vmax.f32 %v1787, 0.0
          %v1820 = vmax.f32 %v1788, 0.0
          %v1821 = vmax.f32 %v1789, 0.0
          %v1822 = vmax.f32 %v1790, 0.0
          %v1823 = vmax.f32 %v1791, 0.0
          %v1824 = vmax.f32 %v1792, 0.0
          %v1825 = vmax.f32 %v1793, 0.0
          %v1826 = vmax.f32 %v1794, 0.0
          %v1827 = vmax.f32 %v1795, 0.0
          %v1828 = vmax.f32 %v1796, 0.0
          %v1829 = vmax.f32 %v1797, 0.0
          %v1830 = vmax.f32 %v1798, 0.0
          %v1831 = vmax.f32 %v1799, 0.0
          %v1832 = vmax.f32 %v1800, 0.0
          %v1833 = vmax.f32 %v1801, 0.0
          %v1834 = vmax.f32 %v1802, 0.0
          %v1835 = vmax.f32 %v1803, 0.0
          %v1836 = vmax.f32 %v1804, 0.0
          %v1837 = vmax.f32 %v1805, 0.0
          %v1838 = vmax.f32 %v1806, 0.0
          %1839 = vst [vmem:[%s244] sm:$0xff] %v1807
          %1840 = vst [vmem:[%s244 + $0x8] sm:$0xff] %v1808
          %1841 = vst [vmem:[%s244 + $0x10] sm:$0xff] %v1809
          %1842 = vst [vmem:[%s244 + $0x18] sm:$0xff] %v1810
          %1843 = vst [vmem:[%s244 + $0x20] sm:$0xff] %v1811
          %1844 = vst [vmem:[%s244 + $0x28] sm:$0xff] %v1812
          %1845 = vst [vmem:[%s244 + $0x30] sm:$0xff] %v1813
          %1846 = vst [vmem:[%s244 + $0x38] sm:$0xff] %v1814
          %1847 = vst [vmem:[%s244 + $0x40] sm:$0xff] %v1815
          %1848 = vst [vmem:[%s244 + $0x48] sm:$0xff] %v1816
          %1849 = vst [vmem:[%s244 + $0x50] sm:$0xff] %v1817
          %1850 = vst [vmem:[%s244 + $0x58] sm:$0xff] %v1818
          %1851 = vst [vmem:[%s244 + $0x60] sm:$0xff] %v1819
          %1852 = vst [vmem:[%s244 + $0x68] sm:$0xff] %v1820
          %1853 = vst [vmem:[%s244 + $0x70] sm:$0xff] %v1821
          %1854 = vst [vmem:[%s244 + $0x78] sm:$0xff] %v1822
          %1855 = vst [vmem:[%s244 + $0x80] sm:$0xff] %v1823
          %1856 = vst [vmem:[%s244 + $0x88] sm:$0xff] %v1824
          %1857 = vst [vmem:[%s244 + $0x90] sm:$0xff] %v1825
          %1858 = vst [vmem:[%s244 + $0x98] sm:$0xff] %v1826
          %1859 = vst [vmem:[%s244 + $0xa0] sm:$0xff] %v1827
          %1860 = vst [vmem:[%s244 + $0xa8] sm:$0xff] %v1828
          %1861 = vst [vmem:[%s244 + $0xb0] sm:$0xff] %v1829
          %1862 = vst [vmem:[%s244 + $0xb8] sm:$0xff] %v1830
          %1863 = vst [vmem:[%s244 + $0xc0] sm:$0xff] %v1831
          %1864 = vst [vmem:[%s244 + $0xc8] sm:$0xff] %v1832
          %1865 = vst [vmem:[%s244 + $0xd0] sm:$0xff] %v1833
          %1866 = vst [vmem:[%s244 + $0xd8] sm:$0xff] %v1834
          %1867 = vst [vmem:[%s244 + $0xe0] sm:$0xff] %v1835
          %1868 = vst [vmem:[%s244 + $0xe8] sm:$0xff] %v1836
          %1869 = vst [vmem:[%s244 + $0xf0] sm:$0xff] %v1837
          %1870 = vst [vmem:[%s244 + $0xf8] sm:$0xff] %v1838
        $region40: #{semantic_net_forward.8} parent=31 // pred_fallthru
          _
        %s1871 = sand.u32 %s125, 1
        %s1872 = sand.u32 %s125, 1
        %s1873 = smul.addr %s1872, 256
        %s1874 = scalar_lea.vmem [#allocation3], %s1873
        // Predicated region
        $region41: #{semantic_net_forward.8} parent=31 // pred_check
          %p1875 = pneg %p135
        $region42: #{semantic_net_forward.8} parent=31 // pred_check_branch
          %1877 = sbr.rel (%p1875) target = $region44
        $region43: #{semantic_net_forward.8} parent=31 // pred_region
          %s1878 = smul.u32 32, %s19
          %s1879 = ssub.s32 43, %s1878
          %p1880 = scmp.lt.s32.totalorder %s1879, 32
          %s1881 = scalar_select %p1880, %s1879, 32
          %s1882 = smul.u32 128, %s1881
          %p1883 = scmp.ne.s32.totalorder 0, %s1882
          %s1884 = sadd.s32 %s20, %s1878
          %s1885 = smul.addr %s1884, 8
          %s1886 = scalar_lea.vmem %s3, %s1885
          // Predicated region
          $region45: #{semantic_net_forward.8} parent=43 // pred_check
            %p1887 = pneg %p1883
          $region46: #{semantic_net_forward.8} parent=43 // pred_check_branch
            %1889 = sbr.rel (%p1887) target = $region48
          $region47: #{semantic_net_forward.8} parent=43 // pred_region
            // Predicated region
            $region49: #{semantic_net_forward.8} parent=47 // pred_check
              _
            $region50: #{semantic_net_forward.8} parent=47 // pred_check_branch
              %1891 = sbr.rel (0) target = $region52
            $region51: #{semantic_net_forward.8} parent=47 // pred_region
              // Predicated region
              $region71: #{semantic_net_forward.8} parent=51 // pred_check
                _
              $region72: #{semantic_net_forward.8} parent=51 // pred_check_branch
                %2002 = sbr.rel (0) target = $region74
              $region73: #{semantic_net_forward.8} parent=51 // pred_region
                %s2003 = sshrl.u32 %s1881, 5
                // While loop
                $region75: #{semantic_net_forward.8} parent=73 // loop_pre_header
                  _
                $region76: #{semantic_net_forward.8} parent=73 // loop_header
                  %s2005 = sphi 0, %s2007
                  %p2006 = scmp.ge.s32.totalorder %s2005, %s2003
                  %s2010 = sphi 0, %s2079
                  %s2011 = sphi %s1874, %s2082
                  %s2012 = sphi %s1886, %s2083
                $region77: #{semantic_net_forward.8} parent=73 // loop_header_branch
                  %2009 = sbr.rel (%p2006) target = $region81
                $region78: #{semantic_net_forward.8} parent=73 // loop_body
                  %v2013 = vld [vmem:[%s2011] sm:$0xff]
                  %2014 = vst [vmem:[%s2012] sm:$0xff] %v2013
                  %v2015 = vld [vmem:[%s2011 + $0x8] sm:$0xff]
                  %2016 = vst [vmem:[%s2012 + $0x8] sm:$0xff] %v2015
                  %v2017 = vld [vmem:[%s2011 + $0x10] sm:$0xff]
                  %2018 = vst [vmem:[%s2012 + $0x10] sm:$0xff] %v2017
                  %v2019 = vld [vmem:[%s2011 + $0x18] sm:$0xff]
                  %2020 = vst [vmem:[%s2012 + $0x18] sm:$0xff] %v2019
                  %v2021 = vld [vmem:[%s2011 + $0x20] sm:$0xff]
                  %2022 = vst [vmem:[%s2012 + $0x20] sm:$0xff] %v2021
                  %v2023 = vld [vmem:[%s2011 + $0x28] sm:$0xff]
                  %2024 = vst [vmem:[%s2012 + $0x28] sm:$0xff] %v2023
                  %v2025 = vld [vmem:[%s2011 + $0x30] sm:$0xff]
                  %2026 = vst [vmem:[%s2012 + $0x30] sm:$0xff] %v2025
                  %v2027 = vld [vmem:[%s2011 + $0x38] sm:$0xff]
                  %2028 = vst [vmem:[%s2012 + $0x38] sm:$0xff] %v2027
                  %v2029 = vld [vmem:[%s2011 + $0x40] sm:$0xff]
                  %2030 = vst [vmem:[%s2012 + $0x40] sm:$0xff] %v2029
                  %v2031 = vld [vmem:[%s2011 + $0x48] sm:$0xff]
                  %2032 = vst [vmem:[%s2012 + $0x48] sm:$0xff] %v2031
                  %v2033 = vld [vmem:[%s2011 + $0x50] sm:$0xff]
                  %2034 = vst [vmem:[%s2012 + $0x50] sm:$0xff] %v2033
                  %v2035 = vld [vmem:[%s2011 + $0x58] sm:$0xff]
                  %2036 = vst [vmem:[%s2012 + $0x58] sm:$0xff] %v2035
                  %v2037 = vld [vmem:[%s2011 + $0x60] sm:$0xff]
                  %2038 = vst [vmem:[%s2012 + $0x60] sm:$0xff] %v2037
                  %v2039 = vld [vmem:[%s2011 + $0x68] sm:$0xff]
                  %2040 = vst [vmem:[%s2012 + $0x68] sm:$0xff] %v2039
                  %v2041 = vld [vmem:[%s2011 + $0x70] sm:$0xff]
                  %2042 = vst [vmem:[%s2012 + $0x70] sm:$0xff] %v2041
                  %v2043 = vld [vmem:[%s2011 + $0x78] sm:$0xff]
                  %2044 = vst [vmem:[%s2012 + $0x78] sm:$0xff] %v2043
                  %v2045 = vld [vmem:[%s2011 + $0x80] sm:$0xff]
                  %2046 = vst [vmem:[%s2012 + $0x80] sm:$0xff] %v2045
                  %v2047 = vld [vmem:[%s2011 + $0x88] sm:$0xff]
                  %2048 = vst [vmem:[%s2012 + $0x88] sm:$0xff] %v2047
                  %v2049 = vld [vmem:[%s2011 + $0x90] sm:$0xff]
                  %2050 = vst [vmem:[%s2012 + $0x90] sm:$0xff] %v2049
                  %v2051 = vld [vmem:[%s2011 + $0x98] sm:$0xff]
                  %2052 = vst [vmem:[%s2012 + $0x98] sm:$0xff] %v2051
                  %v2053 = vld [vmem:[%s2011 + $0xa0] sm:$0xff]
                  %2054 = vst [vmem:[%s2012 + $0xa0] sm:$0xff] %v2053
                  %v2055 = vld [vmem:[%s2011 + $0xa8] sm:$0xff]
                  %2056 = vst [vmem:[%s2012 + $0xa8] sm:$0xff] %v2055
                  %v2057 = vld [vmem:[%s2011 + $0xb0] sm:$0xff]
                  %2058 = vst [vmem:[%s2012 + $0xb0] sm:$0xff] %v2057
                  %v2059 = vld [vmem:[%s2011 + $0xb8] sm:$0xff]
                  %2060 = vst [vmem:[%s2012 + $0xb8] sm:$0xff] %v2059
                  %v2061 = vld [vmem:[%s2011 + $0xc0] sm:$0xff]
                  %2062 = vst [vmem:[%s2012 + $0xc0] sm:$0xff] %v2061
                  %v2063 = vld [vmem:[%s2011 + $0xc8] sm:$0xff]
                  %2064 = vst [vmem:[%s2012 + $0xc8] sm:$0xff] %v2063
                  %v2065 = vld [vmem:[%s2011 + $0xd0] sm:$0xff]
                  %2066 = vst [vmem:[%s2012 + $0xd0] sm:$0xff] %v2065
                  %v2067 = vld [vmem:[%s2011 + $0xd8] sm:$0xff]
                  %2068 = vst [vmem:[%s2012 + $0xd8] sm:$0xff] %v2067
                  %v2069 = vld [vmem:[%s2011 + $0xe0] sm:$0xff]
                  %2070 = vst [vmem:[%s2012 + $0xe0] sm:$0xff] %v2069
                  %v2071 = vld [vmem:[%s2011 + $0xe8] sm:$0xff]
                  %2072 = vst [vmem:[%s2012 + $0xe8] sm:$0xff] %v2071
                  %v2073 = vld [vmem:[%s2011 + $0xf0] sm:$0xff]
                  %2074 = vst [vmem:[%s2012 + $0xf0] sm:$0xff] %v2073
                  %v2075 = vld [vmem:[%s2011 + $0xf8] sm:$0xff]
                  %2076 = vst [vmem:[%s2012 + $0xf8] sm:$0xff] %v2075
                  %s2077 = sadd.s32 1, %s2010
                  %p2078 = scmp.ge.s32.totalorder %s2077, %s2003
                  %s2079 = scalar_select %p2078, 0, %s2077
                  %s2080 = smul.u32 %s2079, 256
                  %s2081 = smul.u32 %s2079, 256
                  %s2082 = scalar_lea.vmem %s1874, %s2080 [#allocation3]
                  %s2083 = scalar_lea.vmem %s1886, %s2081
                $region79: #{semantic_net_forward.8} parent=73 // loop_footer
                  %s2007 = sadd.s32 %s2005, 1
                $region80: #{semantic_net_forward.8} parent=73 // loop_footer_branch
                  %2004 = sbr.rel target = $region76
                $region81: #{semantic_net_forward.8} parent=73 // loop_exit
                  _
                %s2084 = sshrl.u32 %s1881, 5
                %s2085 = sand.u32 %s1881, 31
                %s2086 = smul.u32 %s2084, 32
                %s2087 = smul.u32 8, %s2086
                %s2088 = scalar_lea.vmem %s1874, %s2087 [#allocation3]
                %s2089 = smul.u32 8, %s2086
                %s2090 = scalar_lea.vmem %s1886, %s2089
                // While loop
                $region82: #{semantic_net_forward.8} parent=73 // loop_pre_header
                  _
                $region83: #{semantic_net_forward.8} parent=73 // loop_header
                  %s2092 = sphi 0, %s2094
                  %p2093 = scmp.ge.s32.totalorder %s2092, %s2085
                  %s2097 = sphi 0, %s2104
                  %s2098 = sphi %s2088, %s2107
                  %s2099 = sphi %s2090, %s2108
                $region84: #{semantic_net_forward.8} parent=73 // loop_header_branch
                  %2096 = sbr.rel (%p2093) target = $region88
                $region85: #{semantic_net_forward.8} parent=73 // loop_body
                  %v2100 = vld [vmem:[%s2098] sm:$0xff]
                  %2101 = vst [vmem:[%s2099] sm:$0xff] %v2100
                  %s2102 = sadd.s32 1, %s2097
                  %p2103 = scmp.ge.s32.totalorder %s2102, %s2085
                  %s2104 = scalar_select %p2103, 0, %s2102
                  %s2105 = smul.u32 %s2104, 8
                  %s2106 = smul.u32 %s2104, 8
                  %s2107 = scalar_lea.vmem %s2088, %s2105 [#allocation3]
                  %s2108 = scalar_lea.vmem %s2090, %s2106
                $region86: #{semantic_net_forward.8} parent=73 // loop_footer
                  %s2094 = sadd.s32 %s2092, 1
                $region87: #{semantic_net_forward.8} parent=73 // loop_footer_branch
                  %2091 = sbr.rel target = $region83
                $region88: #{semantic_net_forward.8} parent=73 // loop_exit
                  _
              $region74: #{semantic_net_forward.8} parent=51 // pred_fallthru
                _
              // Predicated region
              $region89: #{semantic_net_forward.8} parent=51 // pred_check
                _
              $region90: #{semantic_net_forward.8} parent=51 // pred_check_branch
                %2110 = sbr.rel target = $region92
              $region91: #{semantic_net_forward.8} parent=51 // pred_region
                _
              $region92: #{semantic_net_forward.8} parent=51 // pred_fallthru
                _
            $region52: #{semantic_net_forward.8} parent=47 // pred_fallthru
              _
            // Predicated region
            $region53: #{semantic_net_forward.8} parent=47 // pred_check
              _
            $region54: #{semantic_net_forward.8} parent=47 // pred_check_branch
              %1893 = sbr.rel target = $region56
            $region55: #{semantic_net_forward.8} parent=47 // pred_region
              %s1895 = sshrl.u32 %s1881, 5
              // While loop
              $region57: #{semantic_net_forward.8} parent=55 // loop_pre_header
                _
              $region58: #{semantic_net_forward.8} parent=55 // loop_header
                %s1897 = sphi 0, %s1899
                %p1898 = scmp.ge.s32.totalorder %s1897, %s1895
                %s1902 = sphi 0, %s1971
                %s1903 = sphi %s1874, %s1974
                %s1904 = sphi %s1886, %s1975
              $region59: #{semantic_net_forward.8} parent=55 // loop_header_branch
                %1901 = sbr.rel (%p1898) target = $region63
              $region60: #{semantic_net_forward.8} parent=55 // loop_body
                %v1905 = vld [vmem:[%s1903] sm:$0xff]
                %1906 = vst [vmem:[%s1904] sm:$0xff] %v1905
                %v1907 = vld [vmem:[%s1903 + $0x8] sm:$0xff]
                %1908 = vst [vmem:[%s1904 + $0x8] sm:$0xff] %v1907
                %v1909 = vld [vmem:[%s1903 + $0x10] sm:$0xff]
                %1910 = vst [vmem:[%s1904 + $0x10] sm:$0xff] %v1909
                %v1911 = vld [vmem:[%s1903 + $0x18] sm:$0xff]
                %1912 = vst [vmem:[%s1904 + $0x18] sm:$0xff] %v1911
                %v1913 = vld [vmem:[%s1903 + $0x20] sm:$0xff]
                %1914 = vst [vmem:[%s1904 + $0x20] sm:$0xff] %v1913
                %v1915 = vld [vmem:[%s1903 + $0x28] sm:$0xff]
                %1916 = vst [vmem:[%s1904 + $0x28] sm:$0xff] %v1915
                %v1917 = vld [vmem:[%s1903 + $0x30] sm:$0xff]
                %1918 = vst [vmem:[%s1904 + $0x30] sm:$0xff] %v1917
                %v1919 = vld [vmem:[%s1903 + $0x38] sm:$0xff]
                %1920 = vst [vmem:[%s1904 + $0x38] sm:$0xff] %v1919
                %v1921 = vld [vmem:[%s1903 + $0x40] sm:$0xff]
                %1922 = vst [vmem:[%s1904 + $0x40] sm:$0xff] %v1921
                %v1923 = vld [vmem:[%s1903 + $0x48] sm:$0xff]
                %1924 = vst [vmem:[%s1904 + $0x48] sm:$0xff] %v1923
                %v1925 = vld [vmem:[%s1903 + $0x50] sm:$0xff]
                %1926 = vst [vmem:[%s1904 + $0x50] sm:$0xff] %v1925
                %v1927 = vld [vmem:[%s1903 + $0x58] sm:$0xff]
                %1928 = vst [vmem:[%s1904 + $0x58] sm:$0xff] %v1927
                %v1929 = vld [vmem:[%s1903 + $0x60] sm:$0xff]
                %1930 = vst [vmem:[%s1904 + $0x60] sm:$0xff] %v1929
                %v1931 = vld [vmem:[%s1903 + $0x68] sm:$0xff]
                %1932 = vst [vmem:[%s1904 + $0x68] sm:$0xff] %v1931
                %v1933 = vld [vmem:[%s1903 + $0x70] sm:$0xff]
                %1934 = vst [vmem:[%s1904 + $0x70] sm:$0xff] %v1933
                %v1935 = vld [vmem:[%s1903 + $0x78] sm:$0xff]
                %1936 = vst [vmem:[%s1904 + $0x78] sm:$0xff] %v1935
                %v1937 = vld [vmem:[%s1903 + $0x80] sm:$0xff]
                %1938 = vst [vmem:[%s1904 + $0x80] sm:$0xff] %v1937
                %v1939 = vld [vmem:[%s1903 + $0x88] sm:$0xff]
                %1940 = vst [vmem:[%s1904 + $0x88] sm:$0xff] %v1939
                %v1941 = vld [vmem:[%s1903 + $0x90] sm:$0xff]
                %1942 = vst [vmem:[%s1904 + $0x90] sm:$0xff] %v1941
                %v1943 = vld [vmem:[%s1903 + $0x98] sm:$0xff]
                %1944 = vst [vmem:[%s1904 + $0x98] sm:$0xff] %v1943
                %v1945 = vld [vmem:[%s1903 + $0xa0] sm:$0xff]
                %1946 = vst [vmem:[%s1904 + $0xa0] sm:$0xff] %v1945
                %v1947 = vld [vmem:[%s1903 + $0xa8] sm:$0xff]
                %1948 = vst [vmem:[%s1904 + $0xa8] sm:$0xff] %v1947
                %v1949 = vld [vmem:[%s1903 + $0xb0] sm:$0xff]
                %1950 = vst [vmem:[%s1904 + $0xb0] sm:$0xff] %v1949
                %v1951 = vld [vmem:[%s1903 + $0xb8] sm:$0xff]
                %1952 = vst [vmem:[%s1904 + $0xb8] sm:$0xff] %v1951
                %v1953 = vld [vmem:[%s1903 + $0xc0] sm:$0xff]
                %1954 = vst [vmem:[%s1904 + $0xc0] sm:$0xff] %v1953
                %v1955 = vld [vmem:[%s1903 + $0xc8] sm:$0xff]
                %1956 = vst [vmem:[%s1904 + $0xc8] sm:$0xff] %v1955
                %v1957 = vld [vmem:[%s1903 + $0xd0] sm:$0xff]
                %1958 = vst [vmem:[%s1904 + $0xd0] sm:$0xff] %v1957
                %v1959 = vld [vmem:[%s1903 + $0xd8] sm:$0xff]
                %1960 = vst [vmem:[%s1904 + $0xd8] sm:$0xff] %v1959
                %v1961 = vld [vmem:[%s1903 + $0xe0] sm:$0xff]
                %1962 = vst [vmem:[%s1904 + $0xe0] sm:$0xff] %v1961
                %v1963 = vld [vmem:[%s1903 + $0xe8] sm:$0xff]
                %1964 = vst [vmem:[%s1904 + $0xe8] sm:$0xff] %v1963
                %v1965 = vld [vmem:[%s1903 + $0xf0] sm:$0xff]
                %1966 = vst [vmem:[%s1904 + $0xf0] sm:$0xff] %v1965
                %v1967 = vld [vmem:[%s1903 + $0xf8] sm:$0xff]
                %1968 = vst [vmem:[%s1904 + $0xf8] sm:$0xff] %v1967
                %s1969 = sadd.s32 1, %s1902
                %p1970 = scmp.ge.s32.totalorder %s1969, %s1895
                %s1971 = scalar_select %p1970, 0, %s1969
                %s1972 = smul.u32 %s1971, 256
                %s1973 = smul.u32 %s1971, 256
                %s1974 = scalar_lea.vmem %s1874, %s1972 [#allocation3]
                %s1975 = scalar_lea.vmem %s1886, %s1973
              $region61: #{semantic_net_forward.8} parent=55 // loop_footer
                %s1899 = sadd.s32 %s1897, 1
              $region62: #{semantic_net_forward.8} parent=55 // loop_footer_branch
                %1896 = sbr.rel target = $region58
              $region63: #{semantic_net_forward.8} parent=55 // loop_exit
                _
              %s1976 = sshrl.u32 %s1881, 5
              %s1977 = sand.u32 %s1881, 31
              %s1978 = smul.u32 %s1976, 32
              %s1979 = smul.u32 8, %s1978
              %s1980 = scalar_lea.vmem %s1874, %s1979 [#allocation3]
              %s1981 = smul.u32 8, %s1978
              %s1982 = scalar_lea.vmem %s1886, %s1981
              // While loop
              $region64: #{semantic_net_forward.8} parent=55 // loop_pre_header
                _
              $region65: #{semantic_net_forward.8} parent=55 // loop_header
                %s1984 = sphi 0, %s1986
                %p1985 = scmp.ge.s32.totalorder %s1984, %s1977
                %s1989 = sphi 0, %s1996
                %s1990 = sphi %s1980, %s1999
                %s1991 = sphi %s1982, %s2000
              $region66: #{semantic_net_forward.8} parent=55 // loop_header_branch
                %1988 = sbr.rel (%p1985) target = $region70
              $region67: #{semantic_net_forward.8} parent=55 // loop_body
                %v1992 = vld [vmem:[%s1990] sm:$0xff]
                %1993 = vst [vmem:[%s1991] sm:$0xff] %v1992
                %s1994 = sadd.s32 1, %s1989
                %p1995 = scmp.ge.s32.totalorder %s1994, %s1977
                %s1996 = scalar_select %p1995, 0, %s1994
                %s1997 = smul.u32 %s1996, 8
                %s1998 = smul.u32 %s1996, 8
                %s1999 = scalar_lea.vmem %s1980, %s1997 [#allocation3]
                %s2000 = scalar_lea.vmem %s1982, %s1998
              $region68: #{semantic_net_forward.8} parent=55 // loop_footer
                %s1986 = sadd.s32 %s1984, 1
              $region69: #{semantic_net_forward.8} parent=55 // loop_footer_branch
                %1983 = sbr.rel target = $region65
              $region70: #{semantic_net_forward.8} parent=55 // loop_exit
                _
            $region56: #{semantic_net_forward.8} parent=47 // pred_fallthru
              _
          $region48: #{semantic_net_forward.8} parent=43 // pred_fallthru
            _
          %2111 = vnop
        $region44: #{semantic_net_forward.8} parent=31 // pred_fallthru
          _
      $region32: #{semantic_net_forward.8} parent=5 // pred_fallthru
        _
      %p2112 = scmp.le.s32.totalorder 2, %s9
      // Predicated region
      $region93: #{semantic_net_forward.8} parent=5 // pred_check
        %p2113 = pneg %p2112
      $region94: #{semantic_net_forward.8} parent=5 // pred_check_branch
        %2115 = sbr.rel (%p2113) target = $region96
      $region95: #{semantic_net_forward.8} parent=5 // pred_region
        %s2116 = ssub.s32 %s9, 2
        // Predicated region
        $region97: #{semantic_net_forward.8} parent=95 // pred_check
          %p2117 = pneg %p141
        $region98: #{semantic_net_forward.8} parent=95 // pred_check_branch
          %2119 = sbr.rel (%p2117) target = $region100
        $region99: #{semantic_net_forward.8} parent=95 // pred_region
          %s2120 = sand.u32 %s126, 1
          %s2121 = sand.u32 %s126, 1
          %s2122 = smul.addr %s2121, 256
          %s2123 = scalar_lea.vmem [#allocation3], %s2122
        $region100: #{semantic_net_forward.8} parent=95 // pred_fallthru
          _
      $region96: #{semantic_net_forward.8} parent=5 // pred_fallthru
        _
    $region6: #{semantic_net_forward.8} parent=1 // loop_footer
      %s13 = sadd.s32 1, %s9
    $region7: #{semantic_net_forward.8} parent=1 // loop_footer_branch
      %8 = sbr.rel target = $region3
    $region8: #{semantic_net_forward.8} parent=1 // loop_exit
      _

// kernel: semantic_net_forward.9
$region0: #{semantic_net_forward.9}
  #allocation0 [shape = 'u32[]', space=smem, size = 0x4, offset = 0x4, fixed_abs, tag = 'smem constant byte address 0x4 - core index']
  #allocation1 [shape = 'u32[144,128]{1,0:T(1,128)}', space=vmem, size = 0x12000, scoped, tag = 'internal scratch']
  %s0 = inlined_call_operand.vmem [shape: f32[2,13,13,128], index: 0, kind: input, shape index: {}]
  %s1 = inlined_call_operand.vmem [shape: bf16[2,6,6,128], index: 1, kind: output, shape index: {}]
  %s2 = sld [smem:[#allocation0]]
  $region14: #{semantic_net_forward.9} parent=0
    _
  %s4 = ssub.s32 1, %s2
  %s5 = scalar_select 0, %s4, %s2
  // Predicated region
  $region2: #{semantic_net_forward.9} parent=0 // pred_check
    _
  $region3: #{semantic_net_forward.9} parent=0 // pred_check_branch
    %7 = sbr.rel (0) target = $region5
  $region4: #{semantic_net_forward.9} parent=0 // pred_region
    _
  $region5: #{semantic_net_forward.9} parent=0 // pred_fallthru
    _
  %v8 = vld [vmem:[%s0] ss:$2 sm:$0x3f]
  %s9 = scalar_lea.vmem %s0, 16
  %v10 = vld [vmem:[%s9] ss:$2 sm:$0x3f]
  %s11 = scalar_lea.vmem %s0, 32
  %v12 = vld [vmem:[%s11] ss:$2 sm:$0x3f]
  %s13 = scalar_lea.vmem %s0, 48
  %v14 = vld [vmem:[%s13] ss:$2 sm:$0x3f]
  %s15 = scalar_lea.vmem %s0, 64
  %v16 = vld [vmem:[%s15] ss:$2 sm:$0x3f]
  %s17 = scalar_lea.vmem %s0, 80
  %v18 = vld [vmem:[%s17] ss:$2 sm:$0x3f]
  %s19 = scalar_lea.vmem %s0, 96
  %v20 = vld [vmem:[%s19] ss:$2 sm:$0x3f]
  %s21 = scalar_lea.vmem %s0, 112
  %v22 = vld [vmem:[%s21] ss:$2 sm:$0x3f]
  %s23 = scalar_lea.vmem %s0, 128
  %v24 = vld [vmem:[%s23] ss:$2 sm:$0x3f]
  %s25 = scalar_lea.vmem %s0, 144
  %v26 = vld [vmem:[%s25] ss:$2 sm:$0x3f]
  %s27 = scalar_lea.vmem %s0, 160
  %v28 = vld [vmem:[%s27] ss:$2 sm:$0x3f]
  %s29 = scalar_lea.vmem %s0, 176
  %v30 = vld [vmem:[%s29] ss:$2 sm:$0x3f]
  %s31 = scalar_lea.vmem %s0, 208
  %v32 = vld [vmem:[%s31] ss:$2 sm:$0x3f]
  %s33 = scalar_lea.vmem %s0, 224
  %v34 = vld [vmem:[%s33] ss:$2 sm:$0x3f]
  %s35 = scalar_lea.vmem %s0, 240
  %v36 = vld [vmem:[%s35] ss:$2 sm:$0x3f]
  %s37 = scalar_lea.vmem %s0, 256
  %v38 = vld [vmem:[%s37] ss:$2 sm:$0x3f]
  %s39 = scalar_lea.vmem %s0, 272
  %v40 = vld [vmem:[%s39] ss:$2 sm:$0x3f]
  %s41 = scalar_lea.vmem %s0, 288
  %v42 = vld [vmem:[%s41] ss:$2 sm:$0x3f]
  %s43 = scalar_lea.vmem %s0, 304
  %v44 = vld [vmem:[%s43] ss:$2 sm:$0x3f]
  %s45 = scalar_lea.vmem %s0, 320
  %v46 = vld [vmem:[%s45] ss:$2 sm:$0x3f]
  %s47 = scalar_lea.vmem %s0, 336
  %v48 = vld [vmem:[%s47] ss:$2 sm:$0x3f]
  %s49 = scalar_lea.vmem %s0, 352
  %v50 = vld [vmem:[%s49] ss:$2 sm:$0x3f]
  %s51 = scalar_lea.vmem %s0, 368
  %v52 = vld [vmem:[%s51] ss:$2 sm:$0x3f]
  %s53 = scalar_lea.vmem %s0, 384
  %v54 = vld [vmem:[%s53] ss:$2 sm:$0x3f]
  %s55 = scalar_lea.vmem %s0, 1
  %v56 = vld [vmem:[%s55] ss:$2 sm:$0x3f]
  %s57 = scalar_lea.vmem %s0, 17
  %v58 = vld [vmem:[%s57] ss:$2 sm:$0x3f]
  %s59 = scalar_lea.vmem %s0, 33
  %v60 = vld [vmem:[%s59] ss:$2 sm:$0x3f]
  %s61 = scalar_lea.vmem %s0, 49
  %v62 = vld [vmem:[%s61] ss:$2 sm:$0x3f]
  %s63 = scalar_lea.vmem %s0, 65
  %v64 = vld [vmem:[%s63] ss:$2 sm:$0x3f]
  %s65 = scalar_lea.vmem %s0, 81
  %v66 = vld [vmem:[%s65] ss:$2 sm:$0x3f]
  %s67 = scalar_lea.vmem %s0, 97
  %v68 = vld [vmem:[%s67] ss:$2 sm:$0x3f]
  %s69 = scalar_lea.vmem %s0, 113
  %v70 = vld [vmem:[%s69] ss:$2 sm:$0x3f]
  %s71 = scalar_lea.vmem %s0, 129
  %v72 = vld [vmem:[%s71] ss:$2 sm:$0x3f]
  %s73 = scalar_lea.vmem %s0, 145
  %v74 = vld [vmem:[%s73] ss:$2 sm:$0x3f]
  %s75 = scalar_lea.vmem %s0, 161
  %v76 = vld [vmem:[%s75] ss:$2 sm:$0x3f]
  %s77 = scalar_lea.vmem %s0, 177
  %v78 = vld [vmem:[%s77] ss:$2 sm:$0x3f]
  %s79 = scalar_lea.vmem %s0, 209
  %v80 = vld [vmem:[%s79] ss:$2 sm:$0x3f]
  %s81 = scalar_lea.vmem %s0, 225
  %v82 = vld [vmem:[%s81] ss:$2 sm:$0x3f]
  %s83 = scalar_lea.vmem %s0, 241
  %v84 = vld [vmem:[%s83] ss:$2 sm:$0x3f]
  %s85 = scalar_lea.vmem %s0, 257
  %v86 = vld [vmem:[%s85] ss:$2 sm:$0x3f]
  %s87 = scalar_lea.vmem %s0, 273
  %v88 = vld [vmem:[%s87] ss:$2 sm:$0x3f]
  %s89 = scalar_lea.vmem %s0, 289
  %v90 = vld [vmem:[%s89] ss:$2 sm:$0x3f]
  %s91 = scalar_lea.vmem %s0, 305
  %v92 = vld [vmem:[%s91] ss:$2 sm:$0x3f]
  %s93 = scalar_lea.vmem %s0, 321
  %v94 = vld [vmem:[%s93] ss:$2 sm:$0x3f]
  %s95 = scalar_lea.vmem %s0, 337
  %v96 = vld [vmem:[%s95] ss:$2 sm:$0x3f]
  %s97 = scalar_lea.vmem %s0, 353
  %v98 = vld [vmem:[%s97] ss:$2 sm:$0x3f]
  %s99 = scalar_lea.vmem %s0, 369
  %v100 = vld [vmem:[%s99] ss:$2 sm:$0x3f]
  %s101 = scalar_lea.vmem %s0, 385
  %v102 = vld [vmem:[%s101] ss:$2 sm:$0x3f]
  %v103 = vmax.f32 %v8, %v56
  %v104 = vmax.f32 %v10, %v58
  %v105 = vmax.f32 %v12, %v60
  %v106 = vmax.f32 %v14, %v62
  %v107 = vmax.f32 %v16, %v64
  %v108 = vmax.f32 %v18, %v66
  %v109 = vmax.f32 %v20, %v68
  %v110 = vmax.f32 %v22, %v70
  %v111 = vmax.f32 %v24, %v72
  %v112 = vmax.f32 %v26, %v74
  %v113 = vmax.f32 %v28, %v76
  %v114 = vmax.f32 %v30, %v78
  %v115 = vmax.f32 %v32, %v80
  %v116 = vmax.f32 %v34, %v82
  %v117 = vmax.f32 %v36, %v84
  %v118 = vmax.f32 %v38, %v86
  %v119 = vmax.f32 %v40, %v88
  %v120 = vmax.f32 %v42, %v90
  %v121 = vmax.f32 %v44, %v92
  %v122 = vmax.f32 %v46, %v94
  %v123 = vmax.f32 %v48, %v96
  %v124 = vmax.f32 %v50, %v98
  %v125 = vmax.f32 %v52, %v100
  %v126 = vmax.f32 %v54, %v102
  %v127 = vmax.f32 %v103, %v104
  %v128 = vmax.f32 %v105, %v106
  %v129 = vmax.f32 %v107, %v108
  %v130 = vmax.f32 %v109, %v110
  %v131 = vmax.f32 %v111, %v112
  %v132 = vmax.f32 %v113, %v114
  %v133 = vmax.f32 %v115, %v116
  %v134 = vmax.f32 %v117, %v118
  %v135 = vmax.f32 %v119, %v120
  %v136 = vmax.f32 %v121, %v122
  %v137 = vmax.f32 %v123, %v124
  %v138 = vmax.f32 %v125, %v126
  %v139 = vpack.c.bf16 %v127, %v127
  %v140 = vpack.c.bf16 %v128, %v128
  %v141 = vpack.c.bf16 %v129, %v129
  %v142 = vpack.c.bf16 %v130, %v130
  %v143 = vpack.c.bf16 %v131, %v131
  %v144 = vpack.c.bf16 %v132, %v132
  %v145 = vpack.c.bf16 %v133, %v133
  %v146 = vpack.c.bf16 %v134, %v134
  %v147 = vpack.c.bf16 %v135, %v135
  %v148 = vpack.c.bf16 %v136, %v136
  %v149 = vpack.c.bf16 %v137, %v137
  %v150 = vpack.c.bf16 %v138, %v138
  %151 = vst [vmem:[%s1] sm:$0x7] %v139
  %152 = vst [vmem:[%s1 + $0x4] sm:$0x7] %v140
  %153 = vst [vmem:[%s1 + $0x8] sm:$0x7] %v141
  %154 = vst [vmem:[%s1 + $0xc] sm:$0x7] %v142
  %155 = vst [vmem:[%s1 + $0x10] sm:$0x7] %v143
  %156 = vst [vmem:[%s1 + $0x14] sm:$0x7] %v144
  %157 = vst [vmem:[%s1 + $0x18] sm:$0x7] %v145
  %158 = vst [vmem:[%s1 + $0x1c] sm:$0x7] %v146
  %159 = vst [vmem:[%s1 + $0x20] sm:$0x7] %v147
  %160 = vst [vmem:[%s1 + $0x24] sm:$0x7] %v148
  %161 = vst [vmem:[%s1 + $0x28] sm:$0x7] %v149
  %162 = vst [vmem:[%s1 + $0x2c] sm:$0x7] %v150
  // Predicated region
  $region6: #{semantic_net_forward.9} parent=0 // pred_check
    _
  $region7: #{semantic_net_forward.9} parent=0 // pred_check_branch
    %164 = sbr.rel (0) target = $region9
  $region8: #{semantic_net_forward.9} parent=0 // pred_region
    _
  $region9: #{semantic_net_forward.9} parent=0 // pred_fallthru
    _
  // Predicated region
  $region10: #{semantic_net_forward.9} parent=0 // pred_check
    _
  $region11: #{semantic_net_forward.9} parent=0 // pred_check_branch
    %166 = sbr.rel (0) target = $region13
  $region12: #{semantic_net_forward.9} parent=0 // pred_region
    _
  $region13: #{semantic_net_forward.9} parent=0 // pred_fallthru
    _

// kernel: semantic_net_forward.10
$region0: #{semantic_net_forward.10}
  #allocation0 [shape = 'u32[]', space=smem, size = 0x4, offset = 0x4, fixed_abs, tag = 'smem constant byte address 0x4 - core index']
  #allocation1 [shape = 'u32[144,128]{1,0:T(1,128)}', space=vmem, size = 0x12000, scoped, tag = 'internal scratch']
  #allocation2 [shape = 'f32[32,256]{1,0:T(8,128)}', space=vmem, size = 0x8000, scoped, tag = 'scratch operand']
  %s0 = inlined_call_operand.vmem [shape: bf16[32,1152], index: 0, kind: input, shape index: {}]
  %s1 = inlined_call_operand.vmem [shape: bf16[1152,256], index: 1, kind: input, shape index: {}]
  %s2 = inlined_call_operand.vmem [shape: f32[1,256], index: 2, kind: input, shape index: {}]
  %s3 = inlined_call_operand.vmem [shape: bf16[32,256], index: 3, kind: output, shape index: {}]
  %s4 = sld [smem:[#allocation0]]
  $region79: #{semantic_net_forward.10} parent=0
    _
  %s6 = ssub.s32 1, %s4
  %s7 = scalar_select 0, %s6, %s4
  $region1: #{semantic_net_forward.10} parent=0
    #allocation3 [shape = 'u8[49152]{0}', space=vmem, size = 0xc000, scoped, tag = 'input window, operand 0']
    loop: start=0, step=1, limit=5
    $region2: #{semantic_net_forward.10} parent=1 // loop_pre_header
      _
    $region3: #{semantic_net_forward.10} parent=1 // loop_header
      %s9 = sphi 0, %s13
      %p10 = scmp.ge.s32.totalorder %s9, 5
      %s16 = sphi 0, %s35
      %s17 = sphi 0, %s31
      %s18 = sphi 0, %s27
      %s19 = sphi 0, %s16
      %s20 = sphi 0, %s17
      %s21 = sphi 0, %s18
      %s22 = sphi 0, %s19
      %s23 = sphi 0, %s20
      %s24 = sphi 0, %s21
      %s40 = sphi 0, %s42
      %s43 = sphi 0, %s40
      %s44 = sphi 0, %s43
      %s60 = sphi 0, %s44
      %s68 = sphi 0, %s70
      %s71 = sphi 0, %s68
      %s72 = sphi 0, %s71
      %s88 = sphi 0, %s72
      %s94 = sphi 0, %s96
      %s97 = sphi 0, %s94
      %s98 = sphi 0, %s97
      %s114 = sphi 0, %s98
      %s122 = sphi 0, %s124
      %s125 = sphi 0, %s122
      %s126 = sphi 0, %s125
      %s142 = sphi 0, %s126
    $region4: #{semantic_net_forward.10} parent=1 // loop_header_branch
      %12 = sbr.rel (%p10) target = $region8
    $region5: #{semantic_net_forward.10} parent=1 // loop_body
      %s14 = ssub.s32 %s9, 1
      %s15 = ssub.s32 %s9, 2
      %s25 = sadd.s32 1, %s18
      %p26 = scmp.ge.s32.totalorder %s25, 3
      %s27 = scalar_select %p26, 0, %s25
      %s28 = sadd.s32 1, %s17
      %s29 = scalar_select %p26, %s28, %s17
      %p30 = scmp.ge.s32.totalorder %s29, 1
      %s31 = scalar_select %p30, 0, %s29
      %s32 = sadd.s32 1, %s16
      %s33 = scalar_select %p30, %s32, %s16
      %p34 = scmp.ge.s32.totalorder %s33, 1
      %s35 = scalar_select %p34, 0, %s33
      %s36 = ssub.s32 %s16, %s35
      %s37 = ssub.s32 %s18, %s27
      %s38 = sor.u32 %s36, %s37
      %p39 = scmp.eq.s32.totalorder %s38, 0
      %s41 = sadd.s32 %s40, 1
      %s42 = scalar_select %p39, %s40, %s41
      %p45 = pneg %p39
      %p46 = scmp.eq.s32.totalorder %s9, 2
      %p47 = por %p45, %p46
      %p48 = scmp.ne.s32.totalorder %s40, %s43
      %p49 = scmp.eq.s32.totalorder %s9, 0
      %p50 = por %p48, %p49
      %p51 = scmp.ne.s32.totalorder %s40, %s43
      %p52 = scmp.eq.s32.totalorder %s14, 2
      %p53 = por %p51, %p52
      %p54 = scmp.ne.s32.totalorder %s43, %s44
      %p55 = scmp.eq.s32.totalorder %s14, 0
      %p56 = por %p54, %p55
      %p57 = scmp.ne.s32.totalorder %s43, %s44
      %p58 = scmp.eq.s32.totalorder %s15, 2
      %p59 = por %p57, %p58
      %p61 = scmp.ne.s32.totalorder %s44, %s60
      %p62 = scmp.eq.s32.totalorder %s15, 0
      %p63 = por %p61, %p62
      %s64 = ssub.s32 %s18, %s27
      %s65 = ssub.s32 %s17, %s31
      %s66 = sor.u32 %s64, %s65
      %p67 = scmp.eq.s32.totalorder %s66, 0
      %s69 = sadd.s32 %s68, 1
      %s70 = scalar_select %p67, %s68, %s69
      %p73 = pneg %p67
      %p74 = scmp.eq.s32.totalorder %s9, 2
      %p75 = por %p73, %p74
      %p76 = scmp.ne.s32.totalorder %s68, %s71
      %p77 = scmp.eq.s32.totalorder %s9, 0
      %p78 = por %p76, %p77
      %p79 = scmp.ne.s32.totalorder %s68, %s71
      %p80 = scmp.eq.s32.totalorder %s14, 2
      %p81 = por %p79, %p80
      %p82 = scmp.ne.s32.totalorder %s71, %s72
      %p83 = scmp.eq.s32.totalorder %s14, 0
      %p84 = por %p82, %p83
      %p85 = scmp.ne.s32.totalorder %s71, %s72
      %p86 = scmp.eq.s32.totalorder %s15, 2
      %p87 = por %p85, %p86
      %p89 = scmp.ne.s32.totalorder %s72, %s88
      %p90 = scmp.eq.s32.totalorder %s15, 0
      %p91 = por %p89, %p90
      %s92 = ssub.s32 %s17, %s31
      %p93 = scmp.eq.s32.totalorder %s92, 0
      %s95 = sadd.s32 %s94, 1
      %s96 = scalar_select %p93, %s94, %s95
      %p99 = pneg %p93
      %p100 = scmp.eq.s32.totalorder %s9, 2
      %p101 = por %p99, %p100
      %p102 = scmp.ne.s32.totalorder %s94, %s97
      %p103 = scmp.eq.s32.totalorder %s9, 0
      %p104 = por %p102, %p103
      %p105 = scmp.ne.s32.totalorder %s94, %s97
      %p106 = scmp.eq.s32.totalorder %s14, 2
      %p107 = por %p105, %p106
      %p108 = scmp.ne.s32.totalorder %s97, %s98
      %p109 = scmp.eq.s32.totalorder %s14, 0
      %p110 = por %p108, %p109
      %p111 = scmp.ne.s32.totalorder %s97, %s98
      %p112 = scmp.eq.s32.totalorder %s15, 2
      %p113 = por %p111, %p112
      %p115 = scmp.ne.s32.totalorder %s98, %s114
      %p116 = scmp.eq.s32.totalorder %s15, 0
      %p117 = por %p115, %p116
      %s118 = ssub.s32 %s16, %s35
      %s119 = ssub.s32 %s17, %s31
      %s120 = sor.u32 %s118, %s119
      %p121 = scmp.eq.s32.totalorder %s120, 0
      %s123 = sadd.s32 %s122, 1
      %s124 = scalar_select %p121, %s122, %s123
      %p127 = pneg %p121
      %p128 = scmp.eq.s32.totalorder %s9, 2
      %p129 = por %p127, %p128
      %p130 = scmp.ne.s32.totalorder %s122, %s125
      %p131 = scmp.eq.s32.totalorder %s9, 0
      %p132 = por %p130, %p131
      %p133 = scmp.ne.s32.totalorder %s122, %s125
      %p134 = scmp.eq.s32.totalorder %s14, 2
      %p135 = por %p133, %p134
      %p136 = scmp.ne.s32.totalorder %s125, %s126
      %p137 = scmp.eq.s32.totalorder %s14, 0
      %p138 = por %p136, %p137
      %p139 = scmp.ne.s32.totalorder %s125, %s126
      %p140 = scmp.eq.s32.totalorder %s15, 2
      %p141 = por %p139, %p140
      %p143 = scmp.ne.s32.totalorder %s126, %s142
      %p144 = scmp.eq.s32.totalorder %s15, 0
      %p145 = por %p143, %p144
      %p146 = scmp.le.s32.totalorder 1, %s9
      %p147 = scmp.lt.s32.totalorder %s9, 4
      %p148 = pnand %p146, %p147
      %p149 = pneg %p148
      // Predicated region
      $region9: #{semantic_net_forward.10} parent=5 // pred_check
        _
      $region10: #{semantic_net_forward.10} parent=5 // pred_check_branch
        %151 = sbr.rel (%p148) target = $region12
      $region11: #{semantic_net_forward.10} parent=5 // pred_region
        %s152 = ssub.s32 %s9, 1
        // Predicated region
        $region13: #{semantic_net_forward.10} parent=11 // pred_check
          %p153 = pneg %p110
        $region14: #{semantic_net_forward.10} parent=11 // pred_check_branch
          %155 = sbr.rel (%p153) target = $region16
        $region15: #{semantic_net_forward.10} parent=11 // pred_region
          %s156 = smul.u32 2, %s20
          %p157 = scmp.lt.s32.totalorder %s156, 1
          %s158 = scalar_select %p157, %s156, 1
          %s159 = scalar_lea.vmem %s2, %s158
          %s160 = smul.u32 2, %s20
        $region16: #{semantic_net_forward.10} parent=11 // pred_fallthru
          _
      $region12: #{semantic_net_forward.10} parent=5 // pred_fallthru
        _
      %p161 = scmp.lt.s32.totalorder %s9, 3
      // Predicated region
      $region17: #{semantic_net_forward.10} parent=5 // pred_check
        %p162 = pneg %p161
      $region18: #{semantic_net_forward.10} parent=5 // pred_check_branch
        %164 = sbr.rel (%p162) target = $region20
      $region19: #{semantic_net_forward.10} parent=5 // pred_region
        // Predicated region
        $region21: #{semantic_net_forward.10} parent=19 // pred_check
          %p165 = pneg %p50
        $region22: #{semantic_net_forward.10} parent=19 // pred_check_branch
          %167 = sbr.rel (%p165) target = $region24
        $region23: #{semantic_net_forward.10} parent=19 // pred_region
          %s168 = sand.u32 %s40, 1
          %s169 = sand.u32 %s40, 1
          %s170 = smul.addr %s169, 48
          %s171 = scalar_lea.vmem [#allocation3], %s170
          %s172 = smul.u32 4, %s16
          %s173 = smul.u32 3, %s18
          %s174 = smul.addr %s172, 9
          %s175 = sadd.s32 %s173, %s174
          %s176 = smul.addr %s175, 4
          %s177 = scalar_lea.vmem %s0, %s176
          // Predicated region
          $region25: #{semantic_net_forward.10} parent=23 // pred_check
            _
          $region26: #{semantic_net_forward.10} parent=23 // pred_check_branch
            %179 = sbr.rel (0) target = $region28
          $region27: #{semantic_net_forward.10} parent=23 // pred_region
            // Predicated region
            $region29: #{semantic_net_forward.10} parent=27 // pred_check
              _
            $region30: #{semantic_net_forward.10} parent=27 // pred_check_branch
              %181 = sbr.rel (0) target = $region32
            $region31: #{semantic_net_forward.10} parent=27 // pred_region
              %s182 = scalar_lea.vmem %s177, 8
              %s183 = scalar_lea.vmem %s171, 8 [#allocation3]
              loop: start=0, step=1, limit=1
              $region33: #{semantic_net_forward.10} parent=31 // loop_pre_header
                _
              $region34: #{semantic_net_forward.10} parent=31 // loop_header
                %s185 = sphi 0, %s189
                %p186 = scmp.ge.s32.totalorder %s185, 1
                %s190 = sphi %s177, %s177
                %s191 = sphi %s171, %s171
              $region35: #{semantic_net_forward.10} parent=31 // loop_header_branch
                %188 = sbr.rel (%p186) target = $region39
              $region36: #{semantic_net_forward.10} parent=31 // loop_body
                %v192 = vld [vmem:[%s190] sm:$0xff]
                %193 = vst [vmem:[%s191] sm:$0xff] %v192
                %v194 = vld [vmem:[%s190 + $0x24] sm:$0xff]
                %195 = vst [vmem:[%s191 + $0xc] sm:$0xff] %v194
                %v196 = vld [vmem:[%s190 + $0x48] sm:$0xff]
                %197 = vst [vmem:[%s191 + $0x18] sm:$0xff] %v196
                %v198 = vld [vmem:[%s190 + $0x6c] sm:$0xff]
                %199 = vst [vmem:[%s191 + $0x24] sm:$0xff] %v198
              $region37: #{semantic_net_forward.10} parent=31 // loop_footer
                %s189 = sadd.s32 1, %s185
              $region38: #{semantic_net_forward.10} parent=31 // loop_footer_branch
                %184 = sbr.rel target = $region34
              $region39: #{semantic_net_forward.10} parent=31 // loop_exit
                _
              loop: start=0, step=1, limit=1
              $region40: #{semantic_net_forward.10} parent=31 // loop_pre_header
                _
              $region41: #{semantic_net_forward.10} parent=31 // loop_header
                %s202 = sphi 0, %s206
                %p203 = scmp.ge.s32.totalorder %s202, 1
                %s207 = sphi %s182, %s182
                %s208 = sphi %s183, %s183
              $region42: #{semantic_net_forward.10} parent=31 // loop_header_branch
                %205 = sbr.rel (%p203) target = $region46
              $region43: #{semantic_net_forward.10} parent=31 // loop_body
                %v209 = vld [vmem:[%s207] sm:$0xf]
                %210 = vst [vmem:[%s208] sm:$0xf] %v209
                %v211 = vld [vmem:[%s207 + $0x24] sm:$0xf]
                %212 = vst [vmem:[%s208 + $0xc] sm:$0xf] %v211
                %v213 = vld [vmem:[%s207 + $0x48] sm:$0xf]
                %214 = vst [vmem:[%s208 + $0x18] sm:$0xf] %v213
                %v215 = vld [vmem:[%s207 + $0x6c] sm:$0xf]
                %216 = vst [vmem:[%s208 + $0x24] sm:$0xf] %v215
              $region44: #{semantic_net_forward.10} parent=31 // loop_footer
                %s206 = sadd.s32 1, %s202
              $region45: #{semantic_net_forward.10} parent=31 // loop_footer_branch
                %201 = sbr.rel target = $region41
              $region46: #{semantic_net_forward.10} parent=31 // loop_exit
                _
            $region32: #{semantic_net_forward.10} parent=27 // pred_fallthru
              _
          $region28: #{semantic_net_forward.10} parent=23 // pred_fallthru
            _
          %217 = vnop
        $region24: #{semantic_net_forward.10} parent=19 // pred_fallthru
          _
        // Predicated region
        $region47: #{semantic_net_forward.10} parent=19 // pred_check
          %p218 = pneg %p78
        $region48: #{semantic_net_forward.10} parent=19 // pred_check_branch
          %220 = sbr.rel (%p218) target = $region50
        $region49: #{semantic_net_forward.10} parent=19 // pred_region
          %s221 = smul.u32 48, %s18
          %s222 = smul.u32 2, %s17
          %p223 = scmp.lt.s32.totalorder %s221, 143
          %s224 = scalar_select %p223, %s221, 143
          %p225 = scmp.lt.s32.totalorder %s222, 1
          %s226 = scalar_select %p225, %s222, 1
          %s227 = smul.addr %s224, 2
          %s228 = sadd.s32 %s226, %s227
          %s229 = smul.addr %s228, 4
          %s230 = scalar_lea.vmem %s1, %s229
          %s231 = smul.u32 48, %s18
          %s232 = smul.u32 2, %s17
        $region50: #{semantic_net_forward.10} parent=19 // pred_fallthru
          _
      $region20: #{semantic_net_forward.10} parent=5 // pred_fallthru
        _
      %p233 = scmp.le.s32.totalorder 1, %s9
      %p234 = scmp.lt.s32.totalorder %s9, 4
      %p235 = pnand %p233, %p234
      %p236 = pneg %p235
      // Predicated region
      $region51: #{semantic_net_forward.10} parent=5 // pred_check
        _
      $region52: #{semantic_net_forward.10} parent=5 // pred_check_branch
        %238 = sbr.rel (%p235) target = $region54
      $region53: #{semantic_net_forward.10} parent=5 // pred_region
        %s239 = ssub.s32 %s9, 1
        %s240 = sand.u32 %s43, 1
        %s241 = sand.u32 %s43, 1
        %s242 = smul.addr %s241, 48
        %s243 = scalar_lea.vmem [#allocation3], %s242
        // Predicated region
        $region55: #{semantic_net_forward.10} parent=53 // pred_check
          %p244 = pneg %p56
        $region56: #{semantic_net_forward.10} parent=53 // pred_check_branch
          %246 = sbr.rel (%p244) target = $region58
        $region57: #{semantic_net_forward.10} parent=53 // pred_region
          _
        $region58: #{semantic_net_forward.10} parent=53 // pred_fallthru
          _
        %s247 = sand.u32 %s43, 1
        %s248 = sand.u32 %s43, 1
        %s249 = smul.addr %s248, 48
        %s250 = scalar_lea.vmem [#allocation3], %s249
        %p251 = pneg %p56
        %p252 = pneg %p53
        %s253 = smul.u32 48, %s21
        %s254 = smul.u32 2, %s20
        %p255 = scmp.lt.s32.totalorder %s253, 143
        %s256 = scalar_select %p255, %s253, 143
        %p257 = scmp.lt.s32.totalorder %s254, 1
        %s258 = scalar_select %p257, %s254, 1
        %s259 = smul.addr %s256, 2
        %s260 = sadd.s32 %s258, %s259
        %s261 = smul.addr %s260, 4
        %s262 = scalar_lea.vmem %s1, %s261
        %p263 = pneg %p84
        %p264 = pneg %p81
        %s265 = smul.u32 2, %s20
        %p266 = scmp.lt.s32.totalorder %s265, 1
        %s267 = scalar_select %p266, %s265, 1
        %s268 = scalar_lea.vmem %s2, %s267
        %p269 = pneg %p110
        %p270 = pneg %p107
        %p271 = pneg %p138
        %p272 = pneg %p135
        %s273 = smul.u32 4, %s19
        %s274 = smul.u32 2, %s20
        %p275 = scmp.lt.s32.totalorder %s273, 3
        %s276 = scalar_select %p275, %s273, 3
        %p277 = scmp.lt.s32.totalorder %s274, 1
        %s278 = scalar_select %p277, %s274, 1
        %s279 = smul.addr %s276, 2
        %s280 = sadd.s32 %s278, %s279
        %s281 = smul.addr %s280, 4
        %s282 = scalar_lea.vmem %s3, %s281
        %s283 = smul.u32 4, %s19
        %s284 = smul.u32 3, %s21
        %s285 = smul.u32 48, %s21
        %s286 = smul.u32 2, %s20
        %p287 = scmp.lt.s32.totalorder %s285, 143
        %s288 = scalar_select %p287, %s285, 143
        %p289 = scmp.lt.s32.totalorder %s286, 1
        %s290 = scalar_select %p289, %s286, 1
        %s291 = smul.addr %s288, 2
        %s292 = sadd.s32 %s290, %s291
        %s293 = smul.addr %s292, 4
        %s294 = scalar_lea.vmem %s1, %s293
        %s295 = smul.u32 48, %s21
        %s296 = smul.u32 2, %s20
        %s297 = smul.u32 2, %s20
        %p298 = scmp.lt.s32.totalorder %s297, 1
        %s299 = scalar_select %p298, %s297, 1
        %s300 = scalar_lea.vmem %s2, %s299
        %s301 = smul.u32 2, %s20
        %s302 = smul.u32 4, %s19
        %s303 = smul.u32 2, %s20
        %p304 = scmp.lt.s32.totalorder %s302, 3
        %s305 = scalar_select %p304, %s302, 3
        %p306 = scmp.lt.s32.totalorder %s303, 1
        %s307 = scalar_select %p306, %s303, 1
        %s308 = smul.addr %s305, 2
        %s309 = sadd.s32 %s307, %s308
        %s310 = smul.addr %s309, 4
        %s311 = scalar_lea.vmem %s3, %s310
        %s312 = smul.u32 4, %s19
        %s313 = smul.u32 2, %s20
        %p315 = scmp.eq.s32.totalorder %s21, 0
        // Predicated region
        $region59: #{semantic_net_forward.10} parent=53 // pred_check
          %p316 = pneg %p315
        $region60: #{semantic_net_forward.10} parent=53 // pred_check_branch
          %318 = sbr.rel (%p316) target = $region62
        $region61: #{semantic_net_forward.10} parent=53 // pred_region
          %319 = vst [vmem:[#allocation2] sm:$0xff] 0.0
          %320 = vst [vmem:[#allocation2 + $0x8] sm:$0xff] 0.0
          %321 = vst [vmem:[#allocation2 + $0x10] sm:$0xff] 0.0
          %322 = vst [vmem:[#allocation2 + $0x18] sm:$0xff] 0.0
          %323 = vst [vmem:[#allocation2 + $0x20] sm:$0xff] 0.0
          %324 = vst [vmem:[#allocation2 + $0x28] sm:$0xff] 0.0
          %325 = vst [vmem:[#allocation2 + $0x30] sm:$0xff] 0.0
          %326 = vst [vmem:[#allocation2 + $0x38] sm:$0xff] 0.0
        $region62: #{semantic_net_forward.10} parent=53 // pred_fallthru
          _
        %v327 = vld [vmem:[#allocation2] sm:$0xff]
        %v328 = vld [vmem:[#allocation2 + $0x8] sm:$0xff]
        %v329 = vld [vmem:[#allocation2 + $0x10] sm:$0xff]
        %v330 = vld [vmem:[#allocation2 + $0x18] sm:$0xff]
        %v331 = vld [vmem:[#allocation2 + $0x20] sm:$0xff]
        %v332 = vld [vmem:[#allocation2 + $0x28] sm:$0xff]
        %v333 = vld [vmem:[#allocation2 + $0x30] sm:$0xff]
        %v334 = vld [vmem:[#allocation2 + $0x38] sm:$0xff]
        %v335 = vld [vmem:[%s243] sm:$0xff]
        %v336 = vld [vmem:[%s243 + $0x8] sm:$0xf]
        %v337 = vld [vmem:[%s243 + $0xc] sm:$0xff]
        %v338 = vld [vmem:[%s243 + $0x14] sm:$0xf]
        %v339 = vld [vmem:[%s243 + $0x18] sm:$0xff]
        %v340 = vld [vmem:[%s243 + $0x20] sm:$0xf]
        %v341 = vld [vmem:[%s243 + $0x24] sm:$0xff]
        %v342 = vld [vmem:[%s243 + $0x2c] sm:$0xf]
        %v343 = vld [vmem:[%s294] sm:$0xff]
        %v344 = vld [vmem:[%s294 + $0x8] sm:$0xff]
        %v345 = vld [vmem:[%s294 + $0x10] sm:$0xff]
        %v346 = vld [vmem:[%s294 + $0x18] sm:$0xff]
        %v347 = vld [vmem:[%s294 + $0x20] sm:$0xff]
        %v348 = vld [vmem:[%s294 + $0x28] sm:$0xff]
        %v349 = vld [vmem:[%s294 + $0x30] sm:$0xff]
        %v350 = vld [vmem:[%s294 + $0x38] sm:$0xff]
        %v351 = vld [vmem:[%s294 + $0x40] sm:$0xff]
        %v352 = vld [vmem:[%s294 + $0x48] sm:$0xff]
        %v353 = vld [vmem:[%s294 + $0x50] sm:$0xff]
        %v354 = vld [vmem:[%s294 + $0x58] sm:$0xff]
        %v355 = vld [vmem:[%s294 + $0x60] sm:$0xff]
        %v356 = vld [vmem:[%s294 + $0x68] sm:$0xff]
        %v357 = vld [vmem:[%s294 + $0x70] sm:$0xff]
        %v358 = vld [vmem:[%s294 + $0x78] sm:$0xff]
        %v359 = vld [vmem:[%s294 + $0x80] sm:$0xff]
        %v360 = vld [vmem:[%s294 + $0x88] sm:$0xff]
        %v361 = vld [vmem:[%s294 + $0x90] sm:$0xff]
        %v362 = vld [vmem:[%s294 + $0x98] sm:$0xff]
        %v363 = vld [vmem:[%s294 + $0xa0] sm:$0xff]
        %v364 = vld [vmem:[%s294 + $0xa8] sm:$0xff]
        %v365 = vld [vmem:[%s294 + $0xb0] sm:$0xff]
        %v366 = vld [vmem:[%s294 + $0xb8] sm:$0xff]
        %v367 = vld [vmem:[%s294 + $0xc0] sm:$0xff]
        %v368 = vld [vmem:[%s294 + $0xc8] sm:$0xff]
        %v369 = vld [vmem:[%s294 + $0xd0] sm:$0xff]
        %v370 = vld [vmem:[%s294 + $0xd8] sm:$0xff]
        %v371 = vld [vmem:[%s294 + $0xe0] sm:$0xff]
        %v372 = vld [vmem:[%s294 + $0xe8] sm:$0xff]
        %v373 = vld [vmem:[%s294 + $0xf0] sm:$0xff]
        %v374 = vld [vmem:[%s294 + $0xf8] sm:$0xff]
        %v375 = vld [vmem:[%s294 + $0x100] sm:$0xff]
        %v376 = vld [vmem:[%s294 + $0x108] sm:$0xff]
        %v377 = vld [vmem:[%s294 + $0x110] sm:$0xff]
        %v378 = vld [vmem:[%s294 + $0x118] sm:$0xff]
        %v379 = vld [vmem:[%s294 + $0x120] sm:$0xff]
        %v380 = vld [vmem:[%s294 + $0x128] sm:$0xff]
        %v381 = vld [vmem:[%s294 + $0x130] sm:$0xff]
        %v382 = vld [vmem:[%s294 + $0x138] sm:$0xff]
        %v383 = vld [vmem:[%s294 + $0x140] sm:$0xff]
        %v384 = vld [vmem:[%s294 + $0x148] sm:$0xff]
        %v385 = vld [vmem:[%s294 + $0x150] sm:$0xff]
        %v386 = vld [vmem:[%s294 + $0x158] sm:$0xff]
        %v387 = vld [vmem:[%s294 + $0x160] sm:$0xff]
        %v388 = vld [vmem:[%s294 + $0x168] sm:$0xff]
        %v389 = vld [vmem:[%s294 + $0x170] sm:$0xff]
        %v390 = vld [vmem:[%s294 + $0x178] sm:$0xff]
        %v399 = vunpack.c.l.b16 %v335
        %v400 = vunpack.c.h.b16 %v335
        %v401 = vunpack.c.l.b16 %v336
        %v402 = vunpack.c.l.b16 %v337
        %v403 = vunpack.c.h.b16 %v337
        %v404 = vunpack.c.l.b16 %v338
        %v405 = vunpack.c.l.b16 %v339
        %v406 = vunpack.c.h.b16 %v339
        %v407 = vunpack.c.l.b16 %v340
        %v408 = vunpack.c.l.b16 %v341
        %v409 = vunpack.c.h.b16 %v341
        %v410 = vunpack.c.l.b16 %v342
        %v411 = vpack.c.b16 %v402, %v399
        %v412 = vpack.c.b16 %v403, %v400
        %v413 = vpack.c.b16 %v404, %v401
        %v414 = vpack.c.b16 %v408, %v405
        %v415 = vpack.c.b16 %v409, %v406
        %v416 = vpack.c.b16 %v410, %v407
        %v471 = vunpack.c.l.b16 %v343
        %v472 = vunpack.c.h.b16 %v343
        %v473 = vunpack.c.l.b16 %v344
        %v474 = vunpack.c.h.b16 %v344
        %v475 = vunpack.c.l.b16 %v345
        %v476 = vunpack.c.h.b16 %v345
        %v477 = vunpack.c.l.b16 %v346
        %v478 = vunpack.c.h.b16 %v346
        %v479 = vunpack.c.l.b16 %v347
        %v480 = vunpack.c.h.b16 %v347
        %v481 = vunpack.c.l.b16 %v348
        %v482 = vunpack.c.h.b16 %v348
        %v483 = vunpack.c.l.b16 %v349
        %v484 = vunpack.c.h.b16 %v349
        %v485 = vunpack.c.l.b16 %v350
        %v486 = vunpack.c.h.b16 %v350
        %v487 = vunpack.c.l.b16 %v351
        %v488 = vunpack.c.h.b16 %v351
        %v489 = vunpack.c.l.b16 %v352
        %v490 = vunpack.c.h.b16 %v352
        %v491 = vunpack.c.l.b16 %v353
        %v492 = vunpack.c.h.b16 %v353
        %v493 = vunpack.c.l.b16 %v354
        %v494 = vunpack.c.h.b16 %v354
        %v495 = vunpack.c.l.b16 %v355
        %v496 = vunpack.c.h.b16 %v355
        %v497 = vunpack.c.l.b16 %v356
        %v498 = vunpack.c.h.b16 %v356
        %v499 = vunpack.c.l.b16 %v357
        %v500 = vunpack.c.h.b16 %v357
        %v501 = vunpack.c.l.b16 %v358
        %v502 = vunpack.c.h.b16 %v358
        %v503 = vunpack.c.l.b16 %v359
        %v504 = vunpack.c.h.b16 %v359
        %v505 = vunpack.c.l.b16 %v360
        %v506 = vunpack.c.h.b16 %v360
        %v507 = vunpack.c.l.b16 %v361
        %v508 = vunpack.c.h.b16 %v361
        %v509 = vunpack.c.l.b16 %v362
        %v510 = vunpack.c.h.b16 %v362
        %v511 = vunpack.c.l.b16 %v363
        %v512 = vunpack.c.h.b16 %v363
        %v513 = vunpack.c.l.b16 %v364
        %v514 = vunpack.c.h.b16 %v364
        %v515 = vunpack.c.l.b16 %v365
        %v516 = vunpack.c.h.b16 %v365
        %v517 = vunpack.c.l.b16 %v366
        %v518 = vunpack.c.h.b16 %v366
        %v519 = vunpack.c.l.b16 %v367
        %v520 = vunpack.c.h.b16 %v367
        %v521 = vunpack.c.l.b16 %v368
        %v522 = vunpack.c.h.b16 %v368
        %v523 = vunpack.c.l.b16 %v369
        %v524 = vunpack.c.h.b16 %v369
        %v525 = vunpack.c.l.b16 %v370
        %v526 = vunpack.c.h.b16 %v370
        %v527 = vunpack.c.l.b16 %v371
        %v528 = vunpack.c.h.b16 %v371
        %v529 = vunpack.c.l.b16 %v372
        %v530 = vunpack.c.h.b16 %v372
        %v531 = vunpack.c.l.b16 %v373
        %v532 = vunpack.c.h.b16 %v373
        %v533 = vunpack.c.l.b16 %v374
        %v534 = vunpack.c.h.b16 %v374
        %v535 = vunpack.c.l.b16 %v375
        %v536 = vunpack.c.h.b16 %v375
        %v537 = vunpack.c.l.b16 %v376
        %v538 = vunpack.c.h.b16 %v376
        %v539 = vunpack.c.l.b16 %v377
        %v540 = vunpack.c.h.b16 %v377
        %v541 = vunpack.c.l.b16 %v378
        %v542 = vunpack.c.h.b16 %v378
        %v543 = vunpack.c.l.b16 %v379
        %v544 = vunpack.c.h.b16 %v379
        %v545 = vunpack.c.l.b16 %v380
        %v546 = vunpack.c.h.b16 %v380
        %v547 = vunpack.c.l.b16 %v381
        %v548 = vunpack.c.h.b16 %v381
        %v549 = vunpack.c.l.b16 %v382
        %v550 = vunpack.c.h.b16 %v382
        %v551 = vunpack.c.l.b16 %v383
        %v552 = vunpack.c.h.b16 %v383
        %v553 = vunpack.c.l.b16 %v384
        %v554 = vunpack.c.h.b16 %v384
        %v555 = vunpack.c.l.b16 %v385
        %v556 = vunpack.c.h.b16 %v385
        %v557 = vunpack.c.l.b16 %v386
        %v558 = vunpack.c.h.b16 %v386
        %v559 = vunpack.c.l.b16 %v387
        %v560 = vunpack.c.h.b16 %v387
        %v561 = vunpack.c.l.b16 %v388
        %v562 = vunpack.c.h.b16 %v388
        %v563 = vunpack.c.l.b16 %v389
        %v564 = vunpack.c.h.b16 %v389
        %v565 = vunpack.c.l.b16 %v390
        %v566 = vunpack.c.h.b16 %v390
        %v567 = vpack.c.b16 %v473, %v471
        %v568 = vpack.c.b16 %v474, %v472
        %v569 = vpack.c.b16 %v477, %v475
        %v570 = vpack.c.b16 %v478, %v476
        %v571 = vpack.c.b16 %v481, %v479
        %v572 = vpack.c.b16 %v482, %v480
        %v573 = vpack.c.b16 %v485, %v483
        %v574 = vpack.c.b16 %v486, %v484
        %v575 = vpack.c.b16 %v489, %v487
        %v576 = vpack.c.b16 %v490, %v488
        %v577 = vpack.c.b16 %v493, %v491
        %v578 = vpack.c.b16 %v494, %v492
        %v579 = vpack.c.b16 %v497, %v495
        %v580 = vpack.c.b16 %v498, %v496
        %v581 = vpack.c.b16 %v501, %v499
        %v582 = vpack.c.b16 %v502, %v500
        %v583 = vpack.c.b16 %v505, %v503
        %v584 = vpack.c.b16 %v506, %v504
        %v585 = vpack.c.b16 %v509, %v507
        %v586 = vpack.c.b16 %v510, %v508
        %v587 = vpack.c.b16 %v513, %v511
        %v588 = vpack.c.b16 %v514, %v512
        %v589 = vpack.c.b16 %v517, %v515
        %v590 = vpack.c.b16 %v518, %v516
        %v591 = vpack.c.b16 %v521, %v519
        %v592 = vpack.c.b16 %v522, %v520
        %v593 = vpack.c.b16 %v525, %v523
        %v594 = vpack.c.b16 %v526, %v524
        %v595 = vpack.c.b16 %v529, %v527
        %v596 = vpack.c.b16 %v530, %v528
        %v597 = vpack.c.b16 %v533, %v531
        %v598 = vpack.c.b16 %v534, %v532
        %v599 = vpack.c.b16 %v537, %v535
        %v600 = vpack.c.b16 %v538, %v536
        %v601 = vpack.c.b16 %v541, %v539
        %v602 = vpack.c.b16 %v542, %v540
        %v603 = vpack.c.b16 %v545, %v543
        %v604 = vpack.c.b16 %v546, %v544
        %v605 = vpack.c.b16 %v549, %v547
        %v606 = vpack.c.b16 %v550, %v548
        %v607 = vpack.c.b16 %v553, %v551
        %v608 = vpack.c.b16 %v554, %v552
        %v609 = vpack.c.b16 %v557, %v555
        %v610 = vpack.c.b16 %v558, %v556
        %v611 = vpack.c.b16 %v561, %v559
        %v612 = vpack.c.b16 %v562, %v560
        %v613 = vpack.c.b16 %v565, %v563
        %v614 = vpack.c.b16 %v566, %v564
        %663 = vmatprep.subr.bf16.mxu0 %v568
        %664 = vmatpush1.bf16.msra.mxu0 %v567
        %665 = vmatprep.subr.bf16.mxu0 %v570
        %666 = vmatpush1.bf16.msra.mxu0 %v569
        %667 = vmatprep.subr.bf16.mxu0 %v572
        %668 = vmatpush1.bf16.msra.mxu0 %v571
        %669 = vmatprep.subr.bf16.mxu0 %v574
        %670 = vmatpush1.bf16.msra.mxu0 %v573
        %671 = vmatprep.subr.bf16.mxu0 %v576
        %672 = vmatpush1.bf16.msra.mxu0 %v575
        %673 = vmatprep.subr.bf16.mxu0 %v578
        %674 = vmatpush1.bf16.msra.mxu0 %v577
        %675 = vmatprep.subr.bf16.mxu0 %v580
        %676 = vmatpush1.bf16.msra.mxu0 %v579
        %677 = vmatprep.subr.bf16.mxu0 %v582
        %678 = vmatpush1.bf16.msra.mxu0 %v581
        %679 = vmatprep.subr.bf16.mxu0 %v584
        %680 = vmatpush1.bf16.msra.mxu0 %v583
        %681 = vmatprep.subr.bf16.mxu0 %v586
        %682 = vmatpush1.bf16.msra.mxu0 %v585
        %683 = vmatprep.subr.bf16.mxu0 %v588
        %684 = vmatpush1.bf16.msra.mxu0 %v587
        %685 = vmatprep.subr.bf16.mxu0 %v590
        %686 = vmatpush1.bf16.msra.mxu0 %v589
        %687 = vmatprep.subr.bf16.mxu0 %v592
        %688 = vmatpush1.bf16.msra.mxu0 %v591
        %689 = vmatprep.subr.bf16.mxu0 %v594
        %690 = vmatpush1.bf16.msra.mxu0 %v593
        %691 = vmatprep.subr.bf16.mxu0 %v596
        %692 = vmatpush1.bf16.msra.mxu0 %v595
        %693 = vmatprep.subr.bf16.mxu0 %v598
        %694 = vmatpush1.bf16.msra.mxu0 %v597
        %695 = vmatprep.mubr.bf16.mxu0 %v412
        %696 = vmatmul.mubr.bf16.gmra.mrb[0].mxu0 %v411
        %v697 = vpop.f32.mrb[0].mxu0
        %v698 = vadd.f32 0.0, %v697
        %v699 = vpop.f32.mrb[0].mxu0
        %v700 = vadd.f32 0.0, %v699
        %v701 = vpop.f32.mrb[0].mxu0
        %v702 = vadd.f32 0.0, %v701
        %v703 = vpop.f32.mrb[0].mxu0
        %v704 = vadd.f32 0.0, %v703
        %705 = vmatprep.mubr.bf16.mxu0 %v415
        %706 = vmatmul.mubr.bf16.gmra.mrb[0].mxu0 %v414
        %v707 = vpop.f32.mrb[0].mxu0
        %v708 = vadd.f32 0.0, %v707
        %v709 = vpop.f32.mrb[0].mxu0
        %v710 = vadd.f32 0.0, %v709
        %v711 = vpop.f32.mrb[0].mxu0
        %v712 = vadd.f32 0.0, %v711
        %v713 = vpop.f32.mrb[0].mxu0
        %v714 = vadd.f32 0.0, %v713
        %715 = vdwg.mxu0
        %716 = vmatprep.subr.bf16.mxu0 %v600
        %717 = vmatpush1.bf16.msra.mxu0 %v599
        %718 = vmatprep.subr.bf16.mxu0 %v602
        %719 = vmatpush1.bf16.msra.mxu0 %v601
        %720 = vmatprep.subr.bf16.mxu0 %v604
        %721 = vmatpush1.bf16.msra.mxu0 %v603
        %722 = vmatprep.subr.bf16.mxu0 %v606
        %723 = vmatpush1.bf16.msra.mxu0 %v605
        %724 = vmatprep.subr.bf16.mxu0 %v608
        %725 = vmatpush1.bf16.msra.mxu0 %v607
        %726 = vmatprep.subr.bf16.mxu0 %v610
        %727 = vmatpush1.bf16.msra.mxu0 %v609
        %728 = vmatprep.subr.bf16.mxu0 %v612
        %729 = vmatpush1.bf16.msra.mxu0 %v611
        %730 = vmatprep.subr.bf16.mxu0 %v614
        %731 = vmatpush1.bf16.msra.mxu0 %v613
        %732 = vmatprep.subr.bf16.mxu0 0
        %733 = vmatpush1.bf16.msra.mxu0 0
        %734 = vmatprep.subr.bf16.mxu0 0
        %735 = vmatpush1.bf16.msra.mxu0 0
        %736 = vmatprep.subr.bf16.mxu0 0
        %737 = vmatpush1.bf16.msra.mxu0 0
        %738 = vmatprep.subr.bf16.mxu0 0
        %739 = vmatpush1.bf16.msra.mxu0 0
        %740 = vmatprep.subr.bf16.mxu0 0
        %741 = vmatpush1.bf16.msra.mxu0 0
        %742 = vmatprep.subr.bf16.mxu0 0
        %743 = vmatpush1.bf16.msra.mxu0 0
        %744 = vmatprep.subr.bf16.mxu0 0
        %745 = vmatpush1.bf16.msra.mxu0 0
        %746 = vmatprep.subr.bf16.mxu0 0
        %747 = vmatpush1.bf16.msra.mxu0 0
        %748 = vmatprep.mubr.bf16.mxu0 0
        %749 = vmatmul.mubr.bf16.gmra.mrb[0].mxu0 %v413
        %v750 = vpop.f32.mrb[0].mxu0
        %v751 = vadd.f32 %v698, %v750
        %v752 = vpop.f32.mrb[0].mxu0
        %v753 = vadd.f32 %v700, %v752
        %v754 = vpop.f32.mrb[0].mxu0
        %v755 = vadd.f32 %v702, %v754
        %v756 = vpop.f32.mrb[0].mxu0
        %v757 = vadd.f32 %v704, %v756
        %758 = vmatprep.mubr.bf16.mxu0 0
        %759 = vmatmul.mubr.bf16.gmra.mrb[0].mxu0 %v416
        %v760 = vpop.f32.mrb[0].mxu0
        %v761 = vadd.f32 %v708, %v760
        %v762 = vpop.f32.mrb[0].mxu0
        %v763 = vadd.f32 %v710, %v762
        %v764 = vpop.f32.mrb[0].mxu0
        %v765 = vadd.f32 %v712, %v764
        %v766 = vpop.f32.mrb[0].mxu0
        %v767 = vadd.f32 %v714, %v766
        %768 = vdwg.mxu0
        %v769 = vadd.f32 %v327, %v751
        %v770 = vadd.f32 %v328, %v753
        %v771 = vadd.f32 %v329, %v755
        %v772 = vadd.f32 %v330, %v757
        %v773 = vadd.f32 %v331, %v761
        %v774 = vadd.f32 %v332, %v763
        %v775 = vadd.f32 %v333, %v765
        %v776 = vadd.f32 %v334, %v767
        %777 = vst [vmem:[#allocation2] sm:$0xff] %v769
        %778 = vst [vmem:[#allocation2 + $0x8] sm:$0xff] %v770
        %779 = vst [vmem:[#allocation2 + $0x10] sm:$0xff] %v771
        %780 = vst [vmem:[#allocation2 + $0x18] sm:$0xff] %v772
        %781 = vst [vmem:[#allocation2 + $0x20] sm:$0xff] %v773
        %782 = vst [vmem:[#allocation2 + $0x28] sm:$0xff] %v774
        %783 = vst [vmem:[#allocation2 + $0x30] sm:$0xff] %v775
        %784 = vst [vmem:[#allocation2 + $0x38] sm:$0xff] %v776
        %p785 = scmp.eq.s32.totalorder %s21, 2
        // Predicated region
        $region63: #{semantic_net_forward.10} parent=53 // pred_check
          %p786 = pneg %p785
        $region64: #{semantic_net_forward.10} parent=53 // pred_check_branch
          %788 = sbr.rel (%p786) target = $region66
        $region65: #{semantic_net_forward.10} parent=53 // pred_region
          %v789 = vld [vmem:[#allocation2] sm:$0xff]
          %v790 = vld [vmem:[#allocation2 + $0x8] sm:$0xff]
          %v791 = vld [vmem:[#allocation2 + $0x10] sm:$0xff]
          %v792 = vld [vmem:[#allocation2 + $0x18] sm:$0xff]
          %v793 = vld [vmem:[#allocation2 + $0x20] sm:$0xff]
          %v794 = vld [vmem:[#allocation2 + $0x28] sm:$0xff]
          %v795 = vld [vmem:[#allocation2 + $0x30] sm:$0xff]
          %v796 = vld [vmem:[#allocation2 + $0x38] sm:$0xff]
          %v797 = vld [vmem:[%s300] sm:$0x3]
          %v799 = vlaneseq
          %v800 = vshrl.u32 %v799, 7
          %v801 = vsub.s32 0, %v800
          %v802 = vrot.slane %v797, %v801
          %v803 = vlaneseq
          %v804 = vshrl.u32 %v803, 7
          %v805 = vsub.s32 1, %v804
          %v806 = vrot.slane %v797, %v805
          %v809 = vadd.f32 %v789, %v802
          %v810 = vadd.f32 %v790, %v806
          %v811 = vadd.f32 %v791, %v802
          %v812 = vadd.f32 %v792, %v806
          %v813 = vadd.f32 %v793, %v802
          %v814 = vadd.f32 %v794, %v806
          %v815 = vadd.f32 %v795, %v802
          %v816 = vadd.f32 %v796, %v806
          %v817 = vmax.f32 %v809, 0.0
          %v818 = vmax.f32 %v810, 0.0
          %v819 = vmax.f32 %v811, 0.0
          %v820 = vmax.f32 %v812, 0.0
          %v821 = vmax.f32 %v813, 0.0
          %v822 = vmax.f32 %v814, 0.0
          %v823 = vmax.f32 %v815, 0.0
          %v824 = vmax.f32 %v816, 0.0
          %v825 = vpack.c.bf16 %v819, %v817
          %v826 = vpack.c.bf16 %v820, %v818
          %v827 = vpack.c.bf16 %v823, %v821
          %v828 = vpack.c.bf16 %v824, %v822
          %v833 = vunpack.c.l.b16 %v825
          %v834 = vunpack.c.l.b16 %v826
          %v835 = vunpack.c.h.b16 %v825
          %v836 = vunpack.c.h.b16 %v826
          %v837 = vunpack.c.l.b16 %v827
          %v838 = vunpack.c.l.b16 %v828
          %v839 = vunpack.c.h.b16 %v827
          %v840 = vunpack.c.h.b16 %v828
          %v841 = vpack.c.b16 %v834, %v833
          %v842 = vpack.c.b16 %v836, %v835
          %v843 = vpack.c.b16 %v838, %v837
          %v844 = vpack.c.b16 %v840, %v839
          %849 = vst [vmem:[%s311] sm:$0xff] %v841
          %850 = vst [vmem:[%s311 + $0x8] sm:$0xff] %v842
          %851 = vst [vmem:[%s311 + $0x10] sm:$0xff] %v843
          %852 = vst [vmem:[%s311 + $0x18] sm:$0xff] %v844
        $region66: #{semantic_net_forward.10} parent=53 // pred_fallthru
          _
        %s853 = smul.u32 4, %s19
        %s854 = smul.u32 2, %s20
        %p855 = scmp.lt.s32.totalorder %s853, 3
        %s856 = scalar_select %p855, %s853, 3
        %p857 = scmp.lt.s32.totalorder %s854, 1
        %s858 = scalar_select %p857, %s854, 1
        %s859 = smul.addr %s856, 2
        %s860 = sadd.s32 %s858, %s859
        %s861 = smul.addr %s860, 4
        %s862 = scalar_lea.vmem %s3, %s861
        // Predicated region
        $region67: #{semantic_net_forward.10} parent=53 // pred_check
          %p863 = pneg %p135
        $region68: #{semantic_net_forward.10} parent=53 // pred_check_branch
          %865 = sbr.rel (%p863) target = $region70
        $region69: #{semantic_net_forward.10} parent=53 // pred_region
          %s866 = smul.u32 4, %s19
          %s867 = smul.u32 2, %s20
        $region70: #{semantic_net_forward.10} parent=53 // pred_fallthru
          _
        // Predicated region
        $region71: #{semantic_net_forward.10} parent=53 // pred_check
          %p868 = pneg %p135
        $region72: #{semantic_net_forward.10} parent=53 // pred_check_branch
          %870 = sbr.rel (%p868) target = $region74
        $region73: #{semantic_net_forward.10} parent=53 // pred_region
          %s871 = smul.u32 4, %s19
          %s872 = smul.u32 2, %s20
          %p873 = scmp.lt.s32.totalorder %s871, 3
          %s874 = scalar_select %p873, %s871, 3
          %p875 = scmp.lt.s32.totalorder %s872, 1
          %s876 = scalar_select %p875, %s872, 1
          %s877 = smul.addr %s874, 2
          %s878 = sadd.s32 %s876, %s877
          %s879 = smul.addr %s878, 4
          %s880 = scalar_lea.vmem %s3, %s879
        $region74: #{semantic_net_forward.10} parent=53 // pred_fallthru
          _
      $region54: #{semantic_net_forward.10} parent=5 // pred_fallthru
        _
      %p881 = scmp.le.s32.totalorder 2, %s9
      // Predicated region
      $region75: #{semantic_net_forward.10} parent=5 // pred_check
        %p882 = pneg %p881
      $region76: #{semantic_net_forward.10} parent=5 // pred_check_branch
        %884 = sbr.rel (%p882) target = $region78
      $region77: #{semantic_net_forward.10} parent=5 // pred_region
        %s885 = ssub.s32 %s9, 2
      $region78: #{semantic_net_forward.10} parent=5 // pred_fallthru
        _
    $region6: #{semantic_net_forward.10} parent=1 // loop_footer
      %s13 = sadd.s32 1, %s9
    $region7: #{semantic_net_forward.10} parent=1 // loop_footer_branch
      %8 = sbr.rel target = $region3
    $region8: #{semantic_net_forward.10} parent=1 // loop_exit
      _

// kernel: semantic_net_forward.11
$region0: #{semantic_net_forward.11}
  #allocation0 [shape = 'u32[]', space=smem, size = 0x4, offset = 0x4, fixed_abs, tag = 'smem constant byte address 0x4 - core index']
  #allocation1 [shape = 'u32[144,128]{1,0:T(1,128)}', space=vmem, size = 0x12000, scoped, tag = 'internal scratch']
  %s0 = inlined_call_operand.vmem [shape: bf16[2,4096], index: 0, kind: input, shape index: {}]
  %s1 = inlined_call_operand.vmem [shape: bf16[4096,5], index: 1, kind: input, shape index: {}]
  %s2 = inlined_call_operand.vmem [shape: f32[2,1500], index: 2, kind: input, shape index: {}]
  %s3 = inlined_call_operand.vmem [shape: bf16[1500,5], index: 3, kind: input, shape index: {}]
  %s4 = inlined_call_operand.vmem [shape: f32[1,5], index: 4, kind: input, shape index: {}]
  %s5 = inlined_call_operand.hbm [shape: f32[2,5], index: 5, kind: output, shape index: {}]
  %s6 = sld [smem:[#allocation0]]
  $region30: #{semantic_net_forward.11} parent=0
    _
  %s8 = ssub.s32 1, %s6
  %s9 = scalar_select 0, %s8, %s6
  $region1: #{semantic_net_forward.11} parent=0
    #allocation2 [shape = 'u8[1024]{0}', space=vmem, size = 0x400, scoped, tag = 'output window, operand 0, single buffered']
    #allocation3 [shape = 's32[1]{0}', space=sflag, size = 0x4, scoped, tag = 'scoped memory for semantic_net_forward.11']
    %10 = vsyncpa [#allocation3], 0
    // Predicated region
    $region2: #{semantic_net_forward.11} parent=1 // pred_check
      _
    $region3: #{semantic_net_forward.11} parent=1 // pred_check_branch
      %12 = sbr.rel (0) target = $region5
    $region4: #{semantic_net_forward.11} parent=1 // pred_region
      _
    $region5: #{semantic_net_forward.11} parent=1 // pred_fallthru
      _
    // Predicated region
    $region6: #{semantic_net_forward.11} parent=1 // pred_check
      _
    $region7: #{semantic_net_forward.11} parent=1 // pred_check_branch
      %14 = sbr.rel (0) target = $region9
    $region8: #{semantic_net_forward.11} parent=1 // pred_region
      _
    $region9: #{semantic_net_forward.11} parent=1 // pred_fallthru
      _
    // Predicated region
    $region10: #{semantic_net_forward.11} parent=1 // pred_check
      _
    $region11: #{semantic_net_forward.11} parent=1 // pred_check_branch
      %16 = sbr.rel (0) target = $region13
    $region12: #{semantic_net_forward.11} parent=1 // pred_region
      _
    $region13: #{semantic_net_forward.11} parent=1 // pred_fallthru
      _
    // Predicated region
    $region14: #{semantic_net_forward.11} parent=1 // pred_check
      _
    $region15: #{semantic_net_forward.11} parent=1 // pred_check_branch
      %18 = sbr.rel (0) target = $region17
    $region16: #{semantic_net_forward.11} parent=1 // pred_region
      _
    $region17: #{semantic_net_forward.11} parent=1 // pred_fallthru
      _
    // Predicated region
    $region18: #{semantic_net_forward.11} parent=1 // pred_check
      _
    $region19: #{semantic_net_forward.11} parent=1 // pred_check_branch
      %20 = sbr.rel (0) target = $region21
    $region20: #{semantic_net_forward.11} parent=1 // pred_region
      _
    $region21: #{semantic_net_forward.11} parent=1 // pred_fallthru
      _
    %v22 = vld [vmem:[%s0] sm:$0xff]
    %v23 = vld [vmem:[%s0 + $0x8] sm:$0xff]
    %v24 = vld [vmem:[%s0 + $0x10] sm:$0xff]
    %v25 = vld [vmem:[%s0 + $0x18] sm:$0xff]
    %v26 = vld [vmem:[%s1] sm:$0xf]
    %v27 = vld [vmem:[%s1 + $0x4] sm:$0xf]
    %v28 = vld [vmem:[%s1 + $0x8] sm:$0xf]
    %v29 = vld [vmem:[%s1 + $0xc] sm:$0xf]
    %v30 = vld [vmem:[%s1 + $0x10] sm:$0xf]
    %v31 = vld [vmem:[%s1 + $0x14] sm:$0xf]
    %v32 = vld [vmem:[%s1 + $0x18] sm:$0xf]
    %v33 = vld [vmem:[%s1 + $0x1c] sm:$0xf]
    %v34 = vld [vmem:[%s1 + $0x20] sm:$0xf]
    %v35 = vld [vmem:[%s1 + $0x24] sm:$0xf]
    %v36 = vld [vmem:[%s1 + $0x28] sm:$0xf]
    %v37 = vld [vmem:[%s1 + $0x2c] sm:$0xf]
    %v38 = vld [vmem:[%s1 + $0x30] sm:$0xf]
    %v39 = vld [vmem:[%s1 + $0x34] sm:$0xf]
    %v40 = vld [vmem:[%s1 + $0x38] sm:$0xf]
    %v41 = vld [vmem:[%s1 + $0x3c] sm:$0xf]
    %v42 = vld [vmem:[%s1 + $0x40] sm:$0xf]
    %v43 = vld [vmem:[%s1 + $0x44] sm:$0xf]
    %v44 = vld [vmem:[%s1 + $0x48] sm:$0xf]
    %v45 = vld [vmem:[%s1 + $0x4c] sm:$0xf]
    %v46 = vld [vmem:[%s1 + $0x50] sm:$0xf]
    %v47 = vld [vmem:[%s1 + $0x54] sm:$0xf]
    %v48 = vld [vmem:[%s1 + $0x58] sm:$0xf]
    %v49 = vld [vmem:[%s1 + $0x5c] sm:$0xf]
    %v50 = vld [vmem:[%s1 + $0x60] sm:$0xf]
    %v51 = vld [vmem:[%s1 + $0x64] sm:$0xf]
    %v52 = vld [vmem:[%s1 + $0x68] sm:$0xf]
    %v53 = vld [vmem:[%s1 + $0x6c] sm:$0xf]
    %v54 = vld [vmem:[%s1 + $0x70] sm:$0xf]
    %v55 = vld [vmem:[%s1 + $0x74] sm:$0xf]
    %v56 = vld [vmem:[%s1 + $0x78] sm:$0xf]
    %v57 = vld [vmem:[%s1 + $0x7c] sm:$0xf]
    %v58 = vld [vmem:[%s1 + $0x80] sm:$0xf]
    %v59 = vld [vmem:[%s1 + $0x84] sm:$0xf]
    %v60 = vld [vmem:[%s1 + $0x88] sm:$0xf]
    %v61 = vld [vmem:[%s1 + $0x8c] sm:$0xf]
    %v62 = vld [vmem:[%s1 + $0x90] sm:$0xf]
    %v63 = vld [vmem:[%s1 + $0x94] sm:$0xf]
    %v64 = vld [vmem:[%s1 + $0x98] sm:$0xf]
    %v65 = vld [vmem:[%s1 + $0x9c] sm:$0xf]
    %v66 = vld [vmem:[%s1 + $0xa0] sm:$0xf]
    %v67 = vld [vmem:[%s1 + $0xa4] sm:$0xf]
    %v68 = vld [vmem:[%s1 + $0xa8] sm:$0xf]
    %v69 = vld [vmem:[%s1 + $0xac] sm:$0xf]
    %v70 = vld [vmem:[%s1 + $0xb0] sm:$0xf]
    %v71 = vld [vmem:[%s1 + $0xb4] sm:$0xf]
    %v72 = vld [vmem:[%s1 + $0xb8] sm:$0xf]
    %v73 = vld [vmem:[%s1 + $0xbc] sm:$0xf]
    %v74 = vld [vmem:[%s1 + $0xc0] sm:$0xf]
    %v75 = vld [vmem:[%s1 + $0xc4] sm:$0xf]
    %v76 = vld [vmem:[%s1 + $0xc8] sm:$0xf]
    %v77 = vld [vmem:[%s1 + $0xcc] sm:$0xf]
    %v78 = vld [vmem:[%s1 + $0xd0] sm:$0xf]
    %v79 = vld [vmem:[%s1 + $0xd4] sm:$0xf]
    %v80 = vld [vmem:[%s1 + $0xd8] sm:$0xf]
    %v81 = vld [vmem:[%s1 + $0xdc] sm:$0xf]
    %v82 = vld [vmem:[%s1 + $0xe0] sm:$0xf]
    %v83 = vld [vmem:[%s1 + $0xe4] sm:$0xf]
    %v84 = vld [vmem:[%s1 + $0xe8] sm:$0xf]
    %v85 = vld [vmem:[%s1 + $0xec] sm:$0xf]
    %v86 = vld [vmem:[%s1 + $0xf0] sm:$0xf]
    %v87 = vld [vmem:[%s1 + $0xf4] sm:$0xf]
    %v88 = vld [vmem:[%s1 + $0xf8] sm:$0xf]
    %v89 = vld [vmem:[%s1 + $0xfc] sm:$0xf]
    %v90 = vld [vmem:[%s1 + $0x100] sm:$0xf]
    %v91 = vld [vmem:[%s1 + $0x104] sm:$0xf]
    %v92 = vld [vmem:[%s1 + $0x108] sm:$0xf]
    %v93 = vld [vmem:[%s1 + $0x10c] sm:$0xf]
    %v94 = vld [vmem:[%s1 + $0x110] sm:$0xf]
    %v95 = vld [vmem:[%s1 + $0x114] sm:$0xf]
    %v96 = vld [vmem:[%s1 + $0x118] sm:$0xf]
    %v97 = vld [vmem:[%s1 + $0x11c] sm:$0xf]
    %v98 = vld [vmem:[%s1 + $0x120] sm:$0xf]
    %v99 = vld [vmem:[%s1 + $0x124] sm:$0xf]
    %v100 = vld [vmem:[%s1 + $0x128] sm:$0xf]
    %v101 = vld [vmem:[%s1 + $0x12c] sm:$0xf]
    %v102 = vld [vmem:[%s1 + $0x130] sm:$0xf]
    %v103 = vld [vmem:[%s1 + $0x134] sm:$0xf]
    %v104 = vld [vmem:[%s1 + $0x138] sm:$0xf]
    %v105 = vld [vmem:[%s1 + $0x13c] sm:$0xf]
    %v106 = vld [vmem:[%s1 + $0x140] sm:$0xf]
    %v107 = vld [vmem:[%s1 + $0x144] sm:$0xf]
    %v108 = vld [vmem:[%s1 + $0x148] sm:$0xf]
    %v109 = vld [vmem:[%s1 + $0x14c] sm:$0xf]
    %v110 = vld [vmem:[%s1 + $0x150] sm:$0xf]
    %v111 = vld [vmem:[%s1 + $0x154] sm:$0xf]
    %v112 = vld [vmem:[%s1 + $0x158] sm:$0xf]
    %v113 = vld [vmem:[%s1 + $0x15c] sm:$0xf]
    %v114 = vld [vmem:[%s1 + $0x160] sm:$0xf]
    %v115 = vld [vmem:[%s1 + $0x164] sm:$0xf]
    %v116 = vld [vmem:[%s1 + $0x168] sm:$0xf]
    %v117 = vld [vmem:[%s1 + $0x16c] sm:$0xf]
    %v118 = vld [vmem:[%s1 + $0x170] sm:$0xf]
    %v119 = vld [vmem:[%s1 + $0x174] sm:$0xf]
    %v120 = vld [vmem:[%s1 + $0x178] sm:$0xf]
    %v121 = vld [vmem:[%s1 + $0x17c] sm:$0xf]
    %v122 = vld [vmem:[%s1 + $0x180] sm:$0xf]
    %v123 = vld [vmem:[%s1 + $0x184] sm:$0xf]
    %v124 = vld [vmem:[%s1 + $0x188] sm:$0xf]
    %v125 = vld [vmem:[%s1 + $0x18c] sm:$0xf]
    %v126 = vld [vmem:[%s1 + $0x190] sm:$0xf]
    %v127 = vld [vmem:[%s1 + $0x194] sm:$0xf]
    %v128 = vld [vmem:[%s1 + $0x198] sm:$0xf]
    %v129 = vld [vmem:[%s1 + $0x19c] sm:$0xf]
    %v130 = vld [vmem:[%s1 + $0x1a0] sm:$0xf]
    %v131 = vld [vmem:[%s1 + $0x1a4] sm:$0xf]
    %v132 = vld [vmem:[%s1 + $0x1a8] sm:$0xf]
    %v133 = vld [vmem:[%s1 + $0x1ac] sm:$0xf]
    %v134 = vld [vmem:[%s1 + $0x1b0] sm:$0xf]
    %v135 = vld [vmem:[%s1 + $0x1b4] sm:$0xf]
    %v136 = vld [vmem:[%s1 + $0x1b8] sm:$0xf]
    %v137 = vld [vmem:[%s1 + $0x1bc] sm:$0xf]
    %v138 = vld [vmem:[%s1 + $0x1c0] sm:$0xf]
    %v139 = vld [vmem:[%s1 + $0x1c4] sm:$0xf]
    %v140 = vld [vmem:[%s1 + $0x1c8] sm:$0xf]
    %v141 = vld [vmem:[%s1 + $0x1cc] sm:$0xf]
    %v142 = vld [vmem:[%s1 + $0x1d0] sm:$0xf]
    %v143 = vld [vmem:[%s1 + $0x1d4] sm:$0xf]
    %v144 = vld [vmem:[%s1 + $0x1d8] sm:$0xf]
    %v145 = vld [vmem:[%s1 + $0x1dc] sm:$0xf]
    %v146 = vld [vmem:[%s1 + $0x1e0] sm:$0xf]
    %v147 = vld [vmem:[%s1 + $0x1e4] sm:$0xf]
    %v148 = vld [vmem:[%s1 + $0x1e8] sm:$0xf]
    %v149 = vld [vmem:[%s1 + $0x1ec] sm:$0xf]
    %v150 = vld [vmem:[%s1 + $0x1f0] sm:$0xf]
    %v151 = vld [vmem:[%s1 + $0x1f4] sm:$0xf]
    %v152 = vld [vmem:[%s1 + $0x1f8] sm:$0xf]
    %v153 = vld [vmem:[%s1 + $0x1fc] sm:$0xf]
    %v154 = vld [vmem:[%s1 + $0x200] sm:$0xf]
    %v155 = vld [vmem:[%s1 + $0x204] sm:$0xf]
    %v156 = vld [vmem:[%s1 + $0x208] sm:$0xf]
    %v157 = vld [vmem:[%s1 + $0x20c] sm:$0xf]
    %v158 = vld [vmem:[%s1 + $0x210] sm:$0xf]
    %v159 = vld [vmem:[%s1 + $0x214] sm:$0xf]
    %v160 = vld [vmem:[%s1 + $0x218] sm:$0xf]
    %v161 = vld [vmem:[%s1 + $0x21c] sm:$0xf]
    %v162 = vld [vmem:[%s1 + $0x220] sm:$0xf]
    %v163 = vld [vmem:[%s1 + $0x224] sm:$0xf]
    %v164 = vld [vmem:[%s1 + $0x228] sm:$0xf]
    %v165 = vld [vmem:[%s1 + $0x22c] sm:$0xf]
    %v166 = vld [vmem:[%s1 + $0x230] sm:$0xf]
    %v167 = vld [vmem:[%s1 + $0x234] sm:$0xf]
    %v168 = vld [vmem:[%s1 + $0x238] sm:$0xf]
    %v169 = vld [vmem:[%s1 + $0x23c] sm:$0xf]
    %v170 = vld [vmem:[%s1 + $0x240] sm:$0xf]
    %v171 = vld [vmem:[%s1 + $0x244] sm:$0xf]
    %v172 = vld [vmem:[%s1 + $0x248] sm:$0xf]
    %v173 = vld [vmem:[%s1 + $0x24c] sm:$0xf]
    %v174 = vld [vmem:[%s1 + $0x250] sm:$0xf]
    %v175 = vld [vmem:[%s1 + $0x254] sm:$0xf]
    %v176 = vld [vmem:[%s1 + $0x258] sm:$0xf]
    %v177 = vld [vmem:[%s1 + $0x25c] sm:$0xf]
    %v178 = vld [vmem:[%s1 + $0x260] sm:$0xf]
    %v179 = vld [vmem:[%s1 + $0x264] sm:$0xf]
    %v180 = vld [vmem:[%s1 + $0x268] sm:$0xf]
    %v181 = vld [vmem:[%s1 + $0x26c] sm:$0xf]
    %v182 = vld [vmem:[%s1 + $0x270] sm:$0xf]
    %v183 = vld [vmem:[%s1 + $0x274] sm:$0xf]
    %v184 = vld [vmem:[%s1 + $0x278] sm:$0xf]
    %v185 = vld [vmem:[%s1 + $0x27c] sm:$0xf]
    %v186 = vld [vmem:[%s1 + $0x280] sm:$0xf]
    %v187 = vld [vmem:[%s1 + $0x284] sm:$0xf]
    %v188 = vld [vmem:[%s1 + $0x288] sm:$0xf]
    %v189 = vld [vmem:[%s1 + $0x28c] sm:$0xf]
    %v190 = vld [vmem:[%s1 + $0x290] sm:$0xf]
    %v191 = vld [vmem:[%s1 + $0x294] sm:$0xf]
    %v192 = vld [vmem:[%s1 + $0x298] sm:$0xf]
    %v193 = vld [vmem:[%s1 + $0x29c] sm:$0xf]
    %v194 = vld [vmem:[%s1 + $0x2a0] sm:$0xf]
    %v195 = vld [vmem:[%s1 + $0x2a4] sm:$0xf]
    %v196 = vld [vmem:[%s1 + $0x2a8] sm:$0xf]
    %v197 = vld [vmem:[%s1 + $0x2ac] sm:$0xf]
    %v198 = vld [vmem:[%s1 + $0x2b0] sm:$0xf]
    %v199 = vld [vmem:[%s1 + $0x2b4] sm:$0xf]
    %v200 = vld [vmem:[%s1 + $0x2b8] sm:$0xf]
    %v201 = vld [vmem:[%s1 + $0x2bc] sm:$0xf]
    %v202 = vld [vmem:[%s1 + $0x2c0] sm:$0xf]
    %v203 = vld [vmem:[%s1 + $0x2c4] sm:$0xf]
    %v204 = vld [vmem:[%s1 + $0x2c8] sm:$0xf]
    %v205 = vld [vmem:[%s1 + $0x2cc] sm:$0xf]
    %v206 = vld [vmem:[%s1 + $0x2d0] sm:$0xf]
    %v207 = vld [vmem:[%s1 + $0x2d4] sm:$0xf]
    %v208 = vld [vmem:[%s1 + $0x2d8] sm:$0xf]
    %v209 = vld [vmem:[%s1 + $0x2dc] sm:$0xf]
    %v210 = vld [vmem:[%s1 + $0x2e0] sm:$0xf]
    %v211 = vld [vmem:[%s1 + $0x2e4] sm:$0xf]
    %v212 = vld [vmem:[%s1 + $0x2e8] sm:$0xf]
    %v213 = vld [vmem:[%s1 + $0x2ec] sm:$0xf]
    %v214 = vld [vmem:[%s1 + $0x2f0] sm:$0xf]
    %v215 = vld [vmem:[%s1 + $0x2f4] sm:$0xf]
    %v216 = vld [vmem:[%s1 + $0x2f8] sm:$0xf]
    %v217 = vld [vmem:[%s1 + $0x2fc] sm:$0xf]
    %v218 = vld [vmem:[%s1 + $0x300] sm:$0xf]
    %v219 = vld [vmem:[%s1 + $0x304] sm:$0xf]
    %v220 = vld [vmem:[%s1 + $0x308] sm:$0xf]
    %v221 = vld [vmem:[%s1 + $0x30c] sm:$0xf]
    %v222 = vld [vmem:[%s1 + $0x310] sm:$0xf]
    %v223 = vld [vmem:[%s1 + $0x314] sm:$0xf]
    %v224 = vld [vmem:[%s1 + $0x318] sm:$0xf]
    %v225 = vld [vmem:[%s1 + $0x31c] sm:$0xf]
    %v226 = vld [vmem:[%s1 + $0x320] sm:$0xf]
    %v227 = vld [vmem:[%s1 + $0x324] sm:$0xf]
    %v228 = vld [vmem:[%s1 + $0x328] sm:$0xf]
    %v229 = vld [vmem:[%s1 + $0x32c] sm:$0xf]
    %v230 = vld [vmem:[%s1 + $0x330] sm:$0xf]
    %v231 = vld [vmem:[%s1 + $0x334] sm:$0xf]
    %v232 = vld [vmem:[%s1 + $0x338] sm:$0xf]
    %v233 = vld [vmem:[%s1 + $0x33c] sm:$0xf]
    %v234 = vld [vmem:[%s1 + $0x340] sm:$0xf]
    %v235 = vld [vmem:[%s1 + $0x344] sm:$0xf]
    %v236 = vld [vmem:[%s1 + $0x348] sm:$0xf]
    %v237 = vld [vmem:[%s1 + $0x34c] sm:$0xf]
    %v238 = vld [vmem:[%s1 + $0x350] sm:$0xf]
    %v239 = vld [vmem:[%s1 + $0x354] sm:$0xf]
    %v240 = vld [vmem:[%s1 + $0x358] sm:$0xf]
    %v241 = vld [vmem:[%s1 + $0x35c] sm:$0xf]
    %v242 = vld [vmem:[%s1 + $0x360] sm:$0xf]
    %v243 = vld [vmem:[%s1 + $0x364] sm:$0xf]
    %v244 = vld [vmem:[%s1 + $0x368] sm:$0xf]
    %v245 = vld [vmem:[%s1 + $0x36c] sm:$0xf]
    %v246 = vld [vmem:[%s1 + $0x370] sm:$0xf]
    %v247 = vld [vmem:[%s1 + $0x374] sm:$0xf]
    %v248 = vld [vmem:[%s1 + $0x378] sm:$0xf]
    %v249 = vld [vmem:[%s1 + $0x37c] sm:$0xf]
    %v250 = vld [vmem:[%s1 + $0x380] sm:$0xf]
    %v251 = vld [vmem:[%s1 + $0x384] sm:$0xf]
    %v252 = vld [vmem:[%s1 + $0x388] sm:$0xf]
    %v253 = vld [vmem:[%s1 + $0x38c] sm:$0xf]
    %v254 = vld [vmem:[%s1 + $0x390] sm:$0xf]
    %v255 = vld [vmem:[%s1 + $0x394] sm:$0xf]
    %v256 = vld [vmem:[%s1 + $0x398] sm:$0xf]
    %v257 = vld [vmem:[%s1 + $0x39c] sm:$0xf]
    %v258 = vld [vmem:[%s1 + $0x3a0] sm:$0xf]
    %v259 = vld [vmem:[%s1 + $0x3a4] sm:$0xf]
    %v260 = vld [vmem:[%s1 + $0x3a8] sm:$0xf]
    %v261 = vld [vmem:[%s1 + $0x3ac] sm:$0xf]
    %v262 = vld [vmem:[%s1 + $0x3b0] sm:$0xf]
    %v263 = vld [vmem:[%s1 + $0x3b4] sm:$0xf]
    %v264 = vld [vmem:[%s1 + $0x3b8] sm:$0xf]
    %v265 = vld [vmem:[%s1 + $0x3bc] sm:$0xf]
    %v266 = vld [vmem:[%s1 + $0x3c0] sm:$0xf]
    %v267 = vld [vmem:[%s1 + $0x3c4] sm:$0xf]
    %v268 = vld [vmem:[%s1 + $0x3c8] sm:$0xf]
    %v269 = vld [vmem:[%s1 + $0x3cc] sm:$0xf]
    %v270 = vld [vmem:[%s1 + $0x3d0] sm:$0xf]
    %v271 = vld [vmem:[%s1 + $0x3d4] sm:$0xf]
    %v272 = vld [vmem:[%s1 + $0x3d8] sm:$0xf]
    %v273 = vld [vmem:[%s1 + $0x3dc] sm:$0xf]
    %v274 = vld [vmem:[%s1 + $0x3e0] sm:$0xf]
    %v275 = vld [vmem:[%s1 + $0x3e4] sm:$0xf]
    %v276 = vld [vmem:[%s1 + $0x3e8] sm:$0xf]
    %v277 = vld [vmem:[%s1 + $0x3ec] sm:$0xf]
    %v278 = vld [vmem:[%s1 + $0x3f0] sm:$0xf]
    %v279 = vld [vmem:[%s1 + $0x3f4] sm:$0xf]
    %v280 = vld [vmem:[%s1 + $0x3f8] sm:$0xf]
    %v281 = vld [vmem:[%s1 + $0x3fc] sm:$0xf]
    %v282 = vld [vmem:[%s1 + $0x400] sm:$0xf]
    %v283 = vld [vmem:[%s1 + $0x404] sm:$0xf]
    %v284 = vld [vmem:[%s1 + $0x408] sm:$0xf]
    %v285 = vld [vmem:[%s1 + $0x40c] sm:$0xf]
    %v286 = vld [vmem:[%s1 + $0x410] sm:$0xf]
    %v287 = vld [vmem:[%s1 + $0x414] sm:$0xf]
    %v288 = vld [vmem:[%s1 + $0x418] sm:$0xf]
    %v289 = vld [vmem:[%s1 + $0x41c] sm:$0xf]
    %v290 = vld [vmem:[%s1 + $0x420] sm:$0xf]
    %v291 = vld [vmem:[%s1 + $0x424] sm:$0xf]
    %v292 = vld [vmem:[%s1 + $0x428] sm:$0xf]
    %v293 = vld [vmem:[%s1 + $0x42c] sm:$0xf]
    %v294 = vld [vmem:[%s1 + $0x430] sm:$0xf]
    %v295 = vld [vmem:[%s1 + $0x434] sm:$0xf]
    %v296 = vld [vmem:[%s1 + $0x438] sm:$0xf]
    %v297 = vld [vmem:[%s1 + $0x43c] sm:$0xf]
    %v298 = vld [vmem:[%s1 + $0x440] sm:$0xf]
    %v299 = vld [vmem:[%s1 + $0x444] sm:$0xf]
    %v300 = vld [vmem:[%s1 + $0x448] sm:$0xf]
    %v301 = vld [vmem:[%s1 + $0x44c] sm:$0xf]
    %v302 = vld [vmem:[%s1 + $0x450] sm:$0xf]
    %v303 = vld [vmem:[%s1 + $0x454] sm:$0xf]
    %v304 = vld [vmem:[%s1 + $0x458] sm:$0xf]
    %v305 = vld [vmem:[%s1 + $0x45c] sm:$0xf]
    %v306 = vld [vmem:[%s1 + $0x460] sm:$0xf]
    %v307 = vld [vmem:[%s1 + $0x464] sm:$0xf]
    %v308 = vld [vmem:[%s1 + $0x468] sm:$0xf]
    %v309 = vld [vmem:[%s1 + $0x46c] sm:$0xf]
    %v310 = vld [vmem:[%s1 + $0x470] sm:$0xf]
    %v311 = vld [vmem:[%s1 + $0x474] sm:$0xf]
    %v312 = vld [vmem:[%s1 + $0x478] sm:$0xf]
    %v313 = vld [vmem:[%s1 + $0x47c] sm:$0xf]
    %v314 = vld [vmem:[%s1 + $0x480] sm:$0xf]
    %v315 = vld [vmem:[%s1 + $0x484] sm:$0xf]
    %v316 = vld [vmem:[%s1 + $0x488] sm:$0xf]
    %v317 = vld [vmem:[%s1 + $0x48c] sm:$0xf]
    %v318 = vld [vmem:[%s1 + $0x490] sm:$0xf]
    %v319 = vld [vmem:[%s1 + $0x494] sm:$0xf]
    %v320 = vld [vmem:[%s1 + $0x498] sm:$0xf]
    %v321 = vld [vmem:[%s1 + $0x49c] sm:$0xf]
    %v322 = vld [vmem:[%s1 + $0x4a0] sm:$0xf]
    %v323 = vld [vmem:[%s1 + $0x4a4] sm:$0xf]
    %v324 = vld [vmem:[%s1 + $0x4a8] sm:$0xf]
    %v325 = vld [vmem:[%s1 + $0x4ac] sm:$0xf]
    %v326 = vld [vmem:[%s1 + $0x4b0] sm:$0xf]
    %v327 = vld [vmem:[%s1 + $0x4b4] sm:$0xf]
    %v328 = vld [vmem:[%s1 + $0x4b8] sm:$0xf]
    %v329 = vld [vmem:[%s1 + $0x4bc] sm:$0xf]
    %v330 = vld [vmem:[%s1 + $0x4c0] sm:$0xf]
    %v331 = vld [vmem:[%s1 + $0x4c4] sm:$0xf]
    %v332 = vld [vmem:[%s1 + $0x4c8] sm:$0xf]
    %v333 = vld [vmem:[%s1 + $0x4cc] sm:$0xf]
    %v334 = vld [vmem:[%s1 + $0x4d0] sm:$0xf]
    %v335 = vld [vmem:[%s1 + $0x4d4] sm:$0xf]
    %v336 = vld [vmem:[%s1 + $0x4d8] sm:$0xf]
    %v337 = vld [vmem:[%s1 + $0x4dc] sm:$0xf]
    %v338 = vld [vmem:[%s1 + $0x4e0] sm:$0xf]
    %v339 = vld [vmem:[%s1 + $0x4e4] sm:$0xf]
    %v340 = vld [vmem:[%s1 + $0x4e8] sm:$0xf]
    %v341 = vld [vmem:[%s1 + $0x4ec] sm:$0xf]
    %v342 = vld [vmem:[%s1 + $0x4f0] sm:$0xf]
    %v343 = vld [vmem:[%s1 + $0x4f4] sm:$0xf]
    %v344 = vld [vmem:[%s1 + $0x4f8] sm:$0xf]
    %v345 = vld [vmem:[%s1 + $0x4fc] sm:$0xf]
    %v346 = vld [vmem:[%s1 + $0x500] sm:$0xf]
    %v347 = vld [vmem:[%s1 + $0x504] sm:$0xf]
    %v348 = vld [vmem:[%s1 + $0x508] sm:$0xf]
    %v349 = vld [vmem:[%s1 + $0x50c] sm:$0xf]
    %v350 = vld [vmem:[%s1 + $0x510] sm:$0xf]
    %v351 = vld [vmem:[%s1 + $0x514] sm:$0xf]
    %v352 = vld [vmem:[%s1 + $0x518] sm:$0xf]
    %v353 = vld [vmem:[%s1 + $0x51c] sm:$0xf]
    %v354 = vld [vmem:[%s1 + $0x520] sm:$0xf]
    %v355 = vld [vmem:[%s1 + $0x524] sm:$0xf]
    %v356 = vld [vmem:[%s1 + $0x528] sm:$0xf]
    %v357 = vld [vmem:[%s1 + $0x52c] sm:$0xf]
    %v358 = vld [vmem:[%s1 + $0x530] sm:$0xf]
    %v359 = vld [vmem:[%s1 + $0x534] sm:$0xf]
    %v360 = vld [vmem:[%s1 + $0x538] sm:$0xf]
    %v361 = vld [vmem:[%s1 + $0x53c] sm:$0xf]
    %v362 = vld [vmem:[%s1 + $0x540] sm:$0xf]
    %v363 = vld [vmem:[%s1 + $0x544] sm:$0xf]
    %v364 = vld [vmem:[%s1 + $0x548] sm:$0xf]
    %v365 = vld [vmem:[%s1 + $0x54c] sm:$0xf]
    %v366 = vld [vmem:[%s1 + $0x550] sm:$0xf]
    %v367 = vld [vmem:[%s1 + $0x554] sm:$0xf]
    %v368 = vld [vmem:[%s1 + $0x558] sm:$0xf]
    %v369 = vld [vmem:[%s1 + $0x55c] sm:$0xf]
    %v370 = vld [vmem:[%s1 + $0x560] sm:$0xf]
    %v371 = vld [vmem:[%s1 + $0x564] sm:$0xf]
    %v372 = vld [vmem:[%s1 + $0x568] sm:$0xf]
    %v373 = vld [vmem:[%s1 + $0x56c] sm:$0xf]
    %v374 = vld [vmem:[%s1 + $0x570] sm:$0xf]
    %v375 = vld [vmem:[%s1 + $0x574] sm:$0xf]
    %v376 = vld [vmem:[%s1 + $0x578] sm:$0xf]
    %v377 = vld [vmem:[%s1 + $0x57c] sm:$0xf]
    %v378 = vld [vmem:[%s1 + $0x580] sm:$0xf]
    %v379 = vld [vmem:[%s1 + $0x584] sm:$0xf]
    %v380 = vld [vmem:[%s1 + $0x588] sm:$0xf]
    %v381 = vld [vmem:[%s1 + $0x58c] sm:$0xf]
    %v382 = vld [vmem:[%s1 + $0x590] sm:$0xf]
    %v383 = vld [vmem:[%s1 + $0x594] sm:$0xf]
    %v384 = vld [vmem:[%s1 + $0x598] sm:$0xf]
    %v385 = vld [vmem:[%s1 + $0x59c] sm:$0xf]
    %v386 = vld [vmem:[%s1 + $0x5a0] sm:$0xf]
    %v387 = vld [vmem:[%s1 + $0x5a4] sm:$0xf]
    %v388 = vld [vmem:[%s1 + $0x5a8] sm:$0xf]
    %v389 = vld [vmem:[%s1 + $0x5ac] sm:$0xf]
    %v390 = vld [vmem:[%s1 + $0x5b0] sm:$0xf]
    %v391 = vld [vmem:[%s1 + $0x5b4] sm:$0xf]
    %v392 = vld [vmem:[%s1 + $0x5b8] sm:$0xf]
    %v393 = vld [vmem:[%s1 + $0x5bc] sm:$0xf]
    %v394 = vld [vmem:[%s1 + $0x5c0] sm:$0xf]
    %v395 = vld [vmem:[%s1 + $0x5c4] sm:$0xf]
    %v396 = vld [vmem:[%s1 + $0x5c8] sm:$0xf]
    %v397 = vld [vmem:[%s1 + $0x5cc] sm:$0xf]
    %v398 = vld [vmem:[%s1 + $0x5d0] sm:$0xf]
    %v399 = vld [vmem:[%s1 + $0x5d4] sm:$0xf]
    %v400 = vld [vmem:[%s1 + $0x5d8] sm:$0xf]
    %v401 = vld [vmem:[%s1 + $0x5dc] sm:$0xf]
    %v402 = vld [vmem:[%s1 + $0x5e0] sm:$0xf]
    %v403 = vld [vmem:[%s1 + $0x5e4] sm:$0xf]
    %v404 = vld [vmem:[%s1 + $0x5e8] sm:$0xf]
    %v405 = vld [vmem:[%s1 + $0x5ec] sm:$0xf]
    %v406 = vld [vmem:[%s1 + $0x5f0] sm:$0xf]
    %v407 = vld [vmem:[%s1 + $0x5f4] sm:$0xf]
    %v408 = vld [vmem:[%s1 + $0x5f8] sm:$0xf]
    %v409 = vld [vmem:[%s1 + $0x5fc] sm:$0xf]
    %v410 = vld [vmem:[%s1 + $0x600] sm:$0xf]
    %v411 = vld [vmem:[%s1 + $0x604] sm:$0xf]
    %v412 = vld [vmem:[%s1 + $0x608] sm:$0xf]
    %v413 = vld [vmem:[%s1 + $0x60c] sm:$0xf]
    %v414 = vld [vmem:[%s1 + $0x610] sm:$0xf]
    %v415 = vld [vmem:[%s1 + $0x614] sm:$0xf]
    %v416 = vld [vmem:[%s1 + $0x618] sm:$0xf]
    %v417 = vld [vmem:[%s1 + $0x61c] sm:$0xf]
    %v418 = vld [vmem:[%s1 + $0x620] sm:$0xf]
    %v419 = vld [vmem:[%s1 + $0x624] sm:$0xf]
    %v420 = vld [vmem:[%s1 + $0x628] sm:$0xf]
    %v421 = vld [vmem:[%s1 + $0x62c] sm:$0xf]
    %v422 = vld [vmem:[%s1 + $0x630] sm:$0xf]
    %v423 = vld [vmem:[%s1 + $0x634] sm:$0xf]
    %v424 = vld [vmem:[%s1 + $0x638] sm:$0xf]
    %v425 = vld [vmem:[%s1 + $0x63c] sm:$0xf]
    %v426 = vld [vmem:[%s1 + $0x640] sm:$0xf]
    %v427 = vld [vmem:[%s1 + $0x644] sm:$0xf]
    %v428 = vld [vmem:[%s1 + $0x648] sm:$0xf]
    %v429 = vld [vmem:[%s1 + $0x64c] sm:$0xf]
    %v430 = vld [vmem:[%s1 + $0x650] sm:$0xf]
    %v431 = vld [vmem:[%s1 + $0x654] sm:$0xf]
    %v432 = vld [vmem:[%s1 + $0x658] sm:$0xf]
    %v433 = vld [vmem:[%s1 + $0x65c] sm:$0xf]
    %v434 = vld [vmem:[%s1 + $0x660] sm:$0xf]
    %v435 = vld [vmem:[%s1 + $0x664] sm:$0xf]
    %v436 = vld [vmem:[%s1 + $0x668] sm:$0xf]
    %v437 = vld [vmem:[%s1 + $0x66c] sm:$0xf]
    %v438 = vld [vmem:[%s1 + $0x670] sm:$0xf]
    %v439 = vld [vmem:[%s1 + $0x674] sm:$0xf]
    %v440 = vld [vmem:[%s1 + $0x678] sm:$0xf]
    %v441 = vld [vmem:[%s1 + $0x67c] sm:$0xf]
    %v442 = vld [vmem:[%s1 + $0x680] sm:$0xf]
    %v443 = vld [vmem:[%s1 + $0x684] sm:$0xf]
    %v444 = vld [vmem:[%s1 + $0x688] sm:$0xf]
    %v445 = vld [vmem:[%s1 + $0x68c] sm:$0xf]
    %v446 = vld [vmem:[%s1 + $0x690] sm:$0xf]
    %v447 = vld [vmem:[%s1 + $0x694] sm:$0xf]
    %v448 = vld [vmem:[%s1 + $0x698] sm:$0xf]
    %v449 = vld [vmem:[%s1 + $0x69c] sm:$0xf]
    %v450 = vld [vmem:[%s1 + $0x6a0] sm:$0xf]
    %v451 = vld [vmem:[%s1 + $0x6a4] sm:$0xf]
    %v452 = vld [vmem:[%s1 + $0x6a8] sm:$0xf]
    %v453 = vld [vmem:[%s1 + $0x6ac] sm:$0xf]
    %v454 = vld [vmem:[%s1 + $0x6b0] sm:$0xf]
    %v455 = vld [vmem:[%s1 + $0x6b4] sm:$0xf]
    %v456 = vld [vmem:[%s1 + $0x6b8] sm:$0xf]
    %v457 = vld [vmem:[%s1 + $0x6bc] sm:$0xf]
    %v458 = vld [vmem:[%s1 + $0x6c0] sm:$0xf]
    %v459 = vld [vmem:[%s1 + $0x6c4] sm:$0xf]
    %v460 = vld [vmem:[%s1 + $0x6c8] sm:$0xf]
    %v461 = vld [vmem:[%s1 + $0x6cc] sm:$0xf]
    %v462 = vld [vmem:[%s1 + $0x6d0] sm:$0xf]
    %v463 = vld [vmem:[%s1 + $0x6d4] sm:$0xf]
    %v464 = vld [vmem:[%s1 + $0x6d8] sm:$0xf]
    %v465 = vld [vmem:[%s1 + $0x6dc] sm:$0xf]
    %v466 = vld [vmem:[%s1 + $0x6e0] sm:$0xf]
    %v467 = vld [vmem:[%s1 + $0x6e4] sm:$0xf]
    %v468 = vld [vmem:[%s1 + $0x6e8] sm:$0xf]
    %v469 = vld [vmem:[%s1 + $0x6ec] sm:$0xf]
    %v470 = vld [vmem:[%s1 + $0x6f0] sm:$0xf]
    %v471 = vld [vmem:[%s1 + $0x6f4] sm:$0xf]
    %v472 = vld [vmem:[%s1 + $0x6f8] sm:$0xf]
    %v473 = vld [vmem:[%s1 + $0x6fc] sm:$0xf]
    %v474 = vld [vmem:[%s1 + $0x700] sm:$0xf]
    %v475 = vld [vmem:[%s1 + $0x704] sm:$0xf]
    %v476 = vld [vmem:[%s1 + $0x708] sm:$0xf]
    %v477 = vld [vmem:[%s1 + $0x70c] sm:$0xf]
    %v478 = vld [vmem:[%s1 + $0x710] sm:$0xf]
    %v479 = vld [vmem:[%s1 + $0x714] sm:$0xf]
    %v480 = vld [vmem:[%s1 + $0x718] sm:$0xf]
    %v481 = vld [vmem:[%s1 + $0x71c] sm:$0xf]
    %v482 = vld [vmem:[%s1 + $0x720] sm:$0xf]
    %v483 = vld [vmem:[%s1 + $0x724] sm:$0xf]
    %v484 = vld [vmem:[%s1 + $0x728] sm:$0xf]
    %v485 = vld [vmem:[%s1 + $0x72c] sm:$0xf]
    %v486 = vld [vmem:[%s1 + $0x730] sm:$0xf]
    %v487 = vld [vmem:[%s1 + $0x734] sm:$0xf]
    %v488 = vld [vmem:[%s1 + $0x738] sm:$0xf]
    %v489 = vld [vmem:[%s1 + $0x73c] sm:$0xf]
    %v490 = vld [vmem:[%s1 + $0x740] sm:$0xf]
    %v491 = vld [vmem:[%s1 + $0x744] sm:$0xf]
    %v492 = vld [vmem:[%s1 + $0x748] sm:$0xf]
    %v493 = vld [vmem:[%s1 + $0x74c] sm:$0xf]
    %v494 = vld [vmem:[%s1 + $0x750] sm:$0xf]
    %v495 = vld [vmem:[%s1 + $0x754] sm:$0xf]
    %v496 = vld [vmem:[%s1 + $0x758] sm:$0xf]
    %v497 = vld [vmem:[%s1 + $0x75c] sm:$0xf]
    %v498 = vld [vmem:[%s1 + $0x760] sm:$0xf]
    %v499 = vld [vmem:[%s1 + $0x764] sm:$0xf]
    %v500 = vld [vmem:[%s1 + $0x768] sm:$0xf]
    %v501 = vld [vmem:[%s1 + $0x76c] sm:$0xf]
    %v502 = vld [vmem:[%s1 + $0x770] sm:$0xf]
    %v503 = vld [vmem:[%s1 + $0x774] sm:$0xf]
    %v504 = vld [vmem:[%s1 + $0x778] sm:$0xf]
    %v505 = vld [vmem:[%s1 + $0x77c] sm:$0xf]
    %v506 = vld [vmem:[%s1 + $0x780] sm:$0xf]
    %v507 = vld [vmem:[%s1 + $0x784] sm:$0xf]
    %v508 = vld [vmem:[%s1 + $0x788] sm:$0xf]
    %v509 = vld [vmem:[%s1 + $0x78c] sm:$0xf]
    %v510 = vld [vmem:[%s1 + $0x790] sm:$0xf]
    %v511 = vld [vmem:[%s1 + $0x794] sm:$0xf]
    %v512 = vld [vmem:[%s1 + $0x798] sm:$0xf]
    %v513 = vld [vmem:[%s1 + $0x79c] sm:$0xf]
    %v514 = vld [vmem:[%s1 + $0x7a0] sm:$0xf]
    %v515 = vld [vmem:[%s1 + $0x7a4] sm:$0xf]
    %v516 = vld [vmem:[%s1 + $0x7a8] sm:$0xf]
    %v517 = vld [vmem:[%s1 + $0x7ac] sm:$0xf]
    %v518 = vld [vmem:[%s1 + $0x7b0] sm:$0xf]
    %v519 = vld [vmem:[%s1 + $0x7b4] sm:$0xf]
    %v520 = vld [vmem:[%s1 + $0x7b8] sm:$0xf]
    %v521 = vld [vmem:[%s1 + $0x7bc] sm:$0xf]
    %v522 = vld [vmem:[%s1 + $0x7c0] sm:$0xf]
    %v523 = vld [vmem:[%s1 + $0x7c4] sm:$0xf]
    %v524 = vld [vmem:[%s1 + $0x7c8] sm:$0xf]
    %v525 = vld [vmem:[%s1 + $0x7cc] sm:$0xf]
    %v526 = vld [vmem:[%s1 + $0x7d0] sm:$0xf]
    %v527 = vld [vmem:[%s1 + $0x7d4] sm:$0xf]
    %v528 = vld [vmem:[%s1 + $0x7d8] sm:$0xf]
    %v529 = vld [vmem:[%s1 + $0x7dc] sm:$0xf]
    %v530 = vld [vmem:[%s1 + $0x7e0] sm:$0xf]
    %v531 = vld [vmem:[%s1 + $0x7e4] sm:$0xf]
    %v532 = vld [vmem:[%s1 + $0x7e8] sm:$0xf]
    %v533 = vld [vmem:[%s1 + $0x7ec] sm:$0xf]
    %v534 = vld [vmem:[%s1 + $0x7f0] sm:$0xf]
    %v535 = vld [vmem:[%s1 + $0x7f4] sm:$0xf]
    %v536 = vld [vmem:[%s1 + $0x7f8] sm:$0xf]
    %v537 = vld [vmem:[%s1 + $0x7fc] sm:$0xf]
    %v538 = vld [vmem:[%s2] sm:$0xff]
    %v539 = vld [vmem:[%s2 + $0x8] sm:$0xff]
    %v540 = vld [vmem:[%s2 + $0x10] sm:$0xff]
    %v544 = vcombine.high %v538, %v538
    %v546 = vunpack.c.l.s4 1983009808
    %v547 = vunpack.c.0.s8 %v546
    %v548 = vlaneseq
    %v549 = vshrl.u32 %v548, 7
    %v550 = vsub.s32 %v547, %v549
    %v551 = vrot.slane %v538, %v550
    %v553 = vunpack.c.l.s4 1983009808
    %v554 = vunpack.c.0.s8 %v553
    %v555 = vlaneseq
    %v556 = vshrl.u32 %v555, 7
    %v557 = vsub.s32 %v554, %v556
    %v558 = vrot.slane %v544, %v557
    %v559 = vcombine.high %v551, %v551
    %v560 = vcombine.high %v558, %v558
    %v561 = vcombine.high %v539, %v539
    %v563 = vunpack.c.l.s4 1983009808
    %v564 = vunpack.c.0.s8 %v563
    %v565 = vlaneseq
    %v566 = vshrl.u32 %v565, 7
    %v567 = vsub.s32 %v564, %v566
    %v568 = vrot.slane %v539, %v567
    %v570 = vunpack.c.l.s4 1983009808
    %v571 = vunpack.c.0.s8 %v570
    %v572 = vlaneseq
    %v573 = vshrl.u32 %v572, 7
    %v574 = vsub.s32 %v571, %v573
    %v575 = vrot.slane %v561, %v574
    %v576 = vcombine.high %v568, %v568
    %v577 = vcombine.high %v575, %v575
    %v578 = vcombine.high %v540, %v540
    %v580 = vunpack.c.l.s4 1983009808
    %v581 = vunpack.c.0.s8 %v580
    %v582 = vlaneseq
    %v583 = vshrl.u32 %v582, 7
    %v584 = vsub.s32 %v581, %v583
    %v585 = vrot.slane %v540, %v584
    %v587 = vunpack.c.l.s4 1983009808
    %v588 = vunpack.c.0.s8 %v587
    %v589 = vlaneseq
    %v590 = vshrl.u32 %v589, 7
    %v591 = vsub.s32 %v588, %v590
    %v592 = vrot.slane %v578, %v591
    %v593 = vcombine.high %v585, %v585
    %v594 = vcombine.high %v592, %v592
    %v607 = vpack.c.bf16 %v551, %v551
    %v608 = vpack.c.bf16 %v559, %v559
    %v609 = vpack.c.bf16 %v558, %v558
    %v610 = vpack.c.bf16 %v560, %v560
    %v611 = vpack.c.bf16 %v568, %v568
    %v612 = vpack.c.bf16 %v576, %v576
    %v613 = vpack.c.bf16 %v575, %v575
    %v614 = vpack.c.bf16 %v577, %v577
    %v615 = vpack.c.bf16 %v585, %v585
    %v616 = vpack.c.bf16 %v593, %v593
    %v617 = vpack.c.bf16 %v592, %v592
    %v618 = vpack.c.bf16 %v594, %v594
    %v619 = vld [vmem:[%s3] sm:$0xf]
    %v620 = vld [vmem:[%s3 + $0x4] sm:$0xf]
    %v621 = vld [vmem:[%s3 + $0x8] sm:$0xf]
    %v622 = vld [vmem:[%s3 + $0xc] sm:$0xf]
    %v623 = vld [vmem:[%s3 + $0x10] sm:$0xf]
    %v624 = vld [vmem:[%s3 + $0x14] sm:$0xf]
    %v625 = vld [vmem:[%s3 + $0x18] sm:$0xf]
    %v626 = vld [vmem:[%s3 + $0x1c] sm:$0xf]
    %v627 = vld [vmem:[%s3 + $0x20] sm:$0xf]
    %v628 = vld [vmem:[%s3 + $0x24] sm:$0xf]
    %v629 = vld [vmem:[%s3 + $0x28] sm:$0xf]
    %v630 = vld [vmem:[%s3 + $0x2c] sm:$0xf]
    %v631 = vld [vmem:[%s3 + $0x30] sm:$0xf]
    %v632 = vld [vmem:[%s3 + $0x34] sm:$0xf]
    %v633 = vld [vmem:[%s3 + $0x38] sm:$0xf]
    %v634 = vld [vmem:[%s3 + $0x3c] sm:$0xf]
    %v635 = vld [vmem:[%s3 + $0x40] sm:$0xf]
    %v636 = vld [vmem:[%s3 + $0x44] sm:$0xf]
    %v637 = vld [vmem:[%s3 + $0x48] sm:$0xf]
    %v638 = vld [vmem:[%s3 + $0x4c] sm:$0xf]
    %v639 = vld [vmem:[%s3 + $0x50] sm:$0xf]
    %v640 = vld [vmem:[%s3 + $0x54] sm:$0xf]
    %v641 = vld [vmem:[%s3 + $0x58] sm:$0xf]
    %v642 = vld [vmem:[%s3 + $0x5c] sm:$0xf]
    %v643 = vld [vmem:[%s3 + $0x60] sm:$0xf]
    %v644 = vld [vmem:[%s3 + $0x64] sm:$0xf]
    %v645 = vld [vmem:[%s3 + $0x68] sm:$0xf]
    %v646 = vld [vmem:[%s3 + $0x6c] sm:$0xf]
    %v647 = vld [vmem:[%s3 + $0x70] sm:$0xf]
    %v648 = vld [vmem:[%s3 + $0x74] sm:$0xf]
    %v649 = vld [vmem:[%s3 + $0x78] sm:$0xf]
    %v650 = vld [vmem:[%s3 + $0x7c] sm:$0xf]
    %v651 = vld [vmem:[%s3 + $0x80] sm:$0xf]
    %v652 = vld [vmem:[%s3 + $0x84] sm:$0xf]
    %v653 = vld [vmem:[%s3 + $0x88] sm:$0xf]
    %v654 = vld [vmem:[%s3 + $0x8c] sm:$0xf]
    %v655 = vld [vmem:[%s3 + $0x90] sm:$0xf]
    %v656 = vld [vmem:[%s3 + $0x94] sm:$0xf]
    %v657 = vld [vmem:[%s3 + $0x98] sm:$0xf]
    %v658 = vld [vmem:[%s3 + $0x9c] sm:$0xf]
    %v659 = vld [vmem:[%s3 + $0xa0] sm:$0xf]
    %v660 = vld [vmem:[%s3 + $0xa4] sm:$0xf]
    %v661 = vld [vmem:[%s3 + $0xa8] sm:$0xf]
    %v662 = vld [vmem:[%s3 + $0xac] sm:$0xf]
    %v663 = vld [vmem:[%s3 + $0xb0] sm:$0xf]
    %v664 = vld [vmem:[%s3 + $0xb4] sm:$0xf]
    %v665 = vld [vmem:[%s3 + $0xb8] sm:$0xf]
    %v666 = vld [vmem:[%s3 + $0xbc] sm:$0xf]
    %v667 = vld [vmem:[%s3 + $0xc0] sm:$0xf]
    %v668 = vld [vmem:[%s3 + $0xc4] sm:$0xf]
    %v669 = vld [vmem:[%s3 + $0xc8] sm:$0xf]
    %v670 = vld [vmem:[%s3 + $0xcc] sm:$0xf]
    %v671 = vld [vmem:[%s3 + $0xd0] sm:$0xf]
    %v672 = vld [vmem:[%s3 + $0xd4] sm:$0xf]
    %v673 = vld [vmem:[%s3 + $0xd8] sm:$0xf]
    %v674 = vld [vmem:[%s3 + $0xdc] sm:$0xf]
    %v675 = vld [vmem:[%s3 + $0xe0] sm:$0xf]
    %v676 = vld [vmem:[%s3 + $0xe4] sm:$0xf]
    %v677 = vld [vmem:[%s3 + $0xe8] sm:$0xf]
    %v678 = vld [vmem:[%s3 + $0xec] sm:$0xf]
    %v679 = vld [vmem:[%s3 + $0xf0] sm:$0xf]
    %v680 = vld [vmem:[%s3 + $0xf4] sm:$0xf]
    %v681 = vld [vmem:[%s3 + $0xf8] sm:$0xf]
    %v682 = vld [vmem:[%s3 + $0xfc] sm:$0xf]
    %v683 = vld [vmem:[%s3 + $0x100] sm:$0xf]
    %v684 = vld [vmem:[%s3 + $0x104] sm:$0xf]
    %v685 = vld [vmem:[%s3 + $0x108] sm:$0xf]
    %v686 = vld [vmem:[%s3 + $0x10c] sm:$0xf]
    %v687 = vld [vmem:[%s3 + $0x110] sm:$0xf]
    %v688 = vld [vmem:[%s3 + $0x114] sm:$0xf]
    %v689 = vld [vmem:[%s3 + $0x118] sm:$0xf]
    %v690 = vld [vmem:[%s3 + $0x11c] sm:$0xf]
    %v691 = vld [vmem:[%s3 + $0x120] sm:$0xf]
    %v692 = vld [vmem:[%s3 + $0x124] sm:$0xf]
    %v693 = vld [vmem:[%s3 + $0x128] sm:$0xf]
    %v694 = vld [vmem:[%s3 + $0x12c] sm:$0xf]
    %v695 = vld [vmem:[%s3 + $0x130] sm:$0xf]
    %v696 = vld [vmem:[%s3 + $0x134] sm:$0xf]
    %v697 = vld [vmem:[%s3 + $0x138] sm:$0xf]
    %v698 = vld [vmem:[%s3 + $0x13c] sm:$0xf]
    %v699 = vld [vmem:[%s3 + $0x140] sm:$0xf]
    %v700 = vld [vmem:[%s3 + $0x144] sm:$0xf]
    %v701 = vld [vmem:[%s3 + $0x148] sm:$0xf]
    %v702 = vld [vmem:[%s3 + $0x14c] sm:$0xf]
    %v703 = vld [vmem:[%s3 + $0x150] sm:$0xf]
    %v704 = vld [vmem:[%s3 + $0x154] sm:$0xf]
    %v705 = vld [vmem:[%s3 + $0x158] sm:$0xf]
    %v706 = vld [vmem:[%s3 + $0x15c] sm:$0xf]
    %v707 = vld [vmem:[%s3 + $0x160] sm:$0xf]
    %v708 = vld [vmem:[%s3 + $0x164] sm:$0xf]
    %v709 = vld [vmem:[%s3 + $0x168] sm:$0xf]
    %v710 = vld [vmem:[%s3 + $0x16c] sm:$0xf]
    %v711 = vld [vmem:[%s3 + $0x170] sm:$0xf]
    %v712 = vld [vmem:[%s3 + $0x174] sm:$0xf]
    %v713 = vld [vmem:[%s3 + $0x178] sm:$0xf]
    %v714 = vld [vmem:[%s3 + $0x17c] sm:$0xf]
    %v715 = vld [vmem:[%s3 + $0x180] sm:$0xf]
    %v716 = vld [vmem:[%s3 + $0x184] sm:$0xf]
    %v717 = vld [vmem:[%s3 + $0x188] sm:$0xf]
    %v718 = vld [vmem:[%s3 + $0x18c] sm:$0xf]
    %v719 = vld [vmem:[%s3 + $0x190] sm:$0xf]
    %v720 = vld [vmem:[%s3 + $0x194] sm:$0xf]
    %v721 = vld [vmem:[%s3 + $0x198] sm:$0xf]
    %v722 = vld [vmem:[%s3 + $0x19c] sm:$0xf]
    %v723 = vld [vmem:[%s3 + $0x1a0] sm:$0xf]
    %v724 = vld [vmem:[%s3 + $0x1a4] sm:$0xf]
    %v725 = vld [vmem:[%s3 + $0x1a8] sm:$0xf]
    %v726 = vld [vmem:[%s3 + $0x1ac] sm:$0xf]
    %v727 = vld [vmem:[%s3 + $0x1b0] sm:$0xf]
    %v728 = vld [vmem:[%s3 + $0x1b4] sm:$0xf]
    %v729 = vld [vmem:[%s3 + $0x1b8] sm:$0xf]
    %v730 = vld [vmem:[%s3 + $0x1bc] sm:$0xf]
    %v731 = vld [vmem:[%s3 + $0x1c0] sm:$0xf]
    %v732 = vld [vmem:[%s3 + $0x1c4] sm:$0xf]
    %v733 = vld [vmem:[%s3 + $0x1c8] sm:$0xf]
    %v734 = vld [vmem:[%s3 + $0x1cc] sm:$0xf]
    %v735 = vld [vmem:[%s3 + $0x1d0] sm:$0xf]
    %v736 = vld [vmem:[%s3 + $0x1d4] sm:$0xf]
    %v737 = vld [vmem:[%s3 + $0x1d8] sm:$0xf]
    %v738 = vld [vmem:[%s3 + $0x1dc] sm:$0xf]
    %v739 = vld [vmem:[%s3 + $0x1e0] sm:$0xf]
    %v740 = vld [vmem:[%s3 + $0x1e4] sm:$0xf]
    %v741 = vld [vmem:[%s3 + $0x1e8] sm:$0xf]
    %v742 = vld [vmem:[%s3 + $0x1ec] sm:$0xf]
    %v743 = vld [vmem:[%s3 + $0x1f0] sm:$0xf]
    %v744 = vld [vmem:[%s3 + $0x1f4] sm:$0xf]
    %v745 = vld [vmem:[%s3 + $0x1f8] sm:$0xf]
    %v746 = vld [vmem:[%s3 + $0x1fc] sm:$0xf]
    %v747 = vld [vmem:[%s3 + $0x200] sm:$0xf]
    %v748 = vld [vmem:[%s3 + $0x204] sm:$0xf]
    %v749 = vld [vmem:[%s3 + $0x208] sm:$0xf]
    %v750 = vld [vmem:[%s3 + $0x20c] sm:$0xf]
    %v751 = vld [vmem:[%s3 + $0x210] sm:$0xf]
    %v752 = vld [vmem:[%s3 + $0x214] sm:$0xf]
    %v753 = vld [vmem:[%s3 + $0x218] sm:$0xf]
    %v754 = vld [vmem:[%s3 + $0x21c] sm:$0xf]
    %v755 = vld [vmem:[%s3 + $0x220] sm:$0xf]
    %v756 = vld [vmem:[%s3 + $0x224] sm:$0xf]
    %v757 = vld [vmem:[%s3 + $0x228] sm:$0xf]
    %v758 = vld [vmem:[%s3 + $0x22c] sm:$0xf]
    %v759 = vld [vmem:[%s3 + $0x230] sm:$0xf]
    %v760 = vld [vmem:[%s3 + $0x234] sm:$0xf]
    %v761 = vld [vmem:[%s3 + $0x238] sm:$0xf]
    %v762 = vld [vmem:[%s3 + $0x23c] sm:$0xf]
    %v763 = vld [vmem:[%s3 + $0x240] sm:$0xf]
    %v764 = vld [vmem:[%s3 + $0x244] sm:$0xf]
    %v765 = vld [vmem:[%s3 + $0x248] sm:$0xf]
    %v766 = vld [vmem:[%s3 + $0x24c] sm:$0xf]
    %v767 = vld [vmem:[%s3 + $0x250] sm:$0xf]
    %v768 = vld [vmem:[%s3 + $0x254] sm:$0xf]
    %v769 = vld [vmem:[%s3 + $0x258] sm:$0xf]
    %v770 = vld [vmem:[%s3 + $0x25c] sm:$0xf]
    %v771 = vld [vmem:[%s3 + $0x260] sm:$0xf]
    %v772 = vld [vmem:[%s3 + $0x264] sm:$0xf]
    %v773 = vld [vmem:[%s3 + $0x268] sm:$0xf]
    %v774 = vld [vmem:[%s3 + $0x26c] sm:$0xf]
    %v775 = vld [vmem:[%s3 + $0x270] sm:$0xf]
    %v776 = vld [vmem:[%s3 + $0x274] sm:$0xf]
    %v777 = vld [vmem:[%s3 + $0x278] sm:$0xf]
    %v778 = vld [vmem:[%s3 + $0x27c] sm:$0xf]
    %v779 = vld [vmem:[%s3 + $0x280] sm:$0xf]
    %v780 = vld [vmem:[%s3 + $0x284] sm:$0xf]
    %v781 = vld [vmem:[%s3 + $0x288] sm:$0xf]
    %v782 = vld [vmem:[%s3 + $0x28c] sm:$0xf]
    %v783 = vld [vmem:[%s3 + $0x290] sm:$0xf]
    %v784 = vld [vmem:[%s3 + $0x294] sm:$0xf]
    %v785 = vld [vmem:[%s3 + $0x298] sm:$0xf]
    %v786 = vld [vmem:[%s3 + $0x29c] sm:$0xf]
    %v787 = vld [vmem:[%s3 + $0x2a0] sm:$0xf]
    %v788 = vld [vmem:[%s3 + $0x2a4] sm:$0xf]
    %v789 = vld [vmem:[%s3 + $0x2a8] sm:$0xf]
    %v790 = vld [vmem:[%s3 + $0x2ac] sm:$0xf]
    %v791 = vld [vmem:[%s3 + $0x2b0] sm:$0xf]
    %v792 = vld [vmem:[%s3 + $0x2b4] sm:$0xf]
    %v793 = vld [vmem:[%s3 + $0x2b8] sm:$0xf]
    %v794 = vld [vmem:[%s3 + $0x2bc] sm:$0xf]
    %v795 = vld [vmem:[%s3 + $0x2c0] sm:$0xf]
    %v796 = vld [vmem:[%s3 + $0x2c4] sm:$0xf]
    %v797 = vld [vmem:[%s3 + $0x2c8] sm:$0xf]
    %v798 = vld [vmem:[%s3 + $0x2cc] sm:$0xf]
    %v799 = vld [vmem:[%s3 + $0x2d0] sm:$0xf]
    %v800 = vld [vmem:[%s3 + $0x2d4] sm:$0xf]
    %v801 = vld [vmem:[%s3 + $0x2d8] sm:$0xf]
    %v802 = vld [vmem:[%s3 + $0x2dc] sm:$0xf]
    %v803 = vld [vmem:[%s3 + $0x2e0] sm:$0xf]
    %v804 = vld [vmem:[%s3 + $0x2e4] sm:$0xf]
    %v805 = vld [vmem:[%s3 + $0x2e8] sm:$0xf]
    %v806 = vld [vmem:[%s3 + $0x2ec] sm:$0x3]
    %v995 = vunpack.c.l.b16 %v619
    %v996 = vunpack.c.l.b16 %v620
    %v997 = vunpack.c.l.b16 %v621
    %v998 = vunpack.c.l.b16 %v622
    %v999 = vunpack.c.l.b16 %v623
    %v1000 = vunpack.c.l.b16 %v624
    %v1001 = vunpack.c.l.b16 %v625
    %v1002 = vunpack.c.l.b16 %v626
    %v1003 = vunpack.c.l.b16 %v627
    %v1004 = vunpack.c.l.b16 %v628
    %v1005 = vunpack.c.l.b16 %v629
    %v1006 = vunpack.c.l.b16 %v630
    %v1007 = vunpack.c.l.b16 %v631
    %v1008 = vunpack.c.l.b16 %v632
    %v1009 = vunpack.c.l.b16 %v633
    %v1010 = vunpack.c.l.b16 %v634
    %v1011 = vunpack.c.l.b16 %v635
    %v1012 = vunpack.c.l.b16 %v636
    %v1013 = vunpack.c.l.b16 %v637
    %v1014 = vunpack.c.l.b16 %v638
    %v1015 = vunpack.c.l.b16 %v639
    %v1016 = vunpack.c.l.b16 %v640
    %v1017 = vunpack.c.l.b16 %v641
    %v1018 = vunpack.c.l.b16 %v642
    %v1019 = vunpack.c.l.b16 %v643
    %v1020 = vunpack.c.l.b16 %v644
    %v1021 = vunpack.c.l.b16 %v645
    %v1022 = vunpack.c.l.b16 %v646
    %v1023 = vunpack.c.l.b16 %v647
    %v1024 = vunpack.c.l.b16 %v648
    %v1025 = vunpack.c.l.b16 %v649
    %v1026 = vunpack.c.l.b16 %v650
    %v1027 = vunpack.c.l.b16 %v651
    %v1028 = vunpack.c.l.b16 %v652
    %v1029 = vunpack.c.l.b16 %v653
    %v1030 = vunpack.c.l.b16 %v654
    %v1031 = vunpack.c.l.b16 %v655
    %v1032 = vunpack.c.l.b16 %v656
    %v1033 = vunpack.c.l.b16 %v657
    %v1034 = vunpack.c.l.b16 %v658
    %v1035 = vunpack.c.l.b16 %v659
    %v1036 = vunpack.c.l.b16 %v660
    %v1037 = vunpack.c.l.b16 %v661
    %v1038 = vunpack.c.l.b16 %v662
    %v1039 = vunpack.c.l.b16 %v663
    %v1040 = vunpack.c.l.b16 %v664
    %v1041 = vunpack.c.l.b16 %v665
    %v1042 = vunpack.c.l.b16 %v666
    %v1043 = vunpack.c.l.b16 %v667
    %v1044 = vunpack.c.l.b16 %v668
    %v1045 = vunpack.c.l.b16 %v669
    %v1046 = vunpack.c.l.b16 %v670
    %v1047 = vunpack.c.l.b16 %v671
    %v1048 = vunpack.c.l.b16 %v672
    %v1049 = vunpack.c.l.b16 %v673
    %v1050 = vunpack.c.l.b16 %v674
    %v1051 = vunpack.c.l.b16 %v675
    %v1052 = vunpack.c.l.b16 %v676
    %v1053 = vunpack.c.l.b16 %v677
    %v1054 = vunpack.c.l.b16 %v678
    %v1055 = vunpack.c.l.b16 %v679
    %v1056 = vunpack.c.l.b16 %v680
    %v1057 = vunpack.c.l.b16 %v681
    %v1058 = vunpack.c.l.b16 %v682
    %v1059 = vunpack.c.l.b16 %v683
    %v1060 = vunpack.c.l.b16 %v684
    %v1061 = vunpack.c.l.b16 %v685
    %v1062 = vunpack.c.l.b16 %v686
    %v1063 = vunpack.c.l.b16 %v687
    %v1064 = vunpack.c.l.b16 %v688
    %v1065 = vunpack.c.l.b16 %v689
    %v1066 = vunpack.c.l.b16 %v690
    %v1067 = vunpack.c.l.b16 %v691
    %v1068 = vunpack.c.l.b16 %v692
    %v1069 = vunpack.c.l.b16 %v693
    %v1070 = vunpack.c.l.b16 %v694
    %v1071 = vunpack.c.l.b16 %v695
    %v1072 = vunpack.c.l.b16 %v696
    %v1073 = vunpack.c.l.b16 %v697
    %v1074 = vunpack.c.l.b16 %v698
    %v1075 = vunpack.c.l.b16 %v699
    %v1076 = vunpack.c.l.b16 %v700
    %v1077 = vunpack.c.l.b16 %v701
    %v1078 = vunpack.c.l.b16 %v702
    %v1079 = vunpack.c.l.b16 %v703
    %v1080 = vunpack.c.l.b16 %v704
    %v1081 = vunpack.c.l.b16 %v705
    %v1082 = vunpack.c.l.b16 %v706
    %v1083 = vunpack.c.l.b16 %v707
    %v1084 = vunpack.c.l.b16 %v708
    %v1085 = vunpack.c.l.b16 %v709
    %v1086 = vunpack.c.l.b16 %v710
    %v1087 = vunpack.c.l.b16 %v711
    %v1088 = vunpack.c.l.b16 %v712
    %v1089 = vunpack.c.l.b16 %v713
    %v1090 = vunpack.c.l.b16 %v714
    %v1091 = vunpack.c.l.b16 %v715
    %v1092 = vunpack.c.l.b16 %v716
    %v1093 = vunpack.c.l.b16 %v717
    %v1094 = vunpack.c.l.b16 %v718
    %v1095 = vunpack.c.l.b16 %v719
    %v1096 = vunpack.c.l.b16 %v720
    %v1097 = vunpack.c.l.b16 %v721
    %v1098 = vunpack.c.l.b16 %v722
    %v1099 = vunpack.c.l.b16 %v723
    %v1100 = vunpack.c.l.b16 %v724
    %v1101 = vunpack.c.l.b16 %v725
    %v1102 = vunpack.c.l.b16 %v726
    %v1103 = vunpack.c.l.b16 %v727
    %v1104 = vunpack.c.l.b16 %v728
    %v1105 = vunpack.c.l.b16 %v729
    %v1106 = vunpack.c.l.b16 %v730
    %v1107 = vunpack.c.l.b16 %v731
    %v1108 = vunpack.c.l.b16 %v732
    %v1109 = vunpack.c.l.b16 %v733
    %v1110 = vunpack.c.l.b16 %v734
    %v1111 = vunpack.c.l.b16 %v735
    %v1112 = vunpack.c.l.b16 %v736
    %v1113 = vunpack.c.l.b16 %v737
    %v1114 = vunpack.c.l.b16 %v738
    %v1115 = vunpack.c.l.b16 %v739
    %v1116 = vunpack.c.l.b16 %v740
    %v1117 = vunpack.c.l.b16 %v741
    %v1118 = vunpack.c.l.b16 %v742
    %v1119 = vunpack.c.l.b16 %v743
    %v1120 = vunpack.c.l.b16 %v744
    %v1121 = vunpack.c.l.b16 %v745
    %v1122 = vunpack.c.l.b16 %v746
    %v1123 = vunpack.c.l.b16 %v747
    %v1124 = vunpack.c.l.b16 %v748
    %v1125 = vunpack.c.l.b16 %v749
    %v1126 = vunpack.c.l.b16 %v750
    %v1127 = vunpack.c.l.b16 %v751
    %v1128 = vunpack.c.l.b16 %v752
    %v1129 = vunpack.c.l.b16 %v753
    %v1130 = vunpack.c.l.b16 %v754
    %v1131 = vunpack.c.l.b16 %v755
    %v1132 = vunpack.c.l.b16 %v756
    %v1133 = vunpack.c.l.b16 %v757
    %v1134 = vunpack.c.l.b16 %v758
    %v1135 = vunpack.c.l.b16 %v759
    %v1136 = vunpack.c.l.b16 %v760
    %v1137 = vunpack.c.l.b16 %v761
    %v1138 = vunpack.c.l.b16 %v762
    %v1139 = vunpack.c.l.b16 %v763
    %v1140 = vunpack.c.l.b16 %v764
    %v1141 = vunpack.c.l.b16 %v765
    %v1142 = vunpack.c.l.b16 %v766
    %v1143 = vunpack.c.l.b16 %v767
    %v1144 = vunpack.c.l.b16 %v768
    %v1145 = vunpack.c.l.b16 %v769
    %v1146 = vunpack.c.l.b16 %v770
    %v1147 = vunpack.c.l.b16 %v771
    %v1148 = vunpack.c.l.b16 %v772
    %v1149 = vunpack.c.l.b16 %v773
    %v1150 = vunpack.c.l.b16 %v774
    %v1151 = vunpack.c.l.b16 %v775
    %v1152 = vunpack.c.l.b16 %v776
    %v1153 = vunpack.c.l.b16 %v777
    %v1154 = vunpack.c.l.b16 %v778
    %v1155 = vunpack.c.l.b16 %v779
    %v1156 = vunpack.c.l.b16 %v780
    %v1157 = vunpack.c.l.b16 %v781
    %v1158 = vunpack.c.l.b16 %v782
    %v1159 = vunpack.c.l.b16 %v783
    %v1160 = vunpack.c.l.b16 %v784
    %v1161 = vunpack.c.l.b16 %v785
    %v1162 = vunpack.c.l.b16 %v786
    %v1163 = vunpack.c.l.b16 %v787
    %v1164 = vunpack.c.l.b16 %v788
    %v1165 = vunpack.c.l.b16 %v789
    %v1166 = vunpack.c.l.b16 %v790
    %v1167 = vunpack.c.l.b16 %v791
    %v1168 = vunpack.c.l.b16 %v792
    %v1169 = vunpack.c.l.b16 %v793
    %v1170 = vunpack.c.l.b16 %v794
    %v1171 = vunpack.c.l.b16 %v795
    %v1172 = vunpack.c.l.b16 %v796
    %v1173 = vunpack.c.l.b16 %v797
    %v1174 = vunpack.c.l.b16 %v798
    %v1175 = vunpack.c.l.b16 %v799
    %v1176 = vunpack.c.l.b16 %v800
    %v1177 = vunpack.c.l.b16 %v801
    %v1178 = vunpack.c.l.b16 %v802
    %v1179 = vunpack.c.l.b16 %v803
    %v1180 = vunpack.c.l.b16 %v804
    %v1181 = vunpack.c.l.b16 %v805
    %v1182 = vunpack.c.l.b16 %v806
    %v1183 = vpack.c.b16 %v996, %v995
    %v1184 = vpack.c.b16 %v998, %v997
    %v1185 = vpack.c.b16 %v1000, %v999
    %v1186 = vpack.c.b16 %v1002, %v1001
    %v1187 = vpack.c.b16 %v1004, %v1003
    %v1188 = vpack.c.b16 %v1006, %v1005
    %v1189 = vpack.c.b16 %v1008, %v1007
    %v1190 = vpack.c.b16 %v1010, %v1009
    %v1191 = vpack.c.b16 %v1012, %v1011
    %v1192 = vpack.c.b16 %v1014, %v1013
    %v1193 = vpack.c.b16 %v1016, %v1015
    %v1194 = vpack.c.b16 %v1018, %v1017
    %v1195 = vpack.c.b16 %v1020, %v1019
    %v1196 = vpack.c.b16 %v1022, %v1021
    %v1197 = vpack.c.b16 %v1024, %v1023
    %v1198 = vpack.c.b16 %v1026, %v1025
    %v1199 = vpack.c.b16 %v1028, %v1027
    %v1200 = vpack.c.b16 %v1030, %v1029
    %v1201 = vpack.c.b16 %v1032, %v1031
    %v1202 = vpack.c.b16 %v1034, %v1033
    %v1203 = vpack.c.b16 %v1036, %v1035
    %v1204 = vpack.c.b16 %v1038, %v1037
    %v1205 = vpack.c.b16 %v1040, %v1039
    %v1206 = vpack.c.b16 %v1042, %v1041
    %v1207 = vpack.c.b16 %v1044, %v1043
    %v1208 = vpack.c.b16 %v1046, %v1045
    %v1209 = vpack.c.b16 %v1048, %v1047
    %v1210 = vpack.c.b16 %v1050, %v1049
    %v1211 = vpack.c.b16 %v1052, %v1051
    %v1212 = vpack.c.b16 %v1054, %v1053
    %v1213 = vpack.c.b16 %v1056, %v1055
    %v1214 = vpack.c.b16 %v1058, %v1057
    %v1215 = vpack.c.b16 %v1060, %v1059
    %v1216 = vpack.c.b16 %v1062, %v1061
    %v1217 = vpack.c.b16 %v1064, %v1063
    %v1218 = vpack.c.b16 %v1066, %v1065
    %v1219 = vpack.c.b16 %v1068, %v1067
    %v1220 = vpack.c.b16 %v1070, %v1069
    %v1221 = vpack.c.b16 %v1072, %v1071
    %v1222 = vpack.c.b16 %v1074, %v1073
    %v1223 = vpack.c.b16 %v1076, %v1075
    %v1224 = vpack.c.b16 %v1078, %v1077
    %v1225 = vpack.c.b16 %v1080, %v1079
    %v1226 = vpack.c.b16 %v1082, %v1081
    %v1227 = vpack.c.b16 %v1084, %v1083
    %v1228 = vpack.c.b16 %v1086, %v1085
    %v1229 = vpack.c.b16 %v1088, %v1087
    %v1230 = vpack.c.b16 %v1090, %v1089
    %v1231 = vpack.c.b16 %v1092, %v1091
    %v1232 = vpack.c.b16 %v1094, %v1093
    %v1233 = vpack.c.b16 %v1096, %v1095
    %v1234 = vpack.c.b16 %v1098, %v1097
    %v1235 = vpack.c.b16 %v1100, %v1099
    %v1236 = vpack.c.b16 %v1102, %v1101
    %v1237 = vpack.c.b16 %v1104, %v1103
    %v1238 = vpack.c.b16 %v1106, %v1105
    %v1239 = vpack.c.b16 %v1108, %v1107
    %v1240 = vpack.c.b16 %v1110, %v1109
    %v1241 = vpack.c.b16 %v1112, %v1111
    %v1242 = vpack.c.b16 %v1114, %v1113
    %v1243 = vpack.c.b16 %v1116, %v1115
    %v1244 = vpack.c.b16 %v1118, %v1117
    %v1245 = vpack.c.b16 %v1120, %v1119
    %v1246 = vpack.c.b16 %v1122, %v1121
    %v1247 = vpack.c.b16 %v1124, %v1123
    %v1248 = vpack.c.b16 %v1126, %v1125
    %v1249 = vpack.c.b16 %v1128, %v1127
    %v1250 = vpack.c.b16 %v1130, %v1129
    %v1251 = vpack.c.b16 %v1132, %v1131
    %v1252 = vpack.c.b16 %v1134, %v1133
    %v1253 = vpack.c.b16 %v1136, %v1135
    %v1254 = vpack.c.b16 %v1138, %v1137
    %v1255 = vpack.c.b16 %v1140, %v1139
    %v1256 = vpack.c.b16 %v1142, %v1141
    %v1257 = vpack.c.b16 %v1144, %v1143
    %v1258 = vpack.c.b16 %v1146, %v1145
    %v1259 = vpack.c.b16 %v1148, %v1147
    %v1260 = vpack.c.b16 %v1150, %v1149
    %v1261 = vpack.c.b16 %v1152, %v1151
    %v1262 = vpack.c.b16 %v1154, %v1153
    %v1263 = vpack.c.b16 %v1156, %v1155
    %v1264 = vpack.c.b16 %v1158, %v1157
    %v1265 = vpack.c.b16 %v1160, %v1159
    %v1266 = vpack.c.b16 %v1162, %v1161
    %v1267 = vpack.c.b16 %v1164, %v1163
    %v1268 = vpack.c.b16 %v1166, %v1165
    %v1269 = vpack.c.b16 %v1168, %v1167
    %v1270 = vpack.c.b16 %v1170, %v1169
    %v1271 = vpack.c.b16 %v1172, %v1171
    %v1272 = vpack.c.b16 %v1174, %v1173
    %v1273 = vpack.c.b16 %v1176, %v1175
    %v1274 = vpack.c.b16 %v1178, %v1177
    %v1275 = vpack.c.b16 %v1180, %v1179
    %v1276 = vpack.c.b16 %v1182, %v1181
    %vm1370 = vcmask 752640
    %v1372 = vsel %vm1370, %v618, 0
    %vm1374 = vcmask 1045504
    %v1376 = vsel %vm1374, %v1276, 0
    %1378 = vmatprep.subr.bf16.mxu0 0
    %1379 = vmatpush1.bf16.msra.mxu0 %v1183
    %1380 = vmatprep.subr.bf16.mxu0 0
    %1381 = vmatpush1.bf16.msra.mxu0 %v1184
    %1382 = vmatprep.subr.bf16.mxu0 0
    %1383 = vmatpush1.bf16.msra.mxu0 %v1185
    %1384 = vmatprep.subr.bf16.mxu0 0
    %1385 = vmatpush1.bf16.msra.mxu0 %v1186
    %1386 = vmatprep.subr.bf16.mxu0 0
    %1387 = vmatpush1.bf16.msra.mxu0 %v1187
    %1388 = vmatprep.subr.bf16.mxu0 0
    %1389 = vmatpush1.bf16.msra.mxu0 %v1188
    %1390 = vmatprep.subr.bf16.mxu0 0
    %1391 = vmatpush1.bf16.msra.mxu0 %v1189
    %1392 = vmatprep.subr.bf16.mxu0 0
    %1393 = vmatpush1.bf16.msra.mxu0 %v1190
    %1394 = vmatprep.subr.bf16.mxu0 0
    %1395 = vmatpush1.bf16.msra.mxu0 %v1191
    %1396 = vmatprep.subr.bf16.mxu0 0
    %1397 = vmatpush1.bf16.msra.mxu0 %v1192
    %1398 = vmatprep.subr.bf16.mxu0 0
    %1399 = vmatpush1.bf16.msra.mxu0 %v1193
    %1400 = vmatprep.subr.bf16.mxu0 0
    %1401 = vmatpush1.bf16.msra.mxu0 %v1194
    %1402 = vmatprep.subr.bf16.mxu0 0
    %1403 = vmatpush1.bf16.msra.mxu0 %v1195
    %1404 = vmatprep.subr.bf16.mxu0 0
    %1405 = vmatpush1.bf16.msra.mxu0 %v1196
    %1406 = vmatprep.subr.bf16.mxu0 0
    %1407 = vmatpush1.bf16.msra.mxu0 %v1197
    %1408 = vmatprep.subr.bf16.mxu0 0
    %1409 = vmatpush1.bf16.msra.mxu0 %v1198
    %1410 = vmatprep.mubr.bf16.mxu0 %v608
    %1411 = vmatmul.mubr.bf16.gmra.mrb[0].mxu0 %v607
    %v1412 = vpop.f32.mrb[0].mxu0
    %v1413 = vadd.f32 0.0, %v1412
    %v1414 = vpop.f32.mrb[0].mxu0
    %v1415 = vpop.f32.mrb[0].mxu0
    %v1416 = vpop.f32.mrb[0].mxu0
    %1417 = vdwg.mxu0
    %1418 = vmatprep.subr.bf16.mxu0 0
    %1419 = vmatpush1.bf16.msra.mxu0 %v1199
    %1420 = vmatprep.subr.bf16.mxu0 0
    %1421 = vmatpush1.bf16.msra.mxu0 %v1200
    %1422 = vmatprep.subr.bf16.mxu0 0
    %1423 = vmatpush1.bf16.msra.mxu0 %v1201
    %1424 = vmatprep.subr.bf16.mxu0 0
    %1425 = vmatpush1.bf16.msra.mxu0 %v1202
    %1426 = vmatprep.subr.bf16.mxu0 0
    %1427 = vmatpush1.bf16.msra.mxu0 %v1203
    %1428 = vmatprep.subr.bf16.mxu0 0
    %1429 = vmatpush1.bf16.msra.mxu0 %v1204
    %1430 = vmatprep.subr.bf16.mxu0 0
    %1431 = vmatpush1.bf16.msra.mxu0 %v1205
    %1432 = vmatprep.subr.bf16.mxu0 0
    %1433 = vmatpush1.bf16.msra.mxu0 %v1206
    %1434 = vmatprep.subr.bf16.mxu0 0
    %1435 = vmatpush1.bf16.msra.mxu0 %v1207
    %1436 = vmatprep.subr.bf16.mxu0 0
    %1437 = vmatpush1.bf16.msra.mxu0 %v1208
    %1438 = vmatprep.subr.bf16.mxu0 0
    %1439 = vmatpush1.bf16.msra.mxu0 %v1209
    %1440 = vmatprep.subr.bf16.mxu0 0
    %1441 = vmatpush1.bf16.msra.mxu0 %v1210
    %1442 = vmatprep.subr.bf16.mxu0 0
    %1443 = vmatpush1.bf16.msra.mxu0 %v1211
    %1444 = vmatprep.subr.bf16.mxu0 0
    %1445 = vmatpush1.bf16.msra.mxu0 %v1212
    %1446 = vmatprep.subr.bf16.mxu0 0
    %1447 = vmatpush1.bf16.msra.mxu0 %v1213
    %1448 = vmatprep.subr.bf16.mxu0 0
    %1449 = vmatpush1.bf16.msra.mxu0 %v1214
    %1450 = vmatprep.mubr.bf16.mxu0 %v610
    %1451 = vmatmul.mubr.bf16.gmra.mrb[0].mxu0 %v609
    %v1452 = vpop.f32.mrb[0].mxu0
    %v1453 = vadd.f32 %v1413, %v1452
    %v1454 = vpop.f32.mrb[0].mxu0
    %v1455 = vpop.f32.mrb[0].mxu0
    %v1456 = vpop.f32.mrb[0].mxu0
    %1457 = vdwg.mxu0
    %1458 = vmatprep.subr.bf16.mxu0 0
    %1459 = vmatpush1.bf16.msra.mxu0 %v1215
    %1460 = vmatprep.subr.bf16.mxu0 0
    %1461 = vmatpush1.bf16.msra.mxu0 %v1216
    %1462 = vmatprep.subr.bf16.mxu0 0
    %1463 = vmatpush1.bf16.msra.mxu0 %v1217
    %1464 = vmatprep.subr.bf16.mxu0 0
    %1465 = vmatpush1.bf16.msra.mxu0 %v1218
    %1466 = vmatprep.subr.bf16.mxu0 0
    %1467 = vmatpush1.bf16.msra.mxu0 %v1219
    %1468 = vmatprep.subr.bf16.mxu0 0
    %1469 = vmatpush1.bf16.msra.mxu0 %v1220
    %1470 = vmatprep.subr.bf16.mxu0 0
    %1471 = vmatpush1.bf16.msra.mxu0 %v1221
    %1472 = vmatprep.subr.bf16.mxu0 0
    %1473 = vmatpush1.bf16.msra.mxu0 %v1222
    %1474 = vmatprep.subr.bf16.mxu0 0
    %1475 = vmatpush1.bf16.msra.mxu0 %v1223
    %1476 = vmatprep.subr.bf16.mxu0 0
    %1477 = vmatpush1.bf16.msra.mxu0 %v1224
    %1478 = vmatprep.subr.bf16.mxu0 0
    %1479 = vmatpush1.bf16.msra.mxu0 %v1225
    %1480 = vmatprep.subr.bf16.mxu0 0
    %1481 = vmatpush1.bf16.msra.mxu0 %v1226
    %1482 = vmatprep.subr.bf16.mxu0 0
    %1483 = vmatpush1.bf16.msra.mxu0 %v1227
    %1484 = vmatprep.subr.bf16.mxu0 0
    %1485 = vmatpush1.bf16.msra.mxu0 %v1228
    %1486 = vmatprep.subr.bf16.mxu0 0
    %1487 = vmatpush1.bf16.msra.mxu0 %v1229
    %1488 = vmatprep.subr.bf16.mxu0 0
    %1489 = vmatpush1.bf16.msra.mxu0 %v1230
    %1490 = vmatprep.mubr.bf16.mxu0 %v612
    %1491 = vmatmul.mubr.bf16.gmra.mrb[0].mxu0 %v611
    %v1492 = vpop.f32.mrb[0].mxu0
    %v1493 = vadd.f32 %v1453, %v1492
    %v1494 = vpop.f32.mrb[0].mxu0
    %v1495 = vpop.f32.mrb[0].mxu0
    %v1496 = vpop.f32.mrb[0].mxu0
    %1497 = vdwg.mxu0
    %1498 = vmatprep.subr.bf16.mxu0 0
    %1499 = vmatpush1.bf16.msra.mxu0 %v1231
    %1500 = vmatprep.subr.bf16.mxu0 0
    %1501 = vmatpush1.bf16.msra.mxu0 %v1232
    %1502 = vmatprep.subr.bf16.mxu0 0
    %1503 = vmatpush1.bf16.msra.mxu0 %v1233
    %1504 = vmatprep.subr.bf16.mxu0 0
    %1505 = vmatpush1.bf16.msra.mxu0 %v1234
    %1506 = vmatprep.subr.bf16.mxu0 0
    %1507 = vmatpush1.bf16.msra.mxu0 %v1235
    %1508 = vmatprep.subr.bf16.mxu0 0
    %1509 = vmatpush1.bf16.msra.mxu0 %v1236
    %1510 = vmatprep.subr.bf16.mxu0 0
    %1511 = vmatpush1.bf16.msra.mxu0 %v1237
    %1512 = vmatprep.subr.bf16.mxu0 0
    %1513 = vmatpush1.bf16.msra.mxu0 %v1238
    %1514 = vmatprep.subr.bf16.mxu0 0
    %1515 = vmatpush1.bf16.msra.mxu0 %v1239
    %1516 = vmatprep.subr.bf16.mxu0 0
    %1517 = vmatpush1.bf16.msra.mxu0 %v1240
    %1518 = vmatprep.subr.bf16.mxu0 0
    %1519 = vmatpush1.bf16.msra.mxu0 %v1241
    %1520 = vmatprep.subr.bf16.mxu0 0
    %1521 = vmatpush1.bf16.msra.mxu0 %v1242
    %1522 = vmatprep.subr.bf16.mxu0 0
    %1523 = vmatpush1.bf16.msra.mxu0 %v1243
    %1524 = vmatprep.subr.bf16.mxu0 0
    %1525 = vmatpush1.bf16.msra.mxu0 %v1244
    %1526 = vmatprep.subr.bf16.mxu0 0
    %1527 = vmatpush1.bf16.msra.mxu0 %v1245
    %1528 = vmatprep.subr.bf16.mxu0 0
    %1529 = vmatpush1.bf16.msra.mxu0 %v1246
    %1530 = vmatprep.mubr.bf16.mxu0 %v614
    %1531 = vmatmul.mubr.bf16.gmra.mrb[0].mxu0 %v613
    %v1532 = vpop.f32.mrb[0].mxu0
    %v1533 = vadd.f32 %v1493, %v1532
    %v1534 = vpop.f32.mrb[0].mxu0
    %v1535 = vpop.f32.mrb[0].mxu0
    %v1536 = vpop.f32.mrb[0].mxu0
    %1537 = vdwg.mxu0
    %1538 = vmatprep.subr.bf16.mxu0 0
    %1539 = vmatpush1.bf16.msra.mxu0 %v1247
    %1540 = vmatprep.subr.bf16.mxu0 0
    %1541 = vmatpush1.bf16.msra.mxu0 %v1248
    %1542 = vmatprep.subr.bf16.mxu0 0
    %1543 = vmatpush1.bf16.msra.mxu0 %v1249
    %1544 = vmatprep.subr.bf16.mxu0 0
    %1545 = vmatpush1.bf16.msra.mxu0 %v1250
    %1546 = vmatprep.subr.bf16.mxu0 0
    %1547 = vmatpush1.bf16.msra.mxu0 %v1251
    %1548 = vmatprep.subr.bf16.mxu0 0
    %1549 = vmatpush1.bf16.msra.mxu0 %v1252
    %1550 = vmatprep.subr.bf16.mxu0 0
    %1551 = vmatpush1.bf16.msra.mxu0 %v1253
    %1552 = vmatprep.subr.bf16.mxu0 0
    %1553 = vmatpush1.bf16.msra.mxu0 %v1254
    %1554 = vmatprep.subr.bf16.mxu0 0
    %1555 = vmatpush1.bf16.msra.mxu0 %v1255
    %1556 = vmatprep.subr.bf16.mxu0 0
    %1557 = vmatpush1.bf16.msra.mxu0 %v1256
    %1558 = vmatprep.subr.bf16.mxu0 0
    %1559 = vmatpush1.bf16.msra.mxu0 %v1257
    %1560 = vmatprep.subr.bf16.mxu0 0
    %1561 = vmatpush1.bf16.msra.mxu0 %v1258
    %1562 = vmatprep.subr.bf16.mxu0 0
    %1563 = vmatpush1.bf16.msra.mxu0 %v1259
    %1564 = vmatprep.subr.bf16.mxu0 0
    %1565 = vmatpush1.bf16.msra.mxu0 %v1260
    %1566 = vmatprep.subr.bf16.mxu0 0
    %1567 = vmatpush1.bf16.msra.mxu0 %v1261
    %1568 = vmatprep.subr.bf16.mxu0 0
    %1569 = vmatpush1.bf16.msra.mxu0 %v1262
    %1570 = vmatprep.mubr.bf16.mxu0 %v616
    %1571 = vmatmul.mubr.bf16.gmra.mrb[0].mxu0 %v615
    %v1572 = vpop.f32.mrb[0].mxu0
    %v1573 = vadd.f32 %v1533, %v1572
    %v1574 = vpop.f32.mrb[0].mxu0
    %v1575 = vpop.f32.mrb[0].mxu0
    %v1576 = vpop.f32.mrb[0].mxu0
    %1577 = vdwg.mxu0
    %1578 = vmatprep.subr.bf16.mxu0 0
    %1579 = vmatpush1.bf16.msra.mxu0 %v1263
    %1580 = vmatprep.subr.bf16.mxu0 0
    %1581 = vmatpush1.bf16.msra.mxu0 %v1264
    %1582 = vmatprep.subr.bf16.mxu0 0
    %1583 = vmatpush1.bf16.msra.mxu0 %v1265
    %1584 = vmatprep.subr.bf16.mxu0 0
    %1585 = vmatpush1.bf16.msra.mxu0 %v1266
    %1586 = vmatprep.subr.bf16.mxu0 0
    %1587 = vmatpush1.bf16.msra.mxu0 %v1267
    %1588 = vmatprep.subr.bf16.mxu0 0
    %1589 = vmatpush1.bf16.msra.mxu0 %v1268
    %1590 = vmatprep.subr.bf16.mxu0 0
    %1591 = vmatpush1.bf16.msra.mxu0 %v1269
    %1592 = vmatprep.subr.bf16.mxu0 0
    %1593 = vmatpush1.bf16.msra.mxu0 %v1270
    %1594 = vmatprep.subr.bf16.mxu0 0
    %1595 = vmatpush1.bf16.msra.mxu0 %v1271
    %1596 = vmatprep.subr.bf16.mxu0 0
    %1597 = vmatpush1.bf16.msra.mxu0 %v1272
    %1598 = vmatprep.subr.bf16.mxu0 0
    %1599 = vmatpush1.bf16.msra.mxu0 %v1273
    %1600 = vmatprep.subr.bf16.mxu0 0
    %1601 = vmatpush1.bf16.msra.mxu0 %v1274
    %1602 = vmatprep.subr.bf16.mxu0 0
    %1603 = vmatpush1.bf16.msra.mxu0 %v1275
    %1604 = vmatprep.subr.bf16.mxu0 0
    %1605 = vmatpush1.bf16.msra.mxu0 %v1376
    %1606 = vmatprep.subr.bf16.mxu0 0
    %1607 = vmatpush1.bf16.msra.mxu0 0
    %1608 = vmatprep.subr.bf16.mxu0 0
    %1609 = vmatpush1.bf16.msra.mxu0 0
    %1610 = vmatprep.mubr.bf16.mxu0 %v1372
    %1611 = vmatmul.mubr.bf16.gmra.mrb[0].mxu0 %v617
    %v1612 = vpop.f32.mrb[0].mxu0
    %v1613 = vadd.f32 %v1573, %v1612
    %v1614 = vpop.f32.mrb[0].mxu0
    %v1615 = vpop.f32.mrb[0].mxu0
    %v1616 = vpop.f32.mrb[0].mxu0
    %1617 = vdwg.mxu0
    %v1622 = vcombine.high %v22, %v22
    %v1624 = vunpack.c.l.s4 1966171168
    %v1625 = vunpack.c.0.s8 %v1624
    %v1626 = vlaneseq
    %v1627 = vshrl.u32 %v1626, 7
    %v1628 = vsub.s32 %v1625, %v1627
    %v1629 = vrot.slane %v22, %v1628
    %v1631 = vunpack.c.l.s4 1966171168
    %v1632 = vunpack.c.0.s8 %v1631
    %v1633 = vlaneseq
    %v1634 = vshrl.u32 %v1633, 7
    %v1635 = vsub.s32 %v1632, %v1634
    %v1636 = vrot.slane %v1622, %v1635
    %v1637 = vcombine.high %v1629, %v1629
    %v1638 = vcombine.high %v1636, %v1636
    %v1640 = vunpack.c.l.s4 1966171168
    %v1641 = vunpack.c.0.s8 %v1640
    %v1642 = vlaneseq
    %v1643 = vshrl.u32 %v1642, 7
    %v1644 = vsub.s32 %v1641, %v1643
    %v1645 = vrot.slane %v1629, %v1644
    %v1647 = vunpack.c.l.s4 1966171168
    %v1648 = vunpack.c.0.s8 %v1647
    %v1649 = vlaneseq
    %v1650 = vshrl.u32 %v1649, 7
    %v1651 = vsub.s32 %v1648, %v1650
    %v1652 = vrot.slane %v1636, %v1651
    %v1654 = vunpack.c.l.s4 1966171168
    %v1655 = vunpack.c.0.s8 %v1654
    %v1656 = vlaneseq
    %v1657 = vshrl.u32 %v1656, 7
    %v1658 = vsub.s32 %v1655, %v1657
    %v1659 = vrot.slane %v1637, %v1658
    %v1661 = vunpack.c.l.s4 1966171168
    %v1662 = vunpack.c.0.s8 %v1661
    %v1663 = vlaneseq
    %v1664 = vshrl.u32 %v1663, 7
    %v1665 = vsub.s32 %v1662, %v1664
    %v1666 = vrot.slane %v1638, %v1665
    %v1667 = vcombine.high %v1645, %v1645
    %v1668 = vcombine.high %v1652, %v1652
    %v1669 = vcombine.high %v1659, %v1659
    %v1670 = vcombine.high %v1666, %v1666
    %v1671 = vcombine.high %v23, %v23
    %v1673 = vunpack.c.l.s4 1966171168
    %v1674 = vunpack.c.0.s8 %v1673
    %v1675 = vlaneseq
    %v1676 = vshrl.u32 %v1675, 7
    %v1677 = vsub.s32 %v1674, %v1676
    %v1678 = vrot.slane %v23, %v1677
    %v1680 = vunpack.c.l.s4 1966171168
    %v1681 = vunpack.c.0.s8 %v1680
    %v1682 = vlaneseq
    %v1683 = vshrl.u32 %v1682, 7
    %v1684 = vsub.s32 %v1681, %v1683
    %v1685 = vrot.slane %v1671, %v1684
    %v1686 = vcombine.high %v1678, %v1678
    %v1687 = vcombine.high %v1685, %v1685
    %v1689 = vunpack.c.l.s4 1966171168
    %v1690 = vunpack.c.0.s8 %v1689
    %v1691 = vlaneseq
    %v1692 = vshrl.u32 %v1691, 7
    %v1693 = vsub.s32 %v1690, %v1692
    %v1694 = vrot.slane %v1678, %v1693
    %v1696 = vunpack.c.l.s4 1966171168
    %v1697 = vunpack.c.0.s8 %v1696
    %v1698 = vlaneseq
    %v1699 = vshrl.u32 %v1698, 7
    %v1700 = vsub.s32 %v1697, %v1699
    %v1701 = vrot.slane %v1685, %v1700
    %v1703 = vunpack.c.l.s4 1966171168
    %v1704 = vunpack.c.0.s8 %v1703
    %v1705 = vlaneseq
    %v1706 = vshrl.u32 %v1705, 7
    %v1707 = vsub.s32 %v1704, %v1706
    %v1708 = vrot.slane %v1686, %v1707
    %v1710 = vunpack.c.l.s4 1966171168
    %v1711 = vunpack.c.0.s8 %v1710
    %v1712 = vlaneseq
    %v1713 = vshrl.u32 %v1712, 7
    %v1714 = vsub.s32 %v1711, %v1713
    %v1715 = vrot.slane %v1687, %v1714
    %v1716 = vcombine.high %v1694, %v1694
    %v1717 = vcombine.high %v1701, %v1701
    %v1718 = vcombine.high %v1708, %v1708
    %v1719 = vcombine.high %v1715, %v1715
    %v1720 = vcombine.high %v24, %v24
    %v1722 = vunpack.c.l.s4 1966171168
    %v1723 = vunpack.c.0.s8 %v1722
    %v1724 = vlaneseq
    %v1725 = vshrl.u32 %v1724, 7
    %v1726 = vsub.s32 %v1723, %v1725
    %v1727 = vrot.slane %v24, %v1726
    %v1729 = vunpack.c.l.s4 1966171168
    %v1730 = vunpack.c.0.s8 %v1729
    %v1731 = vlaneseq
    %v1732 = vshrl.u32 %v1731, 7
    %v1733 = vsub.s32 %v1730, %v1732
    %v1734 = vrot.slane %v1720, %v1733
    %v1735 = vcombine.high %v1727, %v1727
    %v1736 = vcombine.high %v1734, %v1734
    %v1738 = vunpack.c.l.s4 1966171168
    %v1739 = vunpack.c.0.s8 %v1738
    %v1740 = vlaneseq
    %v1741 = vshrl.u32 %v1740, 7
    %v1742 = vsub.s32 %v1739, %v1741
    %v1743 = vrot.slane %v1727, %v1742
    %v1745 = vunpack.c.l.s4 1966171168
    %v1746 = vunpack.c.0.s8 %v1745
    %v1747 = vlaneseq
    %v1748 = vshrl.u32 %v1747, 7
    %v1749 = vsub.s32 %v1746, %v1748
    %v1750 = vrot.slane %v1734, %v1749
    %v1752 = vunpack.c.l.s4 1966171168
    %v1753 = vunpack.c.0.s8 %v1752
    %v1754 = vlaneseq
    %v1755 = vshrl.u32 %v1754, 7
    %v1756 = vsub.s32 %v1753, %v1755
    %v1757 = vrot.slane %v1735, %v1756
    %v1759 = vunpack.c.l.s4 1966171168
    %v1760 = vunpack.c.0.s8 %v1759
    %v1761 = vlaneseq
    %v1762 = vshrl.u32 %v1761, 7
    %v1763 = vsub.s32 %v1760, %v1762
    %v1764 = vrot.slane %v1736, %v1763
    %v1765 = vcombine.high %v1743, %v1743
    %v1766 = vcombine.high %v1750, %v1750
    %v1767 = vcombine.high %v1757, %v1757
    %v1768 = vcombine.high %v1764, %v1764
    %v1769 = vcombine.high %v25, %v25
    %v1771 = vunpack.c.l.s4 1966171168
    %v1772 = vunpack.c.0.s8 %v1771
    %v1773 = vlaneseq
    %v1774 = vshrl.u32 %v1773, 7
    %v1775 = vsub.s32 %v1772, %v1774
    %v1776 = vrot.slane %v25, %v1775
    %v1778 = vunpack.c.l.s4 1966171168
    %v1779 = vunpack.c.0.s8 %v1778
    %v1780 = vlaneseq
    %v1781 = vshrl.u32 %v1780, 7
    %v1782 = vsub.s32 %v1779, %v1781
    %v1783 = vrot.slane %v1769, %v1782
    %v1784 = vcombine.high %v1776, %v1776
    %v1785 = vcombine.high %v1783, %v1783
    %v1787 = vunpack.c.l.s4 1966171168
    %v1788 = vunpack.c.0.s8 %v1787
    %v1789 = vlaneseq
    %v1790 = vshrl.u32 %v1789, 7
    %v1791 = vsub.s32 %v1788, %v1790
    %v1792 = vrot.slane %v1776, %v1791
    %v1794 = vunpack.c.l.s4 1966171168
    %v1795 = vunpack.c.0.s8 %v1794
    %v1796 = vlaneseq
    %v1797 = vshrl.u32 %v1796, 7
    %v1798 = vsub.s32 %v1795, %v1797
    %v1799 = vrot.slane %v1783, %v1798
    %v1801 = vunpack.c.l.s4 1966171168
    %v1802 = vunpack.c.0.s8 %v1801
    %v1803 = vlaneseq
    %v1804 = vshrl.u32 %v1803, 7
    %v1805 = vsub.s32 %v1802, %v1804
    %v1806 = vrot.slane %v1784, %v1805
    %v1808 = vunpack.c.l.s4 1966171168
    %v1809 = vunpack.c.0.s8 %v1808
    %v1810 = vlaneseq
    %v1811 = vshrl.u32 %v1810, 7
    %v1812 = vsub.s32 %v1809, %v1811
    %v1813 = vrot.slane %v1785, %v1812
    %v1814 = vcombine.high %v1792, %v1792
    %v1815 = vcombine.high %v1799, %v1799
    %v1816 = vcombine.high %v1806, %v1806
    %v1817 = vcombine.high %v1813, %v1813
    %v2362 = vunpack.c.l.b16 %v26
    %v2363 = vunpack.c.l.b16 %v27
    %v2364 = vunpack.c.l.b16 %v28
    %v2365 = vunpack.c.l.b16 %v29
    %v2366 = vunpack.c.l.b16 %v30
    %v2367 = vunpack.c.l.b16 %v31
    %v2368 = vunpack.c.l.b16 %v32
    %v2369 = vunpack.c.l.b16 %v33
    %v2370 = vunpack.c.l.b16 %v34
    %v2371 = vunpack.c.l.b16 %v35
    %v2372 = vunpack.c.l.b16 %v36
    %v2373 = vunpack.c.l.b16 %v37
    %v2374 = vunpack.c.l.b16 %v38
    %v2375 = vunpack.c.l.b16 %v39
    %v2376 = vunpack.c.l.b16 %v40
    %v2377 = vunpack.c.l.b16 %v41
    %v2378 = vunpack.c.l.b16 %v42
    %v2379 = vunpack.c.l.b16 %v43
    %v2380 = vunpack.c.l.b16 %v44
    %v2381 = vunpack.c.l.b16 %v45
    %v2382 = vunpack.c.l.b16 %v46
    %v2383 = vunpack.c.l.b16 %v47
    %v2384 = vunpack.c.l.b16 %v48
    %v2385 = vunpack.c.l.b16 %v49
    %v2386 = vunpack.c.l.b16 %v50
    %v2387 = vunpack.c.l.b16 %v51
    %v2388 = vunpack.c.l.b16 %v52
    %v2389 = vunpack.c.l.b16 %v53
    %v2390 = vunpack.c.l.b16 %v54
    %v2391 = vunpack.c.l.b16 %v55
    %v2392 = vunpack.c.l.b16 %v56
    %v2393 = vunpack.c.l.b16 %v57
    %v2394 = vunpack.c.l.b16 %v58
    %v2395 = vunpack.c.l.b16 %v59
    %v2396 = vunpack.c.l.b16 %v60
    %v2397 = vunpack.c.l.b16 %v61
    %v2398 = vunpack.c.l.b16 %v62
    %v2399 = vunpack.c.l.b16 %v63
    %v2400 = vunpack.c.l.b16 %v64
    %v2401 = vunpack.c.l.b16 %v65
    %v2402 = vunpack.c.l.b16 %v66
    %v2403 = vunpack.c.l.b16 %v67
    %v2404 = vunpack.c.l.b16 %v68
    %v2405 = vunpack.c.l.b16 %v69
    %v2406 = vunpack.c.l.b16 %v70
    %v2407 = vunpack.c.l.b16 %v71
    %v2408 = vunpack.c.l.b16 %v72
    %v2409 = vunpack.c.l.b16 %v73
    %v2410 = vunpack.c.l.b16 %v74
    %v2411 = vunpack.c.l.b16 %v75
    %v2412 = vunpack.c.l.b16 %v76
    %v2413 = vunpack.c.l.b16 %v77
    %v2414 = vunpack.c.l.b16 %v78
    %v2415 = vunpack.c.l.b16 %v79
    %v2416 = vunpack.c.l.b16 %v80
    %v2417 = vunpack.c.l.b16 %v81
    %v2418 = vunpack.c.l.b16 %v82
    %v2419 = vunpack.c.l.b16 %v83
    %v2420 = vunpack.c.l.b16 %v84
    %v2421 = vunpack.c.l.b16 %v85
    %v2422 = vunpack.c.l.b16 %v86
    %v2423 = vunpack.c.l.b16 %v87
    %v2424 = vunpack.c.l.b16 %v88
    %v2425 = vunpack.c.l.b16 %v89
    %v2426 = vunpack.c.l.b16 %v90
    %v2427 = vunpack.c.l.b16 %v91
    %v2428 = vunpack.c.l.b16 %v92
    %v2429 = vunpack.c.l.b16 %v93
    %v2430 = vunpack.c.l.b16 %v94
    %v2431 = vunpack.c.l.b16 %v95
    %v2432 = vunpack.c.l.b16 %v96
    %v2433 = vunpack.c.l.b16 %v97
    %v2434 = vunpack.c.l.b16 %v98
    %v2435 = vunpack.c.l.b16 %v99
    %v2436 = vunpack.c.l.b16 %v100
    %v2437 = vunpack.c.l.b16 %v101
    %v2438 = vunpack.c.l.b16 %v102
    %v2439 = vunpack.c.l.b16 %v103
    %v2440 = vunpack.c.l.b16 %v104
    %v2441 = vunpack.c.l.b16 %v105
    %v2442 = vunpack.c.l.b16 %v106
    %v2443 = vunpack.c.l.b16 %v107
    %v2444 = vunpack.c.l.b16 %v108
    %v2445 = vunpack.c.l.b16 %v109
    %v2446 = vunpack.c.l.b16 %v110
    %v2447 = vunpack.c.l.b16 %v111
    %v2448 = vunpack.c.l.b16 %v112
    %v2449 = vunpack.c.l.b16 %v113
    %v2450 = vunpack.c.l.b16 %v114
    %v2451 = vunpack.c.l.b16 %v115
    %v2452 = vunpack.c.l.b16 %v116
    %v2453 = vunpack.c.l.b16 %v117
    %v2454 = vunpack.c.l.b16 %v118
    %v2455 = vunpack.c.l.b16 %v119
    %v2456 = vunpack.c.l.b16 %v120
    %v2457 = vunpack.c.l.b16 %v121
    %v2458 = vunpack.c.l.b16 %v122
    %v2459 = vunpack.c.l.b16 %v123
    %v2460 = vunpack.c.l.b16 %v124
    %v2461 = vunpack.c.l.b16 %v125
    %v2462 = vunpack.c.l.b16 %v126
    %v2463 = vunpack.c.l.b16 %v127
    %v2464 = vunpack.c.l.b16 %v128
    %v2465 = vunpack.c.l.b16 %v129
    %v2466 = vunpack.c.l.b16 %v130
    %v2467 = vunpack.c.l.b16 %v131
    %v2468 = vunpack.c.l.b16 %v132
    %v2469 = vunpack.c.l.b16 %v133
    %v2470 = vunpack.c.l.b16 %v134
    %v2471 = vunpack.c.l.b16 %v135
    %v2472 = vunpack.c.l.b16 %v136
    %v2473 = vunpack.c.l.b16 %v137
    %v2474 = vunpack.c.l.b16 %v138
    %v2475 = vunpack.c.l.b16 %v139
    %v2476 = vunpack.c.l.b16 %v140
    %v2477 = vunpack.c.l.b16 %v141
    %v2478 = vunpack.c.l.b16 %v142
    %v2479 = vunpack.c.l.b16 %v143
    %v2480 = vunpack.c.l.b16 %v144
    %v2481 = vunpack.c.l.b16 %v145
    %v2482 = vunpack.c.l.b16 %v146
    %v2483 = vunpack.c.l.b16 %v147
    %v2484 = vunpack.c.l.b16 %v148
    %v2485 = vunpack.c.l.b16 %v149
    %v2486 = vunpack.c.l.b16 %v150
    %v2487 = vunpack.c.l.b16 %v151
    %v2488 = vunpack.c.l.b16 %v152
    %v2489 = vunpack.c.l.b16 %v153
    %v2490 = vunpack.c.l.b16 %v154
    %v2491 = vunpack.c.l.b16 %v155
    %v2492 = vunpack.c.l.b16 %v156
    %v2493 = vunpack.c.l.b16 %v157
    %v2494 = vunpack.c.l.b16 %v158
    %v2495 = vunpack.c.l.b16 %v159
    %v2496 = vunpack.c.l.b16 %v160
    %v2497 = vunpack.c.l.b16 %v161
    %v2498 = vunpack.c.l.b16 %v162
    %v2499 = vunpack.c.l.b16 %v163
    %v2500 = vunpack.c.l.b16 %v164
    %v2501 = vunpack.c.l.b16 %v165
    %v2502 = vunpack.c.l.b16 %v166
    %v2503 = vunpack.c.l.b16 %v167
    %v2504 = vunpack.c.l.b16 %v168
    %v2505 = vunpack.c.l.b16 %v169
    %v2506 = vunpack.c.l.b16 %v170
    %v2507 = vunpack.c.l.b16 %v171
    %v2508 = vunpack.c.l.b16 %v172
    %v2509 = vunpack.c.l.b16 %v173
    %v2510 = vunpack.c.l.b16 %v174
    %v2511 = vunpack.c.l.b16 %v175
    %v2512 = vunpack.c.l.b16 %v176
    %v2513 = vunpack.c.l.b16 %v177
    %v2514 = vunpack.c.l.b16 %v178
    %v2515 = vunpack.c.l.b16 %v179
    %v2516 = vunpack.c.l.b16 %v180
    %v2517 = vunpack.c.l.b16 %v181
    %v2518 = vunpack.c.l.b16 %v182
    %v2519 = vunpack.c.l.b16 %v183
    %v2520 = vunpack.c.l.b16 %v184
    %v2521 = vunpack.c.l.b16 %v185
    %v2522 = vunpack.c.l.b16 %v186
    %v2523 = vunpack.c.l.b16 %v187
    %v2524 = vunpack.c.l.b16 %v188
    %v2525 = vunpack.c.l.b16 %v189
    %v2526 = vunpack.c.l.b16 %v190
    %v2527 = vunpack.c.l.b16 %v191
    %v2528 = vunpack.c.l.b16 %v192
    %v2529 = vunpack.c.l.b16 %v193
    %v2530 = vunpack.c.l.b16 %v194
    %v2531 = vunpack.c.l.b16 %v195
    %v2532 = vunpack.c.l.b16 %v196
    %v2533 = vunpack.c.l.b16 %v197
    %v2534 = vunpack.c.l.b16 %v198
    %v2535 = vunpack.c.l.b16 %v199
    %v2536 = vunpack.c.l.b16 %v200
    %v2537 = vunpack.c.l.b16 %v201
    %v2538 = vunpack.c.l.b16 %v202
    %v2539 = vunpack.c.l.b16 %v203
    %v2540 = vunpack.c.l.b16 %v204
    %v2541 = vunpack.c.l.b16 %v205
    %v2542 = vunpack.c.l.b16 %v206
    %v2543 = vunpack.c.l.b16 %v207
    %v2544 = vunpack.c.l.b16 %v208
    %v2545 = vunpack.c.l.b16 %v209
    %v2546 = vunpack.c.l.b16 %v210
    %v2547 = vunpack.c.l.b16 %v211
    %v2548 = vunpack.c.l.b16 %v212
    %v2549 = vunpack.c.l.b16 %v213
    %v2550 = vunpack.c.l.b16 %v214
    %v2551 = vunpack.c.l.b16 %v215
    %v2552 = vunpack.c.l.b16 %v216
    %v2553 = vunpack.c.l.b16 %v217
    %v2554 = vunpack.c.l.b16 %v218
    %v2555 = vunpack.c.l.b16 %v219
    %v2556 = vunpack.c.l.b16 %v220
    %v2557 = vunpack.c.l.b16 %v221
    %v2558 = vunpack.c.l.b16 %v222
    %v2559 = vunpack.c.l.b16 %v223
    %v2560 = vunpack.c.l.b16 %v224
    %v2561 = vunpack.c.l.b16 %v225
    %v2562 = vunpack.c.l.b16 %v226
    %v2563 = vunpack.c.l.b16 %v227
    %v2564 = vunpack.c.l.b16 %v228
    %v2565 = vunpack.c.l.b16 %v229
    %v2566 = vunpack.c.l.b16 %v230
    %v2567 = vunpack.c.l.b16 %v231
    %v2568 = vunpack.c.l.b16 %v232
    %v2569 = vunpack.c.l.b16 %v233
    %v2570 = vunpack.c.l.b16 %v234
    %v2571 = vunpack.c.l.b16 %v235
    %v2572 = vunpack.c.l.b16 %v236
    %v2573 = vunpack.c.l.b16 %v237
    %v2574 = vunpack.c.l.b16 %v238
    %v2575 = vunpack.c.l.b16 %v239
    %v2576 = vunpack.c.l.b16 %v240
    %v2577 = vunpack.c.l.b16 %v241
    %v2578 = vunpack.c.l.b16 %v242
    %v2579 = vunpack.c.l.b16 %v243
    %v2580 = vunpack.c.l.b16 %v244
    %v2581 = vunpack.c.l.b16 %v245
    %v2582 = vunpack.c.l.b16 %v246
    %v2583 = vunpack.c.l.b16 %v247
    %v2584 = vunpack.c.l.b16 %v248
    %v2585 = vunpack.c.l.b16 %v249
    %v2586 = vunpack.c.l.b16 %v250
    %v2587 = vunpack.c.l.b16 %v251
    %v2588 = vunpack.c.l.b16 %v252
    %v2589 = vunpack.c.l.b16 %v253
    %v2590 = vunpack.c.l.b16 %v254
    %v2591 = vunpack.c.l.b16 %v255
    %v2592 = vunpack.c.l.b16 %v256
    %v2593 = vunpack.c.l.b16 %v257
    %v2594 = vunpack.c.l.b16 %v258
    %v2595 = vunpack.c.l.b16 %v259
    %v2596 = vunpack.c.l.b16 %v260
    %v2597 = vunpack.c.l.b16 %v261
    %v2598 = vunpack.c.l.b16 %v262
    %v2599 = vunpack.c.l.b16 %v263
    %v2600 = vunpack.c.l.b16 %v264
    %v2601 = vunpack.c.l.b16 %v265
    %v2602 = vunpack.c.l.b16 %v266
    %v2603 = vunpack.c.l.b16 %v267
    %v2604 = vunpack.c.l.b16 %v268
    %v2605 = vunpack.c.l.b16 %v269
    %v2606 = vunpack.c.l.b16 %v270
    %v2607 = vunpack.c.l.b16 %v271
    %v2608 = vunpack.c.l.b16 %v272
    %v2609 = vunpack.c.l.b16 %v273
    %v2610 = vunpack.c.l.b16 %v274
    %v2611 = vunpack.c.l.b16 %v275
    %v2612 = vunpack.c.l.b16 %v276
    %v2613 = vunpack.c.l.b16 %v277
    %v2614 = vunpack.c.l.b16 %v278
    %v2615 = vunpack.c.l.b16 %v279
    %v2616 = vunpack.c.l.b16 %v280
    %v2617 = vunpack.c.l.b16 %v281
    %v2618 = vunpack.c.l.b16 %v282
    %v2619 = vunpack.c.l.b16 %v283
    %v2620 = vunpack.c.l.b16 %v284
    %v2621 = vunpack.c.l.b16 %v285
    %v2622 = vunpack.c.l.b16 %v286
    %v2623 = vunpack.c.l.b16 %v287
    %v2624 = vunpack.c.l.b16 %v288
    %v2625 = vunpack.c.l.b16 %v289
    %v2626 = vunpack.c.l.b16 %v290
    %v2627 = vunpack.c.l.b16 %v291
    %v2628 = vunpack.c.l.b16 %v292
    %v2629 = vunpack.c.l.b16 %v293
    %v2630 = vunpack.c.l.b16 %v294
    %v2631 = vunpack.c.l.b16 %v295
    %v2632 = vunpack.c.l.b16 %v296
    %v2633 = vunpack.c.l.b16 %v297
    %v2634 = vunpack.c.l.b16 %v298
    %v2635 = vunpack.c.l.b16 %v299
    %v2636 = vunpack.c.l.b16 %v300
    %v2637 = vunpack.c.l.b16 %v301
    %v2638 = vunpack.c.l.b16 %v302
    %v2639 = vunpack.c.l.b16 %v303
    %v2640 = vunpack.c.l.b16 %v304
    %v2641 = vunpack.c.l.b16 %v305
    %v2642 = vunpack.c.l.b16 %v306
    %v2643 = vunpack.c.l.b16 %v307
    %v2644 = vunpack.c.l.b16 %v308
    %v2645 = vunpack.c.l.b16 %v309
    %v2646 = vunpack.c.l.b16 %v310
    %v2647 = vunpack.c.l.b16 %v311
    %v2648 = vunpack.c.l.b16 %v312
    %v2649 = vunpack.c.l.b16 %v313
    %v2650 = vunpack.c.l.b16 %v314
    %v2651 = vunpack.c.l.b16 %v315
    %v2652 = vunpack.c.l.b16 %v316
    %v2653 = vunpack.c.l.b16 %v317
    %v2654 = vunpack.c.l.b16 %v318
    %v2655 = vunpack.c.l.b16 %v319
    %v2656 = vunpack.c.l.b16 %v320
    %v2657 = vunpack.c.l.b16 %v321
    %v2658 = vunpack.c.l.b16 %v322
    %v2659 = vunpack.c.l.b16 %v323
    %v2660 = vunpack.c.l.b16 %v324
    %v2661 = vunpack.c.l.b16 %v325
    %v2662 = vunpack.c.l.b16 %v326
    %v2663 = vunpack.c.l.b16 %v327
    %v2664 = vunpack.c.l.b16 %v328
    %v2665 = vunpack.c.l.b16 %v329
    %v2666 = vunpack.c.l.b16 %v330
    %v2667 = vunpack.c.l.b16 %v331
    %v2668 = vunpack.c.l.b16 %v332
    %v2669 = vunpack.c.l.b16 %v333
    %v2670 = vunpack.c.l.b16 %v334
    %v2671 = vunpack.c.l.b16 %v335
    %v2672 = vunpack.c.l.b16 %v336
    %v2673 = vunpack.c.l.b16 %v337
    %v2674 = vunpack.c.l.b16 %v338
    %v2675 = vunpack.c.l.b16 %v339
    %v2676 = vunpack.c.l.b16 %v340
    %v2677 = vunpack.c.l.b16 %v341
    %v2678 = vunpack.c.l.b16 %v342
    %v2679 = vunpack.c.l.b16 %v343
    %v2680 = vunpack.c.l.b16 %v344
    %v2681 = vunpack.c.l.b16 %v345
    %v2682 = vunpack.c.l.b16 %v346
    %v2683 = vunpack.c.l.b16 %v347
    %v2684 = vunpack.c.l.b16 %v348
    %v2685 = vunpack.c.l.b16 %v349
    %v2686 = vunpack.c.l.b16 %v350
    %v2687 = vunpack.c.l.b16 %v351
    %v2688 = vunpack.c.l.b16 %v352
    %v2689 = vunpack.c.l.b16 %v353
    %v2690 = vunpack.c.l.b16 %v354
    %v2691 = vunpack.c.l.b16 %v355
    %v2692 = vunpack.c.l.b16 %v356
    %v2693 = vunpack.c.l.b16 %v357
    %v2694 = vunpack.c.l.b16 %v358
    %v2695 = vunpack.c.l.b16 %v359
    %v2696 = vunpack.c.l.b16 %v360
    %v2697 = vunpack.c.l.b16 %v361
    %v2698 = vunpack.c.l.b16 %v362
    %v2699 = vunpack.c.l.b16 %v363
    %v2700 = vunpack.c.l.b16 %v364
    %v2701 = vunpack.c.l.b16 %v365
    %v2702 = vunpack.c.l.b16 %v366
    %v2703 = vunpack.c.l.b16 %v367
    %v2704 = vunpack.c.l.b16 %v368
    %v2705 = vunpack.c.l.b16 %v369
    %v2706 = vunpack.c.l.b16 %v370
    %v2707 = vunpack.c.l.b16 %v371
    %v2708 = vunpack.c.l.b16 %v372
    %v2709 = vunpack.c.l.b16 %v373
    %v2710 = vunpack.c.l.b16 %v374
    %v2711 = vunpack.c.l.b16 %v375
    %v2712 = vunpack.c.l.b16 %v376
    %v2713 = vunpack.c.l.b16 %v377
    %v2714 = vunpack.c.l.b16 %v378
    %v2715 = vunpack.c.l.b16 %v379
    %v2716 = vunpack.c.l.b16 %v380
    %v2717 = vunpack.c.l.b16 %v381
    %v2718 = vunpack.c.l.b16 %v382
    %v2719 = vunpack.c.l.b16 %v383
    %v2720 = vunpack.c.l.b16 %v384
    %v2721 = vunpack.c.l.b16 %v385
    %v2722 = vunpack.c.l.b16 %v386
    %v2723 = vunpack.c.l.b16 %v387
    %v2724 = vunpack.c.l.b16 %v388
    %v2725 = vunpack.c.l.b16 %v389
    %v2726 = vunpack.c.l.b16 %v390
    %v2727 = vunpack.c.l.b16 %v391
    %v2728 = vunpack.c.l.b16 %v392
    %v2729 = vunpack.c.l.b16 %v393
    %v2730 = vunpack.c.l.b16 %v394
    %v2731 = vunpack.c.l.b16 %v395
    %v2732 = vunpack.c.l.b16 %v396
    %v2733 = vunpack.c.l.b16 %v397
    %v2734 = vunpack.c.l.b16 %v398
    %v2735 = vunpack.c.l.b16 %v399
    %v2736 = vunpack.c.l.b16 %v400
    %v2737 = vunpack.c.l.b16 %v401
    %v2738 = vunpack.c.l.b16 %v402
    %v2739 = vunpack.c.l.b16 %v403
    %v2740 = vunpack.c.l.b16 %v404
    %v2741 = vunpack.c.l.b16 %v405
    %v2742 = vunpack.c.l.b16 %v406
    %v2743 = vunpack.c.l.b16 %v407
    %v2744 = vunpack.c.l.b16 %v408
    %v2745 = vunpack.c.l.b16 %v409
    %v2746 = vunpack.c.l.b16 %v410
    %v2747 = vunpack.c.l.b16 %v411
    %v2748 = vunpack.c.l.b16 %v412
    %v2749 = vunpack.c.l.b16 %v413
    %v2750 = vunpack.c.l.b16 %v414
    %v2751 = vunpack.c.l.b16 %v415
    %v2752 = vunpack.c.l.b16 %v416
    %v2753 = vunpack.c.l.b16 %v417
    %v2754 = vunpack.c.l.b16 %v418
    %v2755 = vunpack.c.l.b16 %v419
    %v2756 = vunpack.c.l.b16 %v420
    %v2757 = vunpack.c.l.b16 %v421
    %v2758 = vunpack.c.l.b16 %v422
    %v2759 = vunpack.c.l.b16 %v423
    %v2760 = vunpack.c.l.b16 %v424
    %v2761 = vunpack.c.l.b16 %v425
    %v2762 = vunpack.c.l.b16 %v426
    %v2763 = vunpack.c.l.b16 %v427
    %v2764 = vunpack.c.l.b16 %v428
    %v2765 = vunpack.c.l.b16 %v429
    %v2766 = vunpack.c.l.b16 %v430
    %v2767 = vunpack.c.l.b16 %v431
    %v2768 = vunpack.c.l.b16 %v432
    %v2769 = vunpack.c.l.b16 %v433
    %v2770 = vunpack.c.l.b16 %v434
    %v2771 = vunpack.c.l.b16 %v435
    %v2772 = vunpack.c.l.b16 %v436
    %v2773 = vunpack.c.l.b16 %v437
    %v2774 = vunpack.c.l.b16 %v438
    %v2775 = vunpack.c.l.b16 %v439
    %v2776 = vunpack.c.l.b16 %v440
    %v2777 = vunpack.c.l.b16 %v441
    %v2778 = vunpack.c.l.b16 %v442
    %v2779 = vunpack.c.l.b16 %v443
    %v2780 = vunpack.c.l.b16 %v444
    %v2781 = vunpack.c.l.b16 %v445
    %v2782 = vunpack.c.l.b16 %v446
    %v2783 = vunpack.c.l.b16 %v447
    %v2784 = vunpack.c.l.b16 %v448
    %v2785 = vunpack.c.l.b16 %v449
    %v2786 = vunpack.c.l.b16 %v450
    %v2787 = vunpack.c.l.b16 %v451
    %v2788 = vunpack.c.l.b16 %v452
    %v2789 = vunpack.c.l.b16 %v453
    %v2790 = vunpack.c.l.b16 %v454
    %v2791 = vunpack.c.l.b16 %v455
    %v2792 = vunpack.c.l.b16 %v456
    %v2793 = vunpack.c.l.b16 %v457
    %v2794 = vunpack.c.l.b16 %v458
    %v2795 = vunpack.c.l.b16 %v459
    %v2796 = vunpack.c.l.b16 %v460
    %v2797 = vunpack.c.l.b16 %v461
    %v2798 = vunpack.c.l.b16 %v462
    %v2799 = vunpack.c.l.b16 %v463
    %v2800 = vunpack.c.l.b16 %v464
    %v2801 = vunpack.c.l.b16 %v465
    %v2802 = vunpack.c.l.b16 %v466
    %v2803 = vunpack.c.l.b16 %v467
    %v2804 = vunpack.c.l.b16 %v468
    %v2805 = vunpack.c.l.b16 %v469
    %v2806 = vunpack.c.l.b16 %v470
    %v2807 = vunpack.c.l.b16 %v471
    %v2808 = vunpack.c.l.b16 %v472
    %v2809 = vunpack.c.l.b16 %v473
    %v2810 = vunpack.c.l.b16 %v474
    %v2811 = vunpack.c.l.b16 %v475
    %v2812 = vunpack.c.l.b16 %v476
    %v2813 = vunpack.c.l.b16 %v477
    %v2814 = vunpack.c.l.b16 %v478
    %v2815 = vunpack.c.l.b16 %v479
    %v2816 = vunpack.c.l.b16 %v480
    %v2817 = vunpack.c.l.b16 %v481
    %v2818 = vunpack.c.l.b16 %v482
    %v2819 = vunpack.c.l.b16 %v483
    %v2820 = vunpack.c.l.b16 %v484
    %v2821 = vunpack.c.l.b16 %v485
    %v2822 = vunpack.c.l.b16 %v486
    %v2823 = vunpack.c.l.b16 %v487
    %v2824 = vunpack.c.l.b16 %v488
    %v2825 = vunpack.c.l.b16 %v489
    %v2826 = vunpack.c.l.b16 %v490
    %v2827 = vunpack.c.l.b16 %v491
    %v2828 = vunpack.c.l.b16 %v492
    %v2829 = vunpack.c.l.b16 %v493
    %v2830 = vunpack.c.l.b16 %v494
    %v2831 = vunpack.c.l.b16 %v495
    %v2832 = vunpack.c.l.b16 %v496
    %v2833 = vunpack.c.l.b16 %v497
    %v2834 = vunpack.c.l.b16 %v498
    %v2835 = vunpack.c.l.b16 %v499
    %v2836 = vunpack.c.l.b16 %v500
    %v2837 = vunpack.c.l.b16 %v501
    %v2838 = vunpack.c.l.b16 %v502
    %v2839 = vunpack.c.l.b16 %v503
    %v2840 = vunpack.c.l.b16 %v504
    %v2841 = vunpack.c.l.b16 %v505
    %v2842 = vunpack.c.l.b16 %v506
    %v2843 = vunpack.c.l.b16 %v507
    %v2844 = vunpack.c.l.b16 %v508
    %v2845 = vunpack.c.l.b16 %v509
    %v2846 = vunpack.c.l.b16 %v510
    %v2847 = vunpack.c.l.b16 %v511
    %v2848 = vunpack.c.l.b16 %v512
    %v2849 = vunpack.c.l.b16 %v513
    %v2850 = vunpack.c.l.b16 %v514
    %v2851 = vunpack.c.l.b16 %v515
    %v2852 = vunpack.c.l.b16 %v516
    %v2853 = vunpack.c.l.b16 %v517
    %v2854 = vunpack.c.l.b16 %v518
    %v2855 = vunpack.c.l.b16 %v519
    %v2856 = vunpack.c.l.b16 %v520
    %v2857 = vunpack.c.l.b16 %v521
    %v2858 = vunpack.c.l.b16 %v522
    %v2859 = vunpack.c.l.b16 %v523
    %v2860 = vunpack.c.l.b16 %v524
    %v2861 = vunpack.c.l.b16 %v525
    %v2862 = vunpack.c.l.b16 %v526
    %v2863 = vunpack.c.l.b16 %v527
    %v2864 = vunpack.c.l.b16 %v528
    %v2865 = vunpack.c.l.b16 %v529
    %v2866 = vunpack.c.l.b16 %v530
    %v2867 = vunpack.c.l.b16 %v531
    %v2868 = vunpack.c.l.b16 %v532
    %v2869 = vunpack.c.l.b16 %v533
    %v2870 = vunpack.c.l.b16 %v534
    %v2871 = vunpack.c.l.b16 %v535
    %v2872 = vunpack.c.l.b16 %v536
    %v2873 = vunpack.c.l.b16 %v537
    %v2874 = vpack.c.b16 %v2363, %v2362
    %v2875 = vpack.c.b16 %v2365, %v2364
    %v2876 = vpack.c.b16 %v2367, %v2366
    %v2877 = vpack.c.b16 %v2369, %v2368
    %v2878 = vpack.c.b16 %v2371, %v2370
    %v2879 = vpack.c.b16 %v2373, %v2372
    %v2880 = vpack.c.b16 %v2375, %v2374
    %v2881 = vpack.c.b16 %v2377, %v2376
    %v2882 = vpack.c.b16 %v2379, %v2378
    %v2883 = vpack.c.b16 %v2381, %v2380
    %v2884 = vpack.c.b16 %v2383, %v2382
    %v2885 = vpack.c.b16 %v2385, %v2384
    %v2886 = vpack.c.b16 %v2387, %v2386
    %v2887 = vpack.c.b16 %v2389, %v2388
    %v2888 = vpack.c.b16 %v2391, %v2390
    %v2889 = vpack.c.b16 %v2393, %v2392
    %v2890 = vpack.c.b16 %v2395, %v2394
    %v2891 = vpack.c.b16 %v2397, %v2396
    %v2892 = vpack.c.b16 %v2399, %v2398
    %v2893 = vpack.c.b16 %v2401, %v2400
    %v2894 = vpack.c.b16 %v2403, %v2402
    %v2895 = vpack.c.b16 %v2405, %v2404
    %v2896 = vpack.c.b16 %v2407, %v2406
    %v2897 = vpack.c.b16 %v2409, %v2408
    %v2898 = vpack.c.b16 %v2411, %v2410
    %v2899 = vpack.c.b16 %v2413, %v2412
    %v2900 = vpack.c.b16 %v2415, %v2414
    %v2901 = vpack.c.b16 %v2417, %v2416
    %v2902 = vpack.c.b16 %v2419, %v2418
    %v2903 = vpack.c.b16 %v2421, %v2420
    %v2904 = vpack.c.b16 %v2423, %v2422
    %v2905 = vpack.c.b16 %v2425, %v2424
    %v2906 = vpack.c.b16 %v2427, %v2426
    %v2907 = vpack.c.b16 %v2429, %v2428
    %v2908 = vpack.c.b16 %v2431, %v2430
    %v2909 = vpack.c.b16 %v2433, %v2432
    %v2910 = vpack.c.b16 %v2435, %v2434
    %v2911 = vpack.c.b16 %v2437, %v2436
    %v2912 = vpack.c.b16 %v2439, %v2438
    %v2913 = vpack.c.b16 %v2441, %v2440
    %v2914 = vpack.c.b16 %v2443, %v2442
    %v2915 = vpack.c.b16 %v2445, %v2444
    %v2916 = vpack.c.b16 %v2447, %v2446
    %v2917 = vpack.c.b16 %v2449, %v2448
    %v2918 = vpack.c.b16 %v2451, %v2450
    %v2919 = vpack.c.b16 %v2453, %v2452
    %v2920 = vpack.c.b16 %v2455, %v2454
    %v2921 = vpack.c.b16 %v2457, %v2456
    %v2922 = vpack.c.b16 %v2459, %v2458
    %v2923 = vpack.c.b16 %v2461, %v2460
    %v2924 = vpack.c.b16 %v2463, %v2462
    %v2925 = vpack.c.b16 %v2465, %v2464
    %v2926 = vpack.c.b16 %v2467, %v2466
    %v2927 = vpack.c.b16 %v2469, %v2468
    %v2928 = vpack.c.b16 %v2471, %v2470
    %v2929 = vpack.c.b16 %v2473, %v2472
    %v2930 = vpack.c.b16 %v2475, %v2474
    %v2931 = vpack.c.b16 %v2477, %v2476
    %v2932 = vpack.c.b16 %v2479, %v2478
    %v2933 = vpack.c.b16 %v2481, %v2480
    %v2934 = vpack.c.b16 %v2483, %v2482
    %v2935 = vpack.c.b16 %v2485, %v2484
    %v2936 = vpack.c.b16 %v2487, %v2486
    %v2937 = vpack.c.b16 %v2489, %v2488
    %v2938 = vpack.c.b16 %v2491, %v2490
    %v2939 = vpack.c.b16 %v2493, %v2492
    %v2940 = vpack.c.b16 %v2495, %v2494
    %v2941 = vpack.c.b16 %v2497, %v2496
    %v2942 = vpack.c.b16 %v2499, %v2498
    %v2943 = vpack.c.b16 %v2501, %v2500
    %v2944 = vpack.c.b16 %v2503, %v2502
    %v2945 = vpack.c.b16 %v2505, %v2504
    %v2946 = vpack.c.b16 %v2507, %v2506
    %v2947 = vpack.c.b16 %v2509, %v2508
    %v2948 = vpack.c.b16 %v2511, %v2510
    %v2949 = vpack.c.b16 %v2513, %v2512
    %v2950 = vpack.c.b16 %v2515, %v2514
    %v2951 = vpack.c.b16 %v2517, %v2516
    %v2952 = vpack.c.b16 %v2519, %v2518
    %v2953 = vpack.c.b16 %v2521, %v2520
    %v2954 = vpack.c.b16 %v2523, %v2522
    %v2955 = vpack.c.b16 %v2525, %v2524
    %v2956 = vpack.c.b16 %v2527, %v2526
    %v2957 = vpack.c.b16 %v2529, %v2528
    %v2958 = vpack.c.b16 %v2531, %v2530
    %v2959 = vpack.c.b16 %v2533, %v2532
    %v2960 = vpack.c.b16 %v2535, %v2534
    %v2961 = vpack.c.b16 %v2537, %v2536
    %v2962 = vpack.c.b16 %v2539, %v2538
    %v2963 = vpack.c.b16 %v2541, %v2540
    %v2964 = vpack.c.b16 %v2543, %v2542
    %v2965 = vpack.c.b16 %v2545, %v2544
    %v2966 = vpack.c.b16 %v2547, %v2546
    %v2967 = vpack.c.b16 %v2549, %v2548
    %v2968 = vpack.c.b16 %v2551, %v2550
    %v2969 = vpack.c.b16 %v2553, %v2552
    %v2970 = vpack.c.b16 %v2555, %v2554
    %v2971 = vpack.c.b16 %v2557, %v2556
    %v2972 = vpack.c.b16 %v2559, %v2558
    %v2973 = vpack.c.b16 %v2561, %v2560
    %v2974 = vpack.c.b16 %v2563, %v2562
    %v2975 = vpack.c.b16 %v2565, %v2564
    %v2976 = vpack.c.b16 %v2567, %v2566
    %v2977 = vpack.c.b16 %v2569, %v2568
    %v2978 = vpack.c.b16 %v2571, %v2570
    %v2979 = vpack.c.b16 %v2573, %v2572
    %v2980 = vpack.c.b16 %v2575, %v2574
    %v2981 = vpack.c.b16 %v2577, %v2576
    %v2982 = vpack.c.b16 %v2579, %v2578
    %v2983 = vpack.c.b16 %v2581, %v2580
    %v2984 = vpack.c.b16 %v2583, %v2582
    %v2985 = vpack.c.b16 %v2585, %v2584
    %v2986 = vpack.c.b16 %v2587, %v2586
    %v2987 = vpack.c.b16 %v2589, %v2588
    %v2988 = vpack.c.b16 %v2591, %v2590
    %v2989 = vpack.c.b16 %v2593, %v2592
    %v2990 = vpack.c.b16 %v2595, %v2594
    %v2991 = vpack.c.b16 %v2597, %v2596
    %v2992 = vpack.c.b16 %v2599, %v2598
    %v2993 = vpack.c.b16 %v2601, %v2600
    %v2994 = vpack.c.b16 %v2603, %v2602
    %v2995 = vpack.c.b16 %v2605, %v2604
    %v2996 = vpack.c.b16 %v2607, %v2606
    %v2997 = vpack.c.b16 %v2609, %v2608
    %v2998 = vpack.c.b16 %v2611, %v2610
    %v2999 = vpack.c.b16 %v2613, %v2612
    %v3000 = vpack.c.b16 %v2615, %v2614
    %v3001 = vpack.c.b16 %v2617, %v2616
    %v3002 = vpack.c.b16 %v2619, %v2618
    %v3003 = vpack.c.b16 %v2621, %v2620
    %v3004 = vpack.c.b16 %v2623, %v2622
    %v3005 = vpack.c.b16 %v2625, %v2624
    %v3006 = vpack.c.b16 %v2627, %v2626
    %v3007 = vpack.c.b16 %v2629, %v2628
    %v3008 = vpack.c.b16 %v2631, %v2630
    %v3009 = vpack.c.b16 %v2633, %v2632
    %v3010 = vpack.c.b16 %v2635, %v2634
    %v3011 = vpack.c.b16 %v2637, %v2636
    %v3012 = vpack.c.b16 %v2639, %v2638
    %v3013 = vpack.c.b16 %v2641, %v2640
    %v3014 = vpack.c.b16 %v2643, %v2642
    %v3015 = vpack.c.b16 %v2645, %v2644
    %v3016 = vpack.c.b16 %v2647, %v2646
    %v3017 = vpack.c.b16 %v2649, %v2648
    %v3018 = vpack.c.b16 %v2651, %v2650
    %v3019 = vpack.c.b16 %v2653, %v2652
    %v3020 = vpack.c.b16 %v2655, %v2654
    %v3021 = vpack.c.b16 %v2657, %v2656
    %v3022 = vpack.c.b16 %v2659, %v2658
    %v3023 = vpack.c.b16 %v2661, %v2660
    %v3024 = vpack.c.b16 %v2663, %v2662
    %v3025 = vpack.c.b16 %v2665, %v2664
    %v3026 = vpack.c.b16 %v2667, %v2666
    %v3027 = vpack.c.b16 %v2669, %v2668
    %v3028 = vpack.c.b16 %v2671, %v2670
    %v3029 = vpack.c.b16 %v2673, %v2672
    %v3030 = vpack.c.b16 %v2675, %v2674
    %v3031 = vpack.c.b16 %v2677, %v2676
    %v3032 = vpack.c.b16 %v2679, %v2678
    %v3033 = vpack.c.b16 %v2681, %v2680
    %v3034 = vpack.c.b16 %v2683, %v2682
    %v3035 = vpack.c.b16 %v2685, %v2684
    %v3036 = vpack.c.b16 %v2687, %v2686
    %v3037 = vpack.c.b16 %v2689, %v2688
    %v3038 = vpack.c.b16 %v2691, %v2690
    %v3039 = vpack.c.b16 %v2693, %v2692
    %v3040 = vpack.c.b16 %v2695, %v2694
    %v3041 = vpack.c.b16 %v2697, %v2696
    %v3042 = vpack.c.b16 %v2699, %v2698
    %v3043 = vpack.c.b16 %v2701, %v2700
    %v3044 = vpack.c.b16 %v2703, %v2702
    %v3045 = vpack.c.b16 %v2705, %v2704
    %v3046 = vpack.c.b16 %v2707, %v2706
    %v3047 = vpack.c.b16 %v2709, %v2708
    %v3048 = vpack.c.b16 %v2711, %v2710
    %v3049 = vpack.c.b16 %v2713, %v2712
    %v3050 = vpack.c.b16 %v2715, %v2714
    %v3051 = vpack.c.b16 %v2717, %v2716
    %v3052 = vpack.c.b16 %v2719, %v2718
    %v3053 = vpack.c.b16 %v2721, %v2720
    %v3054 = vpack.c.b16 %v2723, %v2722
    %v3055 = vpack.c.b16 %v2725, %v2724
    %v3056 = vpack.c.b16 %v2727, %v2726
    %v3057 = vpack.c.b16 %v2729, %v2728
    %v3058 = vpack.c.b16 %v2731, %v2730
    %v3059 = vpack.c.b16 %v2733, %v2732
    %v3060 = vpack.c.b16 %v2735, %v2734
    %v3061 = vpack.c.b16 %v2737, %v2736
    %v3062 = vpack.c.b16 %v2739, %v2738
    %v3063 = vpack.c.b16 %v2741, %v2740
    %v3064 = vpack.c.b16 %v2743, %v2742
    %v3065 = vpack.c.b16 %v2745, %v2744
    %v3066 = vpack.c.b16 %v2747, %v2746
    %v3067 = vpack.c.b16 %v2749, %v2748
    %v3068 = vpack.c.b16 %v2751, %v2750
    %v3069 = vpack.c.b16 %v2753, %v2752
    %v3070 = vpack.c.b16 %v2755, %v2754
    %v3071 = vpack.c.b16 %v2757, %v2756
    %v3072 = vpack.c.b16 %v2759, %v2758
    %v3073 = vpack.c.b16 %v2761, %v2760
    %v3074 = vpack.c.b16 %v2763, %v2762
    %v3075 = vpack.c.b16 %v2765, %v2764
    %v3076 = vpack.c.b16 %v2767, %v2766
    %v3077 = vpack.c.b16 %v2769, %v2768
    %v3078 = vpack.c.b16 %v2771, %v2770
    %v3079 = vpack.c.b16 %v2773, %v2772
    %v3080 = vpack.c.b16 %v2775, %v2774
    %v3081 = vpack.c.b16 %v2777, %v2776
    %v3082 = vpack.c.b16 %v2779, %v2778
    %v3083 = vpack.c.b16 %v2781, %v2780
    %v3084 = vpack.c.b16 %v2783, %v2782
    %v3085 = vpack.c.b16 %v2785, %v2784
    %v3086 = vpack.c.b16 %v2787, %v2786
    %v3087 = vpack.c.b16 %v2789, %v2788
    %v3088 = vpack.c.b16 %v2791, %v2790
    %v3089 = vpack.c.b16 %v2793, %v2792
    %v3090 = vpack.c.b16 %v2795, %v2794
    %v3091 = vpack.c.b16 %v2797, %v2796
    %v3092 = vpack.c.b16 %v2799, %v2798
    %v3093 = vpack.c.b16 %v2801, %v2800
    %v3094 = vpack.c.b16 %v2803, %v2802
    %v3095 = vpack.c.b16 %v2805, %v2804
    %v3096 = vpack.c.b16 %v2807, %v2806
    %v3097 = vpack.c.b16 %v2809, %v2808
    %v3098 = vpack.c.b16 %v2811, %v2810
    %v3099 = vpack.c.b16 %v2813, %v2812
    %v3100 = vpack.c.b16 %v2815, %v2814
    %v3101 = vpack.c.b16 %v2817, %v2816
    %v3102 = vpack.c.b16 %v2819, %v2818
    %v3103 = vpack.c.b16 %v2821, %v2820
    %v3104 = vpack.c.b16 %v2823, %v2822
    %v3105 = vpack.c.b16 %v2825, %v2824
    %v3106 = vpack.c.b16 %v2827, %v2826
    %v3107 = vpack.c.b16 %v2829, %v2828
    %v3108 = vpack.c.b16 %v2831, %v2830
    %v3109 = vpack.c.b16 %v2833, %v2832
    %v3110 = vpack.c.b16 %v2835, %v2834
    %v3111 = vpack.c.b16 %v2837, %v2836
    %v3112 = vpack.c.b16 %v2839, %v2838
    %v3113 = vpack.c.b16 %v2841, %v2840
    %v3114 = vpack.c.b16 %v2843, %v2842
    %v3115 = vpack.c.b16 %v2845, %v2844
    %v3116 = vpack.c.b16 %v2847, %v2846
    %v3117 = vpack.c.b16 %v2849, %v2848
    %v3118 = vpack.c.b16 %v2851, %v2850
    %v3119 = vpack.c.b16 %v2853, %v2852
    %v3120 = vpack.c.b16 %v2855, %v2854
    %v3121 = vpack.c.b16 %v2857, %v2856
    %v3122 = vpack.c.b16 %v2859, %v2858
    %v3123 = vpack.c.b16 %v2861, %v2860
    %v3124 = vpack.c.b16 %v2863, %v2862
    %v3125 = vpack.c.b16 %v2865, %v2864
    %v3126 = vpack.c.b16 %v2867, %v2866
    %v3127 = vpack.c.b16 %v2869, %v2868
    %v3128 = vpack.c.b16 %v2871, %v2870
    %v3129 = vpack.c.b16 %v2873, %v2872
    %3386 = vmatprep.subr.bf16.mxu0 0
    %3387 = vmatpush1.bf16.msra.mxu0 %v2874
    %3388 = vmatprep.subr.bf16.mxu0 0
    %3389 = vmatpush1.bf16.msra.mxu0 %v2875
    %3390 = vmatprep.subr.bf16.mxu0 0
    %3391 = vmatpush1.bf16.msra.mxu0 %v2876
    %3392 = vmatprep.subr.bf16.mxu0 0
    %3393 = vmatpush1.bf16.msra.mxu0 %v2877
    %3394 = vmatprep.subr.bf16.mxu0 0
    %3395 = vmatpush1.bf16.msra.mxu0 %v2878
    %3396 = vmatprep.subr.bf16.mxu0 0
    %3397 = vmatpush1.bf16.msra.mxu0 %v2879
    %3398 = vmatprep.subr.bf16.mxu0 0
    %3399 = vmatpush1.bf16.msra.mxu0 %v2880
    %3400 = vmatprep.subr.bf16.mxu0 0
    %3401 = vmatpush1.bf16.msra.mxu0 %v2881
    %3402 = vmatprep.subr.bf16.mxu0 0
    %3403 = vmatpush1.bf16.msra.mxu0 %v2882
    %3404 = vmatprep.subr.bf16.mxu0 0
    %3405 = vmatpush1.bf16.msra.mxu0 %v2883
    %3406 = vmatprep.subr.bf16.mxu0 0
    %3407 = vmatpush1.bf16.msra.mxu0 %v2884
    %3408 = vmatprep.subr.bf16.mxu0 0
    %3409 = vmatpush1.bf16.msra.mxu0 %v2885
    %3410 = vmatprep.subr.bf16.mxu0 0
    %3411 = vmatpush1.bf16.msra.mxu0 %v2886
    %3412 = vmatprep.subr.bf16.mxu0 0
    %3413 = vmatpush1.bf16.msra.mxu0 %v2887
    %3414 = vmatprep.subr.bf16.mxu0 0
    %3415 = vmatpush1.bf16.msra.mxu0 %v2888
    %3416 = vmatprep.subr.bf16.mxu0 0
    %3417 = vmatpush1.bf16.msra.mxu0 %v2889
    %3418 = vmatprep.mubr.bf16.mxu0 %v1659
    %3419 = vmatmul.mubr.bf16.gmra.mrb[0].mxu0 %v1645
    %v3420 = vpop.f32.mrb[0].mxu0
    %v3421 = vadd.f32 %v1613, %v3420
    %v3422 = vpop.f32.mrb[0].mxu0
    %v3423 = vpop.f32.mrb[0].mxu0
    %v3424 = vpop.f32.mrb[0].mxu0
    %3425 = vdwg.mxu0
    %3426 = vmatprep.subr.bf16.mxu0 0
    %3427 = vmatpush1.bf16.msra.mxu0 %v2890
    %3428 = vmatprep.subr.bf16.mxu0 0
    %3429 = vmatpush1.bf16.msra.mxu0 %v2891
    %3430 = vmatprep.subr.bf16.mxu0 0
    %3431 = vmatpush1.bf16.msra.mxu0 %v2892
    %3432 = vmatprep.subr.bf16.mxu0 0
    %3433 = vmatpush1.bf16.msra.mxu0 %v2893
    %3434 = vmatprep.subr.bf16.mxu0 0
    %3435 = vmatpush1.bf16.msra.mxu0 %v2894
    %3436 = vmatprep.subr.bf16.mxu0 0
    %3437 = vmatpush1.bf16.msra.mxu0 %v2895
    %3438 = vmatprep.subr.bf16.mxu0 0
    %3439 = vmatpush1.bf16.msra.mxu0 %v2896
    %3440 = vmatprep.subr.bf16.mxu0 0
    %3441 = vmatpush1.bf16.msra.mxu0 %v2897
    %3442 = vmatprep.subr.bf16.mxu0 0
    %3443 = vmatpush1.bf16.msra.mxu0 %v2898
    %3444 = vmatprep.subr.bf16.mxu0 0
    %3445 = vmatpush1.bf16.msra.mxu0 %v2899
    %3446 = vmatprep.subr.bf16.mxu0 0
    %3447 = vmatpush1.bf16.msra.mxu0 %v2900
    %3448 = vmatprep.subr.bf16.mxu0 0
    %3449 = vmatpush1.bf16.msra.mxu0 %v2901
    %3450 = vmatprep.subr.bf16.mxu0 0
    %3451 = vmatpush1.bf16.msra.mxu0 %v2902
    %3452 = vmatprep.subr.bf16.mxu0 0
    %3453 = vmatpush1.bf16.msra.mxu0 %v2903
    %3454 = vmatprep.subr.bf16.mxu0 0
    %3455 = vmatpush1.bf16.msra.mxu0 %v2904
    %3456 = vmatprep.subr.bf16.mxu0 0
    %3457 = vmatpush1.bf16.msra.mxu0 %v2905
    %3458 = vmatprep.mubr.bf16.mxu0 %v1669
    %3459 = vmatmul.mubr.bf16.gmra.mrb[0].mxu0 %v1667
    %v3460 = vpop.f32.mrb[0].mxu0
    %v3461 = vadd.f32 %v3421, %v3460
    %v3462 = vpop.f32.mrb[0].mxu0
    %v3463 = vpop.f32.mrb[0].mxu0
    %v3464 = vpop.f32.mrb[0].mxu0
    %3465 = vdwg.mxu0
    %3466 = vmatprep.subr.bf16.mxu0 0
    %3467 = vmatpush1.bf16.msra.mxu0 %v2906
    %3468 = vmatprep.subr.bf16.mxu0 0
    %3469 = vmatpush1.bf16.msra.mxu0 %v2907
    %3470 = vmatprep.subr.bf16.mxu0 0
    %3471 = vmatpush1.bf16.msra.mxu0 %v2908
    %3472 = vmatprep.subr.bf16.mxu0 0
    %3473 = vmatpush1.bf16.msra.mxu0 %v2909
    %3474 = vmatprep.subr.bf16.mxu0 0
    %3475 = vmatpush1.bf16.msra.mxu0 %v2910
    %3476 = vmatprep.subr.bf16.mxu0 0
    %3477 = vmatpush1.bf16.msra.mxu0 %v2911
    %3478 = vmatprep.subr.bf16.mxu0 0
    %3479 = vmatpush1.bf16.msra.mxu0 %v2912
    %3480 = vmatprep.subr.bf16.mxu0 0
    %3481 = vmatpush1.bf16.msra.mxu0 %v2913
    %3482 = vmatprep.subr.bf16.mxu0 0
    %3483 = vmatpush1.bf16.msra.mxu0 %v2914
    %3484 = vmatprep.subr.bf16.mxu0 0
    %3485 = vmatpush1.bf16.msra.mxu0 %v2915
    %3486 = vmatprep.subr.bf16.mxu0 0
    %3487 = vmatpush1.bf16.msra.mxu0 %v2916
    %3488 = vmatprep.subr.bf16.mxu0 0
    %3489 = vmatpush1.bf16.msra.mxu0 %v2917
    %3490 = vmatprep.subr.bf16.mxu0 0
    %3491 = vmatpush1.bf16.msra.mxu0 %v2918
    %3492 = vmatprep.subr.bf16.mxu0 0
    %3493 = vmatpush1.bf16.msra.mxu0 %v2919
    %3494 = vmatprep.subr.bf16.mxu0 0
    %3495 = vmatpush1.bf16.msra.mxu0 %v2920
    %3496 = vmatprep.subr.bf16.mxu0 0
    %3497 = vmatpush1.bf16.msra.mxu0 %v2921
    %3498 = vmatprep.mubr.bf16.mxu0 %v1666
    %3499 = vmatmul.mubr.bf16.gmra.mrb[0].mxu0 %v1652
    %v3500 = vpop.f32.mrb[0].mxu0
    %v3501 = vadd.f32 %v3461, %v3500
    %v3502 = vpop.f32.mrb[0].mxu0
    %v3503 = vpop.f32.mrb[0].mxu0
    %v3504 = vpop.f32.mrb[0].mxu0
    %3505 = vdwg.mxu0
    %3506 = vmatprep.subr.bf16.mxu0 0
    %3507 = vmatpush1.bf16.msra.mxu0 %v2922
    %3508 = vmatprep.subr.bf16.mxu0 0
    %3509 = vmatpush1.bf16.msra.mxu0 %v2923
    %3510 = vmatprep.subr.bf16.mxu0 0
    %3511 = vmatpush1.bf16.msra.mxu0 %v2924
    %3512 = vmatprep.subr.bf16.mxu0 0
    %3513 = vmatpush1.bf16.msra.mxu0 %v2925
    %3514 = vmatprep.subr.bf16.mxu0 0
    %3515 = vmatpush1.bf16.msra.mxu0 %v2926
    %3516 = vmatprep.subr.bf16.mxu0 0
    %3517 = vmatpush1.bf16.msra.mxu0 %v2927
    %3518 = vmatprep.subr.bf16.mxu0 0
    %3519 = vmatpush1.bf16.msra.mxu0 %v2928
    %3520 = vmatprep.subr.bf16.mxu0 0
    %3521 = vmatpush1.bf16.msra.mxu0 %v2929
    %3522 = vmatprep.subr.bf16.mxu0 0
    %3523 = vmatpush1.bf16.msra.mxu0 %v2930
    %3524 = vmatprep.subr.bf16.mxu0 0
    %3525 = vmatpush1.bf16.msra.mxu0 %v2931
    %3526 = vmatprep.subr.bf16.mxu0 0
    %3527 = vmatpush1.bf16.msra.mxu0 %v2932
    %3528 = vmatprep.subr.bf16.mxu0 0
    %3529 = vmatpush1.bf16.msra.mxu0 %v2933
    %3530 = vmatprep.subr.bf16.mxu0 0
    %3531 = vmatpush1.bf16.msra.mxu0 %v2934
    %3532 = vmatprep.subr.bf16.mxu0 0
    %3533 = vmatpush1.bf16.msra.mxu0 %v2935
    %3534 = vmatprep.subr.bf16.mxu0 0
    %3535 = vmatpush1.bf16.msra.mxu0 %v2936
    %3536 = vmatprep.subr.bf16.mxu0 0
    %3537 = vmatpush1.bf16.msra.mxu0 %v2937
    %3538 = vmatprep.mubr.bf16.mxu0 %v1670
    %3539 = vmatmul.mubr.bf16.gmra.mrb[0].mxu0 %v1668
    %v3540 = vpop.f32.mrb[0].mxu0
    %v3541 = vadd.f32 %v3501, %v3540
    %v3542 = vpop.f32.mrb[0].mxu0
    %v3543 = vpop.f32.mrb[0].mxu0
    %v3544 = vpop.f32.mrb[0].mxu0
    %3545 = vdwg.mxu0
    %3546 = vmatprep.subr.bf16.mxu0 0
    %3547 = vmatpush1.bf16.msra.mxu0 %v2938
    %3548 = vmatprep.subr.bf16.mxu0 0
    %3549 = vmatpush1.bf16.msra.mxu0 %v2939
    %3550 = vmatprep.subr.bf16.mxu0 0
    %3551 = vmatpush1.bf16.msra.mxu0 %v2940
    %3552 = vmatprep.subr.bf16.mxu0 0
    %3553 = vmatpush1.bf16.msra.mxu0 %v2941
    %3554 = vmatprep.subr.bf16.mxu0 0
    %3555 = vmatpush1.bf16.msra.mxu0 %v2942
    %3556 = vmatprep.subr.bf16.mxu0 0
    %3557 = vmatpush1.bf16.msra.mxu0 %v2943
    %3558 = vmatprep.subr.bf16.mxu0 0
    %3559 = vmatpush1.bf16.msra.mxu0 %v2944
    %3560 = vmatprep.subr.bf16.mxu0 0
    %3561 = vmatpush1.bf16.msra.mxu0 %v2945
    %3562 = vmatprep.subr.bf16.mxu0 0
    %3563 = vmatpush1.bf16.msra.mxu0 %v2946
    %3564 = vmatprep.subr.bf16.mxu0 0
    %3565 = vmatpush1.bf16.msra.mxu0 %v2947
    %3566 = vmatprep.subr.bf16.mxu0 0
    %3567 = vmatpush1.bf16.msra.mxu0 %v2948
    %3568 = vmatprep.subr.bf16.mxu0 0
    %3569 = vmatpush1.bf16.msra.mxu0 %v2949
    %3570 = vmatprep.subr.bf16.mxu0 0
    %3571 = vmatpush1.bf16.msra.mxu0 %v2950
    %3572 = vmatprep.subr.bf16.mxu0 0
    %3573 = vmatpush1.bf16.msra.mxu0 %v2951
    %3574 = vmatprep.subr.bf16.mxu0 0
    %3575 = vmatpush1.bf16.msra.mxu0 %v2952
    %3576 = vmatprep.subr.bf16.mxu0 0
    %3577 = vmatpush1.bf16.msra.mxu0 %v2953
    %3578 = vmatprep.mubr.bf16.mxu0 %v1708
    %3579 = vmatmul.mubr.bf16.gmra.mrb[0].mxu0 %v1694
    %v3580 = vpop.f32.mrb[0].mxu0
    %v3581 = vadd.f32 %v3541, %v3580
    %v3582 = vpop.f32.mrb[0].mxu0
    %v3583 = vpop.f32.mrb[0].mxu0
    %v3584 = vpop.f32.mrb[0].mxu0
    %3585 = vdwg.mxu0
    %3586 = vmatprep.subr.bf16.mxu0 0
    %3587 = vmatpush1.bf16.msra.mxu0 %v2954
    %3588 = vmatprep.subr.bf16.mxu0 0
    %3589 = vmatpush1.bf16.msra.mxu0 %v2955
    %3590 = vmatprep.subr.bf16.mxu0 0
    %3591 = vmatpush1.bf16.msra.mxu0 %v2956
    %3592 = vmatprep.subr.bf16.mxu0 0
    %3593 = vmatpush1.bf16.msra.mxu0 %v2957
    %3594 = vmatprep.subr.bf16.mxu0 0
    %3595 = vmatpush1.bf16.msra.mxu0 %v2958
    %3596 = vmatprep.subr.bf16.mxu0 0
    %3597 = vmatpush1.bf16.msra.mxu0 %v2959
    %3598 = vmatprep.subr.bf16.mxu0 0
    %3599 = vmatpush1.bf16.msra.mxu0 %v2960
    %3600 = vmatprep.subr.bf16.mxu0 0
    %3601 = vmatpush1.bf16.msra.mxu0 %v2961
    %3602 = vmatprep.subr.bf16.mxu0 0
    %3603 = vmatpush1.bf16.msra.mxu0 %v2962
    %3604 = vmatprep.subr.bf16.mxu0 0
    %3605 = vmatpush1.bf16.msra.mxu0 %v2963
    %3606 = vmatprep.subr.bf16.mxu0 0
    %3607 = vmatpush1.bf16.msra.mxu0 %v2964
    %3608 = vmatprep.subr.bf16.mxu0 0
    %3609 = vmatpush1.bf16.msra.mxu0 %v2965
    %3610 = vmatprep.subr.bf16.mxu0 0
    %3611 = vmatpush1.bf16.msra.mxu0 %v2966
    %3612 = vmatprep.subr.bf16.mxu0 0
    %3613 = vmatpush1.bf16.msra.mxu0 %v2967
    %3614 = vmatprep.subr.bf16.mxu0 0
    %3615 = vmatpush1.bf16.msra.mxu0 %v2968
    %3616 = vmatprep.subr.bf16.mxu0 0
    %3617 = vmatpush1.bf16.msra.mxu0 %v2969
    %3618 = vmatprep.mubr.bf16.mxu0 %v1718
    %3619 = vmatmul.mubr.bf16.gmra.mrb[0].mxu0 %v1716
    %v3620 = vpop.f32.mrb[0].mxu0
    %v3621 = vadd.f32 %v3581, %v3620
    %v3622 = vpop.f32.mrb[0].mxu0
    %v3623 = vpop.f32.mrb[0].mxu0
    %v3624 = vpop.f32.mrb[0].mxu0
    %3625 = vdwg.mxu0
    %3626 = vmatprep.subr.bf16.mxu0 0
    %3627 = vmatpush1.bf16.msra.mxu0 %v2970
    %3628 = vmatprep.subr.bf16.mxu0 0
    %3629 = vmatpush1.bf16.msra.mxu0 %v2971
    %3630 = vmatprep.subr.bf16.mxu0 0
    %3631 = vmatpush1.bf16.msra.mxu0 %v2972
    %3632 = vmatprep.subr.bf16.mxu0 0
    %3633 = vmatpush1.bf16.msra.mxu0 %v2973
    %3634 = vmatprep.subr.bf16.mxu0 0
    %3635 = vmatpush1.bf16.msra.mxu0 %v2974
    %3636 = vmatprep.subr.bf16.mxu0 0
    %3637 = vmatpush1.bf16.msra.mxu0 %v2975
    %3638 = vmatprep.subr.bf16.mxu0 0
    %3639 = vmatpush1.bf16.msra.mxu0 %v2976
    %3640 = vmatprep.subr.bf16.mxu0 0
    %3641 = vmatpush1.bf16.msra.mxu0 %v2977
    %3642 = vmatprep.subr.bf16.mxu0 0
    %3643 = vmatpush1.bf16.msra.mxu0 %v2978
    %3644 = vmatprep.subr.bf16.mxu0 0
    %3645 = vmatpush1.bf16.msra.mxu0 %v2979
    %3646 = vmatprep.subr.bf16.mxu0 0
    %3647 = vmatpush1.bf16.msra.mxu0 %v2980
    %3648 = vmatprep.subr.bf16.mxu0 0
    %3649 = vmatpush1.bf16.msra.mxu0 %v2981
    %3650 = vmatprep.subr.bf16.mxu0 0
    %3651 = vmatpush1.bf16.msra.mxu0 %v2982
    %3652 = vmatprep.subr.bf16.mxu0 0
    %3653 = vmatpush1.bf16.msra.mxu0 %v2983
    %3654 = vmatprep.subr.bf16.mxu0 0
    %3655 = vmatpush1.bf16.msra.mxu0 %v2984
    %3656 = vmatprep.subr.bf16.mxu0 0
    %3657 = vmatpush1.bf16.msra.mxu0 %v2985
    %3658 = vmatprep.mubr.bf16.mxu0 %v1715
    %3659 = vmatmul.mubr.bf16.gmra.mrb[0].mxu0 %v1701
    %v3660 = vpop.f32.mrb[0].mxu0
    %v3661 = vadd.f32 %v3621, %v3660
    %v3662 = vpop.f32.mrb[0].mxu0
    %v3663 = vpop.f32.mrb[0].mxu0
    %v3664 = vpop.f32.mrb[0].mxu0
    %3665 = vdwg.mxu0
    %3666 = vmatprep.subr.bf16.mxu0 0
    %3667 = vmatpush1.bf16.msra.mxu0 %v2986
    %3668 = vmatprep.subr.bf16.mxu0 0
    %3669 = vmatpush1.bf16.msra.mxu0 %v2987
    %3670 = vmatprep.subr.bf16.mxu0 0
    %3671 = vmatpush1.bf16.msra.mxu0 %v2988
    %3672 = vmatprep.subr.bf16.mxu0 0
    %3673 = vmatpush1.bf16.msra.mxu0 %v2989
    %3674 = vmatprep.subr.bf16.mxu0 0
    %3675 = vmatpush1.bf16.msra.mxu0 %v2990
    %3676 = vmatprep.subr.bf16.mxu0 0
    %3677 = vmatpush1.bf16.msra.mxu0 %v2991
    %3678 = vmatprep.subr.bf16.mxu0 0
    %3679 = vmatpush1.bf16.msra.mxu0 %v2992
    %3680 = vmatprep.subr.bf16.mxu0 0
    %3681 = vmatpush1.bf16.msra.mxu0 %v2993
    %3682 = vmatprep.subr.bf16.mxu0 0
    %3683 = vmatpush1.bf16.msra.mxu0 %v2994
    %3684 = vmatprep.subr.bf16.mxu0 0
    %3685 = vmatpush1.bf16.msra.mxu0 %v2995
    %3686 = vmatprep.subr.bf16.mxu0 0
    %3687 = vmatpush1.bf16.msra.mxu0 %v2996
    %3688 = vmatprep.subr.bf16.mxu0 0
    %3689 = vmatpush1.bf16.msra.mxu0 %v2997
    %3690 = vmatprep.subr.bf16.mxu0 0
    %3691 = vmatpush1.bf16.msra.mxu0 %v2998
    %3692 = vmatprep.subr.bf16.mxu0 0
    %3693 = vmatpush1.bf16.msra.mxu0 %v2999
    %3694 = vmatprep.subr.bf16.mxu0 0
    %3695 = vmatpush1.bf16.msra.mxu0 %v3000
    %3696 = vmatprep.subr.bf16.mxu0 0
    %3697 = vmatpush1.bf16.msra.mxu0 %v3001
    %3698 = vmatprep.mubr.bf16.mxu0 %v1719
    %3699 = vmatmul.mubr.bf16.gmra.mrb[0].mxu0 %v1717
    %v3700 = vpop.f32.mrb[0].mxu0
    %v3701 = vadd.f32 %v3661, %v3700
    %v3702 = vpop.f32.mrb[0].mxu0
    %v3703 = vpop.f32.mrb[0].mxu0
    %v3704 = vpop.f32.mrb[0].mxu0
    %3705 = vdwg.mxu0
    %3706 = vmatprep.subr.bf16.mxu0 0
    %3707 = vmatpush1.bf16.msra.mxu0 %v3002
    %3708 = vmatprep.subr.bf16.mxu0 0
    %3709 = vmatpush1.bf16.msra.mxu0 %v3003
    %3710 = vmatprep.subr.bf16.mxu0 0
    %3711 = vmatpush1.bf16.msra.mxu0 %v3004
    %3712 = vmatprep.subr.bf16.mxu0 0
    %3713 = vmatpush1.bf16.msra.mxu0 %v3005
    %3714 = vmatprep.subr.bf16.mxu0 0
    %3715 = vmatpush1.bf16.msra.mxu0 %v3006
    %3716 = vmatprep.subr.bf16.mxu0 0
    %3717 = vmatpush1.bf16.msra.mxu0 %v3007
    %3718 = vmatprep.subr.bf16.mxu0 0
    %3719 = vmatpush1.bf16.msra.mxu0 %v3008
    %3720 = vmatprep.subr.bf16.mxu0 0
    %3721 = vmatpush1.bf16.msra.mxu0 %v3009
    %3722 = vmatprep.subr.bf16.mxu0 0
    %3723 = vmatpush1.bf16.msra.mxu0 %v3010
    %3724 = vmatprep.subr.bf16.mxu0 0
    %3725 = vmatpush1.bf16.msra.mxu0 %v3011
    %3726 = vmatprep.subr.bf16.mxu0 0
    %3727 = vmatpush1.bf16.msra.mxu0 %v3012
    %3728 = vmatprep.subr.bf16.mxu0 0
    %3729 = vmatpush1.bf16.msra.mxu0 %v3013
    %3730 = vmatprep.subr.bf16.mxu0 0
    %3731 = vmatpush1.bf16.msra.mxu0 %v3014
    %3732 = vmatprep.subr.bf16.mxu0 0
    %3733 = vmatpush1.bf16.msra.mxu0 %v3015
    %3734 = vmatprep.subr.bf16.mxu0 0
    %3735 = vmatpush1.bf16.msra.mxu0 %v3016
    %3736 = vmatprep.subr.bf16.mxu0 0
    %3737 = vmatpush1.bf16.msra.mxu0 %v3017
    %3738 = vmatprep.mubr.bf16.mxu0 %v1757
    %3739 = vmatmul.mubr.bf16.gmra.mrb[0].mxu0 %v1743
    %v3740 = vpop.f32.mrb[0].mxu0
    %v3741 = vadd.f32 %v3701, %v3740
    %v3742 = vpop.f32.mrb[0].mxu0
    %v3743 = vpop.f32.mrb[0].mxu0
    %v3744 = vpop.f32.mrb[0].mxu0
    %3745 = vdwg.mxu0
    %3746 = vmatprep.subr.bf16.mxu0 0
    %3747 = vmatpush1.bf16.msra.mxu0 %v3018
    %3748 = vmatprep.subr.bf16.mxu0 0
    %3749 = vmatpush1.bf16.msra.mxu0 %v3019
    %3750 = vmatprep.subr.bf16.mxu0 0
    %3751 = vmatpush1.bf16.msra.mxu0 %v3020
    %3752 = vmatprep.subr.bf16.mxu0 0
    %3753 = vmatpush1.bf16.msra.mxu0 %v3021
    %3754 = vmatprep.subr.bf16.mxu0 0
    %3755 = vmatpush1.bf16.msra.mxu0 %v3022
    %3756 = vmatprep.subr.bf16.mxu0 0
    %3757 = vmatpush1.bf16.msra.mxu0 %v3023
    %3758 = vmatprep.subr.bf16.mxu0 0
    %3759 = vmatpush1.bf16.msra.mxu0 %v3024
    %3760 = vmatprep.subr.bf16.mxu0 0
    %3761 = vmatpush1.bf16.msra.mxu0 %v3025
    %3762 = vmatprep.subr.bf16.mxu0 0
    %3763 = vmatpush1.bf16.msra.mxu0 %v3026
    %3764 = vmatprep.subr.bf16.mxu0 0
    %3765 = vmatpush1.bf16.msra.mxu0 %v3027
    %3766 = vmatprep.subr.bf16.mxu0 0
    %3767 = vmatpush1.bf16.msra.mxu0 %v3028
    %3768 = vmatprep.subr.bf16.mxu0 0
    %3769 = vmatpush1.bf16.msra.mxu0 %v3029
    %3770 = vmatprep.subr.bf16.mxu0 0
    %3771 = vmatpush1.bf16.msra.mxu0 %v3030
    %3772 = vmatprep.subr.bf16.mxu0 0
    %3773 = vmatpush1.bf16.msra.mxu0 %v3031
    %3774 = vmatprep.subr.bf16.mxu0 0
    %3775 = vmatpush1.bf16.msra.mxu0 %v3032
    %3776 = vmatprep.subr.bf16.mxu0 0
    %3777 = vmatpush1.bf16.msra.mxu0 %v3033
    %3778 = vmatprep.mubr.bf16.mxu0 %v1767
    %3779 = vmatmul.mubr.bf16.gmra.mrb[0].mxu0 %v1765
    %v3780 = vpop.f32.mrb[0].mxu0
    %v3781 = vadd.f32 %v3741, %v3780
    %v3782 = vpop.f32.mrb[0].mxu0
    %v3783 = vpop.f32.mrb[0].mxu0
    %v3784 = vpop.f32.mrb[0].mxu0
    %3785 = vdwg.mxu0
    %3786 = vmatprep.subr.bf16.mxu0 0
    %3787 = vmatpush1.bf16.msra.mxu0 %v3034
    %3788 = vmatprep.subr.bf16.mxu0 0
    %3789 = vmatpush1.bf16.msra.mxu0 %v3035
    %3790 = vmatprep.subr.bf16.mxu0 0
    %3791 = vmatpush1.bf16.msra.mxu0 %v3036
    %3792 = vmatprep.subr.bf16.mxu0 0
    %3793 = vmatpush1.bf16.msra.mxu0 %v3037
    %3794 = vmatprep.subr.bf16.mxu0 0
    %3795 = vmatpush1.bf16.msra.mxu0 %v3038
    %3796 = vmatprep.subr.bf16.mxu0 0
    %3797 = vmatpush1.bf16.msra.mxu0 %v3039
    %3798 = vmatprep.subr.bf16.mxu0 0
    %3799 = vmatpush1.bf16.msra.mxu0 %v3040
    %3800 = vmatprep.subr.bf16.mxu0 0
    %3801 = vmatpush1.bf16.msra.mxu0 %v3041
    %3802 = vmatprep.subr.bf16.mxu0 0
    %3803 = vmatpush1.bf16.msra.mxu0 %v3042
    %3804 = vmatprep.subr.bf16.mxu0 0
    %3805 = vmatpush1.bf16.msra.mxu0 %v3043
    %3806 = vmatprep.subr.bf16.mxu0 0
    %3807 = vmatpush1.bf16.msra.mxu0 %v3044
    %3808 = vmatprep.subr.bf16.mxu0 0
    %3809 = vmatpush1.bf16.msra.mxu0 %v3045
    %3810 = vmatprep.subr.bf16.mxu0 0
    %3811 = vmatpush1.bf16.msra.mxu0 %v3046
    %3812 = vmatprep.subr.bf16.mxu0 0
    %3813 = vmatpush1.bf16.msra.mxu0 %v3047
    %3814 = vmatprep.subr.bf16.mxu0 0
    %3815 = vmatpush1.bf16.msra.mxu0 %v3048
    %3816 = vmatprep.subr.bf16.mxu0 0
    %3817 = vmatpush1.bf16.msra.mxu0 %v3049
    %3818 = vmatprep.mubr.bf16.mxu0 %v1764
    %3819 = vmatmul.mubr.bf16.gmra.mrb[0].mxu0 %v1750
    %v3820 = vpop.f32.mrb[0].mxu0
    %v3821 = vadd.f32 %v3781, %v3820
    %v3822 = vpop.f32.mrb[0].mxu0
    %v3823 = vpop.f32.mrb[0].mxu0
    %v3824 = vpop.f32.mrb[0].mxu0
    %3825 = vdwg.mxu0
    %3826 = vmatprep.subr.bf16.mxu0 0
    %3827 = vmatpush1.bf16.msra.mxu0 %v3050
    %3828 = vmatprep.subr.bf16.mxu0 0
    %3829 = vmatpush1.bf16.msra.mxu0 %v3051
    %3830 = vmatprep.subr.bf16.mxu0 0
    %3831 = vmatpush1.bf16.msra.mxu0 %v3052
    %3832 = vmatprep.subr.bf16.mxu0 0
    %3833 = vmatpush1.bf16.msra.mxu0 %v3053
    %3834 = vmatprep.subr.bf16.mxu0 0
    %3835 = vmatpush1.bf16.msra.mxu0 %v3054
    %3836 = vmatprep.subr.bf16.mxu0 0
    %3837 = vmatpush1.bf16.msra.mxu0 %v3055
    %3838 = vmatprep.subr.bf16.mxu0 0
    %3839 = vmatpush1.bf16.msra.mxu0 %v3056
    %3840 = vmatprep.subr.bf16.mxu0 0
    %3841 = vmatpush1.bf16.msra.mxu0 %v3057
    %3842 = vmatprep.subr.bf16.mxu0 0
    %3843 = vmatpush1.bf16.msra.mxu0 %v3058
    %3844 = vmatprep.subr.bf16.mxu0 0
    %3845 = vmatpush1.bf16.msra.mxu0 %v3059
    %3846 = vmatprep.subr.bf16.mxu0 0
    %3847 = vmatpush1.bf16.msra.mxu0 %v3060
    %3848 = vmatprep.subr.bf16.mxu0 0
    %3849 = vmatpush1.bf16.msra.mxu0 %v3061
    %3850 = vmatprep.subr.bf16.mxu0 0
    %3851 = vmatpush1.bf16.msra.mxu0 %v3062
    %3852 = vmatprep.subr.bf16.mxu0 0
    %3853 = vmatpush1.bf16.msra.mxu0 %v3063
    %3854 = vmatprep.subr.bf16.mxu0 0
    %3855 = vmatpush1.bf16.msra.mxu0 %v3064
    %3856 = vmatprep.subr.bf16.mxu0 0
    %3857 = vmatpush1.bf16.msra.mxu0 %v3065
    %3858 = vmatprep.mubr.bf16.mxu0 %v1768
    %3859 = vmatmul.mubr.bf16.gmra.mrb[0].mxu0 %v1766
    %v3860 = vpop.f32.mrb[0].mxu0
    %v3861 = vadd.f32 %v3821, %v3860
    %v3862 = vpop.f32.mrb[0].mxu0
    %v3863 = vpop.f32.mrb[0].mxu0
    %v3864 = vpop.f32.mrb[0].mxu0
    %3865 = vdwg.mxu0
    %3866 = vmatprep.subr.bf16.mxu0 0
    %3867 = vmatpush1.bf16.msra.mxu0 %v3066
    %3868 = vmatprep.subr.bf16.mxu0 0
    %3869 = vmatpush1.bf16.msra.mxu0 %v3067
    %3870 = vmatprep.subr.bf16.mxu0 0
    %3871 = vmatpush1.bf16.msra.mxu0 %v3068
    %3872 = vmatprep.subr.bf16.mxu0 0
    %3873 = vmatpush1.bf16.msra.mxu0 %v3069
    %3874 = vmatprep.subr.bf16.mxu0 0
    %3875 = vmatpush1.bf16.msra.mxu0 %v3070
    %3876 = vmatprep.subr.bf16.mxu0 0
    %3877 = vmatpush1.bf16.msra.mxu0 %v3071
    %3878 = vmatprep.subr.bf16.mxu0 0
    %3879 = vmatpush1.bf16.msra.mxu0 %v3072
    %3880 = vmatprep.subr.bf16.mxu0 0
    %3881 = vmatpush1.bf16.msra.mxu0 %v3073
    %3882 = vmatprep.subr.bf16.mxu0 0
    %3883 = vmatpush1.bf16.msra.mxu0 %v3074
    %3884 = vmatprep.subr.bf16.mxu0 0
    %3885 = vmatpush1.bf16.msra.mxu0 %v3075
    %3886 = vmatprep.subr.bf16.mxu0 0
    %3887 = vmatpush1.bf16.msra.mxu0 %v3076
    %3888 = vmatprep.subr.bf16.mxu0 0
    %3889 = vmatpush1.bf16.msra.mxu0 %v3077
    %3890 = vmatprep.subr.bf16.mxu0 0
    %3891 = vmatpush1.bf16.msra.mxu0 %v3078
    %3892 = vmatprep.subr.bf16.mxu0 0
    %3893 = vmatpush1.bf16.msra.mxu0 %v3079
    %3894 = vmatprep.subr.bf16.mxu0 0
    %3895 = vmatpush1.bf16.msra.mxu0 %v3080
    %3896 = vmatprep.subr.bf16.mxu0 0
    %3897 = vmatpush1.bf16.msra.mxu0 %v3081
    %3898 = vmatprep.mubr.bf16.mxu0 %v1806
    %3899 = vmatmul.mubr.bf16.gmra.mrb[0].mxu0 %v1792
    %v3900 = vpop.f32.mrb[0].mxu0
    %v3901 = vadd.f32 %v3861, %v3900
    %v3902 = vpop.f32.mrb[0].mxu0
    %v3903 = vpop.f32.mrb[0].mxu0
    %v3904 = vpop.f32.mrb[0].mxu0
    %3905 = vdwg.mxu0
    %3906 = vmatprep.subr.bf16.mxu0 0
    %3907 = vmatpush1.bf16.msra.mxu0 %v3082
    %3908 = vmatprep.subr.bf16.mxu0 0
    %3909 = vmatpush1.bf16.msra.mxu0 %v3083
    %3910 = vmatprep.subr.bf16.mxu0 0
    %3911 = vmatpush1.bf16.msra.mxu0 %v3084
    %3912 = vmatprep.subr.bf16.mxu0 0
    %3913 = vmatpush1.bf16.msra.mxu0 %v3085
    %3914 = vmatprep.subr.bf16.mxu0 0
    %3915 = vmatpush1.bf16.msra.mxu0 %v3086
    %3916 = vmatprep.subr.bf16.mxu0 0
    %3917 = vmatpush1.bf16.msra.mxu0 %v3087
    %3918 = vmatprep.subr.bf16.mxu0 0
    %3919 = vmatpush1.bf16.msra.mxu0 %v3088
    %3920 = vmatprep.subr.bf16.mxu0 0
    %3921 = vmatpush1.bf16.msra.mxu0 %v3089
    %3922 = vmatprep.subr.bf16.mxu0 0
    %3923 = vmatpush1.bf16.msra.mxu0 %v3090
    %3924 = vmatprep.subr.bf16.mxu0 0
    %3925 = vmatpush1.bf16.msra.mxu0 %v3091
    %3926 = vmatprep.subr.bf16.mxu0 0
    %3927 = vmatpush1.bf16.msra.mxu0 %v3092
    %3928 = vmatprep.subr.bf16.mxu0 0
    %3929 = vmatpush1.bf16.msra.mxu0 %v3093
    %3930 = vmatprep.subr.bf16.mxu0 0
    %3931 = vmatpush1.bf16.msra.mxu0 %v3094
    %3932 = vmatprep.subr.bf16.mxu0 0
    %3933 = vmatpush1.bf16.msra.mxu0 %v3095
    %3934 = vmatprep.subr.bf16.mxu0 0
    %3935 = vmatpush1.bf16.msra.mxu0 %v3096
    %3936 = vmatprep.subr.bf16.mxu0 0
    %3937 = vmatpush1.bf16.msra.mxu0 %v3097
    %3938 = vmatprep.mubr.bf16.mxu0 %v1816
    %3939 = vmatmul.mubr.bf16.gmra.mrb[0].mxu0 %v1814
    %v3940 = vpop.f32.mrb[0].mxu0
    %v3941 = vadd.f32 %v3901, %v3940
    %v3942 = vpop.f32.mrb[0].mxu0
    %v3943 = vpop.f32.mrb[0].mxu0
    %v3944 = vpop.f32.mrb[0].mxu0
    %3945 = vdwg.mxu0
    %3946 = vmatprep.subr.bf16.mxu0 0
    %3947 = vmatpush1.bf16.msra.mxu0 %v3098
    %3948 = vmatprep.subr.bf16.mxu0 0
    %3949 = vmatpush1.bf16.msra.mxu0 %v3099
    %3950 = vmatprep.subr.bf16.mxu0 0
    %3951 = vmatpush1.bf16.msra.mxu0 %v3100
    %3952 = vmatprep.subr.bf16.mxu0 0
    %3953 = vmatpush1.bf16.msra.mxu0 %v3101
    %3954 = vmatprep.subr.bf16.mxu0 0
    %3955 = vmatpush1.bf16.msra.mxu0 %v3102
    %3956 = vmatprep.subr.bf16.mxu0 0
    %3957 = vmatpush1.bf16.msra.mxu0 %v3103
    %3958 = vmatprep.subr.bf16.mxu0 0
    %3959 = vmatpush1.bf16.msra.mxu0 %v3104
    %3960 = vmatprep.subr.bf16.mxu0 0
    %3961 = vmatpush1.bf16.msra.mxu0 %v3105
    %3962 = vmatprep.subr.bf16.mxu0 0
    %3963 = vmatpush1.bf16.msra.mxu0 %v3106
    %3964 = vmatprep.subr.bf16.mxu0 0
    %3965 = vmatpush1.bf16.msra.mxu0 %v3107
    %3966 = vmatprep.subr.bf16.mxu0 0
    %3967 = vmatpush1.bf16.msra.mxu0 %v3108
    %3968 = vmatprep.subr.bf16.mxu0 0
    %3969 = vmatpush1.bf16.msra.mxu0 %v3109
    %3970 = vmatprep.subr.bf16.mxu0 0
    %3971 = vmatpush1.bf16.msra.mxu0 %v3110
    %3972 = vmatprep.subr.bf16.mxu0 0
    %3973 = vmatpush1.bf16.msra.mxu0 %v3111
    %3974 = vmatprep.subr.bf16.mxu0 0
    %3975 = vmatpush1.bf16.msra.mxu0 %v3112
    %3976 = vmatprep.subr.bf16.mxu0 0
    %3977 = vmatpush1.bf16.msra.mxu0 %v3113
    %3978 = vmatprep.mubr.bf16.mxu0 %v1813
    %3979 = vmatmul.mubr.bf16.gmra.mrb[0].mxu0 %v1799
    %v3980 = vpop.f32.mrb[0].mxu0
    %v3981 = vadd.f32 %v3941, %v3980
    %v3982 = vpop.f32.mrb[0].mxu0
    %v3983 = vpop.f32.mrb[0].mxu0
    %v3984 = vpop.f32.mrb[0].mxu0
    %3985 = vdwg.mxu0
    %3986 = vmatprep.subr.bf16.mxu0 0
    %3987 = vmatpush1.bf16.msra.mxu0 %v3114
    %3988 = vmatprep.subr.bf16.mxu0 0
    %3989 = vmatpush1.bf16.msra.mxu0 %v3115
    %3990 = vmatprep.subr.bf16.mxu0 0
    %3991 = vmatpush1.bf16.msra.mxu0 %v3116
    %3992 = vmatprep.subr.bf16.mxu0 0
    %3993 = vmatpush1.bf16.msra.mxu0 %v3117
    %3994 = vmatprep.subr.bf16.mxu0 0
    %3995 = vmatpush1.bf16.msra.mxu0 %v3118
    %3996 = vmatprep.subr.bf16.mxu0 0
    %3997 = vmatpush1.bf16.msra.mxu0 %v3119
    %3998 = vmatprep.subr.bf16.mxu0 0
    %3999 = vmatpush1.bf16.msra.mxu0 %v3120
    %4000 = vmatprep.subr.bf16.mxu0 0
    %4001 = vmatpush1.bf16.msra.mxu0 %v3121
    %4002 = vmatprep.subr.bf16.mxu0 0
    %4003 = vmatpush1.bf16.msra.mxu0 %v3122
    %4004 = vmatprep.subr.bf16.mxu0 0
    %4005 = vmatpush1.bf16.msra.mxu0 %v3123
    %4006 = vmatprep.subr.bf16.mxu0 0
    %4007 = vmatpush1.bf16.msra.mxu0 %v3124
    %4008 = vmatprep.subr.bf16.mxu0 0
    %4009 = vmatpush1.bf16.msra.mxu0 %v3125
    %4010 = vmatprep.subr.bf16.mxu0 0
    %4011 = vmatpush1.bf16.msra.mxu0 %v3126
    %4012 = vmatprep.subr.bf16.mxu0 0
    %4013 = vmatpush1.bf16.msra.mxu0 %v3127
    %4014 = vmatprep.subr.bf16.mxu0 0
    %4015 = vmatpush1.bf16.msra.mxu0 %v3128
    %4016 = vmatprep.subr.bf16.mxu0 0
    %4017 = vmatpush1.bf16.msra.mxu0 %v3129
    %4018 = vmatprep.mubr.bf16.mxu0 %v1817
    %4019 = vmatmul.mubr.bf16.gmra.mrb[0].mxu0 %v1815
    %v4020 = vpop.f32.mrb[0].mxu0
    %v4021 = vadd.f32 %v3981, %v4020
    %v4022 = vpop.f32.mrb[0].mxu0
    %v4023 = vpop.f32.mrb[0].mxu0
    %v4024 = vpop.f32.mrb[0].mxu0
    %4025 = vdwg.mxu0
    %v4026 = vld [vmem:[%s4] sm:$0x1]
    %v4028 = vlaneseq
    %v4029 = vshrl.u32 %v4028, 7
    %v4030 = vsub.s32 0, %v4029
    %v4031 = vrot.slane %v4026, %v4030
    %v4033 = vadd.f32 %v4021, %v4031
    %vm4034 = vcmask 33792
    %4035 = vst.msk [vmem:[#allocation2] sm:$0x3] %vm4034, %v4033
    // Predicated region
    $region22: #{semantic_net_forward.11} parent=1 // pred_check
      _
    $region23: #{semantic_net_forward.11} parent=1 // pred_check_branch
      %4037 = sbr.rel (0) target = $region25
    $region24: #{semantic_net_forward.11} parent=1 // pred_region
      %s4039 = ssub.s32 32, 32
      %4040 = vsyncadd [#allocation3], %s4039
      %s4042 = sshll.u32 [#allocation2], 4
      %s4043 = int_to_ptr.vmem [resolvable:$true] %s4042
      %4045 = dma.vmem_to_hbm [thread:$0]  %s4043, 32, %s5, [#allocation3]
    $region25: #{semantic_net_forward.11} parent=1 // pred_fallthru
      _
    // Predicated region
    $region26: #{semantic_net_forward.11} parent=1 // pred_check
      _
    $region27: #{semantic_net_forward.11} parent=1 // pred_check_branch
      %4047 = sbr.rel (0) target = $region29
    $region28: #{semantic_net_forward.11} parent=1 // pred_region
      %4048 = dma.done [#allocation3], 32
    $region29: #{semantic_net_forward.11} parent=1 // pred_fallthru
      _
    %4049 = vsyncpa [#allocation3], 1

</llo_original>
